<compile_context>
chip_gen: v7x
topology: tpu7x:2x2x1
jax: 0.10.0
libtpu: 0.0.40
codegen_flags: <defaults>
</compile_context>

<pallas_src>
import functools
import math

import jax
import jax.numpy as jnp
from jax.experimental import pallas as pl
from jax.experimental.pallas import tpu as pltpu

TEXT_SIZE = 300      # d_model of the text transformer (fixed by the module)
D_PAD = 384          # padded d_model: 3 x 128 lanes
NHEAD = 5            # TransformerEncoderLayer nhead
HEAD_DIM = 60        # 300 / 5
HEAD_PAD = 64        # padded head dim
HP = NHEAD * HEAD_PAD            # 320  (padded width of q / k / v)
NUM_LAYERS = 6       # TransformerEncoder num_layers
DIM_FF = 2048        # PyTorch TransformerEncoderLayer default dim_feedforward
OUT_FEAT = 32        # config['model_params']['out_feat'] (synthetic choice)
PROJ_HIDDEN = 1024   # proj_text hidden width
LN_EPS = 1e-5


# ----------------------------- fused per-layer kernel -----------------------------

def _layer_stack_kernel(x_ref, wqkv_ref, bqkv_ref, wo_ref, bo_ref,
                        ln1g_ref, ln1b_ref, w1_ref, fb1_ref,
                        w2_ref, fb2_ref, ln2g_ref, ln2b_ref,
                        o_ref, *, n_batch, scale, d_true):
    """One grid step = one full nn.TransformerEncoderLayer (post-norm, ReLU FFN).

    The running activation lives in o_ref (constant output block index across
    the layer grid axis -> VMEM-resident accumulator)."""
    layer = pl.program_id(0)

    @pl.when(layer == 0)
    def _():
        o_ref[...] = x_ref[...]

    x = o_ref[...]                                              # (M, D_PAD)

    # ---- packed QKV projection (one MXU matmul) ----
    qkv = jnp.dot(x, wqkv_ref[...],
                  preferred_element_type=jnp.float32) + bqkv_ref[...]   # (M, 3*HP)

    # ---- multi-head self-attention (heads = static lane slices) ----
    m = x.shape[0]
    rows = jax.lax.broadcasted_iota(jnp.int32, (m, m), 0)
    cols = jax.lax.broadcasted_iota(jnp.int32, (m, m), 1)
    # rows are ordered (seq, batch); attention runs within each batch element:
    same_batch = (rows % n_batch) == (cols % n_batch)

    head_outs = []
    for h in range(NHEAD):
        q = qkv[:, h * HEAD_PAD:(h + 1) * HEAD_PAD] * scale
        k = qkv[:, HP + h * HEAD_PAD:HP + (h + 1) * HEAD_PAD]
        v = qkv[:, 2 * HP + h * HEAD_PAD:2 * HP + (h + 1) * HEAD_PAD]
        s = jax.lax.dot_general(q, k, (((1,), (1,)), ((), ())),
                                preferred_element_type=jnp.float32)     # (M, M)
        s = jnp.where(same_batch, s, -1e30)
        s = s - jnp.max(s, axis=-1, keepdims=True)
        p = jnp.exp(s)
        p = p * pl.reciprocal(jnp.sum(p, axis=-1, keepdims=True), approx=True)
        head_outs.append(jnp.dot(p, v, preferred_element_type=jnp.float32))
    attn = jnp.concatenate(head_outs, axis=1)                           # (M, HP)
    attn = jnp.dot(attn, wo_ref[...],
                   preferred_element_type=jnp.float32) + bo_ref[...]    # (M, D_PAD)

    # ---- padding-aware LayerNorm (stats over the true 300 features;
    #      padded lanes are exactly zero so sums over 384 == sums over 300) ----
    def layer_norm(v, g, b):
        inv_d = 1.0 / d_true
        mu = jnp.sum(v, axis=-1, keepdims=True) * inv_d
        ms = jnp.sum(v * v, axis=-1, keepdims=True) * inv_d
        inv = jax.lax.rsqrt(ms - mu * mu + LN_EPS)
        return (v - mu) * inv * g + b

    y = layer_norm(x + attn, ln1g_ref[...], ln1b_ref[...])              # norm1

    # ---- FFN: linear1 + ReLU + linear2, intermediate stays in VMEM ----
    ff = jnp.dot(y, w1_ref[...], preferred_element_type=jnp.float32) + fb1_ref[...]
    ff = jnp.maximum(ff, 0.0)
    ff = jnp.dot(ff, w2_ref[...], preferred_element_type=jnp.float32) + fb2_ref[...]

    o_ref[...] = layer_norm(y + ff, ln2g_ref[...], ln2b_ref[...])       # norm2


def run_layer_stack(x_flat, lw, *, n_batch):
    """x_flat: (M, D_PAD) activation (rows ordered seq-major), lw: stacked weights."""
    m = x_flat.shape[0]
    num_layers = lw['wqkv'].shape[0]

    def w_spec(a, b):
        # Per-layer weight slab: leading layer dim squeezed, indexed by grid id.
        return pl.BlockSpec((None, a, b), lambda l: (l, 0, 0))

    act_spec = pl.BlockSpec((m, D_PAD), lambda l: (0, 0))   # resident across layers

    kernel = functools.partial(
        _layer_stack_kernel,
        n_batch=n_batch,
        scale=1.0 / math.sqrt(HEAD_DIM),   # true head_dim=60, as in PyTorch
        d_true=float(TEXT_SIZE))

    return pl.pallas_call(
        kernel,
        out_shape=jax.ShapeDtypeStruct((m, D_PAD), jnp.float32),
        grid=(num_layers,),
        in_specs=[
            act_spec,
            w_spec(D_PAD, 3 * HP),      # wqkv  (packed, head-padded)
            w_spec(1, 3 * HP),          # bqkv
            w_spec(HP, D_PAD),          # wo
            w_spec(1, D_PAD),           # bo
            w_spec(1, D_PAD),           # ln1 gamma
            w_spec(1, D_PAD),           # ln1 beta
            w_spec(D_PAD, DIM_FF),      # w1
            w_spec(1, DIM_FF),          # b1
            w_spec(DIM_FF, D_PAD),      # w2
            w_spec(1, D_PAD),           # b2
            w_spec(1, D_PAD),           # ln2 gamma
            w_spec(1, D_PAD),           # ln2 beta
        ],
        out_specs=act_spec,
        compiler_params=pltpu.CompilerParams(
            dimension_semantics=("arbitrary",),
            vmem_limit_bytes=32 * 1024 * 1024),
    )(x_flat, lw['wqkv'], lw['bqkv'], lw['wo'], lw['bo'],
      lw['ln1g'], lw['ln1b'], lw['w1'], lw['fb1'],
      lw['w2'], lw['fb2'], lw['ln2g'], lw['ln2b'])


# ----------------------------- fused epilogue kernel -----------------------------

def _epilogue_kernel(x_ref, wtl_ref, btl_ref, wp1_ref, bp1_ref, wp2_ref, bp2_ref,
                     tf_ref, proj_ref, *, seq_len, n_batch):
    """feat.mean(0) + text_linear + proj_text (Linear/ReLU/Linear), all fused."""
    x = x_ref[...]                                              # (seq_len*n_batch, D_PAD)
    acc = x[0:n_batch, :]
    for l in range(1, seq_len):
        acc = acc + x[l * n_batch:(l + 1) * n_batch, :]
    feat = acc * (1.0 / seq_len)                                # (n_batch, D_PAD)
    tf = jnp.dot(feat, wtl_ref[...],
                 preferred_element_type=jnp.float32) + btl_ref[...]
    hid = jnp.maximum(
        jnp.dot(tf, wp1_ref[...], preferred_element_type=jnp.float32) + bp1_ref[...],
        0.0)
    proj = jnp.dot(hid, wp2_ref[...],
                   preferred_element_type=jnp.float32) + bp2_ref[...]
    tf_ref[...] = tf
    proj_ref[...] = proj


def run_epilogue(y, ep, *, seq_len, n_batch):
    vspec = pl.BlockSpec(memory_space=pltpu.MemorySpace.VMEM)
    return pl.pallas_call(
        functools.partial(_epilogue_kernel, seq_len=seq_len, n_batch=n_batch),
        out_shape=(jax.ShapeDtypeStruct((n_batch, OUT_FEAT), jnp.float32),
                   jax.ShapeDtypeStruct((n_batch, OUT_FEAT), jnp.float32)),
        in_specs=[vspec] * 7,
        out_specs=(vspec, vspec),
    )(y, ep['wtl'], ep['btl'], ep['wp1'], ep['bp1'], ep['wp2'], ep['bp2'])


# ----------------------------- parameter packing -----------------------------

def build_positional_encoding(d_model, max_len=64):
    position = jnp.arange(max_len, dtype=jnp.float32)[:, None]
    div_term = jnp.exp(jnp.arange(0, d_model, 2, dtype=jnp.float32)
                       * (-math.log(10000.0) / d_model))
    pe = jnp.zeros((max_len, d_model), dtype=jnp.float32)
    pe = pe.at[:, 0::2].set(jnp.sin(position * div_term))
    pe = pe.at[:, 1::2].set(jnp.cos(position * div_term))
    return pe[:, None, :]   # (max_len, 1, d_model) == pe.unsqueeze(0).transpose(0,1)


def _pad_head_cols(w):
    # (300, 300) -> (384, 320): zero-pad input rows, per-head cols 60 -> 64.
    w = jnp.pad(w, ((0, D_PAD - TEXT_SIZE), (0, 0)))
    w = w.reshape(D_PAD, NHEAD, HEAD_DIM)
    w = jnp.pad(w, ((0, 0), (0, 0), (0, HEAD_PAD - HEAD_DIM)))
    return w.reshape(D_PAD, HP)


def _pad_head_bias(b):
    b = b.reshape(NHEAD, HEAD_DIM)
    b = jnp.pad(b, ((0, 0), (0, HEAD_PAD - HEAD_DIM)))
    return b.reshape(HP)


def _pad_vec(b):
    return jnp.pad(b, (0, D_PAD - TEXT_SIZE))[None, :]


def init_params(key):
    """Deterministic synthetic init (PyTorch-Linear-style uniform fan-in bounds),
    padded/packed into the lane-dense layout consumed by the fused kernels.
    fp32 kept for fidelity with the PyTorch reference (bf16 weights would halve
    HBM traffic on v6e/v7x at a small numerics cost)."""
    def dense(k, fan_in, fan_out):
        kw, kb = jax.random.split(k)
        bound = 1.0 / math.sqrt(fan_in)
        w = jax.random.uniform(kw, (fan_in, fan_out), jnp.float32, -bound, bound)
        b = jax.random.uniform(kb, (fan_out,), jnp.float32, -bound, bound)
        return w, b

    keys = jax.random.split(key, NUM_LAYERS + 3)
    names = ('wqkv', 'bqkv', 'wo', 'bo', 'ln1g', 'ln1b',
             'w1', 'fb1', 'w2', 'fb2', 'ln2g', 'ln2b')
    packed = {n: [] for n in names}
    for i in range(NUM_LAYERS):
        ks = jax.random.split(keys[i], 6)
        wq, bq = dense(ks[0], TEXT_SIZE, TEXT_SIZE)
        wk, bk = dense(ks[1], TEXT_SIZE, TEXT_SIZE)
        wv, bv = dense(ks[2], TEXT_SIZE, TEXT_SIZE)
        wo, bo = dense(ks[3], TEXT_SIZE, TEXT_SIZE)
        w1, b1 = dense(ks[4], TEXT_SIZE, DIM_FF)
        w2, b2 = dense(ks[5], DIM_FF, TEXT_SIZE)
        ln_g = jnp.ones((TEXT_SIZE,), jnp.float32)
        ln_b = jnp.zeros((TEXT_SIZE,), jnp.float32)

        packed['wqkv'].append(jnp.concatenate(
            [_pad_head_cols(wq), _pad_head_cols(wk), _pad_head_cols(wv)], axis=1))
        packed['bqkv'].append(jnp.concatenate(
            [_pad_head_bias(bq), _pad_head_bias(bk), _pad_head_bias(bv)])[None, :])
        wo_p = wo.reshape(NHEAD, HEAD_DIM, TEXT_SIZE)
        wo_p = jnp.pad(wo_p, ((0, 0), (0, HEAD_PAD - HEAD_DIM),
                              (0, D_PAD - TEXT_SIZE)))
        packed['wo'].append(wo_p.reshape(HP, D_PAD))
        packed['bo'].append(_pad_vec(bo))
        packed['ln1g'].append(_pad_vec(ln_g))    # gamma padded with zeros
        packed['ln1b'].append(_pad_vec(ln_b))
        packed['w1'].append(jnp.pad(w1, ((0, D_PAD - TEXT_SIZE), (0, 0))))
        packed['fb1'].append(b1[None, :])
        packed['w2'].append(jnp.pad(w2, ((0, 0), (0, D_PAD - TEXT_SIZE))))
        packed['fb2'].append(_pad_vec(b2))
        packed['ln2g'].append(_pad_vec(ln_g))
        packed['ln2b'].append(_pad_vec(ln_b))

    layers = {n: jnp.stack(v) for n, v in packed.items()}

    tl_w, tl_b = dense(keys[NUM_LAYERS], TEXT_SIZE, OUT_FEAT)
    p1_w, p1_b = dense(keys[NUM_LAYERS + 1], OUT_FEAT, PROJ_HIDDEN)
    p2_w, p2_b = dense(keys[NUM_LAYERS + 2], PROJ_HIDDEN, OUT_FEAT)
    epilogue = dict(
        wtl=jnp.pad(tl_w, ((0, D_PAD - TEXT_SIZE), (0, 0))),
        btl=tl_b[None, :],
        wp1=p1_w, bp1=p1_b[None, :],
        wp2=p2_w, bp2=p2_b[None, :])

    return dict(pe=build_positional_encoding(TEXT_SIZE),
                layers=layers, epilogue=epilogue)


# ----------------------------- forward -----------------------------

def encoder_forward(params, input_text):
    """Encoder.forward, text branch only. Returns (proj_feat, basic_feat)."""
    S, B, D = input_text.shape
    # PositionalEncoding (dropout is identity in eval mode); tiny, XLA-fused.
    x = input_text + params['pe'][:S]
    # extract_features(text_feat.permute(1, 0, 2), self.trnn1):
    x = jnp.transpose(x, (1, 0, 2))                # (B, S, 300): attention seq = B
    seq_len, n_batch = B, S
    x = x.reshape(seq_len * n_batch, D)
    x = jnp.pad(x, ((0, 0), (0, D_PAD - D)))       # lane-dense 300 -> 384 (zeros)

    y = run_layer_stack(x, params['layers'], n_batch=n_batch)       # 6 fused layers
    # feat.mean(0) -> dropout(id) -> text_linear -> proj_text, all fused:
    tf, tf_proj = run_epilogue(y, params['epilogue'],
                               seq_len=seq_len, n_batch=n_batch)

    proj_feat = [tf_proj]
    basic_feat = [tf]
    # TODO(synk): audio (TCN), graph (STGCN), video (VideoModel) branches and
    # prediction_head depend on external modules not provided; omitted.
    return proj_feat, basic_feat


if __name__ == "__main__":
    key = jax.random.PRNGKey(0)
    kp, kx = jax.random.split(key)
    params = init_params(kp)

    S, B = 8, 2   # small (seq, batch); feature dim 300 is fixed by the module
    input_text = jax.random.normal(kx, (S, B, TEXT_SIZE), dtype=jnp.float32)

    fwd = jax.jit(encoder_forward)
    proj_feat, basic_feat = fwd(params, input_text)
    jax.block_until_ready((proj_feat, basic_feat))

    assert proj_feat[0].shape == (S, OUT_FEAT)
    assert basic_feat[0].shape == (S, OUT_FEAT)
    assert bool(jnp.all(jnp.isfinite(proj_feat[0])))
    assert bool(jnp.all(jnp.isfinite(basic_feat[0])))
    print("KERNEL_OK")
</pallas_src>

<mosaic_0001>
module attributes {stable_mosaic.version = 11 : i64} {
  func.func @_epilogue_kernel(%arg0: memref<16x384xf32, #tpu.memory_space<vmem>>, %arg1: memref<384x32xf32, #tpu.memory_space<vmem>>, %arg2: memref<1x32xf32, #tpu.memory_space<vmem>>, %arg3: memref<32x1024xf32, #tpu.memory_space<vmem>>, %arg4: memref<1x1024xf32, #tpu.memory_space<vmem>>, %arg5: memref<1024x32xf32, #tpu.memory_space<vmem>>, %arg6: memref<1x32xf32, #tpu.memory_space<vmem>>, %arg7: memref<8x32xf32, #tpu.memory_space<vmem>>, %arg8: memref<8x32xf32, #tpu.memory_space<vmem>>) attributes {dimension_semantics = [], scalar_prefetch = 0 : i64, scratch_operands = 0 : i64, tpu.core_type = #tpu.core_type<tc>} {
    %c0 = arith.constant 0 : index
    %c0_0 = arith.constant 0 : index
    %0 = vector.load %arg0[%c0, %c0_0] : memref<16x384xf32, #tpu.memory_space<vmem>>, vector<16x384xf32>
    %1 = vector.extract_strided_slice %0 {offsets = [0, 0], sizes = [8, 384], strides = [1, 1]} : vector<16x384xf32> to vector<8x384xf32>
    %2 = vector.extract_strided_slice %0 {offsets = [8, 0], sizes = [8, 384], strides = [1, 1]} : vector<16x384xf32> to vector<8x384xf32>
    %3 = arith.addf %1, %2 : vector<8x384xf32>
    %cst = arith.constant 5.000000e-01 : f32
    %4 = vector.broadcast %cst : f32 to vector<8x384xf32>
    %5 = arith.mulf %3, %4 : vector<8x384xf32>
    %c0_1 = arith.constant 0 : index
    %c0_2 = arith.constant 0 : index
    %6 = vector.load %arg1[%c0_1, %c0_2] : memref<384x32xf32, #tpu.memory_space<vmem>>, vector<384x32xf32>
    %cst_3 = arith.constant dense<0.000000e+00> : vector<8x32xf32>
    %7 = tpu.matmul %5, %6, %cst_3 {dimension_numbers = #tpu.dot_dimension_numbers<[1], [0], [0], [1], [0, 0, 1, 1], [], []>} : vector<8x384xf32>, vector<384x32xf32>, vector<8x32xf32> -> vector<8x32xf32>
    %c0_4 = arith.constant 0 : index
    %c0_5 = arith.constant 0 : index
    %8 = vector.load %arg2[%c0_4, %c0_5] : memref<1x32xf32, #tpu.memory_space<vmem>>, vector<1x32xf32>
    %9 = vector.broadcast %8 : vector<1x32xf32> to vector<8x32xf32>
    %10 = arith.addf %7, %9 : vector<8x32xf32>
    %c0_6 = arith.constant 0 : index
    %c0_7 = arith.constant 0 : index
    %11 = vector.load %arg3[%c0_6, %c0_7] : memref<32x1024xf32, #tpu.memory_space<vmem>>, vector<32x1024xf32>
    %cst_8 = arith.constant dense<0.000000e+00> : vector<8x1024xf32>
    %12 = tpu.matmul %10, %11, %cst_8 {dimension_numbers = #tpu.dot_dimension_numbers<[1], [0], [0], [1], [0, 0, 1, 1], [], []>} : vector<8x32xf32>, vector<32x1024xf32>, vector<8x1024xf32> -> vector<8x1024xf32>
    %c0_9 = arith.constant 0 : index
    %c0_10 = arith.constant 0 : index
    %13 = vector.load %arg4[%c0_9, %c0_10] : memref<1x1024xf32, #tpu.memory_space<vmem>>, vector<1x1024xf32>
    %14 = vector.broadcast %13 : vector<1x1024xf32> to vector<8x1024xf32>
    %15 = arith.addf %12, %14 : vector<8x1024xf32>
    %cst_11 = arith.constant 0.000000e+00 : f32
    %16 = vector.broadcast %cst_11 : f32 to vector<8x1024xf32>
    %17 = arith.maximumf %15, %16 : vector<8x1024xf32>
    %c0_12 = arith.constant 0 : index
    %c0_13 = arith.constant 0 : index
    %18 = vector.load %arg5[%c0_12, %c0_13] : memref<1024x32xf32, #tpu.memory_space<vmem>>, vector<1024x32xf32>
    %cst_14 = arith.constant dense<0.000000e+00> : vector<8x32xf32>
    %19 = tpu.matmul %17, %18, %cst_14 {dimension_numbers = #tpu.dot_dimension_numbers<[1], [0], [0], [1], [0, 0, 1, 1], [], []>} : vector<8x1024xf32>, vector<1024x32xf32>, vector<8x32xf32> -> vector<8x32xf32>
    %c0_15 = arith.constant 0 : index
    %c0_16 = arith.constant 0 : index
    %20 = vector.load %arg6[%c0_15, %c0_16] : memref<1x32xf32, #tpu.memory_space<vmem>>, vector<1x32xf32>
    %21 = vector.broadcast %20 : vector<1x32xf32> to vector<8x32xf32>
    %22 = arith.addf %19, %21 : vector<8x32xf32>
    %c0_17 = arith.constant 0 : index
    %c0_18 = arith.constant 0 : index
    %23 = vector.load %arg7[%c0_17, %c0_18] : memref<8x32xf32, #tpu.memory_space<vmem>>, vector<8x32xf32>
    tpu.vector_store %arg7[%c0_17, %c0_18], %10 {strides = array<i32>} : memref<8x32xf32, #tpu.memory_space<vmem>>, vector<8x32xf32>,
    %c0_19 = arith.constant 0 : index
    %c0_20 = arith.constant 0 : index
    %24 = vector.load %arg8[%c0_19, %c0_20] : memref<8x32xf32, #tpu.memory_space<vmem>>, vector<8x32xf32>
    tpu.vector_store %arg8[%c0_19, %c0_20], %22 {strides = array<i32>} : memref<8x32xf32, #tpu.memory_space<vmem>>, vector<8x32xf32>,
    return
  }
}

module attributes {stable_mosaic.version = 11 : i64} {
  func.func @_layer_stack_kernel(%arg0: i32, %arg1: memref<16x384xf32, #tpu.memory_space<vmem>>, %arg2: memref<1x384x960xf32, #tpu.memory_space<vmem>>, %arg3: memref<1x1x960xf32, #tpu.memory_space<vmem>>, %arg4: memref<1x320x384xf32, #tpu.memory_space<vmem>>, %arg5: memref<1x1x384xf32, #tpu.memory_space<vmem>>, %arg6: memref<1x1x384xf32, #tpu.memory_space<vmem>>, %arg7: memref<1x1x384xf32, #tpu.memory_space<vmem>>, %arg8: memref<1x384x2048xf32, #tpu.memory_space<vmem>>, %arg9: memref<1x1x2048xf32, #tpu.memory_space<vmem>>, %arg10: memref<1x2048x384xf32, #tpu.memory_space<vmem>>, %arg11: memref<1x1x384xf32, #tpu.memory_space<vmem>>, %arg12: memref<1x1x384xf32, #tpu.memory_space<vmem>>, %arg13: memref<1x1x384xf32, #tpu.memory_space<vmem>>, %arg14: memref<16x384xf32, #tpu.memory_space<vmem>>) attributes {dimension_semantics = [#tpu.dimension_semantics<arbitrary>], iteration_bounds = array<i64: 6>, scalar_prefetch = 0 : i64, scratch_operands = 0 : i64, tpu.core_type = #tpu.core_type<tc>, window_params = [{pipeline_mode = #tpu.pipeline_mode<synchronous>, transform_indices = @transform_0, window_bounds = array<i64: 16, 384>}, {transform_indices = @transform_1, window_bounds = array<i64: 1, 384, 960>}, {transform_indices = @transform_2, window_bounds = array<i64: 1, 1, 960>}, {transform_indices = @transform_3, window_bounds = array<i64: 1, 320, 384>}, {transform_indices = @transform_4, window_bounds = array<i64: 1, 1, 384>}, {transform_indices = @transform_5, window_bounds = array<i64: 1, 1, 384>}, {transform_indices = @transform_6, window_bounds = array<i64: 1, 1, 384>}, {transform_indices = @transform_7, window_bounds = array<i64: 1, 384, 2048>}, {transform_indices = @transform_8, window_bounds = array<i64: 1, 1, 2048>}, {transform_indices = @transform_9, window_bounds = array<i64: 1, 2048, 384>}, {transform_indices = @transform_10, window_bounds = array<i64: 1, 1, 384>}, {transform_indices = @transform_11, window_bounds = array<i64: 1, 1, 384>}, {transform_indices = @transform_12, window_bounds = array<i64: 1, 1, 384>}, {pipeline_mode = #tpu.pipeline_mode<synchronous>, transform_indices = @transform_13, window_bounds = array<i64: 16, 384>}]} {
    %c0_i32 = arith.constant 0 : i32
    %0 = arith.cmpi eq, %arg0, %c0_i32 : i32
    %1 = arith.extui %0 : i1 to i32
    %c0_i32_0 = arith.constant 0 : i32
    %2 = arith.cmpi ne, %1, %c0_i32_0 : i32
    scf.if %2 {
      %c0_94 = arith.constant 0 : index
      %c0_95 = arith.constant 0 : index
      %220 = vector.load %arg1[%c0_94, %c0_95] : memref<16x384xf32, #tpu.memory_space<vmem>>, vector<16x384xf32>
      %c0_96 = arith.constant 0 : index
      %c0_97 = arith.constant 0 : index
      %221 = vector.load %arg14[%c0_96, %c0_97] : memref<16x384xf32, #tpu.memory_space<vmem>>, vector<16x384xf32>
      tpu.vector_store %arg14[%c0_96, %c0_97], %220 {strides = array<i32>} : memref<16x384xf32, #tpu.memory_space<vmem>>, vector<16x384xf32>,
    } else {
    }
    %c0 = arith.constant 0 : index
    %c0_1 = arith.constant 0 : index
    %3 = vector.load %arg14[%c0, %c0_1] : memref<16x384xf32, #tpu.memory_space<vmem>>, vector<16x384xf32>
    %c0_2 = arith.constant 0 : index
    %c0_3 = arith.constant 0 : index
    %c0_4 = arith.constant 0 : index
    %4 = vector.load %arg2[%c0_2, %c0_3, %c0_4] : memref<1x384x960xf32, #tpu.memory_space<vmem>>, vector<1x384x960xf32>
    %5 = vector.shape_cast %4 : vector<1x384x960xf32> to vector<384x960xf32>
    %cst = arith.constant dense<0.000000e+00> : vector<16x960xf32>
    %6 = tpu.matmul %3, %5, %cst {dimension_numbers = #tpu.dot_dimension_numbers<[1], [0], [0], [1], [0, 0, 1, 1], [], []>} : vector<16x384xf32>, vector<384x960xf32>, vector<16x960xf32> -> vector<16x960xf32>
    %c0_5 = arith.constant 0 : index
    %c0_6 = arith.constant 0 : index
    %c0_7 = arith.constant 0 : index
    %7 = vector.load %arg3[%c0_5, %c0_6, %c0_7] : memref<1x1x960xf32, #tpu.memory_space<vmem>>, vector<1x1x960xf32>
    %8 = vector.shape_cast %7 : vector<1x1x960xf32> to vector<1x960xf32>
    %9 = vector.broadcast %8 : vector<1x960xf32> to vector<16x960xf32>
    %10 = arith.addf %6, %9 : vector<16x960xf32>
    %11 = tpu.iota {dimensions = array<i32: 0>} : vector<16x16xi32>
    %12 = tpu.iota {dimensions = array<i32: 1>} : vector<16x16xi32>
    %c8_i32 = arith.constant 8 : i32
    %c0_i32_8 = arith.constant 0 : i32
    %13 = arith.cmpi eq, %c8_i32, %c0_i32_8 : i32
    %c1_i32 = arith.constant 1 : i32
    %14 = arith.select %13, %c1_i32, %c8_i32 : i32
    %15 = vector.broadcast %14 : i32 to vector<16x16xi32>
    %16 = arith.remsi %11, %15 : vector<16x16xi32>
    %c0_i32_9 = arith.constant 0 : i32
    %17 = vector.broadcast %c0_i32_9 : i32 to vector<16x16xi32>
    %18 = arith.cmpi ne, %16, %17 : vector<16x16xi32>
    %c0_i32_10 = arith.constant 0 : i32
    %19 = vector.broadcast %c0_i32_10 : i32 to vector<16x16xi32>
    %20 = arith.cmpi slt, %16, %19 : vector<16x16xi32>
    %c0_i32_11 = arith.constant 0 : i32
    %21 = arith.cmpi slt, %14, %c0_i32_11 : i32
    %22 = vector.broadcast %21 : i1 to vector<16x16xi1>
    %23 = vector.broadcast %22 : vector<16x16xi1> to vector<16x16xi1>
    %24 = arith.xori %20, %23 : vector<16x16xi1>
    %25 = arith.andi %24, %18 : vector<16x16xi1>
    %26 = vector.broadcast %14 : i32 to vector<16x16xi32>
    %27 = arith.addi %16, %26 : vector<16x16xi32>
    %28 = arith.select %25, %27, %16 : vector<16x16xi1>, vector<16x16xi32>
    %c8_i32_12 = arith.constant 8 : i32
    %c0_i32_13 = arith.constant 0 : i32
    %29 = arith.cmpi eq, %c8_i32_12, %c0_i32_13 : i32
    %c1_i32_14 = arith.constant 1 : i32
    %30 = arith.select %29, %c1_i32_14, %c8_i32_12 : i32
    %31 = vector.broadcast %30 : i32 to vector<16x16xi32>
    %32 = arith.remsi %12, %31 : vector<16x16xi32>
    %c0_i32_15 = arith.constant 0 : i32
    %33 = vector.broadcast %c0_i32_15 : i32 to vector<16x16xi32>
    %34 = arith.cmpi ne, %32, %33 : vector<16x16xi32>
    %c0_i32_16 = arith.constant 0 : i32
    %35 = vector.broadcast %c0_i32_16 : i32 to vector<16x16xi32>
    %36 = arith.cmpi slt, %32, %35 : vector<16x16xi32>
    %c0_i32_17 = arith.constant 0 : i32
    %37 = arith.cmpi slt, %30, %c0_i32_17 : i32
    %38 = vector.broadcast %37 : i1 to vector<16x16xi1>
    %39 = vector.broadcast %38 : vector<16x16xi1> to vector<16x16xi1>
    %40 = arith.xori %36, %39 : vector<16x16xi1>
    %41 = arith.andi %40, %34 : vector<16x16xi1>
    %42 = vector.broadcast %30 : i32 to vector<16x16xi32>
    %43 = arith.addi %32, %42 : vector<16x16xi32>
    %44 = arith.select %41, %43, %32 : vector<16x16xi1>, vector<16x16xi32>
    %45 = arith.cmpi eq, %28, %44 : vector<16x16xi32>
    %46 = vector.extract_strided_slice %10 {offsets = [0, 0], sizes = [16, 64], strides = [1, 1]} : vector<16x960xf32> to vector<16x64xf32>
    %cst_18 = arith.constant 0.129099444 : f32
    %47 = vector.broadcast %cst_18 : f32 to vector<16x64xf32>
    %48 = arith.mulf %46, %47 : vector<16x64xf32>
    %49 = vector.extract_strided_slice %10 {offsets = [0, 320], sizes = [16, 64], strides = [1, 1]} : vector<16x960xf32> to vector<16x64xf32>
    %50 = vector.extract_strided_slice %10 {offsets = [0, 640], sizes = [16, 64], strides = [1, 1]} : vector<16x960xf32> to vector<16x64xf32>
    %cst_19 = arith.constant dense<0.000000e+00> : vector<16x16xf32>
    %51 = tpu.matmul %48, %49, %cst_19 {dimension_numbers = #tpu.dot_dimension_numbers<[1], [1], [0], [0], [0, 0, 1, 0], [], []>} : vector<16x64xf32>, vector<16x64xf32>, vector<16x16xf32> -> vector<16x16xf32>
    %cst_20 = arith.constant -1.000000e+30 : f32
    %52 = vector.broadcast %cst_20 : f32 to vector<16x16xf32>
    %53 = arith.select %45, %51, %52 : vector<16x16xi1>, vector<16x16xf32>
    %cst_21 = arith.constant dense<0xFF800000> : vector<16xf32>
    %54 = vector.multi_reduction <maximumf>, %53, %cst_21 [1] : vector<16x16xf32> to vector<16xf32>
    %55 = vector.shape_cast %54 : vector<16xf32> to vector<16x1xf32>
    %56 = vector.broadcast %55 : vector<16x1xf32> to vector<16x16xf32>
    %57 = arith.subf %53, %56 : vector<16x16xf32>
    %58 = math.exp %57 : vector<16x16xf32>
    %cst_22 = arith.constant dense<0.000000e+00> : vector<16xf32>
    %59 = vector.multi_reduction <add>, %58, %cst_22 [1] : vector<16x16xf32> to vector<16xf32>
    %60 = vector.shape_cast %59 : vector<16xf32> to vector<16x1xf32>
    %61 = tpu.reciprocal %60 {approx = true} : vector<16x1xf32> -> vector<16x1xf32>
    %62 = vector.broadcast %61 : vector<16x1xf32> to vector<16x16xf32>
    %63 = arith.mulf %58, %62 : vector<16x16xf32>
    %cst_23 = arith.constant dense<0.000000e+00> : vector<16x64xf32>
    %64 = tpu.matmul %63, %50, %cst_23 {dimension_numbers = #tpu.dot_dimension_numbers<[1], [0], [0], [1], [0, 0, 1, 1], [], []>} : vector<16x16xf32>, vector<16x64xf32>, vector<16x64xf32> -> vector<16x64xf32>
    %65 = vector.extract_strided_slice %10 {offsets = [0, 64], sizes = [16, 64], strides = [1, 1]} : vector<16x960xf32> to vector<16x64xf32>
    %cst_24 = arith.constant 0.129099444 : f32
    %66 = vector.broadcast %cst_24 : f32 to vector<16x64xf32>
    %67 = arith.mulf %65, %66 : vector<16x64xf32>
    %68 = vector.extract_strided_slice %10 {offsets = [0, 384], sizes = [16, 64], strides = [1, 1]} : vector<16x960xf32> to vector<16x64xf32>
    %69 = vector.extract_strided_slice %10 {offsets = [0, 704], sizes = [16, 64], strides = [1, 1]} : vector<16x960xf32> to vector<16x64xf32>
    %cst_25 = arith.constant dense<0.000000e+00> : vector<16x16xf32>
    %70 = tpu.matmul %67, %68, %cst_25 {dimension_numbers = #tpu.dot_dimension_numbers<[1], [1], [0], [0], [0, 0, 1, 0], [], []>} : vector<16x64xf32>, vector<16x64xf32>, vector<16x16xf32> -> vector<16x16xf32>
    %cst_26 = arith.constant -1.000000e+30 : f32
    %71 = vector.broadcast %cst_26 : f32 to vector<16x16xf32>
    %72 = arith.select %45, %70, %71 : vector<16x16xi1>, vector<16x16xf32>
    %cst_27 = arith.constant dense<0xFF800000> : vector<16xf32>
    %73 = vector.multi_reduction <maximumf>, %72, %cst_27 [1] : vector<16x16xf32> to vector<16xf32>
    %74 = vector.shape_cast %73 : vector<16xf32> to vector<16x1xf32>
    %75 = vector.broadcast %74 : vector<16x1xf32> to vector<16x16xf32>
    %76 = arith.subf %72, %75 : vector<16x16xf32>
    %77 = math.exp %76 : vector<16x16xf32>
    %cst_28 = arith.constant dense<0.000000e+00> : vector<16xf32>
    %78 = vector.multi_reduction <add>, %77, %cst_28 [1] : vector<16x16xf32> to vector<16xf32>
    %79 = vector.shape_cast %78 : vector<16xf32> to vector<16x1xf32>
    %80 = tpu.reciprocal %79 {approx = true} : vector<16x1xf32> -> vector<16x1xf32>
    %81 = vector.broadcast %80 : vector<16x1xf32> to vector<16x16xf32>
    %82 = arith.mulf %77, %81 : vector<16x16xf32>
    %cst_29 = arith.constant dense<0.000000e+00> : vector<16x64xf32>
    %83 = tpu.matmul %82, %69, %cst_29 {dimension_numbers = #tpu.dot_dimension_numbers<[1], [0], [0], [1], [0, 0, 1, 1], [], []>} : vector<16x16xf32>, vector<16x64xf32>, vector<16x64xf32> -> vector<16x64xf32>
    %84 = vector.extract_strided_slice %10 {offsets = [0, 128], sizes = [16, 64], strides = [1, 1]} : vector<16x960xf32> to vector<16x64xf32>
    %cst_30 = arith.constant 0.129099444 : f32
    %85 = vector.broadcast %cst_30 : f32 to vector<16x64xf32>
    %86 = arith.mulf %84, %85 : vector<16x64xf32>
    %87 = vector.extract_strided_slice %10 {offsets = [0, 448], sizes = [16, 64], strides = [1, 1]} : vector<16x960xf32> to vector<16x64xf32>
    %88 = vector.extract_strided_slice %10 {offsets = [0, 768], sizes = [16, 64], strides = [1, 1]} : vector<16x960xf32> to vector<16x64xf32>
    %cst_31 = arith.constant dense<0.000000e+00> : vector<16x16xf32>
    %89 = tpu.matmul %86, %87, %cst_31 {dimension_numbers = #tpu.dot_dimension_numbers<[1], [1], [0], [0], [0, 0, 1, 0], [], []>} : vector<16x64xf32>, vector<16x64xf32>, vector<16x16xf32> -> vector<16x16xf32>
    %cst_32 = arith.constant -1.000000e+30 : f32
    %90 = vector.broadcast %cst_32 : f32 to vector<16x16xf32>
    %91 = arith.select %45, %89, %90 : vector<16x16xi1>, vector<16x16xf32>
    %cst_33 = arith.constant dense<0xFF800000> : vector<16xf32>
    %92 = vector.multi_reduction <maximumf>, %91, %cst_33 [1] : vector<16x16xf32> to vector<16xf32>
    %93 = vector.shape_cast %92 : vector<16xf32> to vector<16x1xf32>
    %94 = vector.broadcast %93 : vector<16x1xf32> to vector<16x16xf32>
    %95 = arith.subf %91, %94 : vector<16x16xf32>
    %96 = math.exp %95 : vector<16x16xf32>
    %cst_34 = arith.constant dense<0.000000e+00> : vector<16xf32>
    %97 = vector.multi_reduction <add>, %96, %cst_34 [1] : vector<16x16xf32> to vector<16xf32>
    %98 = vector.shape_cast %97 : vector<16xf32> to vector<16x1xf32>
    %99 = tpu.reciprocal %98 {approx = true} : vector<16x1xf32> -> vector<16x1xf32>
    %100 = vector.broadcast %99 : vector<16x1xf32> to vector<16x16xf32>
    %101 = arith.mulf %96, %100 : vector<16x16xf32>
    %cst_35 = arith.constant dense<0.000000e+00> : vector<16x64xf32>
    %102 = tpu.matmul %101, %88, %cst_35 {dimension_numbers = #tpu.dot_dimension_numbers<[1], [0], [0], [1], [0, 0, 1, 1], [], []>} : vector<16x16xf32>, vector<16x64xf32>, vector<16x64xf32> -> vector<16x64xf32>
    %103 = vector.extract_strided_slice %10 {offsets = [0, 192], sizes = [16, 64], strides = [1, 1]} : vector<16x960xf32> to vector<16x64xf32>
    %cst_36 = arith.constant 0.129099444 : f32
    %104 = vector.broadcast %cst_36 : f32 to vector<16x64xf32>
    %105 = arith.mulf %103, %104 : vector<16x64xf32>
    %106 = vector.extract_strided_slice %10 {offsets = [0, 512], sizes = [16, 64], strides = [1, 1]} : vector<16x960xf32> to vector<16x64xf32>
    %107 = vector.extract_strided_slice %10 {offsets = [0, 832], sizes = [16, 64], strides = [1, 1]} : vector<16x960xf32> to vector<16x64xf32>
    %cst_37 = arith.constant dense<0.000000e+00> : vector<16x16xf32>
    %108 = tpu.matmul %105, %106, %cst_37 {dimension_numbers = #tpu.dot_dimension_numbers<[1], [1], [0], [0], [0, 0, 1, 0], [], []>} : vector<16x64xf32>, vector<16x64xf32>, vector<16x16xf32> -> vector<16x16xf32>
    %cst_38 = arith.constant -1.000000e+30 : f32
    %109 = vector.broadcast %cst_38 : f32 to vector<16x16xf32>
    %110 = arith.select %45, %108, %109 : vector<16x16xi1>, vector<16x16xf32>
    %cst_39 = arith.constant dense<0xFF800000> : vector<16xf32>
    %111 = vector.multi_reduction <maximumf>, %110, %cst_39 [1] : vector<16x16xf32> to vector<16xf32>
    %112 = vector.shape_cast %111 : vector<16xf32> to vector<16x1xf32>
    %113 = vector.broadcast %112 : vector<16x1xf32> to vector<16x16xf32>
    %114 = arith.subf %110, %113 : vector<16x16xf32>
    %115 = math.exp %114 : vector<16x16xf32>
    %cst_40 = arith.constant dense<0.000000e+00> : vector<16xf32>
    %116 = vector.multi_reduction <add>, %115, %cst_40 [1] : vector<16x16xf32> to vector<16xf32>
    %117 = vector.shape_cast %116 : vector<16xf32> to vector<16x1xf32>
    %118 = tpu.reciprocal %117 {approx = true} : vector<16x1xf32> -> vector<16x1xf32>
    %119 = vector.broadcast %118 : vector<16x1xf32> to vector<16x16xf32>
    %120 = arith.mulf %115, %119 : vector<16x16xf32>
    %cst_41 = arith.constant dense<0.000000e+00> : vector<16x64xf32>
    %121 = tpu.matmul %120, %107, %cst_41 {dimension_numbers = #tpu.dot_dimension_numbers<[1], [0], [0], [1], [0, 0, 1, 1], [], []>} : vector<16x16xf32>, vector<16x64xf32>, vector<16x64xf32> -> vector<16x64xf32>
    %122 = vector.extract_strided_slice %10 {offsets = [0, 256], sizes = [16, 64], strides = [1, 1]} : vector<16x960xf32> to vector<16x64xf32>
    %cst_42 = arith.constant 0.129099444 : f32
    %123 = vector.broadcast %cst_42 : f32 to vector<16x64xf32>
    %124 = arith.mulf %122, %123 : vector<16x64xf32>
    %125 = vector.extract_strided_slice %10 {offsets = [0, 576], sizes = [16, 64], strides = [1, 1]} : vector<16x960xf32> to vector<16x64xf32>
    %126 = vector.extract_strided_slice %10 {offsets = [0, 896], sizes = [16, 64], strides = [1, 1]} : vector<16x960xf32> to vector<16x64xf32>
    %cst_43 = arith.constant dense<0.000000e+00> : vector<16x16xf32>
    %127 = tpu.matmul %124, %125, %cst_43 {dimension_numbers = #tpu.dot_dimension_numbers<[1], [1], [0], [0], [0, 0, 1, 0], [], []>} : vector<16x64xf32>, vector<16x64xf32>, vector<16x16xf32> -> vector<16x16xf32>
    %cst_44 = arith.constant -1.000000e+30 : f32
    %128 = vector.broadcast %cst_44 : f32 to vector<16x16xf32>
    %129 = arith.select %45, %127, %128 : vector<16x16xi1>, vector<16x16xf32>
    %cst_45 = arith.constant dense<0xFF800000> : vector<16xf32>
    %130 = vector.multi_reduction <maximumf>, %129, %cst_45 [1] : vector<16x16xf32> to vector<16xf32>
    %131 = vector.shape_cast %130 : vector<16xf32> to vector<16x1xf32>
    %132 = vector.broadcast %131 : vector<16x1xf32> to vector<16x16xf32>
    %133 = arith.subf %129, %132 : vector<16x16xf32>
    %134 = math.exp %133 : vector<16x16xf32>
    %cst_46 = arith.constant dense<0.000000e+00> : vector<16xf32>
    %135 = vector.multi_reduction <add>, %134, %cst_46 [1] : vector<16x16xf32> to vector<16xf32>
    %136 = vector.shape_cast %135 : vector<16xf32> to vector<16x1xf32>
    %137 = tpu.reciprocal %136 {approx = true} : vector<16x1xf32> -> vector<16x1xf32>
    %138 = vector.broadcast %137 : vector<16x1xf32> to vector<16x16xf32>
    %139 = arith.mulf %134, %138 : vector<16x16xf32>
    %cst_47 = arith.constant dense<0.000000e+00> : vector<16x64xf32>
    %140 = tpu.matmul %139, %126, %cst_47 {dimension_numbers = #tpu.dot_dimension_numbers<[1], [0], [0], [1], [0, 0, 1, 1], [], []>} : vector<16x16xf32>, vector<16x64xf32>, vector<16x64xf32> -> vector<16x64xf32>
    %141 = tpu.concatenate %64, %83, %102, %121, %140 in 1 : vector<16x64xf32>, vector<16x64xf32>, vector<16x64xf32>, vector<16x64xf32>, vector<16x64xf32> -> vector<16x320xf32>
    %c0_48 = arith.constant 0 : index
    %c0_49 = arith.constant 0 : index
    %c0_50 = arith.constant 0 : index
    %142 = vector.load %arg4[%c0_48, %c0_49, %c0_50] : memref<1x320x384xf32, #tpu.memory_space<vmem>>, vector<1x320x384xf32>
    %143 = vector.shape_cast %142 : vector<1x320x384xf32> to vector<320x384xf32>
    %cst_51 = arith.constant dense<0.000000e+00> : vector<16x384xf32>
    %144 = tpu.matmul %141, %143, %cst_51 {dimension_numbers = #tpu.dot_dimension_numbers<[1], [0], [0], [1], [0, 0, 1, 1], [], []>} : vector<16x320xf32>, vector<320x384xf32>, vector<16x384xf32> -> vector<16x384xf32>
    %c0_52 = arith.constant 0 : index
    %c0_53 = arith.constant 0 : index
    %c0_54 = arith.constant 0 : index
    %145 = vector.load %arg5[%c0_52, %c0_53, %c0_54] : memref<1x1x384xf32, #tpu.memory_space<vmem>>, vector<1x1x384xf32>
    %146 = vector.shape_cast %145 : vector<1x1x384xf32> to vector<1x384xf32>
    %147 = vector.broadcast %146 : vector<1x384xf32> to vector<16x384xf32>
    %148 = arith.addf %144, %147 : vector<16x384xf32>
    %149 = arith.addf %3, %148 : vector<16x384xf32>
    %c0_55 = arith.constant 0 : index
    %c0_56 = arith.constant 0 : index
    %c0_57 = arith.constant 0 : index
    %150 = vector.load %arg6[%c0_55, %c0_56, %c0_57] : memref<1x1x384xf32, #tpu.memory_space<vmem>>, vector<1x1x384xf32>
    %151 = vector.shape_cast %150 : vector<1x1x384xf32> to vector<1x384xf32>
    %c0_58 = arith.constant 0 : index
    %c0_59 = arith.constant 0 : index
    %c0_60 = arith.constant 0 : index
    %152 = vector.load %arg7[%c0_58, %c0_59, %c0_60] : memref<1x1x384xf32, #tpu.memory_space<vmem>>, vector<1x1x384xf32>
    %153 = vector.shape_cast %152 : vector<1x1x384xf32> to vector<1x384xf32>
    %cst_61 = arith.constant dense<0.000000e+00> : vector<16xf32>
    %154 = vector.multi_reduction <add>, %149, %cst_61 [1] : vector<16x384xf32> to vector<16xf32>
    %155 = vector.shape_cast %154 : vector<16xf32> to vector<16x1xf32>
    %cst_62 = arith.constant 0.00333333341 : f32
    %156 = vector.broadcast %cst_62 : f32 to vector<16x1xf32>
    %157 = arith.mulf %155, %156 : vector<16x1xf32>
    %158 = arith.mulf %149, %149 : vector<16x384xf32>
    %cst_63 = arith.constant dense<0.000000e+00> : vector<16xf32>
    %159 = vector.multi_reduction <add>, %158, %cst_63 [1] : vector<16x384xf32> to vector<16xf32>
    %160 = vector.shape_cast %159 : vector<16xf32> to vector<16x1xf32>
    %cst_64 = arith.constant 0.00333333341 : f32
    %161 = vector.broadcast %cst_64 : f32 to vector<16x1xf32>
    %162 = arith.mulf %160, %161 : vector<16x1xf32>
    %163 = arith.mulf %157, %157 : vector<16x1xf32>
    %164 = arith.subf %162, %163 : vector<16x1xf32>
    %cst_65 = arith.constant 9.99999974E-6 : f32
    %165 = vector.broadcast %cst_65 : f32 to vector<16x1xf32>
    %166 = arith.addf %164, %165 : vector<16x1xf32>
    %167 = math.rsqrt %166 : vector<16x1xf32>
    %168 = vector.broadcast %157 : vector<16x1xf32> to vector<16x384xf32>
    %169 = arith.subf %149, %168 : vector<16x384xf32>
    %170 = vector.broadcast %167 : vector<16x1xf32> to vector<16x384xf32>
    %171 = arith.mulf %169, %170 : vector<16x384xf32>
    %172 = vector.broadcast %151 : vector<1x384xf32> to vector<16x384xf32>
    %173 = arith.mulf %171, %172 : vector<16x384xf32>
    %174 = vector.broadcast %153 : vector<1x384xf32> to vector<16x384xf32>
    %175 = arith.addf %173, %174 : vector<16x384xf32>
    %c0_66 = arith.constant 0 : index
    %c0_67 = arith.constant 0 : index
    %c0_68 = arith.constant 0 : index
    %176 = vector.load %arg8[%c0_66, %c0_67, %c0_68] : memref<1x384x2048xf32, #tpu.memory_space<vmem>>, vector<1x384x2048xf32>
    %177 = vector.shape_cast %176 : vector<1x384x2048xf32> to vector<384x2048xf32>
    %cst_69 = arith.constant dense<0.000000e+00> : vector<16x2048xf32>
    %178 = tpu.matmul %175, %177, %cst_69 {dimension_numbers = #tpu.dot_dimension_numbers<[1], [0], [0], [1], [0, 0, 1, 1], [], []>} : vector<16x384xf32>, vector<384x2048xf32>, vector<16x2048xf32> -> vector<16x2048xf32>
    %c0_70 = arith.constant 0 : index
    %c0_71 = arith.constant 0 : index
    %c0_72 = arith.constant 0 : index
    %179 = vector.load %arg9[%c0_70, %c0_71, %c0_72] : memref<1x1x2048xf32, #tpu.memory_space<vmem>>, vector<1x1x2048xf32>
    %180 = vector.shape_cast %179 : vector<1x1x2048xf32> to vector<1x2048xf32>
    %181 = vector.broadcast %180 : vector<1x2048xf32> to vector<16x2048xf32>
    %182 = arith.addf %178, %181 : vector<16x2048xf32>
    %cst_73 = arith.constant 0.000000e+00 : f32
    %183 = vector.broadcast %cst_73 : f32 to vector<16x2048xf32>
    %184 = arith.maximumf %182, %183 : vector<16x2048xf32>
    %c0_74 = arith.constant 0 : index
    %c0_75 = arith.constant 0 : index
    %c0_76 = arith.constant 0 : index
    %185 = vector.load %arg10[%c0_74, %c0_75, %c0_76] : memref<1x2048x384xf32, #tpu.memory_space<vmem>>, vector<1x2048x384xf32>
    %186 = vector.shape_cast %185 : vector<1x2048x384xf32> to vector<2048x384xf32>
    %cst_77 = arith.constant dense<0.000000e+00> : vector<16x384xf32>
    %187 = tpu.matmul %184, %186, %cst_77 {dimension_numbers = #tpu.dot_dimension_numbers<[1], [0], [0], [1], [0, 0, 1, 1], [], []>} : vector<16x2048xf32>, vector<2048x384xf32>, vector<16x384xf32> -> vector<16x384xf32>
    %c0_78 = arith.constant 0 : index
    %c0_79 = arith.constant 0 : index
    %c0_80 = arith.constant 0 : index
    %188 = vector.load %arg11[%c0_78, %c0_79, %c0_80] : memref<1x1x384xf32, #tpu.memory_space<vmem>>, vector<1x1x384xf32>
    %189 = vector.shape_cast %188 : vector<1x1x384xf32> to vector<1x384xf32>
    %190 = vector.broadcast %189 : vector<1x384xf32> to vector<16x384xf32>
    %191 = arith.addf %187, %190 : vector<16x384xf32>
    %192 = arith.addf %175, %191 : vector<16x384xf32>
    %c0_81 = arith.constant 0 : index
    %c0_82 = arith.constant 0 : index
    %c0_83 = arith.constant 0 : index
    %193 = vector.load %arg12[%c0_81, %c0_82, %c0_83] : memref<1x1x384xf32, #tpu.memory_space<vmem>>, vector<1x1x384xf32>
    %194 = vector.shape_cast %193 : vector<1x1x384xf32> to vector<1x384xf32>
    %c0_84 = arith.constant 0 : index
    %c0_85 = arith.constant 0 : index
    %c0_86 = arith.constant 0 : index
    %195 = vector.load %arg13[%c0_84, %c0_85, %c0_86] : memref<1x1x384xf32, #tpu.memory_space<vmem>>, vector<1x1x384xf32>
    %196 = vector.shape_cast %195 : vector<1x1x384xf32> to vector<1x384xf32>
    %cst_87 = arith.constant dense<0.000000e+00> : vector<16xf32>
    %197 = vector.multi_reduction <add>, %192, %cst_87 [1] : vector<16x384xf32> to vector<16xf32>
    %198 = vector.shape_cast %197 : vector<16xf32> to vector<16x1xf32>
    %cst_88 = arith.constant 0.00333333341 : f32
    %199 = vector.broadcast %cst_88 : f32 to vector<16x1xf32>
    %200 = arith.mulf %198, %199 : vector<16x1xf32>
    %201 = arith.mulf %192, %192 : vector<16x384xf32>
    %cst_89 = arith.constant dense<0.000000e+00> : vector<16xf32>
    %202 = vector.multi_reduction <add>, %201, %cst_89 [1] : vector<16x384xf32> to vector<16xf32>
    %203 = vector.shape_cast %202 : vector<16xf32> to vector<16x1xf32>
    %cst_90 = arith.constant 0.00333333341 : f32
    %204 = vector.broadcast %cst_90 : f32 to vector<16x1xf32>
    %205 = arith.mulf %203, %204 : vector<16x1xf32>
    %206 = arith.mulf %200, %200 : vector<16x1xf32>
    %207 = arith.subf %205, %206 : vector<16x1xf32>
    %cst_91 = arith.constant 9.99999974E-6 : f32
    %208 = vector.broadcast %cst_91 : f32 to vector<16x1xf32>
    %209 = arith.addf %207, %208 : vector<16x1xf32>
    %210 = math.rsqrt %209 : vector<16x1xf32>
    %211 = vector.broadcast %200 : vector<16x1xf32> to vector<16x384xf32>
    %212 = arith.subf %192, %211 : vector<16x384xf32>
    %213 = vector.broadcast %210 : vector<16x1xf32> to vector<16x384xf32>
    %214 = arith.mulf %212, %213 : vector<16x384xf32>
    %215 = vector.broadcast %194 : vector<1x384xf32> to vector<16x384xf32>
    %216 = arith.mulf %214, %215 : vector<16x384xf32>
    %217 = vector.broadcast %196 : vector<1x384xf32> to vector<16x384xf32>
    %218 = arith.addf %216, %217 : vector<16x384xf32>
    %c0_92 = arith.constant 0 : index
    %c0_93 = arith.constant 0 : index
    %219 = vector.load %arg14[%c0_92, %c0_93] : memref<16x384xf32, #tpu.memory_space<vmem>>, vector<16x384xf32>
    tpu.vector_store %arg14[%c0_92, %c0_93], %218 {strides = array<i32>} : memref<16x384xf32, #tpu.memory_space<vmem>>, vector<16x384xf32>,
    return
  }
  func.func @transform_0(%arg0: i32) -> (i32, i32) {
    %c0_i32 = arith.constant 0 : i32
    %c0_i32_0 = arith.constant 0 : i32
    %c0_i32_1 = arith.constant 0 : i32
    return %c0_i32, %c0_i32_0 : i32, i32
  }
  func.func @transform_1(%arg0: i32) -> (i32, i32, i32) {
    %c0_i32 = arith.constant 0 : i32
    %c0_i32_0 = arith.constant 0 : i32
    %c0_i32_1 = arith.constant 0 : i32
    return %arg0, %c0_i32, %c0_i32_0 : i32, i32, i32
  }
  func.func @transform_2(%arg0: i32) -> (i32, i32, i32) {
    %c0_i32 = arith.constant 0 : i32
    %c0_i32_0 = arith.constant 0 : i32
    %c0_i32_1 = arith.constant 0 : i32
    return %arg0, %c0_i32, %c0_i32_0 : i32, i32, i32
  }
  func.func @transform_3(%arg0: i32) -> (i32, i32, i32) {
    %c0_i32 = arith.constant 0 : i32
    %c0_i32_0 = arith.constant 0 : i32
    %c0_i32_1 = arith.constant 0 : i32
    return %arg0, %c0_i32, %c0_i32_0 : i32, i32, i32
  }
  func.func @transform_4(%arg0: i32) -> (i32, i32, i32) {
    %c0_i32 = arith.constant 0 : i32
    %c0_i32_0 = arith.constant 0 : i32
    %c0_i32_1 = arith.constant 0 : i32
    return %arg0, %c0_i32, %c0_i32_0 : i32, i32, i32
  }
  func.func @transform_5(%arg0: i32) -> (i32, i32, i32) {
    %c0_i32 = arith.constant 0 : i32
    %c0_i32_0 = arith.constant 0 : i32
    %c0_i32_1 = arith.constant 0 : i32
    return %arg0, %c0_i32, %c0_i32_0 : i32, i32, i32
  }
  func.func @transform_6(%arg0: i32) -> (i32, i32, i32) {
    %c0_i32 = arith.constant 0 : i32
    %c0_i32_0 = arith.constant 0 : i32
    %c0_i32_1 = arith.constant 0 : i32
    return %arg0, %c0_i32, %c0_i32_0 : i32, i32, i32
  }
  func.func @transform_7(%arg0: i32) -> (i32, i32, i32) {
    %c0_i32 = arith.constant 0 : i32
    %c0_i32_0 = arith.constant 0 : i32
    %c0_i32_1 = arith.constant 0 : i32
    return %arg0, %c0_i32, %c0_i32_0 : i32, i32, i32
  }
  func.func @transform_8(%arg0: i32) -> (i32, i32, i32) {
    %c0_i32 = arith.constant 0 : i32
    %c0_i32_0 = arith.constant 0 : i32
    %c0_i32_1 = arith.constant 0 : i32
    return %arg0, %c0_i32, %c0_i32_0 : i32, i32, i32
  }
  func.func @transform_9(%arg0: i32) -> (i32, i32, i32) {
    %c0_i32 = arith.constant 0 : i32
    %c0_i32_0 = arith.constant 0 : i32
    %c0_i32_1 = arith.constant 0 : i32
    return %arg0, %c0_i32, %c0_i32_0 : i32, i32, i32
  }
  func.func @transform_10(%arg0: i32) -> (i32, i32, i32) {
    %c0_i32 = arith.constant 0 : i32
    %c0_i32_0 = arith.constant 0 : i32
    %c0_i32_1 = arith.constant 0 : i32
    return %arg0, %c0_i32, %c0_i32_0 : i32, i32, i32
  }
  func.func @transform_11(%arg0: i32) -> (i32, i32, i32) {
    %c0_i32 = arith.constant 0 : i32
    %c0_i32_0 = arith.constant 0 : i32
    %c0_i32_1 = arith.constant 0 : i32
    return %arg0, %c0_i32, %c0_i32_0 : i32, i32, i32
  }
  func.func @transform_12(%arg0: i32) -> (i32, i32, i32) {
    %c0_i32 = arith.constant 0 : i32
    %c0_i32_0 = arith.constant 0 : i32
    %c0_i32_1 = arith.constant 0 : i32
    return %arg0, %c0_i32, %c0_i32_0 : i32, i32, i32
  }
  func.func @transform_13(%arg0: i32) -> (i32, i32) {
    %c0_i32 = arith.constant 0 : i32
    %c0_i32_0 = arith.constant 0 : i32
    %c0_i32_1 = arith.constant 0 : i32
    return %c0_i32, %c0_i32_0 : i32, i32
  }
}

</mosaic_0001>

<llo_original>
// kernel: encoder_forward.3
$region0: #{encoder_forward.3}
  #allocation0 [shape = 'u32[]', space=smem, size = 0x4, offset = 0x4, fixed_abs, tag = 'smem constant byte address 0x4 - core index']
  #allocation1 [shape = 'u32[144,128]{1,0:T(1,128)}', space=vmem, size = 0x12000, scoped, tag = 'internal scratch']
  %s0 = inlined_call_operand.vmem [shape: f32[16,384], index: 0, kind: input, shape index: {}]
  %s1 = inlined_call_operand.vmem [shape: f32[384,32], index: 1, kind: input, shape index: {}]
  %s2 = inlined_call_operand.vmem [shape: f32[1,32], index: 2, kind: input, shape index: {}]
  %s3 = inlined_call_operand.vmem [shape: f32[32,1024], index: 3, kind: input, shape index: {}]
  %s4 = inlined_call_operand.vmem [shape: f32[1,1024], index: 4, kind: input, shape index: {}]
  %s5 = inlined_call_operand.vmem [shape: f32[1024,32], index: 5, kind: input, shape index: {}]
  %s6 = inlined_call_operand.vmem [shape: f32[1,32], index: 6, kind: input, shape index: {}]
  %s7 = inlined_call_operand.hbm [shape: f32[8,32], index: 7, kind: output, shape index: {0}]
  %s8 = inlined_call_operand.hbm [shape: f32[8,32], index: 8, kind: output, shape index: {1}]
  %9 = xla_tuple %s7, %s8
  %s10 = sld [smem:[#allocation0]]
  $region46: #{encoder_forward.3} parent=0
    _
  %s12 = ssub.s32 1, %s10
  %s13 = scalar_select 0, %s12, %s10
  $region1: #{encoder_forward.3} parent=0
    #allocation2 [shape = 'u8[4096]{0}', space=vmem, size = 0x1000, scoped, tag = 'output window, operand 0, single buffered']
    #allocation3 [shape = 's32[1]{0}', space=sflag, size = 0x4, scoped, tag = 'scoped memory for encoder_forward.3']
    #allocation4 [shape = 'u8[4096]{0}', space=vmem, size = 0x1000, scoped, tag = 'output window, operand 1, single buffered']
    #allocation5 [shape = 's32[1]{0}', space=sflag, size = 0x4, scoped, tag = 'scoped memory for encoder_forward.3']
    %14 = vsyncpa [#allocation3], 0
    %15 = vsyncpa [#allocation5], 0
    // Predicated region
    $region2: #{encoder_forward.3} parent=1 // pred_check
      _
    $region3: #{encoder_forward.3} parent=1 // pred_check_branch
      %17 = sbr.rel (0) target = $region5
    $region4: #{encoder_forward.3} parent=1 // pred_region
      _
    $region5: #{encoder_forward.3} parent=1 // pred_fallthru
      _
    // Predicated region
    $region6: #{encoder_forward.3} parent=1 // pred_check
      _
    $region7: #{encoder_forward.3} parent=1 // pred_check_branch
      %19 = sbr.rel (0) target = $region9
    $region8: #{encoder_forward.3} parent=1 // pred_region
      _
    $region9: #{encoder_forward.3} parent=1 // pred_fallthru
      _
    // Predicated region
    $region10: #{encoder_forward.3} parent=1 // pred_check
      _
    $region11: #{encoder_forward.3} parent=1 // pred_check_branch
      %21 = sbr.rel (0) target = $region13
    $region12: #{encoder_forward.3} parent=1 // pred_region
      _
    $region13: #{encoder_forward.3} parent=1 // pred_fallthru
      _
    // Predicated region
    $region14: #{encoder_forward.3} parent=1 // pred_check
      _
    $region15: #{encoder_forward.3} parent=1 // pred_check_branch
      %23 = sbr.rel (0) target = $region17
    $region16: #{encoder_forward.3} parent=1 // pred_region
      _
    $region17: #{encoder_forward.3} parent=1 // pred_fallthru
      _
    // Predicated region
    $region18: #{encoder_forward.3} parent=1 // pred_check
      _
    $region19: #{encoder_forward.3} parent=1 // pred_check_branch
      %25 = sbr.rel (0) target = $region21
    $region20: #{encoder_forward.3} parent=1 // pred_region
      _
    $region21: #{encoder_forward.3} parent=1 // pred_fallthru
      _
    // Predicated region
    $region22: #{encoder_forward.3} parent=1 // pred_check
      _
    $region23: #{encoder_forward.3} parent=1 // pred_check_branch
      %27 = sbr.rel (0) target = $region25
    $region24: #{encoder_forward.3} parent=1 // pred_region
      _
    $region25: #{encoder_forward.3} parent=1 // pred_fallthru
      _
    // Predicated region
    $region26: #{encoder_forward.3} parent=1 // pred_check
      _
    $region27: #{encoder_forward.3} parent=1 // pred_check_branch
      %29 = sbr.rel (0) target = $region29
    $region28: #{encoder_forward.3} parent=1 // pred_region
      _
    $region29: #{encoder_forward.3} parent=1 // pred_fallthru
      _
    %v30 = vld [vmem:[%s0] sm:$0xff]
    %v31 = vld [vmem:[%s0 + $0x8] sm:$0xff]
    %v32 = vld [vmem:[%s0 + $0x10] sm:$0xff]
    %v33 = vld [vmem:[%s0 + $0x18] sm:$0xff]
    %v34 = vld [vmem:[%s0 + $0x20] sm:$0xff]
    %v35 = vld [vmem:[%s0 + $0x28] sm:$0xff]
    %v36 = vadd.f32 %v30, %v33
    %v37 = vadd.f32 %v31, %v34
    %v38 = vadd.f32 %v32, %v35
    %v39 = vmul.f32 %v36, 0.5
    %v40 = vmul.f32 %v37, 0.5
    %v41 = vmul.f32 %v38, 0.5
    %v42 = vld [vmem:[%s1] sm:$0xff]
    %v43 = vld [vmem:[%s1 + $0x8] sm:$0xff]
    %v44 = vld [vmem:[%s1 + $0x10] sm:$0xff]
    %v45 = vld [vmem:[%s1 + $0x18] sm:$0xff]
    %v46 = vld [vmem:[%s1 + $0x20] sm:$0xff]
    %v47 = vld [vmem:[%s1 + $0x28] sm:$0xff]
    %v48 = vld [vmem:[%s1 + $0x30] sm:$0xff]
    %v49 = vld [vmem:[%s1 + $0x38] sm:$0xff]
    %v50 = vld [vmem:[%s1 + $0x40] sm:$0xff]
    %v51 = vld [vmem:[%s1 + $0x48] sm:$0xff]
    %v52 = vld [vmem:[%s1 + $0x50] sm:$0xff]
    %v53 = vld [vmem:[%s1 + $0x58] sm:$0xff]
    %v54 = vld [vmem:[%s1 + $0x60] sm:$0xff]
    %v55 = vld [vmem:[%s1 + $0x68] sm:$0xff]
    %v56 = vld [vmem:[%s1 + $0x70] sm:$0xff]
    %v57 = vld [vmem:[%s1 + $0x78] sm:$0xff]
    %v58 = vld [vmem:[%s1 + $0x80] sm:$0xff]
    %v59 = vld [vmem:[%s1 + $0x88] sm:$0xff]
    %v60 = vld [vmem:[%s1 + $0x90] sm:$0xff]
    %v61 = vld [vmem:[%s1 + $0x98] sm:$0xff]
    %v62 = vld [vmem:[%s1 + $0xa0] sm:$0xff]
    %v63 = vld [vmem:[%s1 + $0xa8] sm:$0xff]
    %v64 = vld [vmem:[%s1 + $0xb0] sm:$0xff]
    %v65 = vld [vmem:[%s1 + $0xb8] sm:$0xff]
    %v66 = vld [vmem:[%s1 + $0xc0] sm:$0xff]
    %v67 = vld [vmem:[%s1 + $0xc8] sm:$0xff]
    %v68 = vld [vmem:[%s1 + $0xd0] sm:$0xff]
    %v69 = vld [vmem:[%s1 + $0xd8] sm:$0xff]
    %v70 = vld [vmem:[%s1 + $0xe0] sm:$0xff]
    %v71 = vld [vmem:[%s1 + $0xe8] sm:$0xff]
    %v72 = vld [vmem:[%s1 + $0xf0] sm:$0xff]
    %v73 = vld [vmem:[%s1 + $0xf8] sm:$0xff]
    %v74 = vld [vmem:[%s1 + $0x100] sm:$0xff]
    %v75 = vld [vmem:[%s1 + $0x108] sm:$0xff]
    %v76 = vld [vmem:[%s1 + $0x110] sm:$0xff]
    %v77 = vld [vmem:[%s1 + $0x118] sm:$0xff]
    %v78 = vld [vmem:[%s1 + $0x120] sm:$0xff]
    %v79 = vld [vmem:[%s1 + $0x128] sm:$0xff]
    %v80 = vld [vmem:[%s1 + $0x130] sm:$0xff]
    %v81 = vld [vmem:[%s1 + $0x138] sm:$0xff]
    %v82 = vld [vmem:[%s1 + $0x140] sm:$0xff]
    %v83 = vld [vmem:[%s1 + $0x148] sm:$0xff]
    %v84 = vld [vmem:[%s1 + $0x150] sm:$0xff]
    %v85 = vld [vmem:[%s1 + $0x158] sm:$0xff]
    %v86 = vld [vmem:[%s1 + $0x160] sm:$0xff]
    %v87 = vld [vmem:[%s1 + $0x168] sm:$0xff]
    %v88 = vld [vmem:[%s1 + $0x170] sm:$0xff]
    %v89 = vld [vmem:[%s1 + $0x178] sm:$0xff]
    %v90 = vld [vmem:[%s2] sm:$0x1]
    %v92 = vlaneseq
    %v93 = vshrl.u32 %v92, 7
    %v94 = vsub.s32 0, %v93
    %v95 = vrot.slane %v90, %v94
    %97 = vmatprep.subr.mxu0 0.0
    %98 = vmatpush1.msra.mxu0 %v42
    %99 = vmatprep.subr.mxu0 0.0
    %100 = vmatpush1.msra.mxu0 %v43
    %101 = vmatprep.subr.mxu0 0.0
    %102 = vmatpush1.msra.mxu0 %v44
    %103 = vmatprep.subr.mxu0 0.0
    %104 = vmatpush1.msra.mxu0 %v45
    %105 = vmatprep.subr.mxu0 0.0
    %106 = vmatpush1.msra.mxu0 %v46
    %107 = vmatprep.subr.mxu0 0.0
    %108 = vmatpush1.msra.mxu0 %v47
    %109 = vmatprep.subr.mxu0 0.0
    %110 = vmatpush1.msra.mxu0 %v48
    %111 = vmatprep.subr.mxu0 0.0
    %112 = vmatpush1.msra.mxu0 %v49
    %113 = vmatprep.subr.mxu0 0.0
    %114 = vmatpush1.msra.mxu0 %v50
    %115 = vmatprep.subr.mxu0 0.0
    %116 = vmatpush1.msra.mxu0 %v51
    %117 = vmatprep.subr.mxu0 0.0
    %118 = vmatpush1.msra.mxu0 %v52
    %119 = vmatprep.subr.mxu0 0.0
    %120 = vmatpush1.msra.mxu0 %v53
    %121 = vmatprep.subr.mxu0 0.0
    %122 = vmatpush1.msra.mxu0 %v54
    %123 = vmatprep.subr.mxu0 0.0
    %124 = vmatpush1.msra.mxu0 %v55
    %125 = vmatprep.subr.mxu0 0.0
    %126 = vmatpush1.msra.mxu0 %v56
    %127 = vmatprep.subr.mxu0 0.0
    %128 = vmatpush1.msra.mxu0 %v57
    %129 = vmatprep.subr.mxu0 0.0
    %130 = vmatpush1.msra.mxu0 %v58
    %131 = vmatprep.subr.mxu0 0.0
    %132 = vmatpush1.msra.mxu0 %v59
    %133 = vmatprep.subr.mxu0 0.0
    %134 = vmatpush1.msra.mxu0 %v60
    %135 = vmatprep.subr.mxu0 0.0
    %136 = vmatpush1.msra.mxu0 %v61
    %137 = vmatprep.subr.mxu0 0.0
    %138 = vmatpush1.msra.mxu0 %v62
    %139 = vmatprep.subr.mxu0 0.0
    %140 = vmatpush1.msra.mxu0 %v63
    %141 = vmatprep.subr.mxu0 0.0
    %142 = vmatpush1.msra.mxu0 %v64
    %143 = vmatprep.subr.mxu0 0.0
    %144 = vmatpush1.msra.mxu0 %v65
    %145 = vmatprep.subr.mxu0 0.0
    %146 = vmatpush1.msra.mxu0 %v66
    %147 = vmatprep.subr.mxu0 0.0
    %148 = vmatpush1.msra.mxu0 %v67
    %149 = vmatprep.subr.mxu0 0.0
    %150 = vmatpush1.msra.mxu0 %v68
    %151 = vmatprep.subr.mxu0 0.0
    %152 = vmatpush1.msra.mxu0 %v69
    %153 = vmatprep.subr.mxu0 0.0
    %154 = vmatpush1.msra.mxu0 %v70
    %155 = vmatprep.subr.mxu0 0.0
    %156 = vmatpush1.msra.mxu0 %v71
    %157 = vmatprep.subr.mxu0 0.0
    %158 = vmatpush1.msra.mxu0 %v72
    %159 = vmatprep.subr.mxu0 0.0
    %160 = vmatpush1.msra.mxu0 %v73
    %161 = vmatprep.mubr.f32.mxu0 %v40
    %162 = vmatmul.mubr.f32.gmra.mrb[0].mxu0 %v39
    %v163 = vpop.f32.mrb[0].mxu0
    %v164 = vadd.f32 %v95, %v163
    %v165 = vpop.f32.mrb[0].mxu0
    %166 = vdwg.mxu0
    %167 = vmatprep.subr.mxu0 0.0
    %168 = vmatpush1.msra.mxu0 %v74
    %169 = vmatprep.subr.mxu0 0.0
    %170 = vmatpush1.msra.mxu0 %v75
    %171 = vmatprep.subr.mxu0 0.0
    %172 = vmatpush1.msra.mxu0 %v76
    %173 = vmatprep.subr.mxu0 0.0
    %174 = vmatpush1.msra.mxu0 %v77
    %175 = vmatprep.subr.mxu0 0.0
    %176 = vmatpush1.msra.mxu0 %v78
    %177 = vmatprep.subr.mxu0 0.0
    %178 = vmatpush1.msra.mxu0 %v79
    %179 = vmatprep.subr.mxu0 0.0
    %180 = vmatpush1.msra.mxu0 %v80
    %181 = vmatprep.subr.mxu0 0.0
    %182 = vmatpush1.msra.mxu0 %v81
    %183 = vmatprep.subr.mxu0 0.0
    %184 = vmatpush1.msra.mxu0 %v82
    %185 = vmatprep.subr.mxu0 0.0
    %186 = vmatpush1.msra.mxu0 %v83
    %187 = vmatprep.subr.mxu0 0.0
    %188 = vmatpush1.msra.mxu0 %v84
    %189 = vmatprep.subr.mxu0 0.0
    %190 = vmatpush1.msra.mxu0 %v85
    %191 = vmatprep.subr.mxu0 0.0
    %192 = vmatpush1.msra.mxu0 %v86
    %193 = vmatprep.subr.mxu0 0.0
    %194 = vmatpush1.msra.mxu0 %v87
    %195 = vmatprep.subr.mxu0 0.0
    %196 = vmatpush1.msra.mxu0 %v88
    %197 = vmatprep.subr.mxu0 0.0
    %198 = vmatpush1.msra.mxu0 %v89
    %199 = vmatprep.subr.mxu0 0.0
    %200 = vmatpush1.msra.mxu0 0.0
    %201 = vmatprep.subr.mxu0 0.0
    %202 = vmatpush1.msra.mxu0 0.0
    %203 = vmatprep.subr.mxu0 0.0
    %204 = vmatpush1.msra.mxu0 0.0
    %205 = vmatprep.subr.mxu0 0.0
    %206 = vmatpush1.msra.mxu0 0.0
    %207 = vmatprep.subr.mxu0 0.0
    %208 = vmatpush1.msra.mxu0 0.0
    %209 = vmatprep.subr.mxu0 0.0
    %210 = vmatpush1.msra.mxu0 0.0
    %211 = vmatprep.subr.mxu0 0.0
    %212 = vmatpush1.msra.mxu0 0.0
    %213 = vmatprep.subr.mxu0 0.0
    %214 = vmatpush1.msra.mxu0 0.0
    %215 = vmatprep.subr.mxu0 0.0
    %216 = vmatpush1.msra.mxu0 0.0
    %217 = vmatprep.subr.mxu0 0.0
    %218 = vmatpush1.msra.mxu0 0.0
    %219 = vmatprep.subr.mxu0 0.0
    %220 = vmatpush1.msra.mxu0 0.0
    %221 = vmatprep.subr.mxu0 0.0
    %222 = vmatpush1.msra.mxu0 0.0
    %223 = vmatprep.subr.mxu0 0.0
    %224 = vmatpush1.msra.mxu0 0.0
    %225 = vmatprep.subr.mxu0 0.0
    %226 = vmatpush1.msra.mxu0 0.0
    %227 = vmatprep.subr.mxu0 0.0
    %228 = vmatpush1.msra.mxu0 0.0
    %229 = vmatprep.subr.mxu0 0.0
    %230 = vmatpush1.msra.mxu0 0.0
    %231 = vmatprep.mubr.f32.mxu0 0.0
    %232 = vmatmul.mubr.f32.gmra.mrb[0].mxu0 %v41
    %v233 = vpop.f32.mrb[0].mxu0
    %v234 = vadd.f32 %v164, %v233
    %v235 = vpop.f32.mrb[0].mxu0
    %236 = vdwg.mxu0
    %v237 = vld [vmem:[%s3] sm:$0xff]
    %v238 = vld [vmem:[%s3 + $0x8] sm:$0xff]
    %v239 = vld [vmem:[%s3 + $0x10] sm:$0xff]
    %v240 = vld [vmem:[%s3 + $0x18] sm:$0xff]
    %v241 = vld [vmem:[%s3 + $0x20] sm:$0xff]
    %v242 = vld [vmem:[%s3 + $0x28] sm:$0xff]
    %v243 = vld [vmem:[%s3 + $0x30] sm:$0xff]
    %v244 = vld [vmem:[%s3 + $0x38] sm:$0xff]
    %v245 = vld [vmem:[%s3 + $0x40] sm:$0xff]
    %v246 = vld [vmem:[%s3 + $0x48] sm:$0xff]
    %v247 = vld [vmem:[%s3 + $0x50] sm:$0xff]
    %v248 = vld [vmem:[%s3 + $0x58] sm:$0xff]
    %v249 = vld [vmem:[%s3 + $0x60] sm:$0xff]
    %v250 = vld [vmem:[%s3 + $0x68] sm:$0xff]
    %v251 = vld [vmem:[%s3 + $0x70] sm:$0xff]
    %v252 = vld [vmem:[%s3 + $0x78] sm:$0xff]
    %v253 = vld [vmem:[%s3 + $0x80] sm:$0xff]
    %v254 = vld [vmem:[%s3 + $0x88] sm:$0xff]
    %v255 = vld [vmem:[%s3 + $0x90] sm:$0xff]
    %v256 = vld [vmem:[%s3 + $0x98] sm:$0xff]
    %v257 = vld [vmem:[%s3 + $0xa0] sm:$0xff]
    %v258 = vld [vmem:[%s3 + $0xa8] sm:$0xff]
    %v259 = vld [vmem:[%s3 + $0xb0] sm:$0xff]
    %v260 = vld [vmem:[%s3 + $0xb8] sm:$0xff]
    %v261 = vld [vmem:[%s3 + $0xc0] sm:$0xff]
    %v262 = vld [vmem:[%s3 + $0xc8] sm:$0xff]
    %v263 = vld [vmem:[%s3 + $0xd0] sm:$0xff]
    %v264 = vld [vmem:[%s3 + $0xd8] sm:$0xff]
    %v265 = vld [vmem:[%s3 + $0xe0] sm:$0xff]
    %v266 = vld [vmem:[%s3 + $0xe8] sm:$0xff]
    %v267 = vld [vmem:[%s3 + $0xf0] sm:$0xff]
    %v268 = vld [vmem:[%s3 + $0xf8] sm:$0xff]
    %v269 = vld [vmem:[%s4] sm:$0xff]
    %v271 = vlaneseq
    %v272 = vshrl.u32 %v271, 7
    %v273 = vsub.s32 0, %v272
    %v274 = vrot.slane %v269, %v273
    %v275 = vlaneseq
    %v276 = vshrl.u32 %v275, 7
    %v277 = vsub.s32 1, %v276
    %v278 = vrot.slane %v269, %v277
    %v279 = vlaneseq
    %v280 = vshrl.u32 %v279, 7
    %v281 = vsub.s32 2, %v280
    %v282 = vrot.slane %v269, %v281
    %v283 = vlaneseq
    %v284 = vshrl.u32 %v283, 7
    %v285 = vsub.s32 3, %v284
    %v286 = vrot.slane %v269, %v285
    %v287 = vlaneseq
    %v288 = vshrl.u32 %v287, 7
    %v289 = vsub.s32 4, %v288
    %v290 = vrot.slane %v269, %v289
    %v291 = vlaneseq
    %v292 = vshrl.u32 %v291, 7
    %v293 = vsub.s32 5, %v292
    %v294 = vrot.slane %v269, %v293
    %v295 = vlaneseq
    %v296 = vshrl.u32 %v295, 7
    %v297 = vsub.s32 6, %v296
    %v298 = vrot.slane %v269, %v297
    %v299 = vlaneseq
    %v300 = vshrl.u32 %v299, 7
    %v301 = vsub.s32 7, %v300
    %v302 = vrot.slane %v269, %v301
    %vm311 = vcmask 261120
    %v313 = vsel %vm311, %v234, 0
    %315 = vmatprep.subr.mxu0 %v238
    %316 = vmatpush1.msra.mxu0 %v237
    %317 = vmatprep.subr.mxu0 %v246
    %318 = vmatpush1.msra.mxu0 %v245
    %319 = vmatprep.subr.mxu0 %v254
    %320 = vmatpush1.msra.mxu0 %v253
    %321 = vmatprep.subr.mxu0 %v262
    %322 = vmatpush1.msra.mxu0 %v261
    %323 = vmatprep.subr.mxu0 0.0
    %324 = vmatpush1.msra.mxu0 0.0
    %325 = vmatprep.subr.mxu0 0.0
    %326 = vmatpush1.msra.mxu0 0.0
    %327 = vmatprep.subr.mxu0 0.0
    %328 = vmatpush1.msra.mxu0 0.0
    %329 = vmatprep.subr.mxu0 0.0
    %330 = vmatpush1.msra.mxu0 0.0
    %331 = vmatprep.subr.mxu0 0.0
    %332 = vmatpush1.msra.mxu0 0.0
    %333 = vmatprep.subr.mxu0 0.0
    %334 = vmatpush1.msra.mxu0 0.0
    %335 = vmatprep.subr.mxu0 0.0
    %336 = vmatpush1.msra.mxu0 0.0
    %337 = vmatprep.subr.mxu0 0.0
    %338 = vmatpush1.msra.mxu0 0.0
    %339 = vmatprep.subr.mxu0 0.0
    %340 = vmatpush1.msra.mxu0 0.0
    %341 = vmatprep.subr.mxu0 0.0
    %342 = vmatpush1.msra.mxu0 0.0
    %343 = vmatprep.subr.mxu0 0.0
    %344 = vmatpush1.msra.mxu0 0.0
    %345 = vmatprep.subr.mxu0 0.0
    %346 = vmatpush1.msra.mxu0 0.0
    %347 = vmatprep.subr.mxu0 0.0
    %348 = vmatpush1.msra.mxu0 0.0
    %349 = vmatprep.subr.mxu0 0.0
    %350 = vmatpush1.msra.mxu0 0.0
    %351 = vmatprep.subr.mxu0 0.0
    %352 = vmatpush1.msra.mxu0 0.0
    %353 = vmatprep.subr.mxu0 0.0
    %354 = vmatpush1.msra.mxu0 0.0
    %355 = vmatprep.subr.mxu0 0.0
    %356 = vmatpush1.msra.mxu0 0.0
    %357 = vmatprep.subr.mxu0 0.0
    %358 = vmatpush1.msra.mxu0 0.0
    %359 = vmatprep.subr.mxu0 0.0
    %360 = vmatpush1.msra.mxu0 0.0
    %361 = vmatprep.subr.mxu0 0.0
    %362 = vmatpush1.msra.mxu0 0.0
    %363 = vmatprep.subr.mxu0 0.0
    %364 = vmatpush1.msra.mxu0 0.0
    %365 = vmatprep.subr.mxu0 0.0
    %366 = vmatpush1.msra.mxu0 0.0
    %367 = vmatprep.subr.mxu0 0.0
    %368 = vmatpush1.msra.mxu0 0.0
    %369 = vmatprep.subr.mxu0 0.0
    %370 = vmatpush1.msra.mxu0 0.0
    %371 = vmatprep.subr.mxu0 0.0
    %372 = vmatpush1.msra.mxu0 0.0
    %373 = vmatprep.subr.mxu0 0.0
    %374 = vmatpush1.msra.mxu0 0.0
    %375 = vmatprep.subr.mxu0 0.0
    %376 = vmatpush1.msra.mxu0 0.0
    %377 = vmatprep.subr.mxu0 0.0
    %378 = vmatpush1.msra.mxu0 0.0
    %379 = vmatprep.mubr.f32.mxu0 0.0
    %380 = vmatmul.mubr.f32.gmra.mrb[0].mxu0 %v313
    %v381 = vpop.f32.mrb[0].mxu0
    %v382 = vadd.f32 %v274, %v381
    %v383 = vpop.f32.mrb[0].mxu0
    %v384 = vadd.f32 %v278, %v383
    %385 = vdwg.mxu0
    %386 = vmatprep.subr.mxu0 %v240
    %387 = vmatpush1.msra.mxu0 %v239
    %388 = vmatprep.subr.mxu0 %v248
    %389 = vmatpush1.msra.mxu0 %v247
    %390 = vmatprep.subr.mxu0 %v256
    %391 = vmatpush1.msra.mxu0 %v255
    %392 = vmatprep.subr.mxu0 %v264
    %393 = vmatpush1.msra.mxu0 %v263
    %394 = vmatprep.subr.mxu0 0.0
    %395 = vmatpush1.msra.mxu0 0.0
    %396 = vmatprep.subr.mxu0 0.0
    %397 = vmatpush1.msra.mxu0 0.0
    %398 = vmatprep.subr.mxu0 0.0
    %399 = vmatpush1.msra.mxu0 0.0
    %400 = vmatprep.subr.mxu0 0.0
    %401 = vmatpush1.msra.mxu0 0.0
    %402 = vmatprep.subr.mxu0 0.0
    %403 = vmatpush1.msra.mxu0 0.0
    %404 = vmatprep.subr.mxu0 0.0
    %405 = vmatpush1.msra.mxu0 0.0
    %406 = vmatprep.subr.mxu0 0.0
    %407 = vmatpush1.msra.mxu0 0.0
    %408 = vmatprep.subr.mxu0 0.0
    %409 = vmatpush1.msra.mxu0 0.0
    %410 = vmatprep.subr.mxu0 0.0
    %411 = vmatpush1.msra.mxu0 0.0
    %412 = vmatprep.subr.mxu0 0.0
    %413 = vmatpush1.msra.mxu0 0.0
    %414 = vmatprep.subr.mxu0 0.0
    %415 = vmatpush1.msra.mxu0 0.0
    %416 = vmatprep.subr.mxu0 0.0
    %417 = vmatpush1.msra.mxu0 0.0
    %418 = vmatprep.subr.mxu0 0.0
    %419 = vmatpush1.msra.mxu0 0.0
    %420 = vmatprep.subr.mxu0 0.0
    %421 = vmatpush1.msra.mxu0 0.0
    %422 = vmatprep.subr.mxu0 0.0
    %423 = vmatpush1.msra.mxu0 0.0
    %424 = vmatprep.subr.mxu0 0.0
    %425 = vmatpush1.msra.mxu0 0.0
    %426 = vmatprep.subr.mxu0 0.0
    %427 = vmatpush1.msra.mxu0 0.0
    %428 = vmatprep.subr.mxu0 0.0
    %429 = vmatpush1.msra.mxu0 0.0
    %430 = vmatprep.subr.mxu0 0.0
    %431 = vmatpush1.msra.mxu0 0.0
    %432 = vmatprep.subr.mxu0 0.0
    %433 = vmatpush1.msra.mxu0 0.0
    %434 = vmatprep.subr.mxu0 0.0
    %435 = vmatpush1.msra.mxu0 0.0
    %436 = vmatprep.subr.mxu0 0.0
    %437 = vmatpush1.msra.mxu0 0.0
    %438 = vmatprep.subr.mxu0 0.0
    %439 = vmatpush1.msra.mxu0 0.0
    %440 = vmatprep.subr.mxu0 0.0
    %441 = vmatpush1.msra.mxu0 0.0
    %442 = vmatprep.subr.mxu0 0.0
    %443 = vmatpush1.msra.mxu0 0.0
    %444 = vmatprep.subr.mxu0 0.0
    %445 = vmatpush1.msra.mxu0 0.0
    %446 = vmatprep.subr.mxu0 0.0
    %447 = vmatpush1.msra.mxu0 0.0
    %448 = vmatprep.subr.mxu0 0.0
    %449 = vmatpush1.msra.mxu0 0.0
    %450 = vmatprep.mubr.f32.mxu0 0.0
    %451 = vmatmul.mubr.f32.gmra.mrb[0].mxu0 %v313
    %v452 = vpop.f32.mrb[0].mxu0
    %v453 = vadd.f32 %v282, %v452
    %v454 = vpop.f32.mrb[0].mxu0
    %v455 = vadd.f32 %v286, %v454
    %456 = vdwg.mxu0
    %457 = vmatprep.subr.mxu0 %v242
    %458 = vmatpush1.msra.mxu0 %v241
    %459 = vmatprep.subr.mxu0 %v250
    %460 = vmatpush1.msra.mxu0 %v249
    %461 = vmatprep.subr.mxu0 %v258
    %462 = vmatpush1.msra.mxu0 %v257
    %463 = vmatprep.subr.mxu0 %v266
    %464 = vmatpush1.msra.mxu0 %v265
    %465 = vmatprep.subr.mxu0 0.0
    %466 = vmatpush1.msra.mxu0 0.0
    %467 = vmatprep.subr.mxu0 0.0
    %468 = vmatpush1.msra.mxu0 0.0
    %469 = vmatprep.subr.mxu0 0.0
    %470 = vmatpush1.msra.mxu0 0.0
    %471 = vmatprep.subr.mxu0 0.0
    %472 = vmatpush1.msra.mxu0 0.0
    %473 = vmatprep.subr.mxu0 0.0
    %474 = vmatpush1.msra.mxu0 0.0
    %475 = vmatprep.subr.mxu0 0.0
    %476 = vmatpush1.msra.mxu0 0.0
    %477 = vmatprep.subr.mxu0 0.0
    %478 = vmatpush1.msra.mxu0 0.0
    %479 = vmatprep.subr.mxu0 0.0
    %480 = vmatpush1.msra.mxu0 0.0
    %481 = vmatprep.subr.mxu0 0.0
    %482 = vmatpush1.msra.mxu0 0.0
    %483 = vmatprep.subr.mxu0 0.0
    %484 = vmatpush1.msra.mxu0 0.0
    %485 = vmatprep.subr.mxu0 0.0
    %486 = vmatpush1.msra.mxu0 0.0
    %487 = vmatprep.subr.mxu0 0.0
    %488 = vmatpush1.msra.mxu0 0.0
    %489 = vmatprep.subr.mxu0 0.0
    %490 = vmatpush1.msra.mxu0 0.0
    %491 = vmatprep.subr.mxu0 0.0
    %492 = vmatpush1.msra.mxu0 0.0
    %493 = vmatprep.subr.mxu0 0.0
    %494 = vmatpush1.msra.mxu0 0.0
    %495 = vmatprep.subr.mxu0 0.0
    %496 = vmatpush1.msra.mxu0 0.0
    %497 = vmatprep.subr.mxu0 0.0
    %498 = vmatpush1.msra.mxu0 0.0
    %499 = vmatprep.subr.mxu0 0.0
    %500 = vmatpush1.msra.mxu0 0.0
    %501 = vmatprep.subr.mxu0 0.0
    %502 = vmatpush1.msra.mxu0 0.0
    %503 = vmatprep.subr.mxu0 0.0
    %504 = vmatpush1.msra.mxu0 0.0
    %505 = vmatprep.subr.mxu0 0.0
    %506 = vmatpush1.msra.mxu0 0.0
    %507 = vmatprep.subr.mxu0 0.0
    %508 = vmatpush1.msra.mxu0 0.0
    %509 = vmatprep.subr.mxu0 0.0
    %510 = vmatpush1.msra.mxu0 0.0
    %511 = vmatprep.subr.mxu0 0.0
    %512 = vmatpush1.msra.mxu0 0.0
    %513 = vmatprep.subr.mxu0 0.0
    %514 = vmatpush1.msra.mxu0 0.0
    %515 = vmatprep.subr.mxu0 0.0
    %516 = vmatpush1.msra.mxu0 0.0
    %517 = vmatprep.subr.mxu0 0.0
    %518 = vmatpush1.msra.mxu0 0.0
    %519 = vmatprep.subr.mxu0 0.0
    %520 = vmatpush1.msra.mxu0 0.0
    %521 = vmatprep.mubr.f32.mxu0 0.0
    %522 = vmatmul.mubr.f32.gmra.mrb[0].mxu0 %v313
    %v523 = vpop.f32.mrb[0].mxu0
    %v524 = vadd.f32 %v290, %v523
    %v525 = vpop.f32.mrb[0].mxu0
    %v526 = vadd.f32 %v294, %v525
    %527 = vdwg.mxu0
    %528 = vmatprep.subr.mxu0 %v244
    %529 = vmatpush1.msra.mxu0 %v243
    %530 = vmatprep.subr.mxu0 %v252
    %531 = vmatpush1.msra.mxu0 %v251
    %532 = vmatprep.subr.mxu0 %v260
    %533 = vmatpush1.msra.mxu0 %v259
    %534 = vmatprep.subr.mxu0 %v268
    %535 = vmatpush1.msra.mxu0 %v267
    %536 = vmatprep.subr.mxu0 0.0
    %537 = vmatpush1.msra.mxu0 0.0
    %538 = vmatprep.subr.mxu0 0.0
    %539 = vmatpush1.msra.mxu0 0.0
    %540 = vmatprep.subr.mxu0 0.0
    %541 = vmatpush1.msra.mxu0 0.0
    %542 = vmatprep.subr.mxu0 0.0
    %543 = vmatpush1.msra.mxu0 0.0
    %544 = vmatprep.subr.mxu0 0.0
    %545 = vmatpush1.msra.mxu0 0.0
    %546 = vmatprep.subr.mxu0 0.0
    %547 = vmatpush1.msra.mxu0 0.0
    %548 = vmatprep.subr.mxu0 0.0
    %549 = vmatpush1.msra.mxu0 0.0
    %550 = vmatprep.subr.mxu0 0.0
    %551 = vmatpush1.msra.mxu0 0.0
    %552 = vmatprep.subr.mxu0 0.0
    %553 = vmatpush1.msra.mxu0 0.0
    %554 = vmatprep.subr.mxu0 0.0
    %555 = vmatpush1.msra.mxu0 0.0
    %556 = vmatprep.subr.mxu0 0.0
    %557 = vmatpush1.msra.mxu0 0.0
    %558 = vmatprep.subr.mxu0 0.0
    %559 = vmatpush1.msra.mxu0 0.0
    %560 = vmatprep.subr.mxu0 0.0
    %561 = vmatpush1.msra.mxu0 0.0
    %562 = vmatprep.subr.mxu0 0.0
    %563 = vmatpush1.msra.mxu0 0.0
    %564 = vmatprep.subr.mxu0 0.0
    %565 = vmatpush1.msra.mxu0 0.0
    %566 = vmatprep.subr.mxu0 0.0
    %567 = vmatpush1.msra.mxu0 0.0
    %568 = vmatprep.subr.mxu0 0.0
    %569 = vmatpush1.msra.mxu0 0.0
    %570 = vmatprep.subr.mxu0 0.0
    %571 = vmatpush1.msra.mxu0 0.0
    %572 = vmatprep.subr.mxu0 0.0
    %573 = vmatpush1.msra.mxu0 0.0
    %574 = vmatprep.subr.mxu0 0.0
    %575 = vmatpush1.msra.mxu0 0.0
    %576 = vmatprep.subr.mxu0 0.0
    %577 = vmatpush1.msra.mxu0 0.0
    %578 = vmatprep.subr.mxu0 0.0
    %579 = vmatpush1.msra.mxu0 0.0
    %580 = vmatprep.subr.mxu0 0.0
    %581 = vmatpush1.msra.mxu0 0.0
    %582 = vmatprep.subr.mxu0 0.0
    %583 = vmatpush1.msra.mxu0 0.0
    %584 = vmatprep.subr.mxu0 0.0
    %585 = vmatpush1.msra.mxu0 0.0
    %586 = vmatprep.subr.mxu0 0.0
    %587 = vmatpush1.msra.mxu0 0.0
    %588 = vmatprep.subr.mxu0 0.0
    %589 = vmatpush1.msra.mxu0 0.0
    %590 = vmatprep.subr.mxu0 0.0
    %591 = vmatpush1.msra.mxu0 0.0
    %592 = vmatprep.mubr.f32.mxu0 0.0
    %593 = vmatmul.mubr.f32.gmra.mrb[0].mxu0 %v313
    %v594 = vpop.f32.mrb[0].mxu0
    %v595 = vadd.f32 %v298, %v594
    %v596 = vpop.f32.mrb[0].mxu0
    %v597 = vadd.f32 %v302, %v596
    %598 = vdwg.mxu0
    %v599 = vmax.f32 %v382, 0.0
    %v600 = vmax.f32 %v384, 0.0
    %v601 = vmax.f32 %v453, 0.0
    %v602 = vmax.f32 %v455, 0.0
    %v603 = vmax.f32 %v524, 0.0
    %v604 = vmax.f32 %v526, 0.0
    %v605 = vmax.f32 %v595, 0.0
    %v606 = vmax.f32 %v597, 0.0
    %v607 = vld [vmem:[%s5] sm:$0xff]
    %v608 = vld [vmem:[%s5 + $0x8] sm:$0xff]
    %v609 = vld [vmem:[%s5 + $0x10] sm:$0xff]
    %v610 = vld [vmem:[%s5 + $0x18] sm:$0xff]
    %v611 = vld [vmem:[%s5 + $0x20] sm:$0xff]
    %v612 = vld [vmem:[%s5 + $0x28] sm:$0xff]
    %v613 = vld [vmem:[%s5 + $0x30] sm:$0xff]
    %v614 = vld [vmem:[%s5 + $0x38] sm:$0xff]
    %v615 = vld [vmem:[%s5 + $0x40] sm:$0xff]
    %v616 = vld [vmem:[%s5 + $0x48] sm:$0xff]
    %v617 = vld [vmem:[%s5 + $0x50] sm:$0xff]
    %v618 = vld [vmem:[%s5 + $0x58] sm:$0xff]
    %v619 = vld [vmem:[%s5 + $0x60] sm:$0xff]
    %v620 = vld [vmem:[%s5 + $0x68] sm:$0xff]
    %v621 = vld [vmem:[%s5 + $0x70] sm:$0xff]
    %v622 = vld [vmem:[%s5 + $0x78] sm:$0xff]
    %v623 = vld [vmem:[%s5 + $0x80] sm:$0xff]
    %v624 = vld [vmem:[%s5 + $0x88] sm:$0xff]
    %v625 = vld [vmem:[%s5 + $0x90] sm:$0xff]
    %v626 = vld [vmem:[%s5 + $0x98] sm:$0xff]
    %v627 = vld [vmem:[%s5 + $0xa0] sm:$0xff]
    %v628 = vld [vmem:[%s5 + $0xa8] sm:$0xff]
    %v629 = vld [vmem:[%s5 + $0xb0] sm:$0xff]
    %v630 = vld [vmem:[%s5 + $0xb8] sm:$0xff]
    %v631 = vld [vmem:[%s5 + $0xc0] sm:$0xff]
    %v632 = vld [vmem:[%s5 + $0xc8] sm:$0xff]
    %v633 = vld [vmem:[%s5 + $0xd0] sm:$0xff]
    %v634 = vld [vmem:[%s5 + $0xd8] sm:$0xff]
    %v635 = vld [vmem:[%s5 + $0xe0] sm:$0xff]
    %v636 = vld [vmem:[%s5 + $0xe8] sm:$0xff]
    %v637 = vld [vmem:[%s5 + $0xf0] sm:$0xff]
    %v638 = vld [vmem:[%s5 + $0xf8] sm:$0xff]
    %v639 = vld [vmem:[%s5 + $0x100] sm:$0xff]
    %v640 = vld [vmem:[%s5 + $0x108] sm:$0xff]
    %v641 = vld [vmem:[%s5 + $0x110] sm:$0xff]
    %v642 = vld [vmem:[%s5 + $0x118] sm:$0xff]
    %v643 = vld [vmem:[%s5 + $0x120] sm:$0xff]
    %v644 = vld [vmem:[%s5 + $0x128] sm:$0xff]
    %v645 = vld [vmem:[%s5 + $0x130] sm:$0xff]
    %v646 = vld [vmem:[%s5 + $0x138] sm:$0xff]
    %v647 = vld [vmem:[%s5 + $0x140] sm:$0xff]
    %v648 = vld [vmem:[%s5 + $0x148] sm:$0xff]
    %v649 = vld [vmem:[%s5 + $0x150] sm:$0xff]
    %v650 = vld [vmem:[%s5 + $0x158] sm:$0xff]
    %v651 = vld [vmem:[%s5 + $0x160] sm:$0xff]
    %v652 = vld [vmem:[%s5 + $0x168] sm:$0xff]
    %v653 = vld [vmem:[%s5 + $0x170] sm:$0xff]
    %v654 = vld [vmem:[%s5 + $0x178] sm:$0xff]
    %v655 = vld [vmem:[%s5 + $0x180] sm:$0xff]
    %v656 = vld [vmem:[%s5 + $0x188] sm:$0xff]
    %v657 = vld [vmem:[%s5 + $0x190] sm:$0xff]
    %v658 = vld [vmem:[%s5 + $0x198] sm:$0xff]
    %v659 = vld [vmem:[%s5 + $0x1a0] sm:$0xff]
    %v660 = vld [vmem:[%s5 + $0x1a8] sm:$0xff]
    %v661 = vld [vmem:[%s5 + $0x1b0] sm:$0xff]
    %v662 = vld [vmem:[%s5 + $0x1b8] sm:$0xff]
    %v663 = vld [vmem:[%s5 + $0x1c0] sm:$0xff]
    %v664 = vld [vmem:[%s5 + $0x1c8] sm:$0xff]
    %v665 = vld [vmem:[%s5 + $0x1d0] sm:$0xff]
    %v666 = vld [vmem:[%s5 + $0x1d8] sm:$0xff]
    %v667 = vld [vmem:[%s5 + $0x1e0] sm:$0xff]
    %v668 = vld [vmem:[%s5 + $0x1e8] sm:$0xff]
    %v669 = vld [vmem:[%s5 + $0x1f0] sm:$0xff]
    %v670 = vld [vmem:[%s5 + $0x1f8] sm:$0xff]
    %v671 = vld [vmem:[%s5 + $0x200] sm:$0xff]
    %v672 = vld [vmem:[%s5 + $0x208] sm:$0xff]
    %v673 = vld [vmem:[%s5 + $0x210] sm:$0xff]
    %v674 = vld [vmem:[%s5 + $0x218] sm:$0xff]
    %v675 = vld [vmem:[%s5 + $0x220] sm:$0xff]
    %v676 = vld [vmem:[%s5 + $0x228] sm:$0xff]
    %v677 = vld [vmem:[%s5 + $0x230] sm:$0xff]
    %v678 = vld [vmem:[%s5 + $0x238] sm:$0xff]
    %v679 = vld [vmem:[%s5 + $0x240] sm:$0xff]
    %v680 = vld [vmem:[%s5 + $0x248] sm:$0xff]
    %v681 = vld [vmem:[%s5 + $0x250] sm:$0xff]
    %v682 = vld [vmem:[%s5 + $0x258] sm:$0xff]
    %v683 = vld [vmem:[%s5 + $0x260] sm:$0xff]
    %v684 = vld [vmem:[%s5 + $0x268] sm:$0xff]
    %v685 = vld [vmem:[%s5 + $0x270] sm:$0xff]
    %v686 = vld [vmem:[%s5 + $0x278] sm:$0xff]
    %v687 = vld [vmem:[%s5 + $0x280] sm:$0xff]
    %v688 = vld [vmem:[%s5 + $0x288] sm:$0xff]
    %v689 = vld [vmem:[%s5 + $0x290] sm:$0xff]
    %v690 = vld [vmem:[%s5 + $0x298] sm:$0xff]
    %v691 = vld [vmem:[%s5 + $0x2a0] sm:$0xff]
    %v692 = vld [vmem:[%s5 + $0x2a8] sm:$0xff]
    %v693 = vld [vmem:[%s5 + $0x2b0] sm:$0xff]
    %v694 = vld [vmem:[%s5 + $0x2b8] sm:$0xff]
    %v695 = vld [vmem:[%s5 + $0x2c0] sm:$0xff]
    %v696 = vld [vmem:[%s5 + $0x2c8] sm:$0xff]
    %v697 = vld [vmem:[%s5 + $0x2d0] sm:$0xff]
    %v698 = vld [vmem:[%s5 + $0x2d8] sm:$0xff]
    %v699 = vld [vmem:[%s5 + $0x2e0] sm:$0xff]
    %v700 = vld [vmem:[%s5 + $0x2e8] sm:$0xff]
    %v701 = vld [vmem:[%s5 + $0x2f0] sm:$0xff]
    %v702 = vld [vmem:[%s5 + $0x2f8] sm:$0xff]
    %v703 = vld [vmem:[%s5 + $0x300] sm:$0xff]
    %v704 = vld [vmem:[%s5 + $0x308] sm:$0xff]
    %v705 = vld [vmem:[%s5 + $0x310] sm:$0xff]
    %v706 = vld [vmem:[%s5 + $0x318] sm:$0xff]
    %v707 = vld [vmem:[%s5 + $0x320] sm:$0xff]
    %v708 = vld [vmem:[%s5 + $0x328] sm:$0xff]
    %v709 = vld [vmem:[%s5 + $0x330] sm:$0xff]
    %v710 = vld [vmem:[%s5 + $0x338] sm:$0xff]
    %v711 = vld [vmem:[%s5 + $0x340] sm:$0xff]
    %v712 = vld [vmem:[%s5 + $0x348] sm:$0xff]
    %v713 = vld [vmem:[%s5 + $0x350] sm:$0xff]
    %v714 = vld [vmem:[%s5 + $0x358] sm:$0xff]
    %v715 = vld [vmem:[%s5 + $0x360] sm:$0xff]
    %v716 = vld [vmem:[%s5 + $0x368] sm:$0xff]
    %v717 = vld [vmem:[%s5 + $0x370] sm:$0xff]
    %v718 = vld [vmem:[%s5 + $0x378] sm:$0xff]
    %v719 = vld [vmem:[%s5 + $0x380] sm:$0xff]
    %v720 = vld [vmem:[%s5 + $0x388] sm:$0xff]
    %v721 = vld [vmem:[%s5 + $0x390] sm:$0xff]
    %v722 = vld [vmem:[%s5 + $0x398] sm:$0xff]
    %v723 = vld [vmem:[%s5 + $0x3a0] sm:$0xff]
    %v724 = vld [vmem:[%s5 + $0x3a8] sm:$0xff]
    %v725 = vld [vmem:[%s5 + $0x3b0] sm:$0xff]
    %v726 = vld [vmem:[%s5 + $0x3b8] sm:$0xff]
    %v727 = vld [vmem:[%s5 + $0x3c0] sm:$0xff]
    %v728 = vld [vmem:[%s5 + $0x3c8] sm:$0xff]
    %v729 = vld [vmem:[%s5 + $0x3d0] sm:$0xff]
    %v730 = vld [vmem:[%s5 + $0x3d8] sm:$0xff]
    %v731 = vld [vmem:[%s5 + $0x3e0] sm:$0xff]
    %v732 = vld [vmem:[%s5 + $0x3e8] sm:$0xff]
    %v733 = vld [vmem:[%s5 + $0x3f0] sm:$0xff]
    %v734 = vld [vmem:[%s5 + $0x3f8] sm:$0xff]
    %v735 = vld [vmem:[%s6] sm:$0x1]
    %v737 = vlaneseq
    %v738 = vshrl.u32 %v737, 7
    %v739 = vsub.s32 0, %v738
    %v740 = vrot.slane %v735, %v739
    %742 = vmatprep.subr.mxu0 0.0
    %743 = vmatpush1.msra.mxu0 %v607
    %744 = vmatprep.subr.mxu0 0.0
    %745 = vmatpush1.msra.mxu0 %v608
    %746 = vmatprep.subr.mxu0 0.0
    %747 = vmatpush1.msra.mxu0 %v609
    %748 = vmatprep.subr.mxu0 0.0
    %749 = vmatpush1.msra.mxu0 %v610
    %750 = vmatprep.subr.mxu0 0.0
    %751 = vmatpush1.msra.mxu0 %v611
    %752 = vmatprep.subr.mxu0 0.0
    %753 = vmatpush1.msra.mxu0 %v612
    %754 = vmatprep.subr.mxu0 0.0
    %755 = vmatpush1.msra.mxu0 %v613
    %756 = vmatprep.subr.mxu0 0.0
    %757 = vmatpush1.msra.mxu0 %v614
    %758 = vmatprep.subr.mxu0 0.0
    %759 = vmatpush1.msra.mxu0 %v615
    %760 = vmatprep.subr.mxu0 0.0
    %761 = vmatpush1.msra.mxu0 %v616
    %762 = vmatprep.subr.mxu0 0.0
    %763 = vmatpush1.msra.mxu0 %v617
    %764 = vmatprep.subr.mxu0 0.0
    %765 = vmatpush1.msra.mxu0 %v618
    %766 = vmatprep.subr.mxu0 0.0
    %767 = vmatpush1.msra.mxu0 %v619
    %768 = vmatprep.subr.mxu0 0.0
    %769 = vmatpush1.msra.mxu0 %v620
    %770 = vmatprep.subr.mxu0 0.0
    %771 = vmatpush1.msra.mxu0 %v621
    %772 = vmatprep.subr.mxu0 0.0
    %773 = vmatpush1.msra.mxu0 %v622
    %774 = vmatprep.subr.mxu0 0.0
    %775 = vmatpush1.msra.mxu0 %v623
    %776 = vmatprep.subr.mxu0 0.0
    %777 = vmatpush1.msra.mxu0 %v624
    %778 = vmatprep.subr.mxu0 0.0
    %779 = vmatpush1.msra.mxu0 %v625
    %780 = vmatprep.subr.mxu0 0.0
    %781 = vmatpush1.msra.mxu0 %v626
    %782 = vmatprep.subr.mxu0 0.0
    %783 = vmatpush1.msra.mxu0 %v627
    %784 = vmatprep.subr.mxu0 0.0
    %785 = vmatpush1.msra.mxu0 %v628
    %786 = vmatprep.subr.mxu0 0.0
    %787 = vmatpush1.msra.mxu0 %v629
    %788 = vmatprep.subr.mxu0 0.0
    %789 = vmatpush1.msra.mxu0 %v630
    %790 = vmatprep.subr.mxu0 0.0
    %791 = vmatpush1.msra.mxu0 %v631
    %792 = vmatprep.subr.mxu0 0.0
    %793 = vmatpush1.msra.mxu0 %v632
    %794 = vmatprep.subr.mxu0 0.0
    %795 = vmatpush1.msra.mxu0 %v633
    %796 = vmatprep.subr.mxu0 0.0
    %797 = vmatpush1.msra.mxu0 %v634
    %798 = vmatprep.subr.mxu0 0.0
    %799 = vmatpush1.msra.mxu0 %v635
    %800 = vmatprep.subr.mxu0 0.0
    %801 = vmatpush1.msra.mxu0 %v636
    %802 = vmatprep.subr.mxu0 0.0
    %803 = vmatpush1.msra.mxu0 %v637
    %804 = vmatprep.subr.mxu0 0.0
    %805 = vmatpush1.msra.mxu0 %v638
    %806 = vmatprep.mubr.f32.mxu0 %v600
    %807 = vmatmul.mubr.f32.gmra.mrb[0].mxu0 %v599
    %v808 = vpop.f32.mrb[0].mxu0
    %v809 = vadd.f32 %v740, %v808
    %v810 = vpop.f32.mrb[0].mxu0
    %811 = vdwg.mxu0
    %812 = vmatprep.subr.mxu0 0.0
    %813 = vmatpush1.msra.mxu0 %v639
    %814 = vmatprep.subr.mxu0 0.0
    %815 = vmatpush1.msra.mxu0 %v640
    %816 = vmatprep.subr.mxu0 0.0
    %817 = vmatpush1.msra.mxu0 %v641
    %818 = vmatprep.subr.mxu0 0.0
    %819 = vmatpush1.msra.mxu0 %v642
    %820 = vmatprep.subr.mxu0 0.0
    %821 = vmatpush1.msra.mxu0 %v643
    %822 = vmatprep.subr.mxu0 0.0
    %823 = vmatpush1.msra.mxu0 %v644
    %824 = vmatprep.subr.mxu0 0.0
    %825 = vmatpush1.msra.mxu0 %v645
    %826 = vmatprep.subr.mxu0 0.0
    %827 = vmatpush1.msra.mxu0 %v646
    %828 = vmatprep.subr.mxu0 0.0
    %829 = vmatpush1.msra.mxu0 %v647
    %830 = vmatprep.subr.mxu0 0.0
    %831 = vmatpush1.msra.mxu0 %v648
    %832 = vmatprep.subr.mxu0 0.0
    %833 = vmatpush1.msra.mxu0 %v649
    %834 = vmatprep.subr.mxu0 0.0
    %835 = vmatpush1.msra.mxu0 %v650
    %836 = vmatprep.subr.mxu0 0.0
    %837 = vmatpush1.msra.mxu0 %v651
    %838 = vmatprep.subr.mxu0 0.0
    %839 = vmatpush1.msra.mxu0 %v652
    %840 = vmatprep.subr.mxu0 0.0
    %841 = vmatpush1.msra.mxu0 %v653
    %842 = vmatprep.subr.mxu0 0.0
    %843 = vmatpush1.msra.mxu0 %v654
    %844 = vmatprep.subr.mxu0 0.0
    %845 = vmatpush1.msra.mxu0 %v655
    %846 = vmatprep.subr.mxu0 0.0
    %847 = vmatpush1.msra.mxu0 %v656
    %848 = vmatprep.subr.mxu0 0.0
    %849 = vmatpush1.msra.mxu0 %v657
    %850 = vmatprep.subr.mxu0 0.0
    %851 = vmatpush1.msra.mxu0 %v658
    %852 = vmatprep.subr.mxu0 0.0
    %853 = vmatpush1.msra.mxu0 %v659
    %854 = vmatprep.subr.mxu0 0.0
    %855 = vmatpush1.msra.mxu0 %v660
    %856 = vmatprep.subr.mxu0 0.0
    %857 = vmatpush1.msra.mxu0 %v661
    %858 = vmatprep.subr.mxu0 0.0
    %859 = vmatpush1.msra.mxu0 %v662
    %860 = vmatprep.subr.mxu0 0.0
    %861 = vmatpush1.msra.mxu0 %v663
    %862 = vmatprep.subr.mxu0 0.0
    %863 = vmatpush1.msra.mxu0 %v664
    %864 = vmatprep.subr.mxu0 0.0
    %865 = vmatpush1.msra.mxu0 %v665
    %866 = vmatprep.subr.mxu0 0.0
    %867 = vmatpush1.msra.mxu0 %v666
    %868 = vmatprep.subr.mxu0 0.0
    %869 = vmatpush1.msra.mxu0 %v667
    %870 = vmatprep.subr.mxu0 0.0
    %871 = vmatpush1.msra.mxu0 %v668
    %872 = vmatprep.subr.mxu0 0.0
    %873 = vmatpush1.msra.mxu0 %v669
    %874 = vmatprep.subr.mxu0 0.0
    %875 = vmatpush1.msra.mxu0 %v670
    %876 = vmatprep.mubr.f32.mxu0 %v602
    %877 = vmatmul.mubr.f32.gmra.mrb[0].mxu0 %v601
    %v878 = vpop.f32.mrb[0].mxu0
    %v879 = vadd.f32 %v809, %v878
    %v880 = vpop.f32.mrb[0].mxu0
    %881 = vdwg.mxu0
    %882 = vmatprep.subr.mxu0 0.0
    %883 = vmatpush1.msra.mxu0 %v671
    %884 = vmatprep.subr.mxu0 0.0
    %885 = vmatpush1.msra.mxu0 %v672
    %886 = vmatprep.subr.mxu0 0.0
    %887 = vmatpush1.msra.mxu0 %v673
    %888 = vmatprep.subr.mxu0 0.0
    %889 = vmatpush1.msra.mxu0 %v674
    %890 = vmatprep.subr.mxu0 0.0
    %891 = vmatpush1.msra.mxu0 %v675
    %892 = vmatprep.subr.mxu0 0.0
    %893 = vmatpush1.msra.mxu0 %v676
    %894 = vmatprep.subr.mxu0 0.0
    %895 = vmatpush1.msra.mxu0 %v677
    %896 = vmatprep.subr.mxu0 0.0
    %897 = vmatpush1.msra.mxu0 %v678
    %898 = vmatprep.subr.mxu0 0.0
    %899 = vmatpush1.msra.mxu0 %v679
    %900 = vmatprep.subr.mxu0 0.0
    %901 = vmatpush1.msra.mxu0 %v680
    %902 = vmatprep.subr.mxu0 0.0
    %903 = vmatpush1.msra.mxu0 %v681
    %904 = vmatprep.subr.mxu0 0.0
    %905 = vmatpush1.msra.mxu0 %v682
    %906 = vmatprep.subr.mxu0 0.0
    %907 = vmatpush1.msra.mxu0 %v683
    %908 = vmatprep.subr.mxu0 0.0
    %909 = vmatpush1.msra.mxu0 %v684
    %910 = vmatprep.subr.mxu0 0.0
    %911 = vmatpush1.msra.mxu0 %v685
    %912 = vmatprep.subr.mxu0 0.0
    %913 = vmatpush1.msra.mxu0 %v686
    %914 = vmatprep.subr.mxu0 0.0
    %915 = vmatpush1.msra.mxu0 %v687
    %916 = vmatprep.subr.mxu0 0.0
    %917 = vmatpush1.msra.mxu0 %v688
    %918 = vmatprep.subr.mxu0 0.0
    %919 = vmatpush1.msra.mxu0 %v689
    %920 = vmatprep.subr.mxu0 0.0
    %921 = vmatpush1.msra.mxu0 %v690
    %922 = vmatprep.subr.mxu0 0.0
    %923 = vmatpush1.msra.mxu0 %v691
    %924 = vmatprep.subr.mxu0 0.0
    %925 = vmatpush1.msra.mxu0 %v692
    %926 = vmatprep.subr.mxu0 0.0
    %927 = vmatpush1.msra.mxu0 %v693
    %928 = vmatprep.subr.mxu0 0.0
    %929 = vmatpush1.msra.mxu0 %v694
    %930 = vmatprep.subr.mxu0 0.0
    %931 = vmatpush1.msra.mxu0 %v695
    %932 = vmatprep.subr.mxu0 0.0
    %933 = vmatpush1.msra.mxu0 %v696
    %934 = vmatprep.subr.mxu0 0.0
    %935 = vmatpush1.msra.mxu0 %v697
    %936 = vmatprep.subr.mxu0 0.0
    %937 = vmatpush1.msra.mxu0 %v698
    %938 = vmatprep.subr.mxu0 0.0
    %939 = vmatpush1.msra.mxu0 %v699
    %940 = vmatprep.subr.mxu0 0.0
    %941 = vmatpush1.msra.mxu0 %v700
    %942 = vmatprep.subr.mxu0 0.0
    %943 = vmatpush1.msra.mxu0 %v701
    %944 = vmatprep.subr.mxu0 0.0
    %945 = vmatpush1.msra.mxu0 %v702
    %946 = vmatprep.mubr.f32.mxu0 %v604
    %947 = vmatmul.mubr.f32.gmra.mrb[0].mxu0 %v603
    %v948 = vpop.f32.mrb[0].mxu0
    %v949 = vadd.f32 %v879, %v948
    %v950 = vpop.f32.mrb[0].mxu0
    %951 = vdwg.mxu0
    %952 = vmatprep.subr.mxu0 0.0
    %953 = vmatpush1.msra.mxu0 %v703
    %954 = vmatprep.subr.mxu0 0.0
    %955 = vmatpush1.msra.mxu0 %v704
    %956 = vmatprep.subr.mxu0 0.0
    %957 = vmatpush1.msra.mxu0 %v705
    %958 = vmatprep.subr.mxu0 0.0
    %959 = vmatpush1.msra.mxu0 %v706
    %960 = vmatprep.subr.mxu0 0.0
    %961 = vmatpush1.msra.mxu0 %v707
    %962 = vmatprep.subr.mxu0 0.0
    %963 = vmatpush1.msra.mxu0 %v708
    %964 = vmatprep.subr.mxu0 0.0
    %965 = vmatpush1.msra.mxu0 %v709
    %966 = vmatprep.subr.mxu0 0.0
    %967 = vmatpush1.msra.mxu0 %v710
    %968 = vmatprep.subr.mxu0 0.0
    %969 = vmatpush1.msra.mxu0 %v711
    %970 = vmatprep.subr.mxu0 0.0
    %971 = vmatpush1.msra.mxu0 %v712
    %972 = vmatprep.subr.mxu0 0.0
    %973 = vmatpush1.msra.mxu0 %v713
    %974 = vmatprep.subr.mxu0 0.0
    %975 = vmatpush1.msra.mxu0 %v714
    %976 = vmatprep.subr.mxu0 0.0
    %977 = vmatpush1.msra.mxu0 %v715
    %978 = vmatprep.subr.mxu0 0.0
    %979 = vmatpush1.msra.mxu0 %v716
    %980 = vmatprep.subr.mxu0 0.0
    %981 = vmatpush1.msra.mxu0 %v717
    %982 = vmatprep.subr.mxu0 0.0
    %983 = vmatpush1.msra.mxu0 %v718
    %984 = vmatprep.subr.mxu0 0.0
    %985 = vmatpush1.msra.mxu0 %v719
    %986 = vmatprep.subr.mxu0 0.0
    %987 = vmatpush1.msra.mxu0 %v720
    %988 = vmatprep.subr.mxu0 0.0
    %989 = vmatpush1.msra.mxu0 %v721
    %990 = vmatprep.subr.mxu0 0.0
    %991 = vmatpush1.msra.mxu0 %v722
    %992 = vmatprep.subr.mxu0 0.0
    %993 = vmatpush1.msra.mxu0 %v723
    %994 = vmatprep.subr.mxu0 0.0
    %995 = vmatpush1.msra.mxu0 %v724
    %996 = vmatprep.subr.mxu0 0.0
    %997 = vmatpush1.msra.mxu0 %v725
    %998 = vmatprep.subr.mxu0 0.0
    %999 = vmatpush1.msra.mxu0 %v726
    %1000 = vmatprep.subr.mxu0 0.0
    %1001 = vmatpush1.msra.mxu0 %v727
    %1002 = vmatprep.subr.mxu0 0.0
    %1003 = vmatpush1.msra.mxu0 %v728
    %1004 = vmatprep.subr.mxu0 0.0
    %1005 = vmatpush1.msra.mxu0 %v729
    %1006 = vmatprep.subr.mxu0 0.0
    %1007 = vmatpush1.msra.mxu0 %v730
    %1008 = vmatprep.subr.mxu0 0.0
    %1009 = vmatpush1.msra.mxu0 %v731
    %1010 = vmatprep.subr.mxu0 0.0
    %1011 = vmatpush1.msra.mxu0 %v732
    %1012 = vmatprep.subr.mxu0 0.0
    %1013 = vmatpush1.msra.mxu0 %v733
    %1014 = vmatprep.subr.mxu0 0.0
    %1015 = vmatpush1.msra.mxu0 %v734
    %1016 = vmatprep.mubr.f32.mxu0 %v606
    %1017 = vmatmul.mubr.f32.gmra.mrb[0].mxu0 %v605
    %v1018 = vpop.f32.mrb[0].mxu0
    %v1019 = vadd.f32 %v949, %v1018
    %v1020 = vpop.f32.mrb[0].mxu0
    %1021 = vdwg.mxu0
    %1022 = vst.msk [vmem:[#allocation2] sm:$0xff] %vm311, %v234
    %1023 = vst.msk [vmem:[#allocation4] sm:$0xff] %vm311, %v1019
    // Predicated region
    $region30: #{encoder_forward.3} parent=1 // pred_check
      _
    $region31: #{encoder_forward.3} parent=1 // pred_check_branch
      %1025 = sbr.rel (0) target = $region33
    $region32: #{encoder_forward.3} parent=1 // pred_region
      %s1027 = ssub.s32 128, 128
      %1028 = vsyncadd [#allocation3], %s1027
      %s1030 = sshll.u32 [#allocation2], 4
      %s1031 = int_to_ptr.vmem [resolvable:$true] %s1030
      %1033 = dma.vmem_to_hbm [thread:$0]  %s1031, 128, %s7, [#allocation3]
    $region33: #{encoder_forward.3} parent=1 // pred_fallthru
      _
    // Predicated region
    $region34: #{encoder_forward.3} parent=1 // pred_check
      _
    $region35: #{encoder_forward.3} parent=1 // pred_check_branch
      %1035 = sbr.rel (0) target = $region37
    $region36: #{encoder_forward.3} parent=1 // pred_region
      %s1037 = ssub.s32 128, 128
      %1038 = vsyncadd [#allocation5], %s1037
      %s1040 = sshll.u32 [#allocation4], 4
      %s1041 = int_to_ptr.vmem [resolvable:$true] %s1040
      %1043 = dma.vmem_to_hbm [thread:$0]  %s1041, 128, %s8, [#allocation5]
    $region37: #{encoder_forward.3} parent=1 // pred_fallthru
      _
    // Predicated region
    $region38: #{encoder_forward.3} parent=1 // pred_check
      _
    $region39: #{encoder_forward.3} parent=1 // pred_check_branch
      %1045 = sbr.rel (0) target = $region41
    $region40: #{encoder_forward.3} parent=1 // pred_region
      %1046 = dma.done [#allocation3], 128
    $region41: #{encoder_forward.3} parent=1 // pred_fallthru
      _
    // Predicated region
    $region42: #{encoder_forward.3} parent=1 // pred_check
      _
    $region43: #{encoder_forward.3} parent=1 // pred_check_branch
      %1048 = sbr.rel (0) target = $region45
    $region44: #{encoder_forward.3} parent=1 // pred_region
      %1049 = dma.done [#allocation5], 128
    $region45: #{encoder_forward.3} parent=1 // pred_fallthru
      _
    %1050 = vsyncpa [#allocation3], 1
    %1051 = vsyncpa [#allocation5], 1

// kernel: encoder_forward.2
$region0: #{encoder_forward.2}
  #allocation0 [shape = 'u32[]', space=smem, size = 0x4, offset = 0x4, fixed_abs, tag = 'smem constant byte address 0x4 - core index']
  #allocation1 [shape = 'u32[144,128]{1,0:T(1,128)}', space=vmem, size = 0x12000, scoped, tag = 'internal scratch']
  %s0 = inlined_call_operand.vmem [shape: f32[16,384], index: 0, kind: input, shape index: {}]
  %s1 = inlined_call_operand.vmem [shape: f32[6,384,960], index: 1, kind: input, shape index: {}]
  %s2 = inlined_call_operand.vmem [shape: f32[6,1,960], index: 2, kind: input, shape index: {}]
  %s3 = inlined_call_operand.vmem [shape: f32[6,320,384], index: 3, kind: input, shape index: {}]
  %s4 = inlined_call_operand.vmem [shape: f32[6,1,384], index: 4, kind: input, shape index: {}]
  %s5 = inlined_call_operand.vmem [shape: f32[6,1,384], index: 5, kind: input, shape index: {}]
  %s6 = inlined_call_operand.vmem [shape: f32[6,1,384], index: 6, kind: input, shape index: {}]
  %s7 = inlined_call_operand.hbm [shape: f32[6,384,2048], index: 7, kind: input, shape index: {}]
  %s8 = inlined_call_operand.vmem [shape: f32[6,1,2048], index: 8, kind: input, shape index: {}]
  %s9 = inlined_call_operand.hbm [shape: f32[6,2048,384], index: 9, kind: input, shape index: {}]
  %s10 = inlined_call_operand.vmem [shape: f32[6,1,384], index: 10, kind: input, shape index: {}]
  %s11 = inlined_call_operand.vmem [shape: f32[6,1,384], index: 11, kind: input, shape index: {}]
  %s12 = inlined_call_operand.vmem [shape: f32[6,1,384], index: 12, kind: input, shape index: {}]
  %s13 = inlined_call_operand.vmem [shape: f32[16,384], index: 13, kind: output, shape index: {}]
  %s14 = sld [smem:[#allocation0]]
  $region97: #{encoder_forward.2} parent=0
    _
  %s16 = ssub.s32 1, %s14
  %s17 = scalar_select 0, %s16, %s14
  $region1: #{encoder_forward.2} parent=0
    #allocation2 [shape = 'u8[6291456]{0}', space=vmem, size = 0x600000, scoped, tag = 'input window, operand 7']
    #allocation3 [shape = 's32[2]{0}', space=sflag, size = 0x8, scoped, tag = 'scoped memory for encoder_forward.2']
    #allocation4 [shape = 'u8[6291456]{0}', space=vmem, size = 0x600000, scoped, tag = 'input window, operand 9']
    #allocation5 [shape = 's32[2]{0}', space=sflag, size = 0x8, scoped, tag = 'scoped memory for encoder_forward.2']
    %18 = vsyncpa [#allocation3], 0
    %s19 = scalar_lea.sflag [#allocation3], 1
    %20 = vsyncpa %s19, 0
    %21 = vsyncpa [#allocation5], 0
    %s22 = scalar_lea.sflag [#allocation5], 1
    %23 = vsyncpa %s22, 0
    loop: start=0, step=1, limit=8
    $region2: #{encoder_forward.2} parent=1 // loop_pre_header
      _
    $region3: #{encoder_forward.2} parent=1 // loop_header
      %s25 = sphi 0, %s29
      %p26 = scmp.ge.s32.totalorder %s25, 8
      %s33 = sphi 0, %s33
      %s35 = sphi 0, %s33
      %s36 = sphi 0, %s35
      %s50 = sphi 0, %s36
      %s56 = sphi 0, %s58
      %s59 = sphi 0, %s56
      %s60 = sphi 0, %s59
      %s76 = sphi 0, %s60
      %s82 = sphi 0, %s84
      %s85 = sphi 0, %s82
      %s86 = sphi 0, %s85
      %s102 = sphi 0, %s86
      %s108 = sphi 0, %s110
      %s111 = sphi 0, %s108
      %s112 = sphi 0, %s111
      %s128 = sphi 0, %s112
      %s134 = sphi 0, %s136
      %s137 = sphi 0, %s134
      %s138 = sphi 0, %s137
      %s154 = sphi 0, %s138
      %s160 = sphi 0, %s162
      %s163 = sphi 0, %s160
      %s164 = sphi 0, %s163
      %s180 = sphi 0, %s164
      %s186 = sphi 0, %s188
      %s189 = sphi 0, %s186
      %s190 = sphi 0, %s189
      %s206 = sphi 0, %s190
      %s212 = sphi 0, %s214
      %s215 = sphi 0, %s212
      %s216 = sphi 0, %s215
      %s232 = sphi 0, %s216
      %s238 = sphi 0, %s240
      %s241 = sphi 0, %s238
      %s242 = sphi 0, %s241
      %s258 = sphi 0, %s242
      %s264 = sphi 0, %s266
      %s267 = sphi 0, %s264
      %s268 = sphi 0, %s267
      %s284 = sphi 0, %s268
      %s290 = sphi 0, %s292
      %s293 = sphi 0, %s290
      %s294 = sphi 0, %s293
      %s310 = sphi 0, %s294
      %s316 = sphi 0, %s318
      %s319 = sphi 0, %s316
      %s320 = sphi 0, %s319
      %s336 = sphi 0, %s320
      %s342 = sphi 0, %s344
      %s345 = sphi 0, %s342
      %s346 = sphi 0, %s345
      %s362 = sphi 0, %s346
      %s366 = sphi 0, %s366
      %s368 = sphi 0, %s366
      %s369 = sphi 0, %s368
      %s383 = sphi 0, %s369
    $region4: #{encoder_forward.2} parent=1 // loop_header_branch
      %28 = sbr.rel (%p26) target = $region8
    $region5: #{encoder_forward.2} parent=1 // loop_body
      %s30 = ssub.s32 %s25, 1
      %s31 = ssub.s32 %s25, 2
      %s32 = sadd.s32 %s25, 1
      %s34 = sadd.s32 %s33, 1
      %p37 = scmp.eq.s32.totalorder %s25, 5
      %p38 = scmp.ne.s32.totalorder %s33, %s35
      %p39 = scmp.eq.s32.totalorder %s25, 0
      %p40 = por %p38, %p39
      %p41 = scmp.ne.s32.totalorder %s33, %s35
      %p42 = scmp.eq.s32.totalorder %s30, 5
      %p43 = por %p41, %p42
      %p44 = scmp.ne.s32.totalorder %s35, %s36
      %p45 = scmp.eq.s32.totalorder %s30, 0
      %p46 = por %p44, %p45
      %p47 = scmp.ne.s32.totalorder %s35, %s36
      %p48 = scmp.eq.s32.totalorder %s31, 5
      %p49 = por %p47, %p48
      %p51 = scmp.ne.s32.totalorder %s36, %s50
      %p52 = scmp.eq.s32.totalorder %s31, 0
      %p53 = por %p51, %p52
      %s54 = ssub.s32 %s25, %s32
      %p55 = scmp.eq.s32.totalorder %s54, 0
      %s57 = sadd.s32 %s56, 1
      %s58 = scalar_select %p55, %s56, %s57
      %p61 = pneg %p55
      %p62 = scmp.eq.s32.totalorder %s25, 5
      %p63 = por %p61, %p62
      %p64 = scmp.ne.s32.totalorder %s56, %s59
      %p65 = scmp.eq.s32.totalorder %s25, 0
      %p66 = por %p64, %p65
      %p67 = scmp.ne.s32.totalorder %s56, %s59
      %p68 = scmp.eq.s32.totalorder %s30, 5
      %p69 = por %p67, %p68
      %p70 = scmp.ne.s32.totalorder %s59, %s60
      %p71 = scmp.eq.s32.totalorder %s30, 0
      %p72 = por %p70, %p71
      %p73 = scmp.ne.s32.totalorder %s59, %s60
      %p74 = scmp.eq.s32.totalorder %s31, 5
      %p75 = por %p73, %p74
      %p77 = scmp.ne.s32.totalorder %s60, %s76
      %p78 = scmp.eq.s32.totalorder %s31, 0
      %p79 = por %p77, %p78
      %s80 = ssub.s32 %s25, %s32
      %p81 = scmp.eq.s32.totalorder %s80, 0
      %s83 = sadd.s32 %s82, 1
      %s84 = scalar_select %p81, %s82, %s83
      %p87 = pneg %p81
      %p88 = scmp.eq.s32.totalorder %s25, 5
      %p89 = por %p87, %p88
      %p90 = scmp.ne.s32.totalorder %s82, %s85
      %p91 = scmp.eq.s32.totalorder %s25, 0
      %p92 = por %p90, %p91
      %p93 = scmp.ne.s32.totalorder %s82, %s85
      %p94 = scmp.eq.s32.totalorder %s30, 5
      %p95 = por %p93, %p94
      %p96 = scmp.ne.s32.totalorder %s85, %s86
      %p97 = scmp.eq.s32.totalorder %s30, 0
      %p98 = por %p96, %p97
      %p99 = scmp.ne.s32.totalorder %s85, %s86
      %p100 = scmp.eq.s32.totalorder %s31, 5
      %p101 = por %p99, %p100
      %p103 = scmp.ne.s32.totalorder %s86, %s102
      %p104 = scmp.eq.s32.totalorder %s31, 0
      %p105 = por %p103, %p104
      %s106 = ssub.s32 %s25, %s32
      %p107 = scmp.eq.s32.totalorder %s106, 0
      %s109 = sadd.s32 %s108, 1
      %s110 = scalar_select %p107, %s108, %s109
      %p113 = pneg %p107
      %p114 = scmp.eq.s32.totalorder %s25, 5
      %p115 = por %p113, %p114
      %p116 = scmp.ne.s32.totalorder %s108, %s111
      %p117 = scmp.eq.s32.totalorder %s25, 0
      %p118 = por %p116, %p117
      %p119 = scmp.ne.s32.totalorder %s108, %s111
      %p120 = scmp.eq.s32.totalorder %s30, 5
      %p121 = por %p119, %p120
      %p122 = scmp.ne.s32.totalorder %s111, %s112
      %p123 = scmp.eq.s32.totalorder %s30, 0
      %p124 = por %p122, %p123
      %p125 = scmp.ne.s32.totalorder %s111, %s112
      %p126 = scmp.eq.s32.totalorder %s31, 5
      %p127 = por %p125, %p126
      %p129 = scmp.ne.s32.totalorder %s112, %s128
      %p130 = scmp.eq.s32.totalorder %s31, 0
      %p131 = por %p129, %p130
      %s132 = ssub.s32 %s25, %s32
      %p133 = scmp.eq.s32.totalorder %s132, 0
      %s135 = sadd.s32 %s134, 1
      %s136 = scalar_select %p133, %s134, %s135
      %p139 = pneg %p133
      %p140 = scmp.eq.s32.totalorder %s25, 5
      %p141 = por %p139, %p140
      %p142 = scmp.ne.s32.totalorder %s134, %s137
      %p143 = scmp.eq.s32.totalorder %s25, 0
      %p144 = por %p142, %p143
      %p145 = scmp.ne.s32.totalorder %s134, %s137
      %p146 = scmp.eq.s32.totalorder %s30, 5
      %p147 = por %p145, %p146
      %p148 = scmp.ne.s32.totalorder %s137, %s138
      %p149 = scmp.eq.s32.totalorder %s30, 0
      %p150 = por %p148, %p149
      %p151 = scmp.ne.s32.totalorder %s137, %s138
      %p152 = scmp.eq.s32.totalorder %s31, 5
      %p153 = por %p151, %p152
      %p155 = scmp.ne.s32.totalorder %s138, %s154
      %p156 = scmp.eq.s32.totalorder %s31, 0
      %p157 = por %p155, %p156
      %s158 = ssub.s32 %s25, %s32
      %p159 = scmp.eq.s32.totalorder %s158, 0
      %s161 = sadd.s32 %s160, 1
      %s162 = scalar_select %p159, %s160, %s161
      %p165 = pneg %p159
      %p166 = scmp.eq.s32.totalorder %s25, 5
      %p167 = por %p165, %p166
      %p168 = scmp.ne.s32.totalorder %s160, %s163
      %p169 = scmp.eq.s32.totalorder %s25, 0
      %p170 = por %p168, %p169
      %p171 = scmp.ne.s32.totalorder %s160, %s163
      %p172 = scmp.eq.s32.totalorder %s30, 5
      %p173 = por %p171, %p172
      %p174 = scmp.ne.s32.totalorder %s163, %s164
      %p175 = scmp.eq.s32.totalorder %s30, 0
      %p176 = por %p174, %p175
      %p177 = scmp.ne.s32.totalorder %s163, %s164
      %p178 = scmp.eq.s32.totalorder %s31, 5
      %p179 = por %p177, %p178
      %p181 = scmp.ne.s32.totalorder %s164, %s180
      %p182 = scmp.eq.s32.totalorder %s31, 0
      %p183 = por %p181, %p182
      %s184 = ssub.s32 %s25, %s32
      %p185 = scmp.eq.s32.totalorder %s184, 0
      %s187 = sadd.s32 %s186, 1
      %s188 = scalar_select %p185, %s186, %s187
      %p191 = pneg %p185
      %p192 = scmp.eq.s32.totalorder %s25, 5
      %p193 = por %p191, %p192
      %p194 = scmp.ne.s32.totalorder %s186, %s189
      %p195 = scmp.eq.s32.totalorder %s25, 0
      %p196 = por %p194, %p195
      %p197 = scmp.ne.s32.totalorder %s186, %s189
      %p198 = scmp.eq.s32.totalorder %s30, 5
      %p199 = por %p197, %p198
      %p200 = scmp.ne.s32.totalorder %s189, %s190
      %p201 = scmp.eq.s32.totalorder %s30, 0
      %p202 = por %p200, %p201
      %p203 = scmp.ne.s32.totalorder %s189, %s190
      %p204 = scmp.eq.s32.totalorder %s31, 5
      %p205 = por %p203, %p204
      %p207 = scmp.ne.s32.totalorder %s190, %s206
      %p208 = scmp.eq.s32.totalorder %s31, 0
      %p209 = por %p207, %p208
      %s210 = ssub.s32 %s25, %s32
      %p211 = scmp.eq.s32.totalorder %s210, 0
      %s213 = sadd.s32 %s212, 1
      %s214 = scalar_select %p211, %s212, %s213
      %p217 = pneg %p211
      %p218 = scmp.eq.s32.totalorder %s25, 5
      %p219 = por %p217, %p218
      %p220 = scmp.ne.s32.totalorder %s212, %s215
      %p221 = scmp.eq.s32.totalorder %s25, 0
      %p222 = por %p220, %p221
      %p223 = scmp.ne.s32.totalorder %s212, %s215
      %p224 = scmp.eq.s32.totalorder %s30, 5
      %p225 = por %p223, %p224
      %p226 = scmp.ne.s32.totalorder %s215, %s216
      %p227 = scmp.eq.s32.totalorder %s30, 0
      %p228 = por %p226, %p227
      %p229 = scmp.ne.s32.totalorder %s215, %s216
      %p230 = scmp.eq.s32.totalorder %s31, 5
      %p231 = por %p229, %p230
      %p233 = scmp.ne.s32.totalorder %s216, %s232
      %p234 = scmp.eq.s32.totalorder %s31, 0
      %p235 = por %p233, %p234
      %s236 = ssub.s32 %s25, %s32
      %p237 = scmp.eq.s32.totalorder %s236, 0
      %s239 = sadd.s32 %s238, 1
      %s240 = scalar_select %p237, %s238, %s239
      %p243 = pneg %p237
      %p244 = scmp.eq.s32.totalorder %s25, 5
      %p245 = por %p243, %p244
      %p246 = scmp.ne.s32.totalorder %s238, %s241
      %p247 = scmp.eq.s32.totalorder %s25, 0
      %p248 = por %p246, %p247
      %p249 = scmp.ne.s32.totalorder %s238, %s241
      %p250 = scmp.eq.s32.totalorder %s30, 5
      %p251 = por %p249, %p250
      %p252 = scmp.ne.s32.totalorder %s241, %s242
      %p253 = scmp.eq.s32.totalorder %s30, 0
      %p254 = por %p252, %p253
      %p255 = scmp.ne.s32.totalorder %s241, %s242
      %p256 = scmp.eq.s32.totalorder %s31, 5
      %p257 = por %p255, %p256
      %p259 = scmp.ne.s32.totalorder %s242, %s258
      %p260 = scmp.eq.s32.totalorder %s31, 0
      %p261 = por %p259, %p260
      %s262 = ssub.s32 %s25, %s32
      %p263 = scmp.eq.s32.totalorder %s262, 0
      %s265 = sadd.s32 %s264, 1
      %s266 = scalar_select %p263, %s264, %s265
      %p269 = pneg %p263
      %p270 = scmp.eq.s32.totalorder %s25, 5
      %p271 = por %p269, %p270
      %p272 = scmp.ne.s32.totalorder %s264, %s267
      %p273 = scmp.eq.s32.totalorder %s25, 0
      %p274 = por %p272, %p273
      %p275 = scmp.ne.s32.totalorder %s264, %s267
      %p276 = scmp.eq.s32.totalorder %s30, 5
      %p277 = por %p275, %p276
      %p278 = scmp.ne.s32.totalorder %s267, %s268
      %p279 = scmp.eq.s32.totalorder %s30, 0
      %p280 = por %p278, %p279
      %p281 = scmp.ne.s32.totalorder %s267, %s268
      %p282 = scmp.eq.s32.totalorder %s31, 5
      %p283 = por %p281, %p282
      %p285 = scmp.ne.s32.totalorder %s268, %s284
      %p286 = scmp.eq.s32.totalorder %s31, 0
      %p287 = por %p285, %p286
      %s288 = ssub.s32 %s25, %s32
      %p289 = scmp.eq.s32.totalorder %s288, 0
      %s291 = sadd.s32 %s290, 1
      %s292 = scalar_select %p289, %s290, %s291
      %p295 = pneg %p289
      %p296 = scmp.eq.s32.totalorder %s25, 5
      %p297 = por %p295, %p296
      %p298 = scmp.ne.s32.totalorder %s290, %s293
      %p299 = scmp.eq.s32.totalorder %s25, 0
      %p300 = por %p298, %p299
      %p301 = scmp.ne.s32.totalorder %s290, %s293
      %p302 = scmp.eq.s32.totalorder %s30, 5
      %p303 = por %p301, %p302
      %p304 = scmp.ne.s32.totalorder %s293, %s294
      %p305 = scmp.eq.s32.totalorder %s30, 0
      %p306 = por %p304, %p305
      %p307 = scmp.ne.s32.totalorder %s293, %s294
      %p308 = scmp.eq.s32.totalorder %s31, 5
      %p309 = por %p307, %p308
      %p311 = scmp.ne.s32.totalorder %s294, %s310
      %p312 = scmp.eq.s32.totalorder %s31, 0
      %p313 = por %p311, %p312
      %s314 = ssub.s32 %s25, %s32
      %p315 = scmp.eq.s32.totalorder %s314, 0
      %s317 = sadd.s32 %s316, 1
      %s318 = scalar_select %p315, %s316, %s317
      %p321 = pneg %p315
      %p322 = scmp.eq.s32.totalorder %s25, 5
      %p323 = por %p321, %p322
      %p324 = scmp.ne.s32.totalorder %s316, %s319
      %p325 = scmp.eq.s32.totalorder %s25, 0
      %p326 = por %p324, %p325
      %p327 = scmp.ne.s32.totalorder %s316, %s319
      %p328 = scmp.eq.s32.totalorder %s30, 5
      %p329 = por %p327, %p328
      %p330 = scmp.ne.s32.totalorder %s319, %s320
      %p331 = scmp.eq.s32.totalorder %s30, 0
      %p332 = por %p330, %p331
      %p333 = scmp.ne.s32.totalorder %s319, %s320
      %p334 = scmp.eq.s32.totalorder %s31, 5
      %p335 = por %p333, %p334
      %p337 = scmp.ne.s32.totalorder %s320, %s336
      %p338 = scmp.eq.s32.totalorder %s31, 0
      %p339 = por %p337, %p338
      %s340 = ssub.s32 %s25, %s32
      %p341 = scmp.eq.s32.totalorder %s340, 0
      %s343 = sadd.s32 %s342, 1
      %s344 = scalar_select %p341, %s342, %s343
      %p347 = pneg %p341
      %p348 = scmp.eq.s32.totalorder %s25, 5
      %p349 = por %p347, %p348
      %p350 = scmp.ne.s32.totalorder %s342, %s345
      %p351 = scmp.eq.s32.totalorder %s25, 0
      %p352 = por %p350, %p351
      %p353 = scmp.ne.s32.totalorder %s342, %s345
      %p354 = scmp.eq.s32.totalorder %s30, 5
      %p355 = por %p353, %p354
      %p356 = scmp.ne.s32.totalorder %s345, %s346
      %p357 = scmp.eq.s32.totalorder %s30, 0
      %p358 = por %p356, %p357
      %p359 = scmp.ne.s32.totalorder %s345, %s346
      %p360 = scmp.eq.s32.totalorder %s31, 5
      %p361 = por %p359, %p360
      %p363 = scmp.ne.s32.totalorder %s346, %s362
      %p364 = scmp.eq.s32.totalorder %s31, 0
      %p365 = por %p363, %p364
      %s367 = sadd.s32 %s366, 1
      %p370 = scmp.eq.s32.totalorder %s25, 5
      %p371 = scmp.ne.s32.totalorder %s366, %s368
      %p372 = scmp.eq.s32.totalorder %s25, 0
      %p373 = por %p371, %p372
      %p374 = scmp.ne.s32.totalorder %s366, %s368
      %p375 = scmp.eq.s32.totalorder %s30, 5
      %p376 = por %p374, %p375
      %p377 = scmp.ne.s32.totalorder %s368, %s369
      %p378 = scmp.eq.s32.totalorder %s30, 0
      %p379 = por %p377, %p378
      %p380 = scmp.ne.s32.totalorder %s368, %s369
      %p381 = scmp.eq.s32.totalorder %s31, 5
      %p382 = por %p380, %p381
      %p384 = scmp.ne.s32.totalorder %s369, %s383
      %p385 = scmp.eq.s32.totalorder %s31, 0
      %p386 = por %p384, %p385
      %p387 = scmp.le.s32.totalorder 1, %s25
      %p388 = scmp.lt.s32.totalorder %s25, 7
      %p389 = pnand %p387, %p388
      %p390 = pneg %p389
      // Predicated region
      $region9: #{encoder_forward.2} parent=5 // pred_check
        _
      $region10: #{encoder_forward.2} parent=5 // pred_check_branch
        %392 = sbr.rel (%p389) target = $region12
      $region11: #{encoder_forward.2} parent=5 // pred_region
        %s393 = ssub.s32 %s25, 1
        // Predicated region
        $region13: #{encoder_forward.2} parent=11 // pred_check
          %p394 = pneg %p46
        $region14: #{encoder_forward.2} parent=11 // pred_check_branch
          %396 = sbr.rel (%p394) target = $region16
        $region15: #{encoder_forward.2} parent=11 // pred_region
          _
        $region16: #{encoder_forward.2} parent=11 // pred_fallthru
          _
      $region12: #{encoder_forward.2} parent=5 // pred_fallthru
        _
      %p397 = scmp.lt.s32.totalorder %s25, 6
      // Predicated region
      $region17: #{encoder_forward.2} parent=5 // pred_check
        %p398 = pneg %p397
      $region18: #{encoder_forward.2} parent=5 // pred_check_branch
        %400 = sbr.rel (%p398) target = $region20
      $region19: #{encoder_forward.2} parent=5 // pred_region
        // Predicated region
        $region21: #{encoder_forward.2} parent=19 // pred_check
          %p401 = pneg %p66
        $region22: #{encoder_forward.2} parent=19 // pred_check_branch
          %403 = sbr.rel (%p401) target = $region24
        $region23: #{encoder_forward.2} parent=19 // pred_region
          %p404 = scmp.lt.s32.totalorder %s25, 5
          %s405 = scalar_select %p404, %s25, 5
          %s406 = smul.addr %s405, 384
          %s407 = smul.addr %s406, 8
          %s408 = scalar_lea.vmem %s1, %s407
        $region24: #{encoder_forward.2} parent=19 // pred_fallthru
          _
        // Predicated region
        $region25: #{encoder_forward.2} parent=19 // pred_check
          %p409 = pneg %p92
        $region26: #{encoder_forward.2} parent=19 // pred_check_branch
          %411 = sbr.rel (%p409) target = $region28
        $region27: #{encoder_forward.2} parent=19 // pred_region
          %p412 = scmp.lt.s32.totalorder %s25, 5
          %s413 = scalar_select %p412, %s25, 5
          %s414 = smul.addr %s413, 8
          %s415 = scalar_lea.vmem %s2, %s414
        $region28: #{encoder_forward.2} parent=19 // pred_fallthru
          _
        // Predicated region
        $region29: #{encoder_forward.2} parent=19 // pred_check
          %p416 = pneg %p118
        $region30: #{encoder_forward.2} parent=19 // pred_check_branch
          %418 = sbr.rel (%p416) target = $region32
        $region31: #{encoder_forward.2} parent=19 // pred_region
          %p419 = scmp.lt.s32.totalorder %s25, 5
          %s420 = scalar_select %p419, %s25, 5
          %s421 = smul.addr %s420, 120
          %s422 = smul.addr %s421, 8
          %s423 = scalar_lea.vmem %s3, %s422
        $region32: #{encoder_forward.2} parent=19 // pred_fallthru
          _
        // Predicated region
        $region33: #{encoder_forward.2} parent=19 // pred_check
          %p424 = pneg %p144
        $region34: #{encoder_forward.2} parent=19 // pred_check_branch
          %426 = sbr.rel (%p424) target = $region36
        $region35: #{encoder_forward.2} parent=19 // pred_region
          %p427 = scmp.lt.s32.totalorder %s25, 5
          %s428 = scalar_select %p427, %s25, 5
          %s429 = smul.addr %s428, 3
          %s430 = scalar_lea.vmem %s4, %s429
        $region36: #{encoder_forward.2} parent=19 // pred_fallthru
          _
        // Predicated region
        $region37: #{encoder_forward.2} parent=19 // pred_check
          %p431 = pneg %p170
        $region38: #{encoder_forward.2} parent=19 // pred_check_branch
          %433 = sbr.rel (%p431) target = $region40
        $region39: #{encoder_forward.2} parent=19 // pred_region
          %p434 = scmp.lt.s32.totalorder %s25, 5
          %s435 = scalar_select %p434, %s25, 5
          %s436 = smul.addr %s435, 3
          %s437 = scalar_lea.vmem %s5, %s436
        $region40: #{encoder_forward.2} parent=19 // pred_fallthru
          _
        // Predicated region
        $region41: #{encoder_forward.2} parent=19 // pred_check
          %p438 = pneg %p196
        $region42: #{encoder_forward.2} parent=19 // pred_check_branch
          %440 = sbr.rel (%p438) target = $region44
        $region43: #{encoder_forward.2} parent=19 // pred_region
          %p441 = scmp.lt.s32.totalorder %s25, 5
          %s442 = scalar_select %p441, %s25, 5
          %s443 = smul.addr %s442, 3
          %s444 = scalar_lea.vmem %s6, %s443
        $region44: #{encoder_forward.2} parent=19 // pred_fallthru
          _
        // Predicated region
        $region45: #{encoder_forward.2} parent=19 // pred_check
          %p445 = pneg %p222
        $region46: #{encoder_forward.2} parent=19 // pred_check_branch
          %447 = sbr.rel (%p445) target = $region48
        $region47: #{encoder_forward.2} parent=19 // pred_region
          %s448 = sand.u32 %s212, 1
          %s449 = scalar_lea.sflag [#allocation3], %s448
          %s450 = sand.u32 %s212, 1
          %s451 = smul.addr %s450, 6144
          %s452 = scalar_lea.vmem [#allocation2], %s451
          %s454 = ssub.s32 98304, 98304
          %455 = vsyncadd %s449, %s454
          %s456 = smul.addr %s25, 768
          %s457 = smul.addr %s456, 128
          %s458 = scalar_lea.hbm %s7, %s457
          %s459 = sshll.u32 %s452, 4
          %s460 = int_to_ptr.vmem [resolvable:$true] %s459
          %465 = dma.hbm_to_vmem [thread:$0]  %s458, 98304, %s460, %s449, 2048, 2048, 128
        $region48: #{encoder_forward.2} parent=19 // pred_fallthru
          _
        // Predicated region
        $region49: #{encoder_forward.2} parent=19 // pred_check
          %p466 = pneg %p248
        $region50: #{encoder_forward.2} parent=19 // pred_check_branch
          %468 = sbr.rel (%p466) target = $region52
        $region51: #{encoder_forward.2} parent=19 // pred_region
          %p469 = scmp.lt.s32.totalorder %s25, 5
          %s470 = scalar_select %p469, %s25, 5
          %s471 = smul.addr %s470, 16
          %s472 = scalar_lea.vmem %s8, %s471
        $region52: #{encoder_forward.2} parent=19 // pred_fallthru
          _
        // Predicated region
        $region53: #{encoder_forward.2} parent=19 // pred_check
          %p473 = pneg %p274
        $region54: #{encoder_forward.2} parent=19 // pred_check_branch
          %475 = sbr.rel (%p473) target = $region56
        $region55: #{encoder_forward.2} parent=19 // pred_region
          %s476 = sand.u32 %s264, 1
          %s477 = scalar_lea.sflag [#allocation5], %s476
          %s478 = sand.u32 %s264, 1
          %s479 = smul.addr %s478, 6144
          %s480 = scalar_lea.vmem [#allocation4], %s479
          %s482 = ssub.s32 98304, 98304
          %483 = vsyncadd %s477, %s482
          %s484 = smul.addr %s25, 768
          %s485 = smul.addr %s484, 128
          %s486 = scalar_lea.hbm %s9, %s485
          %s487 = sshll.u32 %s480, 4
          %s488 = int_to_ptr.vmem [resolvable:$true] %s487
          %493 = dma.hbm_to_vmem [thread:$0]  %s486, 98304, %s488, %s477, 384, 384, 24
        $region56: #{encoder_forward.2} parent=19 // pred_fallthru
          _
        // Predicated region
        $region57: #{encoder_forward.2} parent=19 // pred_check
          %p494 = pneg %p300
        $region58: #{encoder_forward.2} parent=19 // pred_check_branch
          %496 = sbr.rel (%p494) target = $region60
        $region59: #{encoder_forward.2} parent=19 // pred_region
          %p497 = scmp.lt.s32.totalorder %s25, 5
          %s498 = scalar_select %p497, %s25, 5
          %s499 = smul.addr %s498, 3
          %s500 = scalar_lea.vmem %s10, %s499
        $region60: #{encoder_forward.2} parent=19 // pred_fallthru
          _
        // Predicated region
        $region61: #{encoder_forward.2} parent=19 // pred_check
          %p501 = pneg %p326
        $region62: #{encoder_forward.2} parent=19 // pred_check_branch
          %503 = sbr.rel (%p501) target = $region64
        $region63: #{encoder_forward.2} parent=19 // pred_region
          %p504 = scmp.lt.s32.totalorder %s25, 5
          %s505 = scalar_select %p504, %s25, 5
          %s506 = smul.addr %s505, 3
          %s507 = scalar_lea.vmem %s11, %s506
        $region64: #{encoder_forward.2} parent=19 // pred_fallthru
          _
        // Predicated region
        $region65: #{encoder_forward.2} parent=19 // pred_check
          %p508 = pneg %p352
        $region66: #{encoder_forward.2} parent=19 // pred_check_branch
          %510 = sbr.rel (%p508) target = $region68
        $region67: #{encoder_forward.2} parent=19 // pred_region
          %p511 = scmp.lt.s32.totalorder %s25, 5
          %s512 = scalar_select %p511, %s25, 5
          %s513 = smul.addr %s512, 3
          %s514 = scalar_lea.vmem %s12, %s513
        $region68: #{encoder_forward.2} parent=19 // pred_fallthru
          _
      $region20: #{encoder_forward.2} parent=5 // pred_fallthru
        _
      %p515 = scmp.le.s32.totalorder 1, %s25
      %p516 = scmp.lt.s32.totalorder %s25, 7
      %p517 = pnand %p515, %p516
      %p518 = pneg %p517
      // Predicated region
      $region69: #{encoder_forward.2} parent=5 // pred_check
        _
      $region70: #{encoder_forward.2} parent=5 // pred_check_branch
        %520 = sbr.rel (%p517) target = $region72
      $region71: #{encoder_forward.2} parent=5 // pred_region
        %s521 = ssub.s32 %s25, 1
        %s522 = sand.u32 %s215, 1
        %s523 = scalar_lea.sflag [#allocation3], %s522
        %s524 = sand.u32 %s215, 1
        %s525 = smul.addr %s524, 6144
        %s526 = scalar_lea.vmem [#allocation2], %s525
        // Predicated region
        $region73: #{encoder_forward.2} parent=71 // pred_check
          %p527 = pneg %p228
        $region74: #{encoder_forward.2} parent=71 // pred_check_branch
          %529 = sbr.rel (%p527) target = $region76
        $region75: #{encoder_forward.2} parent=71 // pred_region
          %530 = dma.done %s523, 98304
        $region76: #{encoder_forward.2} parent=71 // pred_fallthru
          _
        %s531 = sand.u32 %s267, 1
        %s532 = scalar_lea.sflag [#allocation5], %s531
        %s533 = sand.u32 %s267, 1
        %s534 = smul.addr %s533, 6144
        %s535 = scalar_lea.vmem [#allocation4], %s534
        // Predicated region
        $region77: #{encoder_forward.2} parent=71 // pred_check
          %p536 = pneg %p280
        $region78: #{encoder_forward.2} parent=71 // pred_check_branch
          %538 = sbr.rel (%p536) target = $region80
        $region79: #{encoder_forward.2} parent=71 // pred_region
          %539 = dma.done %s532, 98304
        $region80: #{encoder_forward.2} parent=71 // pred_fallthru
          _
        %p540 = pneg %p46
        %p541 = pneg %p43
        %p542 = scmp.lt.s32.totalorder %s30, 5
        %s543 = scalar_select %p542, %s30, 5
        %s544 = smul.addr %s543, 384
        %s545 = smul.addr %s544, 8
        %s546 = scalar_lea.vmem %s1, %s545
        %p547 = pneg %p72
        %p548 = pneg %p69
        %p549 = scmp.lt.s32.totalorder %s30, 5
        %s550 = scalar_select %p549, %s30, 5
        %s551 = smul.addr %s550, 8
        %s552 = scalar_lea.vmem %s2, %s551
        %p553 = pneg %p98
        %p554 = pneg %p95
        %p555 = scmp.lt.s32.totalorder %s30, 5
        %s556 = scalar_select %p555, %s30, 5
        %s557 = smul.addr %s556, 120
        %s558 = smul.addr %s557, 8
        %s559 = scalar_lea.vmem %s3, %s558
        %p560 = pneg %p124
        %p561 = pneg %p121
        %p562 = scmp.lt.s32.totalorder %s30, 5
        %s563 = scalar_select %p562, %s30, 5
        %s564 = smul.addr %s563, 3
        %s565 = scalar_lea.vmem %s4, %s564
        %p566 = pneg %p150
        %p567 = pneg %p147
        %p568 = scmp.lt.s32.totalorder %s30, 5
        %s569 = scalar_select %p568, %s30, 5
        %s570 = smul.addr %s569, 3
        %s571 = scalar_lea.vmem %s5, %s570
        %p572 = pneg %p176
        %p573 = pneg %p173
        %p574 = scmp.lt.s32.totalorder %s30, 5
        %s575 = scalar_select %p574, %s30, 5
        %s576 = smul.addr %s575, 3
        %s577 = scalar_lea.vmem %s6, %s576
        %p578 = pneg %p202
        %p579 = pneg %p199
        %s580 = sand.u32 %s215, 1
        %s581 = scalar_lea.sflag [#allocation3], %s580
        %s582 = sand.u32 %s215, 1
        %s583 = smul.addr %s582, 6144
        %s584 = scalar_lea.vmem [#allocation2], %s583
        %p585 = pneg %p228
        %p586 = pneg %p225
        %p587 = scmp.lt.s32.totalorder %s30, 5
        %s588 = scalar_select %p587, %s30, 5
        %s589 = smul.addr %s588, 16
        %s590 = scalar_lea.vmem %s8, %s589
        %p591 = pneg %p254
        %p592 = pneg %p251
        %s593 = sand.u32 %s267, 1
        %s594 = scalar_lea.sflag [#allocation5], %s593
        %s595 = sand.u32 %s267, 1
        %s596 = smul.addr %s595, 6144
        %s597 = scalar_lea.vmem [#allocation4], %s596
        %p598 = pneg %p280
        %p599 = pneg %p277
        %p600 = scmp.lt.s32.totalorder %s30, 5
        %s601 = scalar_select %p600, %s30, 5
        %s602 = smul.addr %s601, 3
        %s603 = scalar_lea.vmem %s10, %s602
        %p604 = pneg %p306
        %p605 = pneg %p303
        %p606 = scmp.lt.s32.totalorder %s30, 5
        %s607 = scalar_select %p606, %s30, 5
        %s608 = smul.addr %s607, 3
        %s609 = scalar_lea.vmem %s11, %s608
        %p610 = pneg %p332
        %p611 = pneg %p329
        %p612 = scmp.lt.s32.totalorder %s30, 5
        %s613 = scalar_select %p612, %s30, 5
        %s614 = smul.addr %s613, 3
        %s615 = scalar_lea.vmem %s12, %s614
        %p616 = pneg %p358
        %p617 = pneg %p355
        %p618 = pneg %p379
        %p619 = pneg %p376
        %p620 = scmp.lt.s32.totalorder %s30, 5
        %s621 = scalar_select %p620, %s30, 5
        %s622 = smul.addr %s621, 384
        %s623 = smul.addr %s622, 8
        %s624 = scalar_lea.vmem %s1, %s623
        %p625 = scmp.lt.s32.totalorder %s30, 5
        %s626 = scalar_select %p625, %s30, 5
        %s627 = smul.addr %s626, 8
        %s628 = scalar_lea.vmem %s2, %s627
        %p629 = scmp.lt.s32.totalorder %s30, 5
        %s630 = scalar_select %p629, %s30, 5
        %s631 = smul.addr %s630, 120
        %s632 = smul.addr %s631, 8
        %s633 = scalar_lea.vmem %s3, %s632
        %p634 = scmp.lt.s32.totalorder %s30, 5
        %s635 = scalar_select %p634, %s30, 5
        %s636 = smul.addr %s635, 3
        %s637 = scalar_lea.vmem %s4, %s636
        %p638 = scmp.lt.s32.totalorder %s30, 5
        %s639 = scalar_select %p638, %s30, 5
        %s640 = smul.addr %s639, 3
        %s641 = scalar_lea.vmem %s5, %s640
        %p642 = scmp.lt.s32.totalorder %s30, 5
        %s643 = scalar_select %p642, %s30, 5
        %s644 = smul.addr %s643, 3
        %s645 = scalar_lea.vmem %s6, %s644
        %p646 = scmp.lt.s32.totalorder %s30, 5
        %s647 = scalar_select %p646, %s30, 5
        %s648 = smul.addr %s647, 16
        %s649 = scalar_lea.vmem %s8, %s648
        %p650 = scmp.lt.s32.totalorder %s30, 5
        %s651 = scalar_select %p650, %s30, 5
        %s652 = smul.addr %s651, 3
        %s653 = scalar_lea.vmem %s10, %s652
        %p654 = scmp.lt.s32.totalorder %s30, 5
        %s655 = scalar_select %p654, %s30, 5
        %s656 = smul.addr %s655, 3
        %s657 = scalar_lea.vmem %s11, %s656
        %p658 = scmp.lt.s32.totalorder %s30, 5
        %s659 = scalar_select %p658, %s30, 5
        %s660 = smul.addr %s659, 3
        %s661 = scalar_lea.vmem %s12, %s660
        %p662 = scmp.eq.s32.totalorder %s30, 0
        // Predicated region
        $region81: #{encoder_forward.2} parent=71 // pred_check
          %p663 = pneg %p662
        $region82: #{encoder_forward.2} parent=71 // pred_check_branch
          %665 = sbr.rel (%p663) target = $region84
        $region83: #{encoder_forward.2} parent=71 // pred_region
          %v666 = vld [vmem:[%s0] sm:$0xff]
          %v667 = vld [vmem:[%s0 + $0x8] sm:$0xff]
          %v668 = vld [vmem:[%s0 + $0x10] sm:$0xff]
          %v669 = vld [vmem:[%s0 + $0x18] sm:$0xff]
          %v670 = vld [vmem:[%s0 + $0x20] sm:$0xff]
          %v671 = vld [vmem:[%s0 + $0x28] sm:$0xff]
          %672 = vst [vmem:[%s13] sm:$0xff] %v666
          %673 = vst [vmem:[%s13 + $0x8] sm:$0xff] %v667
          %674 = vst [vmem:[%s13 + $0x10] sm:$0xff] %v668
          %675 = vst [vmem:[%s13 + $0x18] sm:$0xff] %v669
          %676 = vst [vmem:[%s13 + $0x20] sm:$0xff] %v670
          %677 = vst [vmem:[%s13 + $0x28] sm:$0xff] %v671
        $region84: #{encoder_forward.2} parent=71 // pred_fallthru
          _
        %v678 = vld [vmem:[%s13] sm:$0xff]
        %v679 = vld [vmem:[%s13 + $0x8] sm:$0xff]
        %v680 = vld [vmem:[%s13 + $0x10] sm:$0xff]
        %v681 = vld [vmem:[%s13 + $0x18] sm:$0xff]
        %v682 = vld [vmem:[%s13 + $0x20] sm:$0xff]
        %v683 = vld [vmem:[%s13 + $0x28] sm:$0xff]
        %v684 = vld [vmem:[%s624] sm:$0xff]
        %v685 = vld [vmem:[%s624 + $0x8] sm:$0xff]
        %v686 = vld [vmem:[%s624 + $0x10] sm:$0xff]
        %v687 = vld [vmem:[%s624 + $0x18] sm:$0xff]
        %v688 = vld [vmem:[%s624 + $0x20] sm:$0xff]
        %v689 = vld [vmem:[%s624 + $0x28] sm:$0xff]
        %v690 = vld [vmem:[%s624 + $0x30] sm:$0xff]
        %v691 = vld [vmem:[%s624 + $0x38] sm:$0xff]
        %v692 = vld [vmem:[%s624 + $0x40] sm:$0xff]
        %v693 = vld [vmem:[%s624 + $0x48] sm:$0xff]
        %v694 = vld [vmem:[%s624 + $0x50] sm:$0xff]
        %v695 = vld [vmem:[%s624 + $0x58] sm:$0xff]
        %v696 = vld [vmem:[%s624 + $0x60] sm:$0xff]
        %v697 = vld [vmem:[%s624 + $0x68] sm:$0xff]
        %v698 = vld [vmem:[%s624 + $0x70] sm:$0xff]
        %v699 = vld [vmem:[%s624 + $0x78] sm:$0xff]
        %v700 = vld [vmem:[%s624 + $0x80] sm:$0xff]
        %v701 = vld [vmem:[%s624 + $0x88] sm:$0xff]
        %v702 = vld [vmem:[%s624 + $0x90] sm:$0xff]
        %v703 = vld [vmem:[%s624 + $0x98] sm:$0xff]
        %v704 = vld [vmem:[%s624 + $0xa0] sm:$0xff]
        %v705 = vld [vmem:[%s624 + $0xa8] sm:$0xff]
        %v706 = vld [vmem:[%s624 + $0xb0] sm:$0xff]
        %v707 = vld [vmem:[%s624 + $0xb8] sm:$0xff]
        %v708 = vld [vmem:[%s624 + $0xc0] sm:$0xff]
        %v709 = vld [vmem:[%s624 + $0xc8] sm:$0xff]
        %v710 = vld [vmem:[%s624 + $0xd0] sm:$0xff]
        %v711 = vld [vmem:[%s624 + $0xd8] sm:$0xff]
        %v712 = vld [vmem:[%s624 + $0xe0] sm:$0xff]
        %v713 = vld [vmem:[%s624 + $0xe8] sm:$0xff]
        %v714 = vld [vmem:[%s624 + $0xf0] sm:$0xff]
        %v715 = vld [vmem:[%s624 + $0xf8] sm:$0xff]
        %v716 = vld [vmem:[%s624 + $0x100] sm:$0xff]
        %v717 = vld [vmem:[%s624 + $0x108] sm:$0xff]
        %v718 = vld [vmem:[%s624 + $0x110] sm:$0xff]
        %v719 = vld [vmem:[%s624 + $0x118] sm:$0xff]
        %v720 = vld [vmem:[%s624 + $0x120] sm:$0xff]
        %v721 = vld [vmem:[%s624 + $0x128] sm:$0xff]
        %v722 = vld [vmem:[%s624 + $0x130] sm:$0xff]
        %v723 = vld [vmem:[%s624 + $0x138] sm:$0xff]
        %v724 = vld [vmem:[%s624 + $0x140] sm:$0xff]
        %v725 = vld [vmem:[%s624 + $0x148] sm:$0xff]
        %v726 = vld [vmem:[%s624 + $0x150] sm:$0xff]
        %v727 = vld [vmem:[%s624 + $0x158] sm:$0xff]
        %v728 = vld [vmem:[%s624 + $0x160] sm:$0xff]
        %v729 = vld [vmem:[%s624 + $0x168] sm:$0xff]
        %v730 = vld [vmem:[%s624 + $0x170] sm:$0xff]
        %v731 = vld [vmem:[%s624 + $0x178] sm:$0xff]
        %v732 = vld [vmem:[%s624 + $0x180] sm:$0xff]
        %v733 = vld [vmem:[%s624 + $0x188] sm:$0xff]
        %v734 = vld [vmem:[%s624 + $0x190] sm:$0xff]
        %v735 = vld [vmem:[%s624 + $0x198] sm:$0xff]
        %v736 = vld [vmem:[%s624 + $0x1a0] sm:$0xff]
        %v737 = vld [vmem:[%s624 + $0x1a8] sm:$0xff]
        %v738 = vld [vmem:[%s624 + $0x1b0] sm:$0xff]
        %v739 = vld [vmem:[%s624 + $0x1b8] sm:$0xff]
        %v740 = vld [vmem:[%s624 + $0x1c0] sm:$0xff]
        %v741 = vld [vmem:[%s624 + $0x1c8] sm:$0xff]
        %v742 = vld [vmem:[%s624 + $0x1d0] sm:$0xff]
        %v743 = vld [vmem:[%s624 + $0x1d8] sm:$0xff]
        %v744 = vld [vmem:[%s624 + $0x1e0] sm:$0xff]
        %v745 = vld [vmem:[%s624 + $0x1e8] sm:$0xff]
        %v746 = vld [vmem:[%s624 + $0x1f0] sm:$0xff]
        %v747 = vld [vmem:[%s624 + $0x1f8] sm:$0xff]
        %v748 = vld [vmem:[%s624 + $0x200] sm:$0xff]
        %v749 = vld [vmem:[%s624 + $0x208] sm:$0xff]
        %v750 = vld [vmem:[%s624 + $0x210] sm:$0xff]
        %v751 = vld [vmem:[%s624 + $0x218] sm:$0xff]
        %v752 = vld [vmem:[%s624 + $0x220] sm:$0xff]
        %v753 = vld [vmem:[%s624 + $0x228] sm:$0xff]
        %v754 = vld [vmem:[%s624 + $0x230] sm:$0xff]
        %v755 = vld [vmem:[%s624 + $0x238] sm:$0xff]
        %v756 = vld [vmem:[%s624 + $0x240] sm:$0xff]
        %v757 = vld [vmem:[%s624 + $0x248] sm:$0xff]
        %v758 = vld [vmem:[%s624 + $0x250] sm:$0xff]
        %v759 = vld [vmem:[%s624 + $0x258] sm:$0xff]
        %v760 = vld [vmem:[%s624 + $0x260] sm:$0xff]
        %v761 = vld [vmem:[%s624 + $0x268] sm:$0xff]
        %v762 = vld [vmem:[%s624 + $0x270] sm:$0xff]
        %v763 = vld [vmem:[%s624 + $0x278] sm:$0xff]
        %v764 = vld [vmem:[%s624 + $0x280] sm:$0xff]
        %v765 = vld [vmem:[%s624 + $0x288] sm:$0xff]
        %v766 = vld [vmem:[%s624 + $0x290] sm:$0xff]
        %v767 = vld [vmem:[%s624 + $0x298] sm:$0xff]
        %v768 = vld [vmem:[%s624 + $0x2a0] sm:$0xff]
        %v769 = vld [vmem:[%s624 + $0x2a8] sm:$0xff]
        %v770 = vld [vmem:[%s624 + $0x2b0] sm:$0xff]
        %v771 = vld [vmem:[%s624 + $0x2b8] sm:$0xff]
        %v772 = vld [vmem:[%s624 + $0x2c0] sm:$0xff]
        %v773 = vld [vmem:[%s624 + $0x2c8] sm:$0xff]
        %v774 = vld [vmem:[%s624 + $0x2d0] sm:$0xff]
        %v775 = vld [vmem:[%s624 + $0x2d8] sm:$0xff]
        %v776 = vld [vmem:[%s624 + $0x2e0] sm:$0xff]
        %v777 = vld [vmem:[%s624 + $0x2e8] sm:$0xff]
        %v778 = vld [vmem:[%s624 + $0x2f0] sm:$0xff]
        %v779 = vld [vmem:[%s624 + $0x2f8] sm:$0xff]
        %v780 = vld [vmem:[%s624 + $0x300] sm:$0xff]
        %v781 = vld [vmem:[%s624 + $0x308] sm:$0xff]
        %v782 = vld [vmem:[%s624 + $0x310] sm:$0xff]
        %v783 = vld [vmem:[%s624 + $0x318] sm:$0xff]
        %v784 = vld [vmem:[%s624 + $0x320] sm:$0xff]
        %v785 = vld [vmem:[%s624 + $0x328] sm:$0xff]
        %v786 = vld [vmem:[%s624 + $0x330] sm:$0xff]
        %v787 = vld [vmem:[%s624 + $0x338] sm:$0xff]
        %v788 = vld [vmem:[%s624 + $0x340] sm:$0xff]
        %v789 = vld [vmem:[%s624 + $0x348] sm:$0xff]
        %v790 = vld [vmem:[%s624 + $0x350] sm:$0xff]
        %v791 = vld [vmem:[%s624 + $0x358] sm:$0xff]
        %v792 = vld [vmem:[%s624 + $0x360] sm:$0xff]
        %v793 = vld [vmem:[%s624 + $0x368] sm:$0xff]
        %v794 = vld [vmem:[%s624 + $0x370] sm:$0xff]
        %v795 = vld [vmem:[%s624 + $0x378] sm:$0xff]
        %v796 = vld [vmem:[%s624 + $0x380] sm:$0xff]
        %v797 = vld [vmem:[%s624 + $0x388] sm:$0xff]
        %v798 = vld [vmem:[%s624 + $0x390] sm:$0xff]
        %v799 = vld [vmem:[%s624 + $0x398] sm:$0xff]
        %v800 = vld [vmem:[%s624 + $0x3a0] sm:$0xff]
        %v801 = vld [vmem:[%s624 + $0x3a8] sm:$0xff]
        %v802 = vld [vmem:[%s624 + $0x3b0] sm:$0xff]
        %v803 = vld [vmem:[%s624 + $0x3b8] sm:$0xff]
        %v804 = vld [vmem:[%s624 + $0x3c0] sm:$0xff]
        %v805 = vld [vmem:[%s624 + $0x3c8] sm:$0xff]
        %v806 = vld [vmem:[%s624 + $0x3d0] sm:$0xff]
        %v807 = vld [vmem:[%s624 + $0x3d8] sm:$0xff]
        %v808 = vld [vmem:[%s624 + $0x3e0] sm:$0xff]
        %v809 = vld [vmem:[%s624 + $0x3e8] sm:$0xff]
        %v810 = vld [vmem:[%s624 + $0x3f0] sm:$0xff]
        %v811 = vld [vmem:[%s624 + $0x3f8] sm:$0xff]
        %v812 = vld [vmem:[%s624 + $0x400] sm:$0xff]
        %v813 = vld [vmem:[%s624 + $0x408] sm:$0xff]
        %v814 = vld [vmem:[%s624 + $0x410] sm:$0xff]
        %v815 = vld [vmem:[%s624 + $0x418] sm:$0xff]
        %v816 = vld [vmem:[%s624 + $0x420] sm:$0xff]
        %v817 = vld [vmem:[%s624 + $0x428] sm:$0xff]
        %v818 = vld [vmem:[%s624 + $0x430] sm:$0xff]
        %v819 = vld [vmem:[%s624 + $0x438] sm:$0xff]
        %v820 = vld [vmem:[%s624 + $0x440] sm:$0xff]
        %v821 = vld [vmem:[%s624 + $0x448] sm:$0xff]
        %v822 = vld [vmem:[%s624 + $0x450] sm:$0xff]
        %v823 = vld [vmem:[%s624 + $0x458] sm:$0xff]
        %v824 = vld [vmem:[%s624 + $0x460] sm:$0xff]
        %v825 = vld [vmem:[%s624 + $0x468] sm:$0xff]
        %v826 = vld [vmem:[%s624 + $0x470] sm:$0xff]
        %v827 = vld [vmem:[%s624 + $0x478] sm:$0xff]
        %v828 = vld [vmem:[%s624 + $0x480] sm:$0xff]
        %v829 = vld [vmem:[%s624 + $0x488] sm:$0xff]
        %v830 = vld [vmem:[%s624 + $0x490] sm:$0xff]
        %v831 = vld [vmem:[%s624 + $0x498] sm:$0xff]
        %v832 = vld [vmem:[%s624 + $0x4a0] sm:$0xff]
        %v833 = vld [vmem:[%s624 + $0x4a8] sm:$0xff]
        %v834 = vld [vmem:[%s624 + $0x4b0] sm:$0xff]
        %v835 = vld [vmem:[%s624 + $0x4b8] sm:$0xff]
        %v836 = vld [vmem:[%s624 + $0x4c0] sm:$0xff]
        %v837 = vld [vmem:[%s624 + $0x4c8] sm:$0xff]
        %v838 = vld [vmem:[%s624 + $0x4d0] sm:$0xff]
        %v839 = vld [vmem:[%s624 + $0x4d8] sm:$0xff]
        %v840 = vld [vmem:[%s624 + $0x4e0] sm:$0xff]
        %v841 = vld [vmem:[%s624 + $0x4e8] sm:$0xff]
        %v842 = vld [vmem:[%s624 + $0x4f0] sm:$0xff]
        %v843 = vld [vmem:[%s624 + $0x4f8] sm:$0xff]
        %v844 = vld [vmem:[%s624 + $0x500] sm:$0xff]
        %v845 = vld [vmem:[%s624 + $0x508] sm:$0xff]
        %v846 = vld [vmem:[%s624 + $0x510] sm:$0xff]
        %v847 = vld [vmem:[%s624 + $0x518] sm:$0xff]
        %v848 = vld [vmem:[%s624 + $0x520] sm:$0xff]
        %v849 = vld [vmem:[%s624 + $0x528] sm:$0xff]
        %v850 = vld [vmem:[%s624 + $0x530] sm:$0xff]
        %v851 = vld [vmem:[%s624 + $0x538] sm:$0xff]
        %v852 = vld [vmem:[%s624 + $0x540] sm:$0xff]
        %v853 = vld [vmem:[%s624 + $0x548] sm:$0xff]
        %v854 = vld [vmem:[%s624 + $0x550] sm:$0xff]
        %v855 = vld [vmem:[%s624 + $0x558] sm:$0xff]
        %v856 = vld [vmem:[%s624 + $0x560] sm:$0xff]
        %v857 = vld [vmem:[%s624 + $0x568] sm:$0xff]
        %v858 = vld [vmem:[%s624 + $0x570] sm:$0xff]
        %v859 = vld [vmem:[%s624 + $0x578] sm:$0xff]
        %v860 = vld [vmem:[%s624 + $0x580] sm:$0xff]
        %v861 = vld [vmem:[%s624 + $0x588] sm:$0xff]
        %v862 = vld [vmem:[%s624 + $0x590] sm:$0xff]
        %v863 = vld [vmem:[%s624 + $0x598] sm:$0xff]
        %v864 = vld [vmem:[%s624 + $0x5a0] sm:$0xff]
        %v865 = vld [vmem:[%s624 + $0x5a8] sm:$0xff]
        %v866 = vld [vmem:[%s624 + $0x5b0] sm:$0xff]
        %v867 = vld [vmem:[%s624 + $0x5b8] sm:$0xff]
        %v868 = vld [vmem:[%s624 + $0x5c0] sm:$0xff]
        %v869 = vld [vmem:[%s624 + $0x5c8] sm:$0xff]
        %v870 = vld [vmem:[%s624 + $0x5d0] sm:$0xff]
        %v871 = vld [vmem:[%s624 + $0x5d8] sm:$0xff]
        %v872 = vld [vmem:[%s624 + $0x5e0] sm:$0xff]
        %v873 = vld [vmem:[%s624 + $0x5e8] sm:$0xff]
        %v874 = vld [vmem:[%s624 + $0x5f0] sm:$0xff]
        %v875 = vld [vmem:[%s624 + $0x5f8] sm:$0xff]
        %v876 = vld [vmem:[%s624 + $0x600] sm:$0xff]
        %v877 = vld [vmem:[%s624 + $0x608] sm:$0xff]
        %v878 = vld [vmem:[%s624 + $0x610] sm:$0xff]
        %v879 = vld [vmem:[%s624 + $0x618] sm:$0xff]
        %v880 = vld [vmem:[%s624 + $0x620] sm:$0xff]
        %v881 = vld [vmem:[%s624 + $0x628] sm:$0xff]
        %v882 = vld [vmem:[%s624 + $0x630] sm:$0xff]
        %v883 = vld [vmem:[%s624 + $0x638] sm:$0xff]
        %v884 = vld [vmem:[%s624 + $0x640] sm:$0xff]
        %v885 = vld [vmem:[%s624 + $0x648] sm:$0xff]
        %v886 = vld [vmem:[%s624 + $0x650] sm:$0xff]
        %v887 = vld [vmem:[%s624 + $0x658] sm:$0xff]
        %v888 = vld [vmem:[%s624 + $0x660] sm:$0xff]
        %v889 = vld [vmem:[%s624 + $0x668] sm:$0xff]
        %v890 = vld [vmem:[%s624 + $0x670] sm:$0xff]
        %v891 = vld [vmem:[%s624 + $0x678] sm:$0xff]
        %v892 = vld [vmem:[%s624 + $0x680] sm:$0xff]
        %v893 = vld [vmem:[%s624 + $0x688] sm:$0xff]
        %v894 = vld [vmem:[%s624 + $0x690] sm:$0xff]
        %v895 = vld [vmem:[%s624 + $0x698] sm:$0xff]
        %v896 = vld [vmem:[%s624 + $0x6a0] sm:$0xff]
        %v897 = vld [vmem:[%s624 + $0x6a8] sm:$0xff]
        %v898 = vld [vmem:[%s624 + $0x6b0] sm:$0xff]
        %v899 = vld [vmem:[%s624 + $0x6b8] sm:$0xff]
        %v900 = vld [vmem:[%s624 + $0x6c0] sm:$0xff]
        %v901 = vld [vmem:[%s624 + $0x6c8] sm:$0xff]
        %v902 = vld [vmem:[%s624 + $0x6d0] sm:$0xff]
        %v903 = vld [vmem:[%s624 + $0x6d8] sm:$0xff]
        %v904 = vld [vmem:[%s624 + $0x6e0] sm:$0xff]
        %v905 = vld [vmem:[%s624 + $0x6e8] sm:$0xff]
        %v906 = vld [vmem:[%s624 + $0x6f0] sm:$0xff]
        %v907 = vld [vmem:[%s624 + $0x6f8] sm:$0xff]
        %v908 = vld [vmem:[%s624 + $0x700] sm:$0xff]
        %v909 = vld [vmem:[%s624 + $0x708] sm:$0xff]
        %v910 = vld [vmem:[%s624 + $0x710] sm:$0xff]
        %v911 = vld [vmem:[%s624 + $0x718] sm:$0xff]
        %v912 = vld [vmem:[%s624 + $0x720] sm:$0xff]
        %v913 = vld [vmem:[%s624 + $0x728] sm:$0xff]
        %v914 = vld [vmem:[%s624 + $0x730] sm:$0xff]
        %v915 = vld [vmem:[%s624 + $0x738] sm:$0xff]
        %v916 = vld [vmem:[%s624 + $0x740] sm:$0xff]
        %v917 = vld [vmem:[%s624 + $0x748] sm:$0xff]
        %v918 = vld [vmem:[%s624 + $0x750] sm:$0xff]
        %v919 = vld [vmem:[%s624 + $0x758] sm:$0xff]
        %v920 = vld [vmem:[%s624 + $0x760] sm:$0xff]
        %v921 = vld [vmem:[%s624 + $0x768] sm:$0xff]
        %v922 = vld [vmem:[%s624 + $0x770] sm:$0xff]
        %v923 = vld [vmem:[%s624 + $0x778] sm:$0xff]
        %v924 = vld [vmem:[%s624 + $0x780] sm:$0xff]
        %v925 = vld [vmem:[%s624 + $0x788] sm:$0xff]
        %v926 = vld [vmem:[%s624 + $0x790] sm:$0xff]
        %v927 = vld [vmem:[%s624 + $0x798] sm:$0xff]
        %v928 = vld [vmem:[%s624 + $0x7a0] sm:$0xff]
        %v929 = vld [vmem:[%s624 + $0x7a8] sm:$0xff]
        %v930 = vld [vmem:[%s624 + $0x7b0] sm:$0xff]
        %v931 = vld [vmem:[%s624 + $0x7b8] sm:$0xff]
        %v932 = vld [vmem:[%s624 + $0x7c0] sm:$0xff]
        %v933 = vld [vmem:[%s624 + $0x7c8] sm:$0xff]
        %v934 = vld [vmem:[%s624 + $0x7d0] sm:$0xff]
        %v935 = vld [vmem:[%s624 + $0x7d8] sm:$0xff]
        %v936 = vld [vmem:[%s624 + $0x7e0] sm:$0xff]
        %v937 = vld [vmem:[%s624 + $0x7e8] sm:$0xff]
        %v938 = vld [vmem:[%s624 + $0x7f0] sm:$0xff]
        %v939 = vld [vmem:[%s624 + $0x7f8] sm:$0xff]
        %v940 = vld [vmem:[%s624 + $0x800] sm:$0xff]
        %v941 = vld [vmem:[%s624 + $0x808] sm:$0xff]
        %v942 = vld [vmem:[%s624 + $0x810] sm:$0xff]
        %v943 = vld [vmem:[%s624 + $0x818] sm:$0xff]
        %v944 = vld [vmem:[%s624 + $0x820] sm:$0xff]
        %v945 = vld [vmem:[%s624 + $0x828] sm:$0xff]
        %v946 = vld [vmem:[%s624 + $0x830] sm:$0xff]
        %v947 = vld [vmem:[%s624 + $0x838] sm:$0xff]
        %v948 = vld [vmem:[%s624 + $0x840] sm:$0xff]
        %v949 = vld [vmem:[%s624 + $0x848] sm:$0xff]
        %v950 = vld [vmem:[%s624 + $0x850] sm:$0xff]
        %v951 = vld [vmem:[%s624 + $0x858] sm:$0xff]
        %v952 = vld [vmem:[%s624 + $0x860] sm:$0xff]
        %v953 = vld [vmem:[%s624 + $0x868] sm:$0xff]
        %v954 = vld [vmem:[%s624 + $0x870] sm:$0xff]
        %v955 = vld [vmem:[%s624 + $0x878] sm:$0xff]
        %v956 = vld [vmem:[%s624 + $0x880] sm:$0xff]
        %v957 = vld [vmem:[%s624 + $0x888] sm:$0xff]
        %v958 = vld [vmem:[%s624 + $0x890] sm:$0xff]
        %v959 = vld [vmem:[%s624 + $0x898] sm:$0xff]
        %v960 = vld [vmem:[%s624 + $0x8a0] sm:$0xff]
        %v961 = vld [vmem:[%s624 + $0x8a8] sm:$0xff]
        %v962 = vld [vmem:[%s624 + $0x8b0] sm:$0xff]
        %v963 = vld [vmem:[%s624 + $0x8b8] sm:$0xff]
        %v964 = vld [vmem:[%s624 + $0x8c0] sm:$0xff]
        %v965 = vld [vmem:[%s624 + $0x8c8] sm:$0xff]
        %v966 = vld [vmem:[%s624 + $0x8d0] sm:$0xff]
        %v967 = vld [vmem:[%s624 + $0x8d8] sm:$0xff]
        %v968 = vld [vmem:[%s624 + $0x8e0] sm:$0xff]
        %v969 = vld [vmem:[%s624 + $0x8e8] sm:$0xff]
        %v970 = vld [vmem:[%s624 + $0x8f0] sm:$0xff]
        %v971 = vld [vmem:[%s624 + $0x8f8] sm:$0xff]
        %v972 = vld [vmem:[%s624 + $0x900] sm:$0xff]
        %v973 = vld [vmem:[%s624 + $0x908] sm:$0xff]
        %v974 = vld [vmem:[%s624 + $0x910] sm:$0xff]
        %v975 = vld [vmem:[%s624 + $0x918] sm:$0xff]
        %v976 = vld [vmem:[%s624 + $0x920] sm:$0xff]
        %v977 = vld [vmem:[%s624 + $0x928] sm:$0xff]
        %v978 = vld [vmem:[%s624 + $0x930] sm:$0xff]
        %v979 = vld [vmem:[%s624 + $0x938] sm:$0xff]
        %v980 = vld [vmem:[%s624 + $0x940] sm:$0xff]
        %v981 = vld [vmem:[%s624 + $0x948] sm:$0xff]
        %v982 = vld [vmem:[%s624 + $0x950] sm:$0xff]
        %v983 = vld [vmem:[%s624 + $0x958] sm:$0xff]
        %v984 = vld [vmem:[%s624 + $0x960] sm:$0xff]
        %v985 = vld [vmem:[%s624 + $0x968] sm:$0xff]
        %v986 = vld [vmem:[%s624 + $0x970] sm:$0xff]
        %v987 = vld [vmem:[%s624 + $0x978] sm:$0xff]
        %v988 = vld [vmem:[%s624 + $0x980] sm:$0xff]
        %v989 = vld [vmem:[%s624 + $0x988] sm:$0xff]
        %v990 = vld [vmem:[%s624 + $0x990] sm:$0xff]
        %v991 = vld [vmem:[%s624 + $0x998] sm:$0xff]
        %v992 = vld [vmem:[%s624 + $0x9a0] sm:$0xff]
        %v993 = vld [vmem:[%s624 + $0x9a8] sm:$0xff]
        %v994 = vld [vmem:[%s624 + $0x9b0] sm:$0xff]
        %v995 = vld [vmem:[%s624 + $0x9b8] sm:$0xff]
        %v996 = vld [vmem:[%s624 + $0x9c0] sm:$0xff]
        %v997 = vld [vmem:[%s624 + $0x9c8] sm:$0xff]
        %v998 = vld [vmem:[%s624 + $0x9d0] sm:$0xff]
        %v999 = vld [vmem:[%s624 + $0x9d8] sm:$0xff]
        %v1000 = vld [vmem:[%s624 + $0x9e0] sm:$0xff]
        %v1001 = vld [vmem:[%s624 + $0x9e8] sm:$0xff]
        %v1002 = vld [vmem:[%s624 + $0x9f0] sm:$0xff]
        %v1003 = vld [vmem:[%s624 + $0x9f8] sm:$0xff]
        %v1004 = vld [vmem:[%s624 + $0xa00] sm:$0xff]
        %v1005 = vld [vmem:[%s624 + $0xa08] sm:$0xff]
        %v1006 = vld [vmem:[%s624 + $0xa10] sm:$0xff]
        %v1007 = vld [vmem:[%s624 + $0xa18] sm:$0xff]
        %v1008 = vld [vmem:[%s624 + $0xa20] sm:$0xff]
        %v1009 = vld [vmem:[%s624 + $0xa28] sm:$0xff]
        %v1010 = vld [vmem:[%s624 + $0xa30] sm:$0xff]
        %v1011 = vld [vmem:[%s624 + $0xa38] sm:$0xff]
        %v1012 = vld [vmem:[%s624 + $0xa40] sm:$0xff]
        %v1013 = vld [vmem:[%s624 + $0xa48] sm:$0xff]
        %v1014 = vld [vmem:[%s624 + $0xa50] sm:$0xff]
        %v1015 = vld [vmem:[%s624 + $0xa58] sm:$0xff]
        %v1016 = vld [vmem:[%s624 + $0xa60] sm:$0xff]
        %v1017 = vld [vmem:[%s624 + $0xa68] sm:$0xff]
        %v1018 = vld [vmem:[%s624 + $0xa70] sm:$0xff]
        %v1019 = vld [vmem:[%s624 + $0xa78] sm:$0xff]
        %v1020 = vld [vmem:[%s624 + $0xa80] sm:$0xff]
        %v1021 = vld [vmem:[%s624 + $0xa88] sm:$0xff]
        %v1022 = vld [vmem:[%s624 + $0xa90] sm:$0xff]
        %v1023 = vld [vmem:[%s624 + $0xa98] sm:$0xff]
        %v1024 = vld [vmem:[%s624 + $0xaa0] sm:$0xff]
        %v1025 = vld [vmem:[%s624 + $0xaa8] sm:$0xff]
        %v1026 = vld [vmem:[%s624 + $0xab0] sm:$0xff]
        %v1027 = vld [vmem:[%s624 + $0xab8] sm:$0xff]
        %v1028 = vld [vmem:[%s624 + $0xac0] sm:$0xff]
        %v1029 = vld [vmem:[%s624 + $0xac8] sm:$0xff]
        %v1030 = vld [vmem:[%s624 + $0xad0] sm:$0xff]
        %v1031 = vld [vmem:[%s624 + $0xad8] sm:$0xff]
        %v1032 = vld [vmem:[%s624 + $0xae0] sm:$0xff]
        %v1033 = vld [vmem:[%s624 + $0xae8] sm:$0xff]
        %v1034 = vld [vmem:[%s624 + $0xaf0] sm:$0xff]
        %v1035 = vld [vmem:[%s624 + $0xaf8] sm:$0xff]
        %v1036 = vld [vmem:[%s624 + $0xb00] sm:$0xff]
        %v1037 = vld [vmem:[%s624 + $0xb08] sm:$0xff]
        %v1038 = vld [vmem:[%s624 + $0xb10] sm:$0xff]
        %v1039 = vld [vmem:[%s624 + $0xb18] sm:$0xff]
        %v1040 = vld [vmem:[%s624 + $0xb20] sm:$0xff]
        %v1041 = vld [vmem:[%s624 + $0xb28] sm:$0xff]
        %v1042 = vld [vmem:[%s624 + $0xb30] sm:$0xff]
        %v1043 = vld [vmem:[%s624 + $0xb38] sm:$0xff]
        %v1044 = vld [vmem:[%s624 + $0xb40] sm:$0xff]
        %v1045 = vld [vmem:[%s624 + $0xb48] sm:$0xff]
        %v1046 = vld [vmem:[%s624 + $0xb50] sm:$0xff]
        %v1047 = vld [vmem:[%s624 + $0xb58] sm:$0xff]
        %v1048 = vld [vmem:[%s624 + $0xb60] sm:$0xff]
        %v1049 = vld [vmem:[%s624 + $0xb68] sm:$0xff]
        %v1050 = vld [vmem:[%s624 + $0xb70] sm:$0xff]
        %v1051 = vld [vmem:[%s624 + $0xb78] sm:$0xff]
        %v1052 = vld [vmem:[%s624 + $0xb80] sm:$0xff]
        %v1053 = vld [vmem:[%s624 + $0xb88] sm:$0xff]
        %v1054 = vld [vmem:[%s624 + $0xb90] sm:$0xff]
        %v1055 = vld [vmem:[%s624 + $0xb98] sm:$0xff]
        %v1056 = vld [vmem:[%s624 + $0xba0] sm:$0xff]
        %v1057 = vld [vmem:[%s624 + $0xba8] sm:$0xff]
        %v1058 = vld [vmem:[%s624 + $0xbb0] sm:$0xff]
        %v1059 = vld [vmem:[%s624 + $0xbb8] sm:$0xff]
        %v1060 = vld [vmem:[%s624 + $0xbc0] sm:$0xff]
        %v1061 = vld [vmem:[%s624 + $0xbc8] sm:$0xff]
        %v1062 = vld [vmem:[%s624 + $0xbd0] sm:$0xff]
        %v1063 = vld [vmem:[%s624 + $0xbd8] sm:$0xff]
        %v1064 = vld [vmem:[%s624 + $0xbe0] sm:$0xff]
        %v1065 = vld [vmem:[%s624 + $0xbe8] sm:$0xff]
        %v1066 = vld [vmem:[%s624 + $0xbf0] sm:$0xff]
        %v1067 = vld [vmem:[%s624 + $0xbf8] sm:$0xff]
        %v1068 = vld [vmem:[%s628] sm:$0xff]
        %v1070 = vlaneseq
        %v1071 = vshrl.u32 %v1070, 7
        %v1072 = vsub.s32 0, %v1071
        %v1073 = vrot.slane %v1068, %v1072
        %v1074 = vlaneseq
        %v1075 = vshrl.u32 %v1074, 7
        %v1076 = vsub.s32 1, %v1075
        %v1077 = vrot.slane %v1068, %v1076
        %v1078 = vlaneseq
        %v1079 = vshrl.u32 %v1078, 7
        %v1080 = vsub.s32 2, %v1079
        %v1081 = vrot.slane %v1068, %v1080
        %v1082 = vlaneseq
        %v1083 = vshrl.u32 %v1082, 7
        %v1084 = vsub.s32 3, %v1083
        %v1085 = vrot.slane %v1068, %v1084
        %v1086 = vlaneseq
        %v1087 = vshrl.u32 %v1086, 7
        %v1088 = vsub.s32 4, %v1087
        %v1089 = vrot.slane %v1068, %v1088
        %v1090 = vlaneseq
        %v1091 = vshrl.u32 %v1090, 7
        %v1092 = vsub.s32 5, %v1091
        %v1093 = vrot.slane %v1068, %v1092
        %v1094 = vlaneseq
        %v1095 = vshrl.u32 %v1094, 7
        %v1096 = vsub.s32 6, %v1095
        %v1097 = vrot.slane %v1068, %v1096
        %v1098 = vlaneseq
        %v1099 = vshrl.u32 %v1098, 7
        %v1100 = vsub.s32 7, %v1099
        %v1101 = vrot.slane %v1068, %v1100
        %1110 = vmatprep.subr.mxu0 %v685
        %1111 = vmatpush1.msra.mxu0 %v684
        %1112 = vmatprep.subr.mxu0 %v693
        %1113 = vmatpush1.msra.mxu0 %v692
        %1114 = vmatprep.subr.mxu0 %v701
        %1115 = vmatpush1.msra.mxu0 %v700
        %1116 = vmatprep.subr.mxu0 %v709
        %1117 = vmatpush1.msra.mxu0 %v708
        %1118 = vmatprep.subr.mxu0 %v717
        %1119 = vmatpush1.msra.mxu0 %v716
        %1120 = vmatprep.subr.mxu0 %v725
        %1121 = vmatpush1.msra.mxu0 %v724
        %1122 = vmatprep.subr.mxu0 %v733
        %1123 = vmatpush1.msra.mxu0 %v732
        %1124 = vmatprep.subr.mxu0 %v741
        %1125 = vmatpush1.msra.mxu0 %v740
        %1126 = vmatprep.subr.mxu0 %v749
        %1127 = vmatpush1.msra.mxu0 %v748
        %1128 = vmatprep.subr.mxu0 %v757
        %1129 = vmatpush1.msra.mxu0 %v756
        %1130 = vmatprep.subr.mxu0 %v765
        %1131 = vmatpush1.msra.mxu0 %v764
        %1132 = vmatprep.subr.mxu0 %v773
        %1133 = vmatpush1.msra.mxu0 %v772
        %1134 = vmatprep.subr.mxu0 %v781
        %1135 = vmatpush1.msra.mxu0 %v780
        %1136 = vmatprep.subr.mxu0 %v789
        %1137 = vmatpush1.msra.mxu0 %v788
        %1138 = vmatprep.subr.mxu0 %v797
        %1139 = vmatpush1.msra.mxu0 %v796
        %1140 = vmatprep.subr.mxu0 %v805
        %1141 = vmatpush1.msra.mxu0 %v804
        %1142 = vmatprep.subr.mxu0 %v813
        %1143 = vmatpush1.msra.mxu0 %v812
        %1144 = vmatprep.subr.mxu0 %v821
        %1145 = vmatpush1.msra.mxu0 %v820
        %1146 = vmatprep.subr.mxu0 %v829
        %1147 = vmatpush1.msra.mxu0 %v828
        %1148 = vmatprep.subr.mxu0 %v837
        %1149 = vmatpush1.msra.mxu0 %v836
        %1150 = vmatprep.subr.mxu0 %v845
        %1151 = vmatpush1.msra.mxu0 %v844
        %1152 = vmatprep.subr.mxu0 %v853
        %1153 = vmatpush1.msra.mxu0 %v852
        %1154 = vmatprep.subr.mxu0 %v861
        %1155 = vmatpush1.msra.mxu0 %v860
        %1156 = vmatprep.subr.mxu0 %v869
        %1157 = vmatpush1.msra.mxu0 %v868
        %1158 = vmatprep.subr.mxu0 %v877
        %1159 = vmatpush1.msra.mxu0 %v876
        %1160 = vmatprep.subr.mxu0 %v885
        %1161 = vmatpush1.msra.mxu0 %v884
        %1162 = vmatprep.subr.mxu0 %v893
        %1163 = vmatpush1.msra.mxu0 %v892
        %1164 = vmatprep.subr.mxu0 %v901
        %1165 = vmatpush1.msra.mxu0 %v900
        %1166 = vmatprep.subr.mxu0 %v909
        %1167 = vmatpush1.msra.mxu0 %v908
        %1168 = vmatprep.subr.mxu0 %v917
        %1169 = vmatpush1.msra.mxu0 %v916
        %1170 = vmatprep.subr.mxu0 %v925
        %1171 = vmatpush1.msra.mxu0 %v924
        %1172 = vmatprep.subr.mxu0 %v933
        %1173 = vmatpush1.msra.mxu0 %v932
        %1174 = vmatprep.mubr.f32.mxu0 %v679
        %1175 = vmatmul.mubr.f32.gmra.mrb[0].mxu0 %v678
        %v1176 = vpop.f32.mrb[0].mxu0
        %v1177 = vadd.f32 %v1073, %v1176
        %v1178 = vpop.f32.mrb[0].mxu0
        %v1179 = vadd.f32 %v1077, %v1178
        %1180 = vmatprep.mubr.f32.mxu0 %v682
        %1181 = vmatmul.mubr.f32.gmra.mrb[0].mxu0 %v681
        %v1182 = vpop.f32.mrb[0].mxu0
        %v1183 = vadd.f32 %v1073, %v1182
        %v1184 = vpop.f32.mrb[0].mxu0
        %v1185 = vadd.f32 %v1077, %v1184
        %1186 = vdwg.mxu0
        %1187 = vmatprep.subr.mxu0 %v941
        %1188 = vmatpush1.msra.mxu0 %v940
        %1189 = vmatprep.subr.mxu0 %v949
        %1190 = vmatpush1.msra.mxu0 %v948
        %1191 = vmatprep.subr.mxu0 %v957
        %1192 = vmatpush1.msra.mxu0 %v956
        %1193 = vmatprep.subr.mxu0 %v965
        %1194 = vmatpush1.msra.mxu0 %v964
        %1195 = vmatprep.subr.mxu0 %v973
        %1196 = vmatpush1.msra.mxu0 %v972
        %1197 = vmatprep.subr.mxu0 %v981
        %1198 = vmatpush1.msra.mxu0 %v980
        %1199 = vmatprep.subr.mxu0 %v989
        %1200 = vmatpush1.msra.mxu0 %v988
        %1201 = vmatprep.subr.mxu0 %v997
        %1202 = vmatpush1.msra.mxu0 %v996
        %1203 = vmatprep.subr.mxu0 %v1005
        %1204 = vmatpush1.msra.mxu0 %v1004
        %1205 = vmatprep.subr.mxu0 %v1013
        %1206 = vmatpush1.msra.mxu0 %v1012
        %1207 = vmatprep.subr.mxu0 %v1021
        %1208 = vmatpush1.msra.mxu0 %v1020
        %1209 = vmatprep.subr.mxu0 %v1029
        %1210 = vmatpush1.msra.mxu0 %v1028
        %1211 = vmatprep.subr.mxu0 %v1037
        %1212 = vmatpush1.msra.mxu0 %v1036
        %1213 = vmatprep.subr.mxu0 %v1045
        %1214 = vmatpush1.msra.mxu0 %v1044
        %1215 = vmatprep.subr.mxu0 %v1053
        %1216 = vmatpush1.msra.mxu0 %v1052
        %1217 = vmatprep.subr.mxu0 %v1061
        %1218 = vmatpush1.msra.mxu0 %v1060
        %1219 = vmatprep.subr.mxu0 0.0
        %1220 = vmatpush1.msra.mxu0 0.0
        %1221 = vmatprep.subr.mxu0 0.0
        %1222 = vmatpush1.msra.mxu0 0.0
        %1223 = vmatprep.subr.mxu0 0.0
        %1224 = vmatpush1.msra.mxu0 0.0
        %1225 = vmatprep.subr.mxu0 0.0
        %1226 = vmatpush1.msra.mxu0 0.0
        %1227 = vmatprep.subr.mxu0 0.0
        %1228 = vmatpush1.msra.mxu0 0.0
        %1229 = vmatprep.subr.mxu0 0.0
        %1230 = vmatpush1.msra.mxu0 0.0
        %1231 = vmatprep.subr.mxu0 0.0
        %1232 = vmatpush1.msra.mxu0 0.0
        %1233 = vmatprep.subr.mxu0 0.0
        %1234 = vmatpush1.msra.mxu0 0.0
        %1235 = vmatprep.subr.mxu0 0.0
        %1236 = vmatpush1.msra.mxu0 0.0
        %1237 = vmatprep.subr.mxu0 0.0
        %1238 = vmatpush1.msra.mxu0 0.0
        %1239 = vmatprep.subr.mxu0 0.0
        %1240 = vmatpush1.msra.mxu0 0.0
        %1241 = vmatprep.subr.mxu0 0.0
        %1242 = vmatpush1.msra.mxu0 0.0
        %1243 = vmatprep.subr.mxu0 0.0
        %1244 = vmatpush1.msra.mxu0 0.0
        %1245 = vmatprep.subr.mxu0 0.0
        %1246 = vmatpush1.msra.mxu0 0.0
        %1247 = vmatprep.subr.mxu0 0.0
        %1248 = vmatpush1.msra.mxu0 0.0
        %1249 = vmatprep.subr.mxu0 0.0
        %1250 = vmatpush1.msra.mxu0 0.0
        %1251 = vmatprep.mubr.f32.mxu0 0.0
        %1252 = vmatmul.mubr.f32.gmra.mrb[0].mxu0 %v680
        %v1253 = vpop.f32.mrb[0].mxu0
        %v1254 = vadd.f32 %v1177, %v1253
        %v1255 = vpop.f32.mrb[0].mxu0
        %v1256 = vadd.f32 %v1179, %v1255
        %1257 = vmatprep.mubr.f32.mxu0 0.0
        %1258 = vmatmul.mubr.f32.gmra.mrb[0].mxu0 %v683
        %v1259 = vpop.f32.mrb[0].mxu0
        %v1260 = vadd.f32 %v1183, %v1259
        %v1261 = vpop.f32.mrb[0].mxu0
        %v1262 = vadd.f32 %v1185, %v1261
        %1263 = vdwg.mxu0
        %1264 = vmatprep.subr.mxu0 %v687
        %1265 = vmatpush1.msra.mxu0 %v686
        %1266 = vmatprep.subr.mxu0 %v695
        %1267 = vmatpush1.msra.mxu0 %v694
        %1268 = vmatprep.subr.mxu0 %v703
        %1269 = vmatpush1.msra.mxu0 %v702
        %1270 = vmatprep.subr.mxu0 %v711
        %1271 = vmatpush1.msra.mxu0 %v710
        %1272 = vmatprep.subr.mxu0 %v719
        %1273 = vmatpush1.msra.mxu0 %v718
        %1274 = vmatprep.subr.mxu0 %v727
        %1275 = vmatpush1.msra.mxu0 %v726
        %1276 = vmatprep.subr.mxu0 %v735
        %1277 = vmatpush1.msra.mxu0 %v734
        %1278 = vmatprep.subr.mxu0 %v743
        %1279 = vmatpush1.msra.mxu0 %v742
        %1280 = vmatprep.subr.mxu0 %v751
        %1281 = vmatpush1.msra.mxu0 %v750
        %1282 = vmatprep.subr.mxu0 %v759
        %1283 = vmatpush1.msra.mxu0 %v758
        %1284 = vmatprep.subr.mxu0 %v767
        %1285 = vmatpush1.msra.mxu0 %v766
        %1286 = vmatprep.subr.mxu0 %v775
        %1287 = vmatpush1.msra.mxu0 %v774
        %1288 = vmatprep.subr.mxu0 %v783
        %1289 = vmatpush1.msra.mxu0 %v782
        %1290 = vmatprep.subr.mxu0 %v791
        %1291 = vmatpush1.msra.mxu0 %v790
        %1292 = vmatprep.subr.mxu0 %v799
        %1293 = vmatpush1.msra.mxu0 %v798
        %1294 = vmatprep.subr.mxu0 %v807
        %1295 = vmatpush1.msra.mxu0 %v806
        %1296 = vmatprep.subr.mxu0 %v815
        %1297 = vmatpush1.msra.mxu0 %v814
        %1298 = vmatprep.subr.mxu0 %v823
        %1299 = vmatpush1.msra.mxu0 %v822
        %1300 = vmatprep.subr.mxu0 %v831
        %1301 = vmatpush1.msra.mxu0 %v830
        %1302 = vmatprep.subr.mxu0 %v839
        %1303 = vmatpush1.msra.mxu0 %v838
        %1304 = vmatprep.subr.mxu0 %v847
        %1305 = vmatpush1.msra.mxu0 %v846
        %1306 = vmatprep.subr.mxu0 %v855
        %1307 = vmatpush1.msra.mxu0 %v854
        %1308 = vmatprep.subr.mxu0 %v863
        %1309 = vmatpush1.msra.mxu0 %v862
        %1310 = vmatprep.subr.mxu0 %v871
        %1311 = vmatpush1.msra.mxu0 %v870
        %1312 = vmatprep.subr.mxu0 %v879
        %1313 = vmatpush1.msra.mxu0 %v878
        %1314 = vmatprep.subr.mxu0 %v887
        %1315 = vmatpush1.msra.mxu0 %v886
        %1316 = vmatprep.subr.mxu0 %v895
        %1317 = vmatpush1.msra.mxu0 %v894
        %1318 = vmatprep.subr.mxu0 %v903
        %1319 = vmatpush1.msra.mxu0 %v902
        %1320 = vmatprep.subr.mxu0 %v911
        %1321 = vmatpush1.msra.mxu0 %v910
        %1322 = vmatprep.subr.mxu0 %v919
        %1323 = vmatpush1.msra.mxu0 %v918
        %1324 = vmatprep.subr.mxu0 %v927
        %1325 = vmatpush1.msra.mxu0 %v926
        %1326 = vmatprep.subr.mxu0 %v935
        %1327 = vmatpush1.msra.mxu0 %v934
        %1328 = vmatprep.mubr.f32.mxu0 %v679
        %1329 = vmatmul.mubr.f32.gmra.mrb[0].mxu0 %v678
        %v1330 = vpop.f32.mrb[0].mxu0
        %v1331 = vadd.f32 %v1081, %v1330
        %v1332 = vpop.f32.mrb[0].mxu0
        %v1333 = vadd.f32 %v1085, %v1332
        %1334 = vmatprep.mubr.f32.mxu0 %v682
        %1335 = vmatmul.mubr.f32.gmra.mrb[0].mxu0 %v681
        %v1336 = vpop.f32.mrb[0].mxu0
        %v1337 = vadd.f32 %v1081, %v1336
        %v1338 = vpop.f32.mrb[0].mxu0
        %v1339 = vadd.f32 %v1085, %v1338
        %1340 = vdwg.mxu0
        %1341 = vmatprep.subr.mxu0 %v943
        %1342 = vmatpush1.msra.mxu0 %v942
        %1343 = vmatprep.subr.mxu0 %v951
        %1344 = vmatpush1.msra.mxu0 %v950
        %1345 = vmatprep.subr.mxu0 %v959
        %1346 = vmatpush1.msra.mxu0 %v958
        %1347 = vmatprep.subr.mxu0 %v967
        %1348 = vmatpush1.msra.mxu0 %v966
        %1349 = vmatprep.subr.mxu0 %v975
        %1350 = vmatpush1.msra.mxu0 %v974
        %1351 = vmatprep.subr.mxu0 %v983
        %1352 = vmatpush1.msra.mxu0 %v982
        %1353 = vmatprep.subr.mxu0 %v991
        %1354 = vmatpush1.msra.mxu0 %v990
        %1355 = vmatprep.subr.mxu0 %v999
        %1356 = vmatpush1.msra.mxu0 %v998
        %1357 = vmatprep.subr.mxu0 %v1007
        %1358 = vmatpush1.msra.mxu0 %v1006
        %1359 = vmatprep.subr.mxu0 %v1015
        %1360 = vmatpush1.msra.mxu0 %v1014
        %1361 = vmatprep.subr.mxu0 %v1023
        %1362 = vmatpush1.msra.mxu0 %v1022
        %1363 = vmatprep.subr.mxu0 %v1031
        %1364 = vmatpush1.msra.mxu0 %v1030
        %1365 = vmatprep.subr.mxu0 %v1039
        %1366 = vmatpush1.msra.mxu0 %v1038
        %1367 = vmatprep.subr.mxu0 %v1047
        %1368 = vmatpush1.msra.mxu0 %v1046
        %1369 = vmatprep.subr.mxu0 %v1055
        %1370 = vmatpush1.msra.mxu0 %v1054
        %1371 = vmatprep.subr.mxu0 %v1063
        %1372 = vmatpush1.msra.mxu0 %v1062
        %1373 = vmatprep.subr.mxu0 0.0
        %1374 = vmatpush1.msra.mxu0 0.0
        %1375 = vmatprep.subr.mxu0 0.0
        %1376 = vmatpush1.msra.mxu0 0.0
        %1377 = vmatprep.subr.mxu0 0.0
        %1378 = vmatpush1.msra.mxu0 0.0
        %1379 = vmatprep.subr.mxu0 0.0
        %1380 = vmatpush1.msra.mxu0 0.0
        %1381 = vmatprep.subr.mxu0 0.0
        %1382 = vmatpush1.msra.mxu0 0.0
        %1383 = vmatprep.subr.mxu0 0.0
        %1384 = vmatpush1.msra.mxu0 0.0
        %1385 = vmatprep.subr.mxu0 0.0
        %1386 = vmatpush1.msra.mxu0 0.0
        %1387 = vmatprep.subr.mxu0 0.0
        %1388 = vmatpush1.msra.mxu0 0.0
        %1389 = vmatprep.subr.mxu0 0.0
        %1390 = vmatpush1.msra.mxu0 0.0
        %1391 = vmatprep.subr.mxu0 0.0
        %1392 = vmatpush1.msra.mxu0 0.0
        %1393 = vmatprep.subr.mxu0 0.0
        %1394 = vmatpush1.msra.mxu0 0.0
        %1395 = vmatprep.subr.mxu0 0.0
        %1396 = vmatpush1.msra.mxu0 0.0
        %1397 = vmatprep.subr.mxu0 0.0
        %1398 = vmatpush1.msra.mxu0 0.0
        %1399 = vmatprep.subr.mxu0 0.0
        %1400 = vmatpush1.msra.mxu0 0.0
        %1401 = vmatprep.subr.mxu0 0.0
        %1402 = vmatpush1.msra.mxu0 0.0
        %1403 = vmatprep.subr.mxu0 0.0
        %1404 = vmatpush1.msra.mxu0 0.0
        %1405 = vmatprep.mubr.f32.mxu0 0.0
        %1406 = vmatmul.mubr.f32.gmra.mrb[0].mxu0 %v680
        %v1407 = vpop.f32.mrb[0].mxu0
        %v1408 = vadd.f32 %v1331, %v1407
        %v1409 = vpop.f32.mrb[0].mxu0
        %v1410 = vadd.f32 %v1333, %v1409
        %1411 = vmatprep.mubr.f32.mxu0 0.0
        %1412 = vmatmul.mubr.f32.gmra.mrb[0].mxu0 %v683
        %v1413 = vpop.f32.mrb[0].mxu0
        %v1414 = vadd.f32 %v1337, %v1413
        %v1415 = vpop.f32.mrb[0].mxu0
        %v1416 = vadd.f32 %v1339, %v1415
        %1417 = vdwg.mxu0
        %1418 = vmatprep.subr.mxu0 %v689
        %1419 = vmatpush1.msra.mxu0 %v688
        %1420 = vmatprep.subr.mxu0 %v697
        %1421 = vmatpush1.msra.mxu0 %v696
        %1422 = vmatprep.subr.mxu0 %v705
        %1423 = vmatpush1.msra.mxu0 %v704
        %1424 = vmatprep.subr.mxu0 %v713
        %1425 = vmatpush1.msra.mxu0 %v712
        %1426 = vmatprep.subr.mxu0 %v721
        %1427 = vmatpush1.msra.mxu0 %v720
        %1428 = vmatprep.subr.mxu0 %v729
        %1429 = vmatpush1.msra.mxu0 %v728
        %1430 = vmatprep.subr.mxu0 %v737
        %1431 = vmatpush1.msra.mxu0 %v736
        %1432 = vmatprep.subr.mxu0 %v745
        %1433 = vmatpush1.msra.mxu0 %v744
        %1434 = vmatprep.subr.mxu0 %v753
        %1435 = vmatpush1.msra.mxu0 %v752
        %1436 = vmatprep.subr.mxu0 %v761
        %1437 = vmatpush1.msra.mxu0 %v760
        %1438 = vmatprep.subr.mxu0 %v769
        %1439 = vmatpush1.msra.mxu0 %v768
        %1440 = vmatprep.subr.mxu0 %v777
        %1441 = vmatpush1.msra.mxu0 %v776
        %1442 = vmatprep.subr.mxu0 %v785
        %1443 = vmatpush1.msra.mxu0 %v784
        %1444 = vmatprep.subr.mxu0 %v793
        %1445 = vmatpush1.msra.mxu0 %v792
        %1446 = vmatprep.subr.mxu0 %v801
        %1447 = vmatpush1.msra.mxu0 %v800
        %1448 = vmatprep.subr.mxu0 %v809
        %1449 = vmatpush1.msra.mxu0 %v808
        %1450 = vmatprep.subr.mxu0 %v817
        %1451 = vmatpush1.msra.mxu0 %v816
        %1452 = vmatprep.subr.mxu0 %v825
        %1453 = vmatpush1.msra.mxu0 %v824
        %1454 = vmatprep.subr.mxu0 %v833
        %1455 = vmatpush1.msra.mxu0 %v832
        %1456 = vmatprep.subr.mxu0 %v841
        %1457 = vmatpush1.msra.mxu0 %v840
        %1458 = vmatprep.subr.mxu0 %v849
        %1459 = vmatpush1.msra.mxu0 %v848
        %1460 = vmatprep.subr.mxu0 %v857
        %1461 = vmatpush1.msra.mxu0 %v856
        %1462 = vmatprep.subr.mxu0 %v865
        %1463 = vmatpush1.msra.mxu0 %v864
        %1464 = vmatprep.subr.mxu0 %v873
        %1465 = vmatpush1.msra.mxu0 %v872
        %1466 = vmatprep.subr.mxu0 %v881
        %1467 = vmatpush1.msra.mxu0 %v880
        %1468 = vmatprep.subr.mxu0 %v889
        %1469 = vmatpush1.msra.mxu0 %v888
        %1470 = vmatprep.subr.mxu0 %v897
        %1471 = vmatpush1.msra.mxu0 %v896
        %1472 = vmatprep.subr.mxu0 %v905
        %1473 = vmatpush1.msra.mxu0 %v904
        %1474 = vmatprep.subr.mxu0 %v913
        %1475 = vmatpush1.msra.mxu0 %v912
        %1476 = vmatprep.subr.mxu0 %v921
        %1477 = vmatpush1.msra.mxu0 %v920
        %1478 = vmatprep.subr.mxu0 %v929
        %1479 = vmatpush1.msra.mxu0 %v928
        %1480 = vmatprep.subr.mxu0 %v937
        %1481 = vmatpush1.msra.mxu0 %v936
        %1482 = vmatprep.mubr.f32.mxu0 %v679
        %1483 = vmatmul.mubr.f32.gmra.mrb[0].mxu0 %v678
        %v1484 = vpop.f32.mrb[0].mxu0
        %v1485 = vadd.f32 %v1089, %v1484
        %v1486 = vpop.f32.mrb[0].mxu0
        %v1487 = vadd.f32 %v1093, %v1486
        %1488 = vmatprep.mubr.f32.mxu0 %v682
        %1489 = vmatmul.mubr.f32.gmra.mrb[0].mxu0 %v681
        %v1490 = vpop.f32.mrb[0].mxu0
        %v1491 = vadd.f32 %v1089, %v1490
        %v1492 = vpop.f32.mrb[0].mxu0
        %v1493 = vadd.f32 %v1093, %v1492
        %1494 = vdwg.mxu0
        %1495 = vmatprep.subr.mxu0 %v945
        %1496 = vmatpush1.msra.mxu0 %v944
        %1497 = vmatprep.subr.mxu0 %v953
        %1498 = vmatpush1.msra.mxu0 %v952
        %1499 = vmatprep.subr.mxu0 %v961
        %1500 = vmatpush1.msra.mxu0 %v960
        %1501 = vmatprep.subr.mxu0 %v969
        %1502 = vmatpush1.msra.mxu0 %v968
        %1503 = vmatprep.subr.mxu0 %v977
        %1504 = vmatpush1.msra.mxu0 %v976
        %1505 = vmatprep.subr.mxu0 %v985
        %1506 = vmatpush1.msra.mxu0 %v984
        %1507 = vmatprep.subr.mxu0 %v993
        %1508 = vmatpush1.msra.mxu0 %v992
        %1509 = vmatprep.subr.mxu0 %v1001
        %1510 = vmatpush1.msra.mxu0 %v1000
        %1511 = vmatprep.subr.mxu0 %v1009
        %1512 = vmatpush1.msra.mxu0 %v1008
        %1513 = vmatprep.subr.mxu0 %v1017
        %1514 = vmatpush1.msra.mxu0 %v1016
        %1515 = vmatprep.subr.mxu0 %v1025
        %1516 = vmatpush1.msra.mxu0 %v1024
        %1517 = vmatprep.subr.mxu0 %v1033
        %1518 = vmatpush1.msra.mxu0 %v1032
        %1519 = vmatprep.subr.mxu0 %v1041
        %1520 = vmatpush1.msra.mxu0 %v1040
        %1521 = vmatprep.subr.mxu0 %v1049
        %1522 = vmatpush1.msra.mxu0 %v1048
        %1523 = vmatprep.subr.mxu0 %v1057
        %1524 = vmatpush1.msra.mxu0 %v1056
        %1525 = vmatprep.subr.mxu0 %v1065
        %1526 = vmatpush1.msra.mxu0 %v1064
        %1527 = vmatprep.subr.mxu0 0.0
        %1528 = vmatpush1.msra.mxu0 0.0
        %1529 = vmatprep.subr.mxu0 0.0
        %1530 = vmatpush1.msra.mxu0 0.0
        %1531 = vmatprep.subr.mxu0 0.0
        %1532 = vmatpush1.msra.mxu0 0.0
        %1533 = vmatprep.subr.mxu0 0.0
        %1534 = vmatpush1.msra.mxu0 0.0
        %1535 = vmatprep.subr.mxu0 0.0
        %1536 = vmatpush1.msra.mxu0 0.0
        %1537 = vmatprep.subr.mxu0 0.0
        %1538 = vmatpush1.msra.mxu0 0.0
        %1539 = vmatprep.subr.mxu0 0.0
        %1540 = vmatpush1.msra.mxu0 0.0
        %1541 = vmatprep.subr.mxu0 0.0
        %1542 = vmatpush1.msra.mxu0 0.0
        %1543 = vmatprep.subr.mxu0 0.0
        %1544 = vmatpush1.msra.mxu0 0.0
        %1545 = vmatprep.subr.mxu0 0.0
        %1546 = vmatpush1.msra.mxu0 0.0
        %1547 = vmatprep.subr.mxu0 0.0
        %1548 = vmatpush1.msra.mxu0 0.0
        %1549 = vmatprep.subr.mxu0 0.0
        %1550 = vmatpush1.msra.mxu0 0.0
        %1551 = vmatprep.subr.mxu0 0.0
        %1552 = vmatpush1.msra.mxu0 0.0
        %1553 = vmatprep.subr.mxu0 0.0
        %1554 = vmatpush1.msra.mxu0 0.0
        %1555 = vmatprep.subr.mxu0 0.0
        %1556 = vmatpush1.msra.mxu0 0.0
        %1557 = vmatprep.subr.mxu0 0.0
        %1558 = vmatpush1.msra.mxu0 0.0
        %1559 = vmatprep.mubr.f32.mxu0 0.0
        %1560 = vmatmul.mubr.f32.gmra.mrb[0].mxu0 %v680
        %v1561 = vpop.f32.mrb[0].mxu0
        %v1562 = vadd.f32 %v1485, %v1561
        %v1563 = vpop.f32.mrb[0].mxu0
        %v1564 = vadd.f32 %v1487, %v1563
        %1565 = vmatprep.mubr.f32.mxu0 0.0
        %1566 = vmatmul.mubr.f32.gmra.mrb[0].mxu0 %v683
        %v1567 = vpop.f32.mrb[0].mxu0
        %v1568 = vadd.f32 %v1491, %v1567
        %v1569 = vpop.f32.mrb[0].mxu0
        %v1570 = vadd.f32 %v1493, %v1569
        %1571 = vdwg.mxu0
        %1572 = vmatprep.subr.mxu0 %v691
        %1573 = vmatpush1.msra.mxu0 %v690
        %1574 = vmatprep.subr.mxu0 %v699
        %1575 = vmatpush1.msra.mxu0 %v698
        %1576 = vmatprep.subr.mxu0 %v707
        %1577 = vmatpush1.msra.mxu0 %v706
        %1578 = vmatprep.subr.mxu0 %v715
        %1579 = vmatpush1.msra.mxu0 %v714
        %1580 = vmatprep.subr.mxu0 %v723
        %1581 = vmatpush1.msra.mxu0 %v722
        %1582 = vmatprep.subr.mxu0 %v731
        %1583 = vmatpush1.msra.mxu0 %v730
        %1584 = vmatprep.subr.mxu0 %v739
        %1585 = vmatpush1.msra.mxu0 %v738
        %1586 = vmatprep.subr.mxu0 %v747
        %1587 = vmatpush1.msra.mxu0 %v746
        %1588 = vmatprep.subr.mxu0 %v755
        %1589 = vmatpush1.msra.mxu0 %v754
        %1590 = vmatprep.subr.mxu0 %v763
        %1591 = vmatpush1.msra.mxu0 %v762
        %1592 = vmatprep.subr.mxu0 %v771
        %1593 = vmatpush1.msra.mxu0 %v770
        %1594 = vmatprep.subr.mxu0 %v779
        %1595 = vmatpush1.msra.mxu0 %v778
        %1596 = vmatprep.subr.mxu0 %v787
        %1597 = vmatpush1.msra.mxu0 %v786
        %1598 = vmatprep.subr.mxu0 %v795
        %1599 = vmatpush1.msra.mxu0 %v794
        %1600 = vmatprep.subr.mxu0 %v803
        %1601 = vmatpush1.msra.mxu0 %v802
        %1602 = vmatprep.subr.mxu0 %v811
        %1603 = vmatpush1.msra.mxu0 %v810
        %1604 = vmatprep.subr.mxu0 %v819
        %1605 = vmatpush1.msra.mxu0 %v818
        %1606 = vmatprep.subr.mxu0 %v827
        %1607 = vmatpush1.msra.mxu0 %v826
        %1608 = vmatprep.subr.mxu0 %v835
        %1609 = vmatpush1.msra.mxu0 %v834
        %1610 = vmatprep.subr.mxu0 %v843
        %1611 = vmatpush1.msra.mxu0 %v842
        %1612 = vmatprep.subr.mxu0 %v851
        %1613 = vmatpush1.msra.mxu0 %v850
        %1614 = vmatprep.subr.mxu0 %v859
        %1615 = vmatpush1.msra.mxu0 %v858
        %1616 = vmatprep.subr.mxu0 %v867
        %1617 = vmatpush1.msra.mxu0 %v866
        %1618 = vmatprep.subr.mxu0 %v875
        %1619 = vmatpush1.msra.mxu0 %v874
        %1620 = vmatprep.subr.mxu0 %v883
        %1621 = vmatpush1.msra.mxu0 %v882
        %1622 = vmatprep.subr.mxu0 %v891
        %1623 = vmatpush1.msra.mxu0 %v890
        %1624 = vmatprep.subr.mxu0 %v899
        %1625 = vmatpush1.msra.mxu0 %v898
        %1626 = vmatprep.subr.mxu0 %v907
        %1627 = vmatpush1.msra.mxu0 %v906
        %1628 = vmatprep.subr.mxu0 %v915
        %1629 = vmatpush1.msra.mxu0 %v914
        %1630 = vmatprep.subr.mxu0 %v923
        %1631 = vmatpush1.msra.mxu0 %v922
        %1632 = vmatprep.subr.mxu0 %v931
        %1633 = vmatpush1.msra.mxu0 %v930
        %1634 = vmatprep.subr.mxu0 %v939
        %1635 = vmatpush1.msra.mxu0 %v938
        %1636 = vmatprep.mubr.f32.mxu0 %v679
        %1637 = vmatmul.mubr.f32.gmra.mrb[0].mxu0 %v678
        %v1638 = vpop.f32.mrb[0].mxu0
        %v1639 = vadd.f32 %v1097, %v1638
        %v1640 = vpop.f32.mrb[0].mxu0
        %v1641 = vadd.f32 %v1101, %v1640
        %1642 = vmatprep.mubr.f32.mxu0 %v682
        %1643 = vmatmul.mubr.f32.gmra.mrb[0].mxu0 %v681
        %v1644 = vpop.f32.mrb[0].mxu0
        %v1645 = vadd.f32 %v1097, %v1644
        %v1646 = vpop.f32.mrb[0].mxu0
        %v1647 = vadd.f32 %v1101, %v1646
        %1648 = vdwg.mxu0
        %1649 = vmatprep.subr.mxu0 %v947
        %1650 = vmatpush1.msra.mxu0 %v946
        %1651 = vmatprep.subr.mxu0 %v955
        %1652 = vmatpush1.msra.mxu0 %v954
        %1653 = vmatprep.subr.mxu0 %v963
        %1654 = vmatpush1.msra.mxu0 %v962
        %1655 = vmatprep.subr.mxu0 %v971
        %1656 = vmatpush1.msra.mxu0 %v970
        %1657 = vmatprep.subr.mxu0 %v979
        %1658 = vmatpush1.msra.mxu0 %v978
        %1659 = vmatprep.subr.mxu0 %v987
        %1660 = vmatpush1.msra.mxu0 %v986
        %1661 = vmatprep.subr.mxu0 %v995
        %1662 = vmatpush1.msra.mxu0 %v994
        %1663 = vmatprep.subr.mxu0 %v1003
        %1664 = vmatpush1.msra.mxu0 %v1002
        %1665 = vmatprep.subr.mxu0 %v1011
        %1666 = vmatpush1.msra.mxu0 %v1010
        %1667 = vmatprep.subr.mxu0 %v1019
        %1668 = vmatpush1.msra.mxu0 %v1018
        %1669 = vmatprep.subr.mxu0 %v1027
        %1670 = vmatpush1.msra.mxu0 %v1026
        %1671 = vmatprep.subr.mxu0 %v1035
        %1672 = vmatpush1.msra.mxu0 %v1034
        %1673 = vmatprep.subr.mxu0 %v1043
        %1674 = vmatpush1.msra.mxu0 %v1042
        %1675 = vmatprep.subr.mxu0 %v1051
        %1676 = vmatpush1.msra.mxu0 %v1050
        %1677 = vmatprep.subr.mxu0 %v1059
        %1678 = vmatpush1.msra.mxu0 %v1058
        %1679 = vmatprep.subr.mxu0 %v1067
        %1680 = vmatpush1.msra.mxu0 %v1066
        %1681 = vmatprep.subr.mxu0 0.0
        %1682 = vmatpush1.msra.mxu0 0.0
        %1683 = vmatprep.subr.mxu0 0.0
        %1684 = vmatpush1.msra.mxu0 0.0
        %1685 = vmatprep.subr.mxu0 0.0
        %1686 = vmatpush1.msra.mxu0 0.0
        %1687 = vmatprep.subr.mxu0 0.0
        %1688 = vmatpush1.msra.mxu0 0.0
        %1689 = vmatprep.subr.mxu0 0.0
        %1690 = vmatpush1.msra.mxu0 0.0
        %1691 = vmatprep.subr.mxu0 0.0
        %1692 = vmatpush1.msra.mxu0 0.0
        %1693 = vmatprep.subr.mxu0 0.0
        %1694 = vmatpush1.msra.mxu0 0.0
        %1695 = vmatprep.subr.mxu0 0.0
        %1696 = vmatpush1.msra.mxu0 0.0
        %1697 = vmatprep.subr.mxu0 0.0
        %1698 = vmatpush1.msra.mxu0 0.0
        %1699 = vmatprep.subr.mxu0 0.0
        %1700 = vmatpush1.msra.mxu0 0.0
        %1701 = vmatprep.subr.mxu0 0.0
        %1702 = vmatpush1.msra.mxu0 0.0
        %1703 = vmatprep.subr.mxu0 0.0
        %1704 = vmatpush1.msra.mxu0 0.0
        %1705 = vmatprep.subr.mxu0 0.0
        %1706 = vmatpush1.msra.mxu0 0.0
        %1707 = vmatprep.subr.mxu0 0.0
        %1708 = vmatpush1.msra.mxu0 0.0
        %1709 = vmatprep.subr.mxu0 0.0
        %1710 = vmatpush1.msra.mxu0 0.0
        %1711 = vmatprep.subr.mxu0 0.0
        %1712 = vmatpush1.msra.mxu0 0.0
        %1713 = vmatprep.mubr.f32.mxu0 0.0
        %1714 = vmatmul.mubr.f32.gmra.mrb[0].mxu0 %v680
        %v1715 = vpop.f32.mrb[0].mxu0
        %v1716 = vadd.f32 %v1639, %v1715
        %v1717 = vpop.f32.mrb[0].mxu0
        %v1718 = vadd.f32 %v1641, %v1717
        %1719 = vmatprep.mubr.f32.mxu0 0.0
        %1720 = vmatmul.mubr.f32.gmra.mrb[0].mxu0 %v683
        %v1721 = vpop.f32.mrb[0].mxu0
        %v1722 = vadd.f32 %v1645, %v1721
        %v1723 = vpop.f32.mrb[0].mxu0
        %v1724 = vadd.f32 %v1647, %v1723
        %1725 = vdwg.mxu0
        %v1726 = vlaneseq
        %v1727 = vshrl.u32 %v1726, 7
        %v1728 = vadd.s32 %v1727, 8
        %v1729 = vlaneseq
        %v1730 = vand.u32 %v1729, 127
        %vm1731 = vcmp.lt.s32.totalorder %v1727, 0
        %v1732 = vsub.s32 0, %v1727
        %v1733 = vsel %vm1731, %v1732, %v1727
        %v1734 = vshrl.u32 %v1733, 3
        %v1735 = vand.u32 %v1733, 7
        %v1736 = vsub.s32 0, %v1735
        %v1737 = vsel %vm1731, %v1736, %v1735
        %vm1738 = vcmp.lt.s32.totalorder %v1728, 0
        %v1739 = vsub.s32 0, %v1728
        %v1740 = vsel %vm1738, %v1739, %v1728
        %v1741 = vshrl.u32 %v1740, 3
        %v1742 = vand.u32 %v1740, 7
        %v1743 = vsub.s32 0, %v1742
        %v1744 = vsel %vm1738, %v1743, %v1742
        %vm1745 = vcmp.ne.s32.totalorder %v1737, 0
        %vm1746 = vcmp.ne.s32.totalorder %v1744, 0
        %vm1747 = vcmp.lt.s32.totalorder %v1737, 0
        %vm1748 = vcmp.lt.s32.totalorder %v1744, 0
        %vm1749 = vmand %vm1747, %vm1745
        %vm1750 = vmand %vm1748, %vm1746
        %v1751 = vadd.s32 %v1737, 8
        %v1752 = vadd.s32 %v1744, 8
        %v1753 = vsel %vm1749, %v1751, %v1737
        %v1754 = vsel %vm1750, %v1752, %v1744
        %vm1755 = vcmp.lt.s32.totalorder %v1730, 0
        %v1756 = vsub.s32 0, %v1730
        %v1757 = vsel %vm1755, %v1756, %v1730
        %v1758 = vshrl.u32 %v1757, 3
        %v1759 = vand.u32 %v1757, 7
        %v1760 = vsub.s32 0, %v1759
        %v1761 = vsel %vm1755, %v1760, %v1759
        %vm1762 = vcmp.ne.s32.totalorder %v1761, 0
        %vm1763 = vcmp.lt.s32.totalorder %v1761, 0
        %vm1764 = vmand %vm1763, %vm1762
        %v1765 = vadd.s32 %v1761, 8
        %v1766 = vsel %vm1764, %v1765, %v1761
        %vm1767 = vcmp.eq.s32.totalorder %v1753, %v1766
        %vm1768 = vcmp.eq.s32.totalorder %v1754, %v1766
        %v1769 = vmul.f32 %v1254, 0.12909944
        %v1770 = vmul.f32 %v1260, 0.12909944
        %1773 = vrot.lane.b32.xlu0 %v1408, 64
        %v1774 = vpop.permute.xlu0 %1773
        %1775 = vrot.lane.b32.xlu0 %v1414, 64
        %v1776 = vpop.permute.xlu0 %1775
        %vm1777 = vcmask 523264
        %v1779 = vsel %vm1777, %v1769, 0
        %v1782 = vsel %vm1777, %v1770, 0
        %v1784 = vsel %vm1777, %v1774, 0
        %v1786 = vsel %vm1777, %v1776, 0
        %1788 = vmatprep.subr.mxu0 0.0
        %1789 = vmatpush1.xpose.msra.mxu0 %v1784
        %1790 = vmatprep.subr.mxu0 0.0
        %1791 = vmatpush1.xpose.msra.mxu0 %v1786
        %1792 = vmatprep.subr.mxu0 0.0
        %1793 = vmatpush1.xpose.msra.mxu0 0.0
        %1794 = vmatprep.subr.mxu0 0.0
        %1795 = vmatpush1.xpose.msra.mxu0 0.0
        %1796 = vmatprep.subr.mxu0 0.0
        %1797 = vmatpush1.xpose.msra.mxu0 0.0
        %1798 = vmatprep.subr.mxu0 0.0
        %1799 = vmatpush1.xpose.msra.mxu0 0.0
        %1800 = vmatprep.subr.mxu0 0.0
        %1801 = vmatpush1.xpose.msra.mxu0 0.0
        %1802 = vmatprep.subr.mxu0 0.0
        %1803 = vmatpush1.xpose.msra.mxu0 0.0
        %1804 = vmatprep.subr.mxu0 0.0
        %1805 = vmatpush1.xpose.msra.mxu0 0.0
        %1806 = vmatprep.subr.mxu0 0.0
        %1807 = vmatpush1.xpose.msra.mxu0 0.0
        %1808 = vmatprep.subr.mxu0 0.0
        %1809 = vmatpush1.xpose.msra.mxu0 0.0
        %1810 = vmatprep.subr.mxu0 0.0
        %1811 = vmatpush1.xpose.msra.mxu0 0.0
        %1812 = vmatprep.subr.mxu0 0.0
        %1813 = vmatpush1.xpose.msra.mxu0 0.0
        %1814 = vmatprep.subr.mxu0 0.0
        %1815 = vmatpush1.xpose.msra.mxu0 0.0
        %1816 = vmatprep.subr.mxu0 0.0
        %1817 = vmatpush1.xpose.msra.mxu0 0.0
        %1818 = vmatprep.subr.mxu0 0.0
        %1819 = vmatpush1.xpose.msra.mxu0 0.0
        %1820 = vmatprep.subr.mxu0 0.0
        %1821 = vmatpush1.xpose.msra.mxu0 0.0
        %1822 = vmatprep.subr.mxu0 0.0
        %1823 = vmatpush1.xpose.msra.mxu0 0.0
        %1824 = vmatprep.subr.mxu0 0.0
        %1825 = vmatpush1.xpose.msra.mxu0 0.0
        %1826 = vmatprep.subr.mxu0 0.0
        %1827 = vmatpush1.xpose.msra.mxu0 0.0
        %1828 = vmatprep.subr.mxu0 0.0
        %1829 = vmatpush1.xpose.msra.mxu0 0.0
        %1830 = vmatprep.subr.mxu0 0.0
        %1831 = vmatpush1.xpose.msra.mxu0 0.0
        %1832 = vmatprep.subr.mxu0 0.0
        %1833 = vmatpush1.xpose.msra.mxu0 0.0
        %1834 = vmatprep.subr.mxu0 0.0
        %1835 = vmatpush1.xpose.msra.mxu0 0.0
        %1836 = vmatprep.subr.mxu0 0.0
        %1837 = vmatpush1.xpose.msra.mxu0 0.0
        %1838 = vmatprep.subr.mxu0 0.0
        %1839 = vmatpush1.xpose.msra.mxu0 0.0
        %1840 = vmatprep.subr.mxu0 0.0
        %1841 = vmatpush1.xpose.msra.mxu0 0.0
        %1842 = vmatprep.subr.mxu0 0.0
        %1843 = vmatpush1.xpose.msra.mxu0 0.0
        %1844 = vmatprep.subr.mxu0 0.0
        %1845 = vmatpush1.xpose.msra.mxu0 0.0
        %1846 = vmatprep.subr.mxu0 0.0
        %1847 = vmatpush1.xpose.msra.mxu0 0.0
        %1848 = vmatprep.subr.mxu0 0.0
        %1849 = vmatpush1.xpose.msra.mxu0 0.0
        %1850 = vmatprep.subr.mxu0 0.0
        %1851 = vmatpush1.xpose.msra.mxu0 0.0
        %1852 = vmatprep.mubr.f32.mxu0 0.0
        %1853 = vmatmul.mubr.f32.gmra.mrb[0].mxu0 %v1779
        %v1854 = vpop.f32.mrb[0].mxu0
        %v1855 = vadd.f32 0.0, %v1854
        %v1856 = vpop.f32.mrb[0].mxu0
        %1857 = vmatprep.mubr.f32.mxu0 0.0
        %1858 = vmatmul.mubr.f32.gmra.mrb[0].mxu0 %v1782
        %v1859 = vpop.f32.mrb[0].mxu0
        %v1860 = vadd.f32 0.0, %v1859
        %v1861 = vpop.f32.mrb[0].mxu0
        %1862 = vdwg.mxu0
        %v1863 = vsel %vm1767, %v1855, -1e+30
        %v1864 = vsel %vm1768, %v1860, -1e+30
        %vm1865 = vcmask 130048
        %v1866 = vsel %vm1865, %v1863, -inf
        %1867 = vmax.xlane.f32.xlu0 %v1866
        %v1868 = vpop.xlane.xlu0 %1867
        %v1869 = vsel %vm1865, %v1864, -inf
        %1870 = vmax.xlane.f32.xlu0 %v1869
        %v1871 = vpop.xlane.xlu0 %1870
        %v1872 = vsub.f32 %v1863, %v1868
        %v1873 = vsub.f32 %v1864, %v1871
        %v1874 = vmul.f32 %v1872, 1.442695
        %v1875 = vpow.pop %v1874
        %v1876 = vmul.f32 %v1873, 1.442695
        %v1877 = vpow.pop %v1876
        %v1878 = vsel %vm1865, %v1875, 0.0
        %1879 = vadd.xlane.f32.xlu0 %v1878
        %v1880 = vpop.xlane.xlu0 %1879
        %v1881 = vsel %vm1865, %v1877, 0.0
        %1882 = vadd.xlane.f32.xlu0 %v1881
        %v1883 = vpop.xlane.xlu0 %1882
        %v1884 = vrcp.pop %v1880
        %v1885 = vrcp.pop %v1883
        %v1886 = vmul.f32 %v1875, %v1884
        %v1887 = vmul.f32 %v1877, %v1885
        %v1889 = vsel %vm1865, %v1886, 0
        %v1892 = vsel %vm1865, %v1887, 0
        %1894 = vmatprep.subr.mxu0 0.0
        %1895 = vmatpush1.msra.mxu0 %v1564
        %1896 = vmatprep.subr.mxu0 0.0
        %1897 = vmatpush1.msra.mxu0 %v1570
        %1898 = vmatprep.subr.mxu0 0.0
        %1899 = vmatpush1.msra.mxu0 0.0
        %1900 = vmatprep.subr.mxu0 0.0
        %1901 = vmatpush1.msra.mxu0 0.0
        %1902 = vmatprep.subr.mxu0 0.0
        %1903 = vmatpush1.msra.mxu0 0.0
        %1904 = vmatprep.subr.mxu0 0.0
        %1905 = vmatpush1.msra.mxu0 0.0
        %1906 = vmatprep.subr.mxu0 0.0
        %1907 = vmatpush1.msra.mxu0 0.0
        %1908 = vmatprep.subr.mxu0 0.0
        %1909 = vmatpush1.msra.mxu0 0.0
        %1910 = vmatprep.subr.mxu0 0.0
        %1911 = vmatpush1.msra.mxu0 0.0
        %1912 = vmatprep.subr.mxu0 0.0
        %1913 = vmatpush1.msra.mxu0 0.0
        %1914 = vmatprep.subr.mxu0 0.0
        %1915 = vmatpush1.msra.mxu0 0.0
        %1916 = vmatprep.subr.mxu0 0.0
        %1917 = vmatpush1.msra.mxu0 0.0
        %1918 = vmatprep.subr.mxu0 0.0
        %1919 = vmatpush1.msra.mxu0 0.0
        %1920 = vmatprep.subr.mxu0 0.0
        %1921 = vmatpush1.msra.mxu0 0.0
        %1922 = vmatprep.subr.mxu0 0.0
        %1923 = vmatpush1.msra.mxu0 0.0
        %1924 = vmatprep.subr.mxu0 0.0
        %1925 = vmatpush1.msra.mxu0 0.0
        %1926 = vmatprep.subr.mxu0 0.0
        %1927 = vmatpush1.msra.mxu0 0.0
        %1928 = vmatprep.subr.mxu0 0.0
        %1929 = vmatpush1.msra.mxu0 0.0
        %1930 = vmatprep.subr.mxu0 0.0
        %1931 = vmatpush1.msra.mxu0 0.0
        %1932 = vmatprep.subr.mxu0 0.0
        %1933 = vmatpush1.msra.mxu0 0.0
        %1934 = vmatprep.subr.mxu0 0.0
        %1935 = vmatpush1.msra.mxu0 0.0
        %1936 = vmatprep.subr.mxu0 0.0
        %1937 = vmatpush1.msra.mxu0 0.0
        %1938 = vmatprep.subr.mxu0 0.0
        %1939 = vmatpush1.msra.mxu0 0.0
        %1940 = vmatprep.subr.mxu0 0.0
        %1941 = vmatpush1.msra.mxu0 0.0
        %1942 = vmatprep.subr.mxu0 0.0
        %1943 = vmatpush1.msra.mxu0 0.0
        %1944 = vmatprep.subr.mxu0 0.0
        %1945 = vmatpush1.msra.mxu0 0.0
        %1946 = vmatprep.subr.mxu0 0.0
        %1947 = vmatpush1.msra.mxu0 0.0
        %1948 = vmatprep.subr.mxu0 0.0
        %1949 = vmatpush1.msra.mxu0 0.0
        %1950 = vmatprep.subr.mxu0 0.0
        %1951 = vmatpush1.msra.mxu0 0.0
        %1952 = vmatprep.subr.mxu0 0.0
        %1953 = vmatpush1.msra.mxu0 0.0
        %1954 = vmatprep.subr.mxu0 0.0
        %1955 = vmatpush1.msra.mxu0 0.0
        %1956 = vmatprep.subr.mxu0 0.0
        %1957 = vmatpush1.msra.mxu0 0.0
        %1958 = vmatprep.mubr.f32.mxu0 0.0
        %1959 = vmatmul.mubr.f32.gmra.mrb[0].mxu0 %v1889
        %v1960 = vpop.f32.mrb[0].mxu0
        %v1961 = vadd.f32 0.0, %v1960
        %v1962 = vpop.f32.mrb[0].mxu0
        %1963 = vmatprep.mubr.f32.mxu0 0.0
        %1964 = vmatmul.mubr.f32.gmra.mrb[0].mxu0 %v1892
        %v1965 = vpop.f32.mrb[0].mxu0
        %v1966 = vadd.f32 0.0, %v1965
        %v1967 = vpop.f32.mrb[0].mxu0
        %1968 = vdwg.mxu0
        %1969 = vrot.lane.b32.xlu0 %v1769, 64
        %v1970 = vpop.permute.xlu0 %1969
        %1971 = vrot.lane.b32.xlu0 %v1770, 64
        %v1972 = vpop.permute.xlu0 %1971
        %v1973 = vsel %vm1777, %v1970, 0
        %v1975 = vsel %vm1777, %v1972, 0
        %v1978 = vsel %vm1777, %v1410, 0
        %v1981 = vsel %vm1777, %v1416, 0
        %1983 = vmatprep.subr.mxu0 0.0
        %1984 = vmatpush1.xpose.msra.mxu0 %v1978
        %1985 = vmatprep.subr.mxu0 0.0
        %1986 = vmatpush1.xpose.msra.mxu0 %v1981
        %1987 = vmatprep.subr.mxu0 0.0
        %1988 = vmatpush1.xpose.msra.mxu0 0.0
        %1989 = vmatprep.subr.mxu0 0.0
        %1990 = vmatpush1.xpose.msra.mxu0 0.0
        %1991 = vmatprep.subr.mxu0 0.0
        %1992 = vmatpush1.xpose.msra.mxu0 0.0
        %1993 = vmatprep.subr.mxu0 0.0
        %1994 = vmatpush1.xpose.msra.mxu0 0.0
        %1995 = vmatprep.subr.mxu0 0.0
        %1996 = vmatpush1.xpose.msra.mxu0 0.0
        %1997 = vmatprep.subr.mxu0 0.0
        %1998 = vmatpush1.xpose.msra.mxu0 0.0
        %1999 = vmatprep.subr.mxu0 0.0
        %2000 = vmatpush1.xpose.msra.mxu0 0.0
        %2001 = vmatprep.subr.mxu0 0.0
        %2002 = vmatpush1.xpose.msra.mxu0 0.0
        %2003 = vmatprep.subr.mxu0 0.0
        %2004 = vmatpush1.xpose.msra.mxu0 0.0
        %2005 = vmatprep.subr.mxu0 0.0
        %2006 = vmatpush1.xpose.msra.mxu0 0.0
        %2007 = vmatprep.subr.mxu0 0.0
        %2008 = vmatpush1.xpose.msra.mxu0 0.0
        %2009 = vmatprep.subr.mxu0 0.0
        %2010 = vmatpush1.xpose.msra.mxu0 0.0
        %2011 = vmatprep.subr.mxu0 0.0
        %2012 = vmatpush1.xpose.msra.mxu0 0.0
        %2013 = vmatprep.subr.mxu0 0.0
        %2014 = vmatpush1.xpose.msra.mxu0 0.0
        %2015 = vmatprep.subr.mxu0 0.0
        %2016 = vmatpush1.xpose.msra.mxu0 0.0
        %2017 = vmatprep.subr.mxu0 0.0
        %2018 = vmatpush1.xpose.msra.mxu0 0.0
        %2019 = vmatprep.subr.mxu0 0.0
        %2020 = vmatpush1.xpose.msra.mxu0 0.0
        %2021 = vmatprep.subr.mxu0 0.0
        %2022 = vmatpush1.xpose.msra.mxu0 0.0
        %2023 = vmatprep.subr.mxu0 0.0
        %2024 = vmatpush1.xpose.msra.mxu0 0.0
        %2025 = vmatprep.subr.mxu0 0.0
        %2026 = vmatpush1.xpose.msra.mxu0 0.0
        %2027 = vmatprep.subr.mxu0 0.0
        %2028 = vmatpush1.xpose.msra.mxu0 0.0
        %2029 = vmatprep.subr.mxu0 0.0
        %2030 = vmatpush1.xpose.msra.mxu0 0.0
        %2031 = vmatprep.subr.mxu0 0.0
        %2032 = vmatpush1.xpose.msra.mxu0 0.0
        %2033 = vmatprep.subr.mxu0 0.0
        %2034 = vmatpush1.xpose.msra.mxu0 0.0
        %2035 = vmatprep.subr.mxu0 0.0
        %2036 = vmatpush1.xpose.msra.mxu0 0.0
        %2037 = vmatprep.subr.mxu0 0.0
        %2038 = vmatpush1.xpose.msra.mxu0 0.0
        %2039 = vmatprep.subr.mxu0 0.0
        %2040 = vmatpush1.xpose.msra.mxu0 0.0
        %2041 = vmatprep.subr.mxu0 0.0
        %2042 = vmatpush1.xpose.msra.mxu0 0.0
        %2043 = vmatprep.subr.mxu0 0.0
        %2044 = vmatpush1.xpose.msra.mxu0 0.0
        %2045 = vmatprep.subr.mxu0 0.0
        %2046 = vmatpush1.xpose.msra.mxu0 0.0
        %2047 = vmatprep.mubr.f32.mxu0 0.0
        %2048 = vmatmul.mubr.f32.gmra.mrb[0].mxu0 %v1973
        %v2049 = vpop.f32.mrb[0].mxu0
        %v2050 = vadd.f32 0.0, %v2049
        %v2051 = vpop.f32.mrb[0].mxu0
        %2052 = vmatprep.mubr.f32.mxu0 0.0
        %2053 = vmatmul.mubr.f32.gmra.mrb[0].mxu0 %v1975
        %v2054 = vpop.f32.mrb[0].mxu0
        %v2055 = vadd.f32 0.0, %v2054
        %v2056 = vpop.f32.mrb[0].mxu0
        %2057 = vdwg.mxu0
        %v2058 = vsel %vm1767, %v2050, -1e+30
        %v2059 = vsel %vm1768, %v2055, -1e+30
        %v2060 = vsel %vm1865, %v2058, -inf
        %2061 = vmax.xlane.f32.xlu0 %v2060
        %v2062 = vpop.xlane.xlu0 %2061
        %v2063 = vsel %vm1865, %v2059, -inf
        %2064 = vmax.xlane.f32.xlu0 %v2063
        %v2065 = vpop.xlane.xlu0 %2064
        %v2066 = vsub.f32 %v2058, %v2062
        %v2067 = vsub.f32 %v2059, %v2065
        %v2068 = vmul.f32 %v2066, 1.442695
        %v2069 = vpow.pop %v2068
        %v2070 = vmul.f32 %v2067, 1.442695
        %v2071 = vpow.pop %v2070
        %v2072 = vsel %vm1865, %v2069, 0.0
        %2073 = vadd.xlane.f32.xlu0 %v2072
        %v2074 = vpop.xlane.xlu0 %2073
        %v2075 = vsel %vm1865, %v2071, 0.0
        %2076 = vadd.xlane.f32.xlu0 %v2075
        %v2077 = vpop.xlane.xlu0 %2076
        %v2078 = vrcp.pop %v2074
        %v2079 = vrcp.pop %v2077
        %v2080 = vmul.f32 %v2069, %v2078
        %v2081 = vmul.f32 %v2071, %v2079
        %2084 = vrot.lane.b32.xlu0 %v1564, 64
        %v2085 = vpop.permute.xlu0 %2084
        %2086 = vrot.lane.b32.xlu0 %v1570, 64
        %v2087 = vpop.permute.xlu0 %2086
        %v2091 = vsel %vm1865, %v2080, 0
        %v2094 = vsel %vm1865, %v2081, 0
        %2096 = vmatprep.subr.mxu0 0.0
        %2097 = vmatpush1.msra.mxu0 %v2085
        %2098 = vmatprep.subr.mxu0 0.0
        %2099 = vmatpush1.msra.mxu0 %v2087
        %2100 = vmatprep.subr.mxu0 0.0
        %2101 = vmatpush1.msra.mxu0 0.0
        %2102 = vmatprep.subr.mxu0 0.0
        %2103 = vmatpush1.msra.mxu0 0.0
        %2104 = vmatprep.subr.mxu0 0.0
        %2105 = vmatpush1.msra.mxu0 0.0
        %2106 = vmatprep.subr.mxu0 0.0
        %2107 = vmatpush1.msra.mxu0 0.0
        %2108 = vmatprep.subr.mxu0 0.0
        %2109 = vmatpush1.msra.mxu0 0.0
        %2110 = vmatprep.subr.mxu0 0.0
        %2111 = vmatpush1.msra.mxu0 0.0
        %2112 = vmatprep.subr.mxu0 0.0
        %2113 = vmatpush1.msra.mxu0 0.0
        %2114 = vmatprep.subr.mxu0 0.0
        %2115 = vmatpush1.msra.mxu0 0.0
        %2116 = vmatprep.subr.mxu0 0.0
        %2117 = vmatpush1.msra.mxu0 0.0
        %2118 = vmatprep.subr.mxu0 0.0
        %2119 = vmatpush1.msra.mxu0 0.0
        %2120 = vmatprep.subr.mxu0 0.0
        %2121 = vmatpush1.msra.mxu0 0.0
        %2122 = vmatprep.subr.mxu0 0.0
        %2123 = vmatpush1.msra.mxu0 0.0
        %2124 = vmatprep.subr.mxu0 0.0
        %2125 = vmatpush1.msra.mxu0 0.0
        %2126 = vmatprep.subr.mxu0 0.0
        %2127 = vmatpush1.msra.mxu0 0.0
        %2128 = vmatprep.subr.mxu0 0.0
        %2129 = vmatpush1.msra.mxu0 0.0
        %2130 = vmatprep.subr.mxu0 0.0
        %2131 = vmatpush1.msra.mxu0 0.0
        %2132 = vmatprep.subr.mxu0 0.0
        %2133 = vmatpush1.msra.mxu0 0.0
        %2134 = vmatprep.subr.mxu0 0.0
        %2135 = vmatpush1.msra.mxu0 0.0
        %2136 = vmatprep.subr.mxu0 0.0
        %2137 = vmatpush1.msra.mxu0 0.0
        %2138 = vmatprep.subr.mxu0 0.0
        %2139 = vmatpush1.msra.mxu0 0.0
        %2140 = vmatprep.subr.mxu0 0.0
        %2141 = vmatpush1.msra.mxu0 0.0
        %2142 = vmatprep.subr.mxu0 0.0
        %2143 = vmatpush1.msra.mxu0 0.0
        %2144 = vmatprep.subr.mxu0 0.0
        %2145 = vmatpush1.msra.mxu0 0.0
        %2146 = vmatprep.subr.mxu0 0.0
        %2147 = vmatpush1.msra.mxu0 0.0
        %2148 = vmatprep.subr.mxu0 0.0
        %2149 = vmatpush1.msra.mxu0 0.0
        %2150 = vmatprep.subr.mxu0 0.0
        %2151 = vmatpush1.msra.mxu0 0.0
        %2152 = vmatprep.subr.mxu0 0.0
        %2153 = vmatpush1.msra.mxu0 0.0
        %2154 = vmatprep.subr.mxu0 0.0
        %2155 = vmatpush1.msra.mxu0 0.0
        %2156 = vmatprep.subr.mxu0 0.0
        %2157 = vmatpush1.msra.mxu0 0.0
        %2158 = vmatprep.subr.mxu0 0.0
        %2159 = vmatpush1.msra.mxu0 0.0
        %2160 = vmatprep.mubr.f32.mxu0 0.0
        %2161 = vmatmul.mubr.f32.gmra.mrb[0].mxu0 %v2091
        %v2162 = vpop.f32.mrb[0].mxu0
        %v2163 = vadd.f32 0.0, %v2162
        %v2164 = vpop.f32.mrb[0].mxu0
        %2165 = vmatprep.mubr.f32.mxu0 0.0
        %2166 = vmatmul.mubr.f32.gmra.mrb[0].mxu0 %v2094
        %v2167 = vpop.f32.mrb[0].mxu0
        %v2168 = vadd.f32 0.0, %v2167
        %v2169 = vpop.f32.mrb[0].mxu0
        %2170 = vdwg.mxu0
        %v2171 = vmul.f32 %v1256, 0.12909944
        %v2172 = vmul.f32 %v1262, 0.12909944
        %2173 = vrot.lane.b32.xlu0 %v1410, 64
        %v2174 = vpop.permute.xlu0 %2173
        %2175 = vrot.lane.b32.xlu0 %v1416, 64
        %v2176 = vpop.permute.xlu0 %2175
        %v2178 = vsel %vm1777, %v2171, 0
        %v2181 = vsel %vm1777, %v2172, 0
        %v2183 = vsel %vm1777, %v2174, 0
        %v2185 = vsel %vm1777, %v2176, 0
        %2187 = vmatprep.subr.mxu0 0.0
        %2188 = vmatpush1.xpose.msra.mxu0 %v2183
        %2189 = vmatprep.subr.mxu0 0.0
        %2190 = vmatpush1.xpose.msra.mxu0 %v2185
        %2191 = vmatprep.subr.mxu0 0.0
        %2192 = vmatpush1.xpose.msra.mxu0 0.0
        %2193 = vmatprep.subr.mxu0 0.0
        %2194 = vmatpush1.xpose.msra.mxu0 0.0
        %2195 = vmatprep.subr.mxu0 0.0
        %2196 = vmatpush1.xpose.msra.mxu0 0.0
        %2197 = vmatprep.subr.mxu0 0.0
        %2198 = vmatpush1.xpose.msra.mxu0 0.0
        %2199 = vmatprep.subr.mxu0 0.0
        %2200 = vmatpush1.xpose.msra.mxu0 0.0
        %2201 = vmatprep.subr.mxu0 0.0
        %2202 = vmatpush1.xpose.msra.mxu0 0.0
        %2203 = vmatprep.subr.mxu0 0.0
        %2204 = vmatpush1.xpose.msra.mxu0 0.0
        %2205 = vmatprep.subr.mxu0 0.0
        %2206 = vmatpush1.xpose.msra.mxu0 0.0
        %2207 = vmatprep.subr.mxu0 0.0
        %2208 = vmatpush1.xpose.msra.mxu0 0.0
        %2209 = vmatprep.subr.mxu0 0.0
        %2210 = vmatpush1.xpose.msra.mxu0 0.0
        %2211 = vmatprep.subr.mxu0 0.0
        %2212 = vmatpush1.xpose.msra.mxu0 0.0
        %2213 = vmatprep.subr.mxu0 0.0
        %2214 = vmatpush1.xpose.msra.mxu0 0.0
        %2215 = vmatprep.subr.mxu0 0.0
        %2216 = vmatpush1.xpose.msra.mxu0 0.0
        %2217 = vmatprep.subr.mxu0 0.0
        %2218 = vmatpush1.xpose.msra.mxu0 0.0
        %2219 = vmatprep.subr.mxu0 0.0
        %2220 = vmatpush1.xpose.msra.mxu0 0.0
        %2221 = vmatprep.subr.mxu0 0.0
        %2222 = vmatpush1.xpose.msra.mxu0 0.0
        %2223 = vmatprep.subr.mxu0 0.0
        %2224 = vmatpush1.xpose.msra.mxu0 0.0
        %2225 = vmatprep.subr.mxu0 0.0
        %2226 = vmatpush1.xpose.msra.mxu0 0.0
        %2227 = vmatprep.subr.mxu0 0.0
        %2228 = vmatpush1.xpose.msra.mxu0 0.0
        %2229 = vmatprep.subr.mxu0 0.0
        %2230 = vmatpush1.xpose.msra.mxu0 0.0
        %2231 = vmatprep.subr.mxu0 0.0
        %2232 = vmatpush1.xpose.msra.mxu0 0.0
        %2233 = vmatprep.subr.mxu0 0.0
        %2234 = vmatpush1.xpose.msra.mxu0 0.0
        %2235 = vmatprep.subr.mxu0 0.0
        %2236 = vmatpush1.xpose.msra.mxu0 0.0
        %2237 = vmatprep.subr.mxu0 0.0
        %2238 = vmatpush1.xpose.msra.mxu0 0.0
        %2239 = vmatprep.subr.mxu0 0.0
        %2240 = vmatpush1.xpose.msra.mxu0 0.0
        %2241 = vmatprep.subr.mxu0 0.0
        %2242 = vmatpush1.xpose.msra.mxu0 0.0
        %2243 = vmatprep.subr.mxu0 0.0
        %2244 = vmatpush1.xpose.msra.mxu0 0.0
        %2245 = vmatprep.subr.mxu0 0.0
        %2246 = vmatpush1.xpose.msra.mxu0 0.0
        %2247 = vmatprep.subr.mxu0 0.0
        %2248 = vmatpush1.xpose.msra.mxu0 0.0
        %2249 = vmatprep.subr.mxu0 0.0
        %2250 = vmatpush1.xpose.msra.mxu0 0.0
        %2251 = vmatprep.mubr.f32.mxu0 0.0
        %2252 = vmatmul.mubr.f32.gmra.mrb[0].mxu0 %v2178
        %v2253 = vpop.f32.mrb[0].mxu0
        %v2254 = vadd.f32 0.0, %v2253
        %v2255 = vpop.f32.mrb[0].mxu0
        %2256 = vmatprep.mubr.f32.mxu0 0.0
        %2257 = vmatmul.mubr.f32.gmra.mrb[0].mxu0 %v2181
        %v2258 = vpop.f32.mrb[0].mxu0
        %v2259 = vadd.f32 0.0, %v2258
        %v2260 = vpop.f32.mrb[0].mxu0
        %2261 = vdwg.mxu0
        %v2262 = vsel %vm1767, %v2254, -1e+30
        %v2263 = vsel %vm1768, %v2259, -1e+30
        %v2264 = vsel %vm1865, %v2262, -inf
        %2265 = vmax.xlane.f32.xlu0 %v2264
        %v2266 = vpop.xlane.xlu0 %2265
        %v2267 = vsel %vm1865, %v2263, -inf
        %2268 = vmax.xlane.f32.xlu0 %v2267
        %v2269 = vpop.xlane.xlu0 %2268
        %v2270 = vsub.f32 %v2262, %v2266
        %v2271 = vsub.f32 %v2263, %v2269
        %v2272 = vmul.f32 %v2270, 1.442695
        %v2273 = vpow.pop %v2272
        %v2274 = vmul.f32 %v2271, 1.442695
        %v2275 = vpow.pop %v2274
        %v2276 = vsel %vm1865, %v2273, 0.0
        %2277 = vadd.xlane.f32.xlu0 %v2276
        %v2278 = vpop.xlane.xlu0 %2277
        %v2279 = vsel %vm1865, %v2275, 0.0
        %2280 = vadd.xlane.f32.xlu0 %v2279
        %v2281 = vpop.xlane.xlu0 %2280
        %v2282 = vrcp.pop %v2278
        %v2283 = vrcp.pop %v2281
        %v2284 = vmul.f32 %v2273, %v2282
        %v2285 = vmul.f32 %v2275, %v2283
        %v2287 = vsel %vm1865, %v2284, 0
        %v2290 = vsel %vm1865, %v2285, 0
        %2292 = vmatprep.subr.mxu0 0.0
        %2293 = vmatpush1.msra.mxu0 %v1716
        %2294 = vmatprep.subr.mxu0 0.0
        %2295 = vmatpush1.msra.mxu0 %v1722
        %2296 = vmatprep.subr.mxu0 0.0
        %2297 = vmatpush1.msra.mxu0 0.0
        %2298 = vmatprep.subr.mxu0 0.0
        %2299 = vmatpush1.msra.mxu0 0.0
        %2300 = vmatprep.subr.mxu0 0.0
        %2301 = vmatpush1.msra.mxu0 0.0
        %2302 = vmatprep.subr.mxu0 0.0
        %2303 = vmatpush1.msra.mxu0 0.0
        %2304 = vmatprep.subr.mxu0 0.0
        %2305 = vmatpush1.msra.mxu0 0.0
        %2306 = vmatprep.subr.mxu0 0.0
        %2307 = vmatpush1.msra.mxu0 0.0
        %2308 = vmatprep.subr.mxu0 0.0
        %2309 = vmatpush1.msra.mxu0 0.0
        %2310 = vmatprep.subr.mxu0 0.0
        %2311 = vmatpush1.msra.mxu0 0.0
        %2312 = vmatprep.subr.mxu0 0.0
        %2313 = vmatpush1.msra.mxu0 0.0
        %2314 = vmatprep.subr.mxu0 0.0
        %2315 = vmatpush1.msra.mxu0 0.0
        %2316 = vmatprep.subr.mxu0 0.0
        %2317 = vmatpush1.msra.mxu0 0.0
        %2318 = vmatprep.subr.mxu0 0.0
        %2319 = vmatpush1.msra.mxu0 0.0
        %2320 = vmatprep.subr.mxu0 0.0
        %2321 = vmatpush1.msra.mxu0 0.0
        %2322 = vmatprep.subr.mxu0 0.0
        %2323 = vmatpush1.msra.mxu0 0.0
        %2324 = vmatprep.subr.mxu0 0.0
        %2325 = vmatpush1.msra.mxu0 0.0
        %2326 = vmatprep.subr.mxu0 0.0
        %2327 = vmatpush1.msra.mxu0 0.0
        %2328 = vmatprep.subr.mxu0 0.0
        %2329 = vmatpush1.msra.mxu0 0.0
        %2330 = vmatprep.subr.mxu0 0.0
        %2331 = vmatpush1.msra.mxu0 0.0
        %2332 = vmatprep.subr.mxu0 0.0
        %2333 = vmatpush1.msra.mxu0 0.0
        %2334 = vmatprep.subr.mxu0 0.0
        %2335 = vmatpush1.msra.mxu0 0.0
        %2336 = vmatprep.subr.mxu0 0.0
        %2337 = vmatpush1.msra.mxu0 0.0
        %2338 = vmatprep.subr.mxu0 0.0
        %2339 = vmatpush1.msra.mxu0 0.0
        %2340 = vmatprep.subr.mxu0 0.0
        %2341 = vmatpush1.msra.mxu0 0.0
        %2342 = vmatprep.subr.mxu0 0.0
        %2343 = vmatpush1.msra.mxu0 0.0
        %2344 = vmatprep.subr.mxu0 0.0
        %2345 = vmatpush1.msra.mxu0 0.0
        %2346 = vmatprep.subr.mxu0 0.0
        %2347 = vmatpush1.msra.mxu0 0.0
        %2348 = vmatprep.subr.mxu0 0.0
        %2349 = vmatpush1.msra.mxu0 0.0
        %2350 = vmatprep.subr.mxu0 0.0
        %2351 = vmatpush1.msra.mxu0 0.0
        %2352 = vmatprep.subr.mxu0 0.0
        %2353 = vmatpush1.msra.mxu0 0.0
        %2354 = vmatprep.subr.mxu0 0.0
        %2355 = vmatpush1.msra.mxu0 0.0
        %2356 = vmatprep.mubr.f32.mxu0 0.0
        %2357 = vmatmul.mubr.f32.gmra.mrb[0].mxu0 %v2287
        %v2358 = vpop.f32.mrb[0].mxu0
        %v2359 = vadd.f32 0.0, %v2358
        %v2360 = vpop.f32.mrb[0].mxu0
        %2361 = vmatprep.mubr.f32.mxu0 0.0
        %2362 = vmatmul.mubr.f32.gmra.mrb[0].mxu0 %v2290
        %v2363 = vpop.f32.mrb[0].mxu0
        %v2364 = vadd.f32 0.0, %v2363
        %v2365 = vpop.f32.mrb[0].mxu0
        %2366 = vdwg.mxu0
        %2367 = vrot.lane.b32.xlu0 %v2171, 64
        %v2368 = vpop.permute.xlu0 %2367
        %2369 = vrot.lane.b32.xlu0 %v2172, 64
        %v2370 = vpop.permute.xlu0 %2369
        %v2371 = vsel %vm1777, %v2368, 0
        %v2373 = vsel %vm1777, %v2370, 0
        %v2376 = vsel %vm1777, %v1562, 0
        %v2379 = vsel %vm1777, %v1568, 0
        %2381 = vmatprep.subr.mxu0 0.0
        %2382 = vmatpush1.xpose.msra.mxu0 %v2376
        %2383 = vmatprep.subr.mxu0 0.0
        %2384 = vmatpush1.xpose.msra.mxu0 %v2379
        %2385 = vmatprep.subr.mxu0 0.0
        %2386 = vmatpush1.xpose.msra.mxu0 0.0
        %2387 = vmatprep.subr.mxu0 0.0
        %2388 = vmatpush1.xpose.msra.mxu0 0.0
        %2389 = vmatprep.subr.mxu0 0.0
        %2390 = vmatpush1.xpose.msra.mxu0 0.0
        %2391 = vmatprep.subr.mxu0 0.0
        %2392 = vmatpush1.xpose.msra.mxu0 0.0
        %2393 = vmatprep.subr.mxu0 0.0
        %2394 = vmatpush1.xpose.msra.mxu0 0.0
        %2395 = vmatprep.subr.mxu0 0.0
        %2396 = vmatpush1.xpose.msra.mxu0 0.0
        %2397 = vmatprep.subr.mxu0 0.0
        %2398 = vmatpush1.xpose.msra.mxu0 0.0
        %2399 = vmatprep.subr.mxu0 0.0
        %2400 = vmatpush1.xpose.msra.mxu0 0.0
        %2401 = vmatprep.subr.mxu0 0.0
        %2402 = vmatpush1.xpose.msra.mxu0 0.0
        %2403 = vmatprep.subr.mxu0 0.0
        %2404 = vmatpush1.xpose.msra.mxu0 0.0
        %2405 = vmatprep.subr.mxu0 0.0
        %2406 = vmatpush1.xpose.msra.mxu0 0.0
        %2407 = vmatprep.subr.mxu0 0.0
        %2408 = vmatpush1.xpose.msra.mxu0 0.0
        %2409 = vmatprep.subr.mxu0 0.0
        %2410 = vmatpush1.xpose.msra.mxu0 0.0
        %2411 = vmatprep.subr.mxu0 0.0
        %2412 = vmatpush1.xpose.msra.mxu0 0.0
        %2413 = vmatprep.subr.mxu0 0.0
        %2414 = vmatpush1.xpose.msra.mxu0 0.0
        %2415 = vmatprep.subr.mxu0 0.0
        %2416 = vmatpush1.xpose.msra.mxu0 0.0
        %2417 = vmatprep.subr.mxu0 0.0
        %2418 = vmatpush1.xpose.msra.mxu0 0.0
        %2419 = vmatprep.subr.mxu0 0.0
        %2420 = vmatpush1.xpose.msra.mxu0 0.0
        %2421 = vmatprep.subr.mxu0 0.0
        %2422 = vmatpush1.xpose.msra.mxu0 0.0
        %2423 = vmatprep.subr.mxu0 0.0
        %2424 = vmatpush1.xpose.msra.mxu0 0.0
        %2425 = vmatprep.subr.mxu0 0.0
        %2426 = vmatpush1.xpose.msra.mxu0 0.0
        %2427 = vmatprep.subr.mxu0 0.0
        %2428 = vmatpush1.xpose.msra.mxu0 0.0
        %2429 = vmatprep.subr.mxu0 0.0
        %2430 = vmatpush1.xpose.msra.mxu0 0.0
        %2431 = vmatprep.subr.mxu0 0.0
        %2432 = vmatpush1.xpose.msra.mxu0 0.0
        %2433 = vmatprep.subr.mxu0 0.0
        %2434 = vmatpush1.xpose.msra.mxu0 0.0
        %2435 = vmatprep.subr.mxu0 0.0
        %2436 = vmatpush1.xpose.msra.mxu0 0.0
        %2437 = vmatprep.subr.mxu0 0.0
        %2438 = vmatpush1.xpose.msra.mxu0 0.0
        %2439 = vmatprep.subr.mxu0 0.0
        %2440 = vmatpush1.xpose.msra.mxu0 0.0
        %2441 = vmatprep.subr.mxu0 0.0
        %2442 = vmatpush1.xpose.msra.mxu0 0.0
        %2443 = vmatprep.subr.mxu0 0.0
        %2444 = vmatpush1.xpose.msra.mxu0 0.0
        %2445 = vmatprep.mubr.f32.mxu0 0.0
        %2446 = vmatmul.mubr.f32.gmra.mrb[0].mxu0 %v2371
        %v2447 = vpop.f32.mrb[0].mxu0
        %v2448 = vadd.f32 0.0, %v2447
        %v2449 = vpop.f32.mrb[0].mxu0
        %2450 = vmatprep.mubr.f32.mxu0 0.0
        %2451 = vmatmul.mubr.f32.gmra.mrb[0].mxu0 %v2373
        %v2452 = vpop.f32.mrb[0].mxu0
        %v2453 = vadd.f32 0.0, %v2452
        %v2454 = vpop.f32.mrb[0].mxu0
        %2455 = vdwg.mxu0
        %v2456 = vsel %vm1767, %v2448, -1e+30
        %v2457 = vsel %vm1768, %v2453, -1e+30
        %v2458 = vsel %vm1865, %v2456, -inf
        %2459 = vmax.xlane.f32.xlu0 %v2458
        %v2460 = vpop.xlane.xlu0 %2459
        %v2461 = vsel %vm1865, %v2457, -inf
        %2462 = vmax.xlane.f32.xlu0 %v2461
        %v2463 = vpop.xlane.xlu0 %2462
        %v2464 = vsub.f32 %v2456, %v2460
        %v2465 = vsub.f32 %v2457, %v2463
        %v2466 = vmul.f32 %v2464, 1.442695
        %v2467 = vpow.pop %v2466
        %v2468 = vmul.f32 %v2465, 1.442695
        %v2469 = vpow.pop %v2468
        %v2470 = vsel %vm1865, %v2467, 0.0
        %2471 = vadd.xlane.f32.xlu0 %v2470
        %v2472 = vpop.xlane.xlu0 %2471
        %v2473 = vsel %vm1865, %v2469, 0.0
        %2474 = vadd.xlane.f32.xlu0 %v2473
        %v2475 = vpop.xlane.xlu0 %2474
        %v2476 = vrcp.pop %v2472
        %v2477 = vrcp.pop %v2475
        %v2478 = vmul.f32 %v2467, %v2476
        %v2479 = vmul.f32 %v2469, %v2477
        %2482 = vrot.lane.b32.xlu0 %v1716, 64
        %v2483 = vpop.permute.xlu0 %2482
        %2484 = vrot.lane.b32.xlu0 %v1722, 64
        %v2485 = vpop.permute.xlu0 %2484
        %v2489 = vsel %vm1865, %v2478, 0
        %v2492 = vsel %vm1865, %v2479, 0
        %2494 = vmatprep.subr.mxu0 0.0
        %2495 = vmatpush1.msra.mxu0 %v2483
        %2496 = vmatprep.subr.mxu0 0.0
        %2497 = vmatpush1.msra.mxu0 %v2485
        %2498 = vmatprep.subr.mxu0 0.0
        %2499 = vmatpush1.msra.mxu0 0.0
        %2500 = vmatprep.subr.mxu0 0.0
        %2501 = vmatpush1.msra.mxu0 0.0
        %2502 = vmatprep.subr.mxu0 0.0
        %2503 = vmatpush1.msra.mxu0 0.0
        %2504 = vmatprep.subr.mxu0 0.0
        %2505 = vmatpush1.msra.mxu0 0.0
        %2506 = vmatprep.subr.mxu0 0.0
        %2507 = vmatpush1.msra.mxu0 0.0
        %2508 = vmatprep.subr.mxu0 0.0
        %2509 = vmatpush1.msra.mxu0 0.0
        %2510 = vmatprep.subr.mxu0 0.0
        %2511 = vmatpush1.msra.mxu0 0.0
        %2512 = vmatprep.subr.mxu0 0.0
        %2513 = vmatpush1.msra.mxu0 0.0
        %2514 = vmatprep.subr.mxu0 0.0
        %2515 = vmatpush1.msra.mxu0 0.0
        %2516 = vmatprep.subr.mxu0 0.0
        %2517 = vmatpush1.msra.mxu0 0.0
        %2518 = vmatprep.subr.mxu0 0.0
        %2519 = vmatpush1.msra.mxu0 0.0
        %2520 = vmatprep.subr.mxu0 0.0
        %2521 = vmatpush1.msra.mxu0 0.0
        %2522 = vmatprep.subr.mxu0 0.0
        %2523 = vmatpush1.msra.mxu0 0.0
        %2524 = vmatprep.subr.mxu0 0.0
        %2525 = vmatpush1.msra.mxu0 0.0
        %2526 = vmatprep.subr.mxu0 0.0
        %2527 = vmatpush1.msra.mxu0 0.0
        %2528 = vmatprep.subr.mxu0 0.0
        %2529 = vmatpush1.msra.mxu0 0.0
        %2530 = vmatprep.subr.mxu0 0.0
        %2531 = vmatpush1.msra.mxu0 0.0
        %2532 = vmatprep.subr.mxu0 0.0
        %2533 = vmatpush1.msra.mxu0 0.0
        %2534 = vmatprep.subr.mxu0 0.0
        %2535 = vmatpush1.msra.mxu0 0.0
        %2536 = vmatprep.subr.mxu0 0.0
        %2537 = vmatpush1.msra.mxu0 0.0
        %2538 = vmatprep.subr.mxu0 0.0
        %2539 = vmatpush1.msra.mxu0 0.0
        %2540 = vmatprep.subr.mxu0 0.0
        %2541 = vmatpush1.msra.mxu0 0.0
        %2542 = vmatprep.subr.mxu0 0.0
        %2543 = vmatpush1.msra.mxu0 0.0
        %2544 = vmatprep.subr.mxu0 0.0
        %2545 = vmatpush1.msra.mxu0 0.0
        %2546 = vmatprep.subr.mxu0 0.0
        %2547 = vmatpush1.msra.mxu0 0.0
        %2548 = vmatprep.subr.mxu0 0.0
        %2549 = vmatpush1.msra.mxu0 0.0
        %2550 = vmatprep.subr.mxu0 0.0
        %2551 = vmatpush1.msra.mxu0 0.0
        %2552 = vmatprep.subr.mxu0 0.0
        %2553 = vmatpush1.msra.mxu0 0.0
        %2554 = vmatprep.subr.mxu0 0.0
        %2555 = vmatpush1.msra.mxu0 0.0
        %2556 = vmatprep.subr.mxu0 0.0
        %2557 = vmatpush1.msra.mxu0 0.0
        %2558 = vmatprep.mubr.f32.mxu0 0.0
        %2559 = vmatmul.mubr.f32.gmra.mrb[0].mxu0 %v2489
        %v2560 = vpop.f32.mrb[0].mxu0
        %v2561 = vadd.f32 0.0, %v2560
        %v2562 = vpop.f32.mrb[0].mxu0
        %2563 = vmatprep.mubr.f32.mxu0 0.0
        %2564 = vmatmul.mubr.f32.gmra.mrb[0].mxu0 %v2492
        %v2565 = vpop.f32.mrb[0].mxu0
        %v2566 = vadd.f32 0.0, %v2565
        %v2567 = vpop.f32.mrb[0].mxu0
        %2568 = vdwg.mxu0
        %v2569 = vmul.f32 %v1408, 0.12909944
        %v2570 = vmul.f32 %v1414, 0.12909944
        %2571 = vrot.lane.b32.xlu0 %v1562, 64
        %v2572 = vpop.permute.xlu0 %2571
        %2573 = vrot.lane.b32.xlu0 %v1568, 64
        %v2574 = vpop.permute.xlu0 %2573
        %v2576 = vsel %vm1777, %v2569, 0
        %v2579 = vsel %vm1777, %v2570, 0
        %v2581 = vsel %vm1777, %v2572, 0
        %v2583 = vsel %vm1777, %v2574, 0
        %2585 = vmatprep.subr.mxu0 0.0
        %2586 = vmatpush1.xpose.msra.mxu0 %v2581
        %2587 = vmatprep.subr.mxu0 0.0
        %2588 = vmatpush1.xpose.msra.mxu0 %v2583
        %2589 = vmatprep.subr.mxu0 0.0
        %2590 = vmatpush1.xpose.msra.mxu0 0.0
        %2591 = vmatprep.subr.mxu0 0.0
        %2592 = vmatpush1.xpose.msra.mxu0 0.0
        %2593 = vmatprep.subr.mxu0 0.0
        %2594 = vmatpush1.xpose.msra.mxu0 0.0
        %2595 = vmatprep.subr.mxu0 0.0
        %2596 = vmatpush1.xpose.msra.mxu0 0.0
        %2597 = vmatprep.subr.mxu0 0.0
        %2598 = vmatpush1.xpose.msra.mxu0 0.0
        %2599 = vmatprep.subr.mxu0 0.0
        %2600 = vmatpush1.xpose.msra.mxu0 0.0
        %2601 = vmatprep.subr.mxu0 0.0
        %2602 = vmatpush1.xpose.msra.mxu0 0.0
        %2603 = vmatprep.subr.mxu0 0.0
        %2604 = vmatpush1.xpose.msra.mxu0 0.0
        %2605 = vmatprep.subr.mxu0 0.0
        %2606 = vmatpush1.xpose.msra.mxu0 0.0
        %2607 = vmatprep.subr.mxu0 0.0
        %2608 = vmatpush1.xpose.msra.mxu0 0.0
        %2609 = vmatprep.subr.mxu0 0.0
        %2610 = vmatpush1.xpose.msra.mxu0 0.0
        %2611 = vmatprep.subr.mxu0 0.0
        %2612 = vmatpush1.xpose.msra.mxu0 0.0
        %2613 = vmatprep.subr.mxu0 0.0
        %2614 = vmatpush1.xpose.msra.mxu0 0.0
        %2615 = vmatprep.subr.mxu0 0.0
        %2616 = vmatpush1.xpose.msra.mxu0 0.0
        %2617 = vmatprep.subr.mxu0 0.0
        %2618 = vmatpush1.xpose.msra.mxu0 0.0
        %2619 = vmatprep.subr.mxu0 0.0
        %2620 = vmatpush1.xpose.msra.mxu0 0.0
        %2621 = vmatprep.subr.mxu0 0.0
        %2622 = vmatpush1.xpose.msra.mxu0 0.0
        %2623 = vmatprep.subr.mxu0 0.0
        %2624 = vmatpush1.xpose.msra.mxu0 0.0
        %2625 = vmatprep.subr.mxu0 0.0
        %2626 = vmatpush1.xpose.msra.mxu0 0.0
        %2627 = vmatprep.subr.mxu0 0.0
        %2628 = vmatpush1.xpose.msra.mxu0 0.0
        %2629 = vmatprep.subr.mxu0 0.0
        %2630 = vmatpush1.xpose.msra.mxu0 0.0
        %2631 = vmatprep.subr.mxu0 0.0
        %2632 = vmatpush1.xpose.msra.mxu0 0.0
        %2633 = vmatprep.subr.mxu0 0.0
        %2634 = vmatpush1.xpose.msra.mxu0 0.0
        %2635 = vmatprep.subr.mxu0 0.0
        %2636 = vmatpush1.xpose.msra.mxu0 0.0
        %2637 = vmatprep.subr.mxu0 0.0
        %2638 = vmatpush1.xpose.msra.mxu0 0.0
        %2639 = vmatprep.subr.mxu0 0.0
        %2640 = vmatpush1.xpose.msra.mxu0 0.0
        %2641 = vmatprep.subr.mxu0 0.0
        %2642 = vmatpush1.xpose.msra.mxu0 0.0
        %2643 = vmatprep.subr.mxu0 0.0
        %2644 = vmatpush1.xpose.msra.mxu0 0.0
        %2645 = vmatprep.subr.mxu0 0.0
        %2646 = vmatpush1.xpose.msra.mxu0 0.0
        %2647 = vmatprep.subr.mxu0 0.0
        %2648 = vmatpush1.xpose.msra.mxu0 0.0
        %2649 = vmatprep.mubr.f32.mxu0 0.0
        %2650 = vmatmul.mubr.f32.gmra.mrb[0].mxu0 %v2576
        %v2651 = vpop.f32.mrb[0].mxu0
        %v2652 = vadd.f32 0.0, %v2651
        %v2653 = vpop.f32.mrb[0].mxu0
        %2654 = vmatprep.mubr.f32.mxu0 0.0
        %2655 = vmatmul.mubr.f32.gmra.mrb[0].mxu0 %v2579
        %v2656 = vpop.f32.mrb[0].mxu0
        %v2657 = vadd.f32 0.0, %v2656
        %v2658 = vpop.f32.mrb[0].mxu0
        %2659 = vdwg.mxu0
        %v2660 = vsel %vm1767, %v2652, -1e+30
        %v2661 = vsel %vm1768, %v2657, -1e+30
        %v2662 = vsel %vm1865, %v2660, -inf
        %2663 = vmax.xlane.f32.xlu0 %v2662
        %v2664 = vpop.xlane.xlu0 %2663
        %v2665 = vsel %vm1865, %v2661, -inf
        %2666 = vmax.xlane.f32.xlu0 %v2665
        %v2667 = vpop.xlane.xlu0 %2666
        %v2668 = vsub.f32 %v2660, %v2664
        %v2669 = vsub.f32 %v2661, %v2667
        %v2670 = vmul.f32 %v2668, 1.442695
        %v2671 = vpow.pop %v2670
        %v2672 = vmul.f32 %v2669, 1.442695
        %v2673 = vpow.pop %v2672
        %v2674 = vsel %vm1865, %v2671, 0.0
        %2675 = vadd.xlane.f32.xlu0 %v2674
        %v2676 = vpop.xlane.xlu0 %2675
        %v2677 = vsel %vm1865, %v2673, 0.0
        %2678 = vadd.xlane.f32.xlu0 %v2677
        %v2679 = vpop.xlane.xlu0 %2678
        %v2680 = vrcp.pop %v2676
        %v2681 = vrcp.pop %v2679
        %v2682 = vmul.f32 %v2671, %v2680
        %v2683 = vmul.f32 %v2673, %v2681
        %v2685 = vsel %vm1865, %v2682, 0
        %v2688 = vsel %vm1865, %v2683, 0
        %2690 = vmatprep.subr.mxu0 0.0
        %2691 = vmatpush1.msra.mxu0 %v1718
        %2692 = vmatprep.subr.mxu0 0.0
        %2693 = vmatpush1.msra.mxu0 %v1724
        %2694 = vmatprep.subr.mxu0 0.0
        %2695 = vmatpush1.msra.mxu0 0.0
        %2696 = vmatprep.subr.mxu0 0.0
        %2697 = vmatpush1.msra.mxu0 0.0
        %2698 = vmatprep.subr.mxu0 0.0
        %2699 = vmatpush1.msra.mxu0 0.0
        %2700 = vmatprep.subr.mxu0 0.0
        %2701 = vmatpush1.msra.mxu0 0.0
        %2702 = vmatprep.subr.mxu0 0.0
        %2703 = vmatpush1.msra.mxu0 0.0
        %2704 = vmatprep.subr.mxu0 0.0
        %2705 = vmatpush1.msra.mxu0 0.0
        %2706 = vmatprep.subr.mxu0 0.0
        %2707 = vmatpush1.msra.mxu0 0.0
        %2708 = vmatprep.subr.mxu0 0.0
        %2709 = vmatpush1.msra.mxu0 0.0
        %2710 = vmatprep.subr.mxu0 0.0
        %2711 = vmatpush1.msra.mxu0 0.0
        %2712 = vmatprep.subr.mxu0 0.0
        %2713 = vmatpush1.msra.mxu0 0.0
        %2714 = vmatprep.subr.mxu0 0.0
        %2715 = vmatpush1.msra.mxu0 0.0
        %2716 = vmatprep.subr.mxu0 0.0
        %2717 = vmatpush1.msra.mxu0 0.0
        %2718 = vmatprep.subr.mxu0 0.0
        %2719 = vmatpush1.msra.mxu0 0.0
        %2720 = vmatprep.subr.mxu0 0.0
        %2721 = vmatpush1.msra.mxu0 0.0
        %2722 = vmatprep.subr.mxu0 0.0
        %2723 = vmatpush1.msra.mxu0 0.0
        %2724 = vmatprep.subr.mxu0 0.0
        %2725 = vmatpush1.msra.mxu0 0.0
        %2726 = vmatprep.subr.mxu0 0.0
        %2727 = vmatpush1.msra.mxu0 0.0
        %2728 = vmatprep.subr.mxu0 0.0
        %2729 = vmatpush1.msra.mxu0 0.0
        %2730 = vmatprep.subr.mxu0 0.0
        %2731 = vmatpush1.msra.mxu0 0.0
        %2732 = vmatprep.subr.mxu0 0.0
        %2733 = vmatpush1.msra.mxu0 0.0
        %2734 = vmatprep.subr.mxu0 0.0
        %2735 = vmatpush1.msra.mxu0 0.0
        %2736 = vmatprep.subr.mxu0 0.0
        %2737 = vmatpush1.msra.mxu0 0.0
        %2738 = vmatprep.subr.mxu0 0.0
        %2739 = vmatpush1.msra.mxu0 0.0
        %2740 = vmatprep.subr.mxu0 0.0
        %2741 = vmatpush1.msra.mxu0 0.0
        %2742 = vmatprep.subr.mxu0 0.0
        %2743 = vmatpush1.msra.mxu0 0.0
        %2744 = vmatprep.subr.mxu0 0.0
        %2745 = vmatpush1.msra.mxu0 0.0
        %2746 = vmatprep.subr.mxu0 0.0
        %2747 = vmatpush1.msra.mxu0 0.0
        %2748 = vmatprep.subr.mxu0 0.0
        %2749 = vmatpush1.msra.mxu0 0.0
        %2750 = vmatprep.subr.mxu0 0.0
        %2751 = vmatpush1.msra.mxu0 0.0
        %2752 = vmatprep.subr.mxu0 0.0
        %2753 = vmatpush1.msra.mxu0 0.0
        %2754 = vmatprep.mubr.f32.mxu0 0.0
        %2755 = vmatmul.mubr.f32.gmra.mrb[0].mxu0 %v2685
        %v2756 = vpop.f32.mrb[0].mxu0
        %v2757 = vadd.f32 0.0, %v2756
        %v2758 = vpop.f32.mrb[0].mxu0
        %2759 = vmatprep.mubr.f32.mxu0 0.0
        %2760 = vmatmul.mubr.f32.gmra.mrb[0].mxu0 %v2688
        %v2761 = vpop.f32.mrb[0].mxu0
        %v2762 = vadd.f32 0.0, %v2761
        %v2763 = vpop.f32.mrb[0].mxu0
        %2764 = vdwg.mxu0
        %2767 = vrot.lane.b32.xlu0 %v2163, 64
        %v2768 = vpop.permute.xlu0 %2767
        %2769 = vrot.lane.b32.xlu0 %v2168, 64
        %v2770 = vpop.permute.xlu0 %2769
        %2775 = vrot.lane.b32.xlu0 %v2561, 64
        %v2776 = vpop.permute.xlu0 %2775
        %2777 = vrot.lane.b32.xlu0 %v2566, 64
        %v2778 = vpop.permute.xlu0 %2777
        %v2781 = vsel %vm1777, %v1961, %v2768
        %v2782 = vsel %vm1777, %v1966, %v2770
        %v2783 = vsel %vm1777, %v2359, %v2776
        %v2784 = vsel %vm1777, %v2364, %v2778
        %v2785 = vld [vmem:[%s633] sm:$0xff]
        %v2786 = vld [vmem:[%s633 + $0x8] sm:$0xff]
        %v2787 = vld [vmem:[%s633 + $0x10] sm:$0xff]
        %v2788 = vld [vmem:[%s633 + $0x18] sm:$0xff]
        %v2789 = vld [vmem:[%s633 + $0x20] sm:$0xff]
        %v2790 = vld [vmem:[%s633 + $0x28] sm:$0xff]
        %v2791 = vld [vmem:[%s633 + $0x30] sm:$0xff]
        %v2792 = vld [vmem:[%s633 + $0x38] sm:$0xff]
        %v2793 = vld [vmem:[%s633 + $0x40] sm:$0xff]
        %v2794 = vld [vmem:[%s633 + $0x48] sm:$0xff]
        %v2795 = vld [vmem:[%s633 + $0x50] sm:$0xff]
        %v2796 = vld [vmem:[%s633 + $0x58] sm:$0xff]
        %v2797 = vld [vmem:[%s633 + $0x60] sm:$0xff]
        %v2798 = vld [vmem:[%s633 + $0x68] sm:$0xff]
        %v2799 = vld [vmem:[%s633 + $0x70] sm:$0xff]
        %v2800 = vld [vmem:[%s633 + $0x78] sm:$0xff]
        %v2801 = vld [vmem:[%s633 + $0x80] sm:$0xff]
        %v2802 = vld [vmem:[%s633 + $0x88] sm:$0xff]
        %v2803 = vld [vmem:[%s633 + $0x90] sm:$0xff]
        %v2804 = vld [vmem:[%s633 + $0x98] sm:$0xff]
        %v2805 = vld [vmem:[%s633 + $0xa0] sm:$0xff]
        %v2806 = vld [vmem:[%s633 + $0xa8] sm:$0xff]
        %v2807 = vld [vmem:[%s633 + $0xb0] sm:$0xff]
        %v2808 = vld [vmem:[%s633 + $0xb8] sm:$0xff]
        %v2809 = vld [vmem:[%s633 + $0xc0] sm:$0xff]
        %v2810 = vld [vmem:[%s633 + $0xc8] sm:$0xff]
        %v2811 = vld [vmem:[%s633 + $0xd0] sm:$0xff]
        %v2812 = vld [vmem:[%s633 + $0xd8] sm:$0xff]
        %v2813 = vld [vmem:[%s633 + $0xe0] sm:$0xff]
        %v2814 = vld [vmem:[%s633 + $0xe8] sm:$0xff]
        %v2815 = vld [vmem:[%s633 + $0xf0] sm:$0xff]
        %v2816 = vld [vmem:[%s633 + $0xf8] sm:$0xff]
        %v2817 = vld [vmem:[%s633 + $0x100] sm:$0xff]
        %v2818 = vld [vmem:[%s633 + $0x108] sm:$0xff]
        %v2819 = vld [vmem:[%s633 + $0x110] sm:$0xff]
        %v2820 = vld [vmem:[%s633 + $0x118] sm:$0xff]
        %v2821 = vld [vmem:[%s633 + $0x120] sm:$0xff]
        %v2822 = vld [vmem:[%s633 + $0x128] sm:$0xff]
        %v2823 = vld [vmem:[%s633 + $0x130] sm:$0xff]
        %v2824 = vld [vmem:[%s633 + $0x138] sm:$0xff]
        %v2825 = vld [vmem:[%s633 + $0x140] sm:$0xff]
        %v2826 = vld [vmem:[%s633 + $0x148] sm:$0xff]
        %v2827 = vld [vmem:[%s633 + $0x150] sm:$0xff]
        %v2828 = vld [vmem:[%s633 + $0x158] sm:$0xff]
        %v2829 = vld [vmem:[%s633 + $0x160] sm:$0xff]
        %v2830 = vld [vmem:[%s633 + $0x168] sm:$0xff]
        %v2831 = vld [vmem:[%s633 + $0x170] sm:$0xff]
        %v2832 = vld [vmem:[%s633 + $0x178] sm:$0xff]
        %v2833 = vld [vmem:[%s633 + $0x180] sm:$0xff]
        %v2834 = vld [vmem:[%s633 + $0x188] sm:$0xff]
        %v2835 = vld [vmem:[%s633 + $0x190] sm:$0xff]
        %v2836 = vld [vmem:[%s633 + $0x198] sm:$0xff]
        %v2837 = vld [vmem:[%s633 + $0x1a0] sm:$0xff]
        %v2838 = vld [vmem:[%s633 + $0x1a8] sm:$0xff]
        %v2839 = vld [vmem:[%s633 + $0x1b0] sm:$0xff]
        %v2840 = vld [vmem:[%s633 + $0x1b8] sm:$0xff]
        %v2841 = vld [vmem:[%s633 + $0x1c0] sm:$0xff]
        %v2842 = vld [vmem:[%s633 + $0x1c8] sm:$0xff]
        %v2843 = vld [vmem:[%s633 + $0x1d0] sm:$0xff]
        %v2844 = vld [vmem:[%s633 + $0x1d8] sm:$0xff]
        %v2845 = vld [vmem:[%s633 + $0x1e0] sm:$0xff]
        %v2846 = vld [vmem:[%s633 + $0x1e8] sm:$0xff]
        %v2847 = vld [vmem:[%s633 + $0x1f0] sm:$0xff]
        %v2848 = vld [vmem:[%s633 + $0x1f8] sm:$0xff]
        %v2849 = vld [vmem:[%s633 + $0x200] sm:$0xff]
        %v2850 = vld [vmem:[%s633 + $0x208] sm:$0xff]
        %v2851 = vld [vmem:[%s633 + $0x210] sm:$0xff]
        %v2852 = vld [vmem:[%s633 + $0x218] sm:$0xff]
        %v2853 = vld [vmem:[%s633 + $0x220] sm:$0xff]
        %v2854 = vld [vmem:[%s633 + $0x228] sm:$0xff]
        %v2855 = vld [vmem:[%s633 + $0x230] sm:$0xff]
        %v2856 = vld [vmem:[%s633 + $0x238] sm:$0xff]
        %v2857 = vld [vmem:[%s633 + $0x240] sm:$0xff]
        %v2858 = vld [vmem:[%s633 + $0x248] sm:$0xff]
        %v2859 = vld [vmem:[%s633 + $0x250] sm:$0xff]
        %v2860 = vld [vmem:[%s633 + $0x258] sm:$0xff]
        %v2861 = vld [vmem:[%s633 + $0x260] sm:$0xff]
        %v2862 = vld [vmem:[%s633 + $0x268] sm:$0xff]
        %v2863 = vld [vmem:[%s633 + $0x270] sm:$0xff]
        %v2864 = vld [vmem:[%s633 + $0x278] sm:$0xff]
        %v2865 = vld [vmem:[%s633 + $0x280] sm:$0xff]
        %v2866 = vld [vmem:[%s633 + $0x288] sm:$0xff]
        %v2867 = vld [vmem:[%s633 + $0x290] sm:$0xff]
        %v2868 = vld [vmem:[%s633 + $0x298] sm:$0xff]
        %v2869 = vld [vmem:[%s633 + $0x2a0] sm:$0xff]
        %v2870 = vld [vmem:[%s633 + $0x2a8] sm:$0xff]
        %v2871 = vld [vmem:[%s633 + $0x2b0] sm:$0xff]
        %v2872 = vld [vmem:[%s633 + $0x2b8] sm:$0xff]
        %v2873 = vld [vmem:[%s633 + $0x2c0] sm:$0xff]
        %v2874 = vld [vmem:[%s633 + $0x2c8] sm:$0xff]
        %v2875 = vld [vmem:[%s633 + $0x2d0] sm:$0xff]
        %v2876 = vld [vmem:[%s633 + $0x2d8] sm:$0xff]
        %v2877 = vld [vmem:[%s633 + $0x2e0] sm:$0xff]
        %v2878 = vld [vmem:[%s633 + $0x2e8] sm:$0xff]
        %v2879 = vld [vmem:[%s633 + $0x2f0] sm:$0xff]
        %v2880 = vld [vmem:[%s633 + $0x2f8] sm:$0xff]
        %v2881 = vld [vmem:[%s633 + $0x300] sm:$0xff]
        %v2882 = vld [vmem:[%s633 + $0x308] sm:$0xff]
        %v2883 = vld [vmem:[%s633 + $0x310] sm:$0xff]
        %v2884 = vld [vmem:[%s633 + $0x318] sm:$0xff]
        %v2885 = vld [vmem:[%s633 + $0x320] sm:$0xff]
        %v2886 = vld [vmem:[%s633 + $0x328] sm:$0xff]
        %v2887 = vld [vmem:[%s633 + $0x330] sm:$0xff]
        %v2888 = vld [vmem:[%s633 + $0x338] sm:$0xff]
        %v2889 = vld [vmem:[%s633 + $0x340] sm:$0xff]
        %v2890 = vld [vmem:[%s633 + $0x348] sm:$0xff]
        %v2891 = vld [vmem:[%s633 + $0x350] sm:$0xff]
        %v2892 = vld [vmem:[%s633 + $0x358] sm:$0xff]
        %v2893 = vld [vmem:[%s633 + $0x360] sm:$0xff]
        %v2894 = vld [vmem:[%s633 + $0x368] sm:$0xff]
        %v2895 = vld [vmem:[%s633 + $0x370] sm:$0xff]
        %v2896 = vld [vmem:[%s633 + $0x378] sm:$0xff]
        %v2897 = vld [vmem:[%s633 + $0x380] sm:$0xff]
        %v2898 = vld [vmem:[%s633 + $0x388] sm:$0xff]
        %v2899 = vld [vmem:[%s633 + $0x390] sm:$0xff]
        %v2900 = vld [vmem:[%s633 + $0x398] sm:$0xff]
        %v2901 = vld [vmem:[%s633 + $0x3a0] sm:$0xff]
        %v2902 = vld [vmem:[%s633 + $0x3a8] sm:$0xff]
        %v2903 = vld [vmem:[%s633 + $0x3b0] sm:$0xff]
        %v2904 = vld [vmem:[%s633 + $0x3b8] sm:$0xff]
        %v2905 = vld [vmem:[%s637] sm:$0x7]
        %v2907 = vlaneseq
        %v2908 = vshrl.u32 %v2907, 7
        %v2909 = vsub.s32 0, %v2908
        %v2910 = vrot.slane %v2905, %v2909
        %v2911 = vlaneseq
        %v2912 = vshrl.u32 %v2911, 7
        %v2913 = vsub.s32 1, %v2912
        %v2914 = vrot.slane %v2905, %v2913
        %v2915 = vlaneseq
        %v2916 = vshrl.u32 %v2915, 7
        %v2917 = vsub.s32 2, %v2916
        %v2918 = vrot.slane %v2905, %v2917
        %v2923 = vsel %vm1777, %v2757, 0
        %v2926 = vsel %vm1777, %v2762, 0
        %2928 = vmatprep.subr.mxu0 %v2786
        %2929 = vmatpush1.msra.mxu0 %v2785
        %2930 = vmatprep.subr.mxu0 %v2789
        %2931 = vmatpush1.msra.mxu0 %v2788
        %2932 = vmatprep.subr.mxu0 %v2792
        %2933 = vmatpush1.msra.mxu0 %v2791
        %2934 = vmatprep.subr.mxu0 %v2795
        %2935 = vmatpush1.msra.mxu0 %v2794
        %2936 = vmatprep.subr.mxu0 %v2798
        %2937 = vmatpush1.msra.mxu0 %v2797
        %2938 = vmatprep.subr.mxu0 %v2801
        %2939 = vmatpush1.msra.mxu0 %v2800
        %2940 = vmatprep.subr.mxu0 %v2804
        %2941 = vmatpush1.msra.mxu0 %v2803
        %2942 = vmatprep.subr.mxu0 %v2807
        %2943 = vmatpush1.msra.mxu0 %v2806
        %2944 = vmatprep.subr.mxu0 %v2810
        %2945 = vmatpush1.msra.mxu0 %v2809
        %2946 = vmatprep.subr.mxu0 %v2813
        %2947 = vmatpush1.msra.mxu0 %v2812
        %2948 = vmatprep.subr.mxu0 %v2816
        %2949 = vmatpush1.msra.mxu0 %v2815
        %2950 = vmatprep.subr.mxu0 %v2819
        %2951 = vmatpush1.msra.mxu0 %v2818
        %2952 = vmatprep.subr.mxu0 %v2822
        %2953 = vmatpush1.msra.mxu0 %v2821
        %2954 = vmatprep.subr.mxu0 %v2825
        %2955 = vmatpush1.msra.mxu0 %v2824
        %2956 = vmatprep.subr.mxu0 %v2828
        %2957 = vmatpush1.msra.mxu0 %v2827
        %2958 = vmatprep.subr.mxu0 %v2831
        %2959 = vmatpush1.msra.mxu0 %v2830
        %2960 = vmatprep.subr.mxu0 %v2834
        %2961 = vmatpush1.msra.mxu0 %v2833
        %2962 = vmatprep.subr.mxu0 %v2837
        %2963 = vmatpush1.msra.mxu0 %v2836
        %2964 = vmatprep.subr.mxu0 %v2840
        %2965 = vmatpush1.msra.mxu0 %v2839
        %2966 = vmatprep.subr.mxu0 %v2843
        %2967 = vmatpush1.msra.mxu0 %v2842
        %2968 = vmatprep.subr.mxu0 %v2846
        %2969 = vmatpush1.msra.mxu0 %v2845
        %2970 = vmatprep.subr.mxu0 %v2849
        %2971 = vmatpush1.msra.mxu0 %v2848
        %2972 = vmatprep.subr.mxu0 %v2852
        %2973 = vmatpush1.msra.mxu0 %v2851
        %2974 = vmatprep.subr.mxu0 %v2855
        %2975 = vmatpush1.msra.mxu0 %v2854
        %2976 = vmatprep.subr.mxu0 %v2858
        %2977 = vmatpush1.msra.mxu0 %v2857
        %2978 = vmatprep.subr.mxu0 %v2861
        %2979 = vmatpush1.msra.mxu0 %v2860
        %2980 = vmatprep.subr.mxu0 %v2864
        %2981 = vmatpush1.msra.mxu0 %v2863
        %2982 = vmatprep.subr.mxu0 %v2867
        %2983 = vmatpush1.msra.mxu0 %v2866
        %2984 = vmatprep.subr.mxu0 %v2870
        %2985 = vmatpush1.msra.mxu0 %v2869
        %2986 = vmatprep.subr.mxu0 %v2873
        %2987 = vmatpush1.msra.mxu0 %v2872
        %2988 = vmatprep.subr.mxu0 %v2876
        %2989 = vmatpush1.msra.mxu0 %v2875
        %2990 = vmatprep.subr.mxu0 %v2879
        %2991 = vmatpush1.msra.mxu0 %v2878
        %2992 = vmatprep.mubr.f32.mxu0 %v2783
        %2993 = vmatmul.mubr.f32.gmra.mrb[0].mxu0 %v2781
        %v2994 = vpop.f32.mrb[0].mxu0
        %v2995 = vadd.f32 %v2910, %v2994
        %v2996 = vpop.f32.mrb[0].mxu0
        %v2997 = vadd.f32 %v2914, %v2996
        %2998 = vmatprep.mubr.f32.mxu0 %v2784
        %2999 = vmatmul.mubr.f32.gmra.mrb[0].mxu0 %v2782
        %v3000 = vpop.f32.mrb[0].mxu0
        %v3001 = vadd.f32 %v2910, %v3000
        %v3002 = vpop.f32.mrb[0].mxu0
        %v3003 = vadd.f32 %v2914, %v3002
        %3004 = vdwg.mxu0
        %3005 = vmatprep.subr.mxu0 %v2882
        %3006 = vmatpush1.msra.mxu0 %v2881
        %3007 = vmatprep.subr.mxu0 %v2885
        %3008 = vmatpush1.msra.mxu0 %v2884
        %3009 = vmatprep.subr.mxu0 %v2888
        %3010 = vmatpush1.msra.mxu0 %v2887
        %3011 = vmatprep.subr.mxu0 %v2891
        %3012 = vmatpush1.msra.mxu0 %v2890
        %3013 = vmatprep.subr.mxu0 %v2894
        %3014 = vmatpush1.msra.mxu0 %v2893
        %3015 = vmatprep.subr.mxu0 %v2897
        %3016 = vmatpush1.msra.mxu0 %v2896
        %3017 = vmatprep.subr.mxu0 %v2900
        %3018 = vmatpush1.msra.mxu0 %v2899
        %3019 = vmatprep.subr.mxu0 %v2903
        %3020 = vmatpush1.msra.mxu0 %v2902
        %3021 = vmatprep.subr.mxu0 0.0
        %3022 = vmatpush1.msra.mxu0 0.0
        %3023 = vmatprep.subr.mxu0 0.0
        %3024 = vmatpush1.msra.mxu0 0.0
        %3025 = vmatprep.subr.mxu0 0.0
        %3026 = vmatpush1.msra.mxu0 0.0
        %3027 = vmatprep.subr.mxu0 0.0
        %3028 = vmatpush1.msra.mxu0 0.0
        %3029 = vmatprep.subr.mxu0 0.0
        %3030 = vmatpush1.msra.mxu0 0.0
        %3031 = vmatprep.subr.mxu0 0.0
        %3032 = vmatpush1.msra.mxu0 0.0
        %3033 = vmatprep.subr.mxu0 0.0
        %3034 = vmatpush1.msra.mxu0 0.0
        %3035 = vmatprep.subr.mxu0 0.0
        %3036 = vmatpush1.msra.mxu0 0.0
        %3037 = vmatprep.subr.mxu0 0.0
        %3038 = vmatpush1.msra.mxu0 0.0
        %3039 = vmatprep.subr.mxu0 0.0
        %3040 = vmatpush1.msra.mxu0 0.0
        %3041 = vmatprep.subr.mxu0 0.0
        %3042 = vmatpush1.msra.mxu0 0.0
        %3043 = vmatprep.subr.mxu0 0.0
        %3044 = vmatpush1.msra.mxu0 0.0
        %3045 = vmatprep.subr.mxu0 0.0
        %3046 = vmatpush1.msra.mxu0 0.0
        %3047 = vmatprep.subr.mxu0 0.0
        %3048 = vmatpush1.msra.mxu0 0.0
        %3049 = vmatprep.subr.mxu0 0.0
        %3050 = vmatpush1.msra.mxu0 0.0
        %3051 = vmatprep.subr.mxu0 0.0
        %3052 = vmatpush1.msra.mxu0 0.0
        %3053 = vmatprep.subr.mxu0 0.0
        %3054 = vmatpush1.msra.mxu0 0.0
        %3055 = vmatprep.subr.mxu0 0.0
        %3056 = vmatpush1.msra.mxu0 0.0
        %3057 = vmatprep.subr.mxu0 0.0
        %3058 = vmatpush1.msra.mxu0 0.0
        %3059 = vmatprep.subr.mxu0 0.0
        %3060 = vmatpush1.msra.mxu0 0.0
        %3061 = vmatprep.subr.mxu0 0.0
        %3062 = vmatpush1.msra.mxu0 0.0
        %3063 = vmatprep.subr.mxu0 0.0
        %3064 = vmatpush1.msra.mxu0 0.0
        %3065 = vmatprep.subr.mxu0 0.0
        %3066 = vmatpush1.msra.mxu0 0.0
        %3067 = vmatprep.subr.mxu0 0.0
        %3068 = vmatpush1.msra.mxu0 0.0
        %3069 = vmatprep.mubr.f32.mxu0 0.0
        %3070 = vmatmul.mubr.f32.gmra.mrb[0].mxu0 %v2923
        %v3071 = vpop.f32.mrb[0].mxu0
        %v3072 = vadd.f32 %v2995, %v3071
        %v3073 = vpop.f32.mrb[0].mxu0
        %v3074 = vadd.f32 %v2997, %v3073
        %3075 = vmatprep.mubr.f32.mxu0 0.0
        %3076 = vmatmul.mubr.f32.gmra.mrb[0].mxu0 %v2926
        %v3077 = vpop.f32.mrb[0].mxu0
        %v3078 = vadd.f32 %v3001, %v3077
        %v3079 = vpop.f32.mrb[0].mxu0
        %v3080 = vadd.f32 %v3003, %v3079
        %3081 = vdwg.mxu0
        %3082 = vmatprep.subr.mxu0 0.0
        %3083 = vmatpush1.msra.mxu0 %v2787
        %3084 = vmatprep.subr.mxu0 0.0
        %3085 = vmatpush1.msra.mxu0 %v2790
        %3086 = vmatprep.subr.mxu0 0.0
        %3087 = vmatpush1.msra.mxu0 %v2793
        %3088 = vmatprep.subr.mxu0 0.0
        %3089 = vmatpush1.msra.mxu0 %v2796
        %3090 = vmatprep.subr.mxu0 0.0
        %3091 = vmatpush1.msra.mxu0 %v2799
        %3092 = vmatprep.subr.mxu0 0.0
        %3093 = vmatpush1.msra.mxu0 %v2802
        %3094 = vmatprep.subr.mxu0 0.0
        %3095 = vmatpush1.msra.mxu0 %v2805
        %3096 = vmatprep.subr.mxu0 0.0
        %3097 = vmatpush1.msra.mxu0 %v2808
        %3098 = vmatprep.subr.mxu0 0.0
        %3099 = vmatpush1.msra.mxu0 %v2811
        %3100 = vmatprep.subr.mxu0 0.0
        %3101 = vmatpush1.msra.mxu0 %v2814
        %3102 = vmatprep.subr.mxu0 0.0
        %3103 = vmatpush1.msra.mxu0 %v2817
        %3104 = vmatprep.subr.mxu0 0.0
        %3105 = vmatpush1.msra.mxu0 %v2820
        %3106 = vmatprep.subr.mxu0 0.0
        %3107 = vmatpush1.msra.mxu0 %v2823
        %3108 = vmatprep.subr.mxu0 0.0
        %3109 = vmatpush1.msra.mxu0 %v2826
        %3110 = vmatprep.subr.mxu0 0.0
        %3111 = vmatpush1.msra.mxu0 %v2829
        %3112 = vmatprep.subr.mxu0 0.0
        %3113 = vmatpush1.msra.mxu0 %v2832
        %3114 = vmatprep.subr.mxu0 0.0
        %3115 = vmatpush1.msra.mxu0 %v2835
        %3116 = vmatprep.subr.mxu0 0.0
        %3117 = vmatpush1.msra.mxu0 %v2838
        %3118 = vmatprep.subr.mxu0 0.0
        %3119 = vmatpush1.msra.mxu0 %v2841
        %3120 = vmatprep.subr.mxu0 0.0
        %3121 = vmatpush1.msra.mxu0 %v2844
        %3122 = vmatprep.subr.mxu0 0.0
        %3123 = vmatpush1.msra.mxu0 %v2847
        %3124 = vmatprep.subr.mxu0 0.0
        %3125 = vmatpush1.msra.mxu0 %v2850
        %3126 = vmatprep.subr.mxu0 0.0
        %3127 = vmatpush1.msra.mxu0 %v2853
        %3128 = vmatprep.subr.mxu0 0.0
        %3129 = vmatpush1.msra.mxu0 %v2856
        %3130 = vmatprep.subr.mxu0 0.0
        %3131 = vmatpush1.msra.mxu0 %v2859
        %3132 = vmatprep.subr.mxu0 0.0
        %3133 = vmatpush1.msra.mxu0 %v2862
        %3134 = vmatprep.subr.mxu0 0.0
        %3135 = vmatpush1.msra.mxu0 %v2865
        %3136 = vmatprep.subr.mxu0 0.0
        %3137 = vmatpush1.msra.mxu0 %v2868
        %3138 = vmatprep.subr.mxu0 0.0
        %3139 = vmatpush1.msra.mxu0 %v2871
        %3140 = vmatprep.subr.mxu0 0.0
        %3141 = vmatpush1.msra.mxu0 %v2874
        %3142 = vmatprep.subr.mxu0 0.0
        %3143 = vmatpush1.msra.mxu0 %v2877
        %3144 = vmatprep.subr.mxu0 0.0
        %3145 = vmatpush1.msra.mxu0 %v2880
        %3146 = vmatprep.mubr.f32.mxu0 %v2783
        %3147 = vmatmul.mubr.f32.gmra.mrb[0].mxu0 %v2781
        %v3148 = vpop.f32.mrb[0].mxu0
        %v3149 = vadd.f32 %v2918, %v3148
        %v3150 = vpop.f32.mrb[0].mxu0
        %3151 = vmatprep.mubr.f32.mxu0 %v2784
        %3152 = vmatmul.mubr.f32.gmra.mrb[0].mxu0 %v2782
        %v3153 = vpop.f32.mrb[0].mxu0
        %v3154 = vadd.f32 %v2918, %v3153
        %v3155 = vpop.f32.mrb[0].mxu0
        %3156 = vdwg.mxu0
        %3157 = vmatprep.subr.mxu0 0.0
        %3158 = vmatpush1.msra.mxu0 %v2883
        %3159 = vmatprep.subr.mxu0 0.0
        %3160 = vmatpush1.msra.mxu0 %v2886
        %3161 = vmatprep.subr.mxu0 0.0
        %3162 = vmatpush1.msra.mxu0 %v2889
        %3163 = vmatprep.subr.mxu0 0.0
        %3164 = vmatpush1.msra.mxu0 %v2892
        %3165 = vmatprep.subr.mxu0 0.0
        %3166 = vmatpush1.msra.mxu0 %v2895
        %3167 = vmatprep.subr.mxu0 0.0
        %3168 = vmatpush1.msra.mxu0 %v2898
        %3169 = vmatprep.subr.mxu0 0.0
        %3170 = vmatpush1.msra.mxu0 %v2901
        %3171 = vmatprep.subr.mxu0 0.0
        %3172 = vmatpush1.msra.mxu0 %v2904
        %3173 = vmatprep.subr.mxu0 0.0
        %3174 = vmatpush1.msra.mxu0 0.0
        %3175 = vmatprep.subr.mxu0 0.0
        %3176 = vmatpush1.msra.mxu0 0.0
        %3177 = vmatprep.subr.mxu0 0.0
        %3178 = vmatpush1.msra.mxu0 0.0
        %3179 = vmatprep.subr.mxu0 0.0
        %3180 = vmatpush1.msra.mxu0 0.0
        %3181 = vmatprep.subr.mxu0 0.0
        %3182 = vmatpush1.msra.mxu0 0.0
        %3183 = vmatprep.subr.mxu0 0.0
        %3184 = vmatpush1.msra.mxu0 0.0
        %3185 = vmatprep.subr.mxu0 0.0
        %3186 = vmatpush1.msra.mxu0 0.0
        %3187 = vmatprep.subr.mxu0 0.0
        %3188 = vmatpush1.msra.mxu0 0.0
        %3189 = vmatprep.subr.mxu0 0.0
        %3190 = vmatpush1.msra.mxu0 0.0
        %3191 = vmatprep.subr.mxu0 0.0
        %3192 = vmatpush1.msra.mxu0 0.0
        %3193 = vmatprep.subr.mxu0 0.0
        %3194 = vmatpush1.msra.mxu0 0.0
        %3195 = vmatprep.subr.mxu0 0.0
        %3196 = vmatpush1.msra.mxu0 0.0
        %3197 = vmatprep.subr.mxu0 0.0
        %3198 = vmatpush1.msra.mxu0 0.0
        %3199 = vmatprep.subr.mxu0 0.0
        %3200 = vmatpush1.msra.mxu0 0.0
        %3201 = vmatprep.subr.mxu0 0.0
        %3202 = vmatpush1.msra.mxu0 0.0
        %3203 = vmatprep.subr.mxu0 0.0
        %3204 = vmatpush1.msra.mxu0 0.0
        %3205 = vmatprep.subr.mxu0 0.0
        %3206 = vmatpush1.msra.mxu0 0.0
        %3207 = vmatprep.subr.mxu0 0.0
        %3208 = vmatpush1.msra.mxu0 0.0
        %3209 = vmatprep.subr.mxu0 0.0
        %3210 = vmatpush1.msra.mxu0 0.0
        %3211 = vmatprep.subr.mxu0 0.0
        %3212 = vmatpush1.msra.mxu0 0.0
        %3213 = vmatprep.subr.mxu0 0.0
        %3214 = vmatpush1.msra.mxu0 0.0
        %3215 = vmatprep.subr.mxu0 0.0
        %3216 = vmatpush1.msra.mxu0 0.0
        %3217 = vmatprep.subr.mxu0 0.0
        %3218 = vmatpush1.msra.mxu0 0.0
        %3219 = vmatprep.subr.mxu0 0.0
        %3220 = vmatpush1.msra.mxu0 0.0
        %3221 = vmatprep.mubr.f32.mxu0 0.0
        %3222 = vmatmul.mubr.f32.gmra.mrb[0].mxu0 %v2923
        %v3223 = vpop.f32.mrb[0].mxu0
        %v3224 = vadd.f32 %v3149, %v3223
        %v3225 = vpop.f32.mrb[0].mxu0
        %3226 = vmatprep.mubr.f32.mxu0 0.0
        %3227 = vmatmul.mubr.f32.gmra.mrb[0].mxu0 %v2926
        %v3228 = vpop.f32.mrb[0].mxu0
        %v3229 = vadd.f32 %v3154, %v3228
        %v3230 = vpop.f32.mrb[0].mxu0
        %3231 = vdwg.mxu0
        %v3232 = vadd.f32 %v678, %v3072
        %v3233 = vadd.f32 %v679, %v3074
        %v3234 = vadd.f32 %v680, %v3224
        %v3235 = vadd.f32 %v681, %v3078
        %v3236 = vadd.f32 %v682, %v3080
        %v3237 = vadd.f32 %v683, %v3229
        %v3238 = vld [vmem:[%s641] sm:$0x7]
        %v3239 = vld [vmem:[%s645] sm:$0x7]
        %v3240 = vadd.f32 %v3232, %v3233
        %v3241 = vadd.f32 %v3240, %v3234
        %3242 = vadd.xlane.f32.xlu0 %v3241
        %v3243 = vpop.xlane.xlu0 %3242
        %v3244 = vadd.f32 %v3235, %v3236
        %v3245 = vadd.f32 %v3244, %v3237
        %3246 = vadd.xlane.f32.xlu0 %v3245
        %v3247 = vpop.xlane.xlu0 %3246
        %v3248 = vmul.f32 %v3243, 0.0033333334
        %v3249 = vmul.f32 %v3247, 0.0033333334
        %v3250 = vmul.f32 %v3232, %v3232
        %v3251 = vmul.f32 %v3233, %v3233
        %v3252 = vmul.f32 %v3234, %v3234
        %v3253 = vmul.f32 %v3235, %v3235
        %v3254 = vmul.f32 %v3236, %v3236
        %v3255 = vmul.f32 %v3237, %v3237
        %v3256 = vadd.f32 %v3250, %v3251
        %v3257 = vadd.f32 %v3256, %v3252
        %3258 = vadd.xlane.f32.xlu0 %v3257
        %v3259 = vpop.xlane.xlu0 %3258
        %v3260 = vadd.f32 %v3253, %v3254
        %v3261 = vadd.f32 %v3260, %v3255
        %3262 = vadd.xlane.f32.xlu0 %v3261
        %v3263 = vpop.xlane.xlu0 %3262
        %v3264 = vmul.f32 %v3259, 0.0033333334
        %v3265 = vmul.f32 %v3263, 0.0033333334
        %v3266 = vmul.f32 %v3248, %v3248
        %v3267 = vmul.f32 %v3249, %v3249
        %v3268 = vsub.f32 %v3264, %v3266
        %v3269 = vsub.f32 %v3265, %v3267
        %v3270 = vadd.f32 %v3268, 1e-05
        %v3271 = vadd.f32 %v3269, 1e-05
        %v3272 = vrsqrt.pop %v3270
        %v3273 = vrsqrt.pop %v3271
        %v3274 = vsub.f32 %v3232, %v3248
        %v3275 = vsub.f32 %v3233, %v3248
        %v3276 = vsub.f32 %v3234, %v3248
        %v3277 = vsub.f32 %v3235, %v3249
        %v3278 = vsub.f32 %v3236, %v3249
        %v3279 = vsub.f32 %v3237, %v3249
        %v3280 = vmul.f32 %v3274, %v3272
        %v3281 = vmul.f32 %v3275, %v3272
        %v3282 = vmul.f32 %v3276, %v3272
        %v3283 = vmul.f32 %v3277, %v3273
        %v3284 = vmul.f32 %v3278, %v3273
        %v3285 = vmul.f32 %v3279, %v3273
        %v3287 = vlaneseq
        %v3288 = vshrl.u32 %v3287, 7
        %v3289 = vsub.s32 0, %v3288
        %v3290 = vrot.slane %v3238, %v3289
        %v3291 = vlaneseq
        %v3292 = vshrl.u32 %v3291, 7
        %v3293 = vsub.s32 1, %v3292
        %v3294 = vrot.slane %v3238, %v3293
        %v3295 = vlaneseq
        %v3296 = vshrl.u32 %v3295, 7
        %v3297 = vsub.s32 2, %v3296
        %v3298 = vrot.slane %v3238, %v3297
        %v3302 = vmul.f32 %v3280, %v3290
        %v3303 = vmul.f32 %v3281, %v3294
        %v3304 = vmul.f32 %v3282, %v3298
        %v3305 = vmul.f32 %v3283, %v3290
        %v3306 = vmul.f32 %v3284, %v3294
        %v3307 = vmul.f32 %v3285, %v3298
        %v3309 = vlaneseq
        %v3310 = vshrl.u32 %v3309, 7
        %v3311 = vsub.s32 0, %v3310
        %v3312 = vrot.slane %v3239, %v3311
        %v3313 = vlaneseq
        %v3314 = vshrl.u32 %v3313, 7
        %v3315 = vsub.s32 1, %v3314
        %v3316 = vrot.slane %v3239, %v3315
        %v3317 = vlaneseq
        %v3318 = vshrl.u32 %v3317, 7
        %v3319 = vsub.s32 2, %v3318
        %v3320 = vrot.slane %v3239, %v3319
        %v3324 = vadd.f32 %v3302, %v3312
        %v3325 = vadd.f32 %v3303, %v3316
        %v3326 = vadd.f32 %v3304, %v3320
        %v3327 = vadd.f32 %v3305, %v3312
        %v3328 = vadd.f32 %v3306, %v3316
        %v3329 = vadd.f32 %v3307, %v3320
        %v3330 = vld [vmem:[%s526] sm:$0xff]
        %v3331 = vld [vmem:[%s526 + $0x8] sm:$0xff]
        %v3332 = vld [vmem:[%s526 + $0x10] sm:$0xff]
        %v3333 = vld [vmem:[%s526 + $0x18] sm:$0xff]
        %v3334 = vld [vmem:[%s526 + $0x20] sm:$0xff]
        %v3335 = vld [vmem:[%s526 + $0x28] sm:$0xff]
        %v3336 = vld [vmem:[%s526 + $0x30] sm:$0xff]
        %v3337 = vld [vmem:[%s526 + $0x38] sm:$0xff]
        %v3338 = vld [vmem:[%s526 + $0x40] sm:$0xff]
        %v3339 = vld [vmem:[%s526 + $0x48] sm:$0xff]
        %v3340 = vld [vmem:[%s526 + $0x50] sm:$0xff]
        %v3341 = vld [vmem:[%s526 + $0x58] sm:$0xff]
        %v3342 = vld [vmem:[%s526 + $0x60] sm:$0xff]
        %v3343 = vld [vmem:[%s526 + $0x68] sm:$0xff]
        %v3344 = vld [vmem:[%s526 + $0x70] sm:$0xff]
        %v3345 = vld [vmem:[%s526 + $0x78] sm:$0xff]
        %v3346 = vld [vmem:[%s526 + $0x80] sm:$0xff]
        %v3347 = vld [vmem:[%s526 + $0x88] sm:$0xff]
        %v3348 = vld [vmem:[%s526 + $0x90] sm:$0xff]
        %v3349 = vld [vmem:[%s526 + $0x98] sm:$0xff]
        %v3350 = vld [vmem:[%s526 + $0xa0] sm:$0xff]
        %v3351 = vld [vmem:[%s526 + $0xa8] sm:$0xff]
        %v3352 = vld [vmem:[%s526 + $0xb0] sm:$0xff]
        %v3353 = vld [vmem:[%s526 + $0xb8] sm:$0xff]
        %v3354 = vld [vmem:[%s526 + $0xc0] sm:$0xff]
        %v3355 = vld [vmem:[%s526 + $0xc8] sm:$0xff]
        %v3356 = vld [vmem:[%s526 + $0xd0] sm:$0xff]
        %v3357 = vld [vmem:[%s526 + $0xd8] sm:$0xff]
        %v3358 = vld [vmem:[%s526 + $0xe0] sm:$0xff]
        %v3359 = vld [vmem:[%s526 + $0xe8] sm:$0xff]
        %v3360 = vld [vmem:[%s526 + $0xf0] sm:$0xff]
        %v3361 = vld [vmem:[%s526 + $0xf8] sm:$0xff]
        %v3362 = vld [vmem:[%s526 + $0x100] sm:$0xff]
        %v3363 = vld [vmem:[%s526 + $0x108] sm:$0xff]
        %v3364 = vld [vmem:[%s526 + $0x110] sm:$0xff]
        %v3365 = vld [vmem:[%s526 + $0x118] sm:$0xff]
        %v3366 = vld [vmem:[%s526 + $0x120] sm:$0xff]
        %v3367 = vld [vmem:[%s526 + $0x128] sm:$0xff]
        %v3368 = vld [vmem:[%s526 + $0x130] sm:$0xff]
        %v3369 = vld [vmem:[%s526 + $0x138] sm:$0xff]
        %v3370 = vld [vmem:[%s526 + $0x140] sm:$0xff]
        %v3371 = vld [vmem:[%s526 + $0x148] sm:$0xff]
        %v3372 = vld [vmem:[%s526 + $0x150] sm:$0xff]
        %v3373 = vld [vmem:[%s526 + $0x158] sm:$0xff]
        %v3374 = vld [vmem:[%s526 + $0x160] sm:$0xff]
        %v3375 = vld [vmem:[%s526 + $0x168] sm:$0xff]
        %v3376 = vld [vmem:[%s526 + $0x170] sm:$0xff]
        %v3377 = vld [vmem:[%s526 + $0x178] sm:$0xff]
        %v3378 = vld [vmem:[%s526 + $0x180] sm:$0xff]
        %v3379 = vld [vmem:[%s526 + $0x188] sm:$0xff]
        %v3380 = vld [vmem:[%s526 + $0x190] sm:$0xff]
        %v3381 = vld [vmem:[%s526 + $0x198] sm:$0xff]
        %v3382 = vld [vmem:[%s526 + $0x1a0] sm:$0xff]
        %v3383 = vld [vmem:[%s526 + $0x1a8] sm:$0xff]
        %v3384 = vld [vmem:[%s526 + $0x1b0] sm:$0xff]
        %v3385 = vld [vmem:[%s526 + $0x1b8] sm:$0xff]
        %v3386 = vld [vmem:[%s526 + $0x1c0] sm:$0xff]
        %v3387 = vld [vmem:[%s526 + $0x1c8] sm:$0xff]
        %v3388 = vld [vmem:[%s526 + $0x1d0] sm:$0xff]
        %v3389 = vld [vmem:[%s526 + $0x1d8] sm:$0xff]
        %v3390 = vld [vmem:[%s526 + $0x1e0] sm:$0xff]
        %v3391 = vld [vmem:[%s526 + $0x1e8] sm:$0xff]
        %v3392 = vld [vmem:[%s526 + $0x1f0] sm:$0xff]
        %v3393 = vld [vmem:[%s526 + $0x1f8] sm:$0xff]
        %v3394 = vld [vmem:[%s526 + $0x200] sm:$0xff]
        %v3395 = vld [vmem:[%s526 + $0x208] sm:$0xff]
        %v3396 = vld [vmem:[%s526 + $0x210] sm:$0xff]
        %v3397 = vld [vmem:[%s526 + $0x218] sm:$0xff]
        %v3398 = vld [vmem:[%s526 + $0x220] sm:$0xff]
        %v3399 = vld [vmem:[%s526 + $0x228] sm:$0xff]
        %v3400 = vld [vmem:[%s526 + $0x230] sm:$0xff]
        %v3401 = vld [vmem:[%s526 + $0x238] sm:$0xff]
        %v3402 = vld [vmem:[%s526 + $0x240] sm:$0xff]
        %v3403 = vld [vmem:[%s526 + $0x248] sm:$0xff]
        %v3404 = vld [vmem:[%s526 + $0x250] sm:$0xff]
        %v3405 = vld [vmem:[%s526 + $0x258] sm:$0xff]
        %v3406 = vld [vmem:[%s526 + $0x260] sm:$0xff]
        %v3407 = vld [vmem:[%s526 + $0x268] sm:$0xff]
        %v3408 = vld [vmem:[%s526 + $0x270] sm:$0xff]
        %v3409 = vld [vmem:[%s526 + $0x278] sm:$0xff]
        %v3410 = vld [vmem:[%s526 + $0x280] sm:$0xff]
        %v3411 = vld [vmem:[%s526 + $0x288] sm:$0xff]
        %v3412 = vld [vmem:[%s526 + $0x290] sm:$0xff]
        %v3413 = vld [vmem:[%s526 + $0x298] sm:$0xff]
        %v3414 = vld [vmem:[%s526 + $0x2a0] sm:$0xff]
        %v3415 = vld [vmem:[%s526 + $0x2a8] sm:$0xff]
        %v3416 = vld [vmem:[%s526 + $0x2b0] sm:$0xff]
        %v3417 = vld [vmem:[%s526 + $0x2b8] sm:$0xff]
        %v3418 = vld [vmem:[%s526 + $0x2c0] sm:$0xff]
        %v3419 = vld [vmem:[%s526 + $0x2c8] sm:$0xff]
        %v3420 = vld [vmem:[%s526 + $0x2d0] sm:$0xff]
        %v3421 = vld [vmem:[%s526 + $0x2d8] sm:$0xff]
        %v3422 = vld [vmem:[%s526 + $0x2e0] sm:$0xff]
        %v3423 = vld [vmem:[%s526 + $0x2e8] sm:$0xff]
        %v3424 = vld [vmem:[%s526 + $0x2f0] sm:$0xff]
        %v3425 = vld [vmem:[%s526 + $0x2f8] sm:$0xff]
        %v3426 = vld [vmem:[%s526 + $0x300] sm:$0xff]
        %v3427 = vld [vmem:[%s526 + $0x308] sm:$0xff]
        %v3428 = vld [vmem:[%s526 + $0x310] sm:$0xff]
        %v3429 = vld [vmem:[%s526 + $0x318] sm:$0xff]
        %v3430 = vld [vmem:[%s526 + $0x320] sm:$0xff]
        %v3431 = vld [vmem:[%s526 + $0x328] sm:$0xff]
        %v3432 = vld [vmem:[%s526 + $0x330] sm:$0xff]
        %v3433 = vld [vmem:[%s526 + $0x338] sm:$0xff]
        %v3434 = vld [vmem:[%s526 + $0x340] sm:$0xff]
        %v3435 = vld [vmem:[%s526 + $0x348] sm:$0xff]
        %v3436 = vld [vmem:[%s526 + $0x350] sm:$0xff]
        %v3437 = vld [vmem:[%s526 + $0x358] sm:$0xff]
        %v3438 = vld [vmem:[%s526 + $0x360] sm:$0xff]
        %v3439 = vld [vmem:[%s526 + $0x368] sm:$0xff]
        %v3440 = vld [vmem:[%s526 + $0x370] sm:$0xff]
        %v3441 = vld [vmem:[%s526 + $0x378] sm:$0xff]
        %v3442 = vld [vmem:[%s526 + $0x380] sm:$0xff]
        %v3443 = vld [vmem:[%s526 + $0x388] sm:$0xff]
        %v3444 = vld [vmem:[%s526 + $0x390] sm:$0xff]
        %v3445 = vld [vmem:[%s526 + $0x398] sm:$0xff]
        %v3446 = vld [vmem:[%s526 + $0x3a0] sm:$0xff]
        %v3447 = vld [vmem:[%s526 + $0x3a8] sm:$0xff]
        %v3448 = vld [vmem:[%s526 + $0x3b0] sm:$0xff]
        %v3449 = vld [vmem:[%s526 + $0x3b8] sm:$0xff]
        %v3450 = vld [vmem:[%s526 + $0x3c0] sm:$0xff]
        %v3451 = vld [vmem:[%s526 + $0x3c8] sm:$0xff]
        %v3452 = vld [vmem:[%s526 + $0x3d0] sm:$0xff]
        %v3453 = vld [vmem:[%s526 + $0x3d8] sm:$0xff]
        %v3454 = vld [vmem:[%s526 + $0x3e0] sm:$0xff]
        %v3455 = vld [vmem:[%s526 + $0x3e8] sm:$0xff]
        %v3456 = vld [vmem:[%s526 + $0x3f0] sm:$0xff]
        %v3457 = vld [vmem:[%s526 + $0x3f8] sm:$0xff]
        %v3458 = vld [vmem:[%s526 + $0x400] sm:$0xff]
        %v3459 = vld [vmem:[%s526 + $0x408] sm:$0xff]
        %v3460 = vld [vmem:[%s526 + $0x410] sm:$0xff]
        %v3461 = vld [vmem:[%s526 + $0x418] sm:$0xff]
        %v3462 = vld [vmem:[%s526 + $0x420] sm:$0xff]
        %v3463 = vld [vmem:[%s526 + $0x428] sm:$0xff]
        %v3464 = vld [vmem:[%s526 + $0x430] sm:$0xff]
        %v3465 = vld [vmem:[%s526 + $0x438] sm:$0xff]
        %v3466 = vld [vmem:[%s526 + $0x440] sm:$0xff]
        %v3467 = vld [vmem:[%s526 + $0x448] sm:$0xff]
        %v3468 = vld [vmem:[%s526 + $0x450] sm:$0xff]
        %v3469 = vld [vmem:[%s526 + $0x458] sm:$0xff]
        %v3470 = vld [vmem:[%s526 + $0x460] sm:$0xff]
        %v3471 = vld [vmem:[%s526 + $0x468] sm:$0xff]
        %v3472 = vld [vmem:[%s526 + $0x470] sm:$0xff]
        %v3473 = vld [vmem:[%s526 + $0x478] sm:$0xff]
        %v3474 = vld [vmem:[%s526 + $0x480] sm:$0xff]
        %v3475 = vld [vmem:[%s526 + $0x488] sm:$0xff]
        %v3476 = vld [vmem:[%s526 + $0x490] sm:$0xff]
        %v3477 = vld [vmem:[%s526 + $0x498] sm:$0xff]
        %v3478 = vld [vmem:[%s526 + $0x4a0] sm:$0xff]
        %v3479 = vld [vmem:[%s526 + $0x4a8] sm:$0xff]
        %v3480 = vld [vmem:[%s526 + $0x4b0] sm:$0xff]
        %v3481 = vld [vmem:[%s526 + $0x4b8] sm:$0xff]
        %v3482 = vld [vmem:[%s526 + $0x4c0] sm:$0xff]
        %v3483 = vld [vmem:[%s526 + $0x4c8] sm:$0xff]
        %v3484 = vld [vmem:[%s526 + $0x4d0] sm:$0xff]
        %v3485 = vld [vmem:[%s526 + $0x4d8] sm:$0xff]
        %v3486 = vld [vmem:[%s526 + $0x4e0] sm:$0xff]
        %v3487 = vld [vmem:[%s526 + $0x4e8] sm:$0xff]
        %v3488 = vld [vmem:[%s526 + $0x4f0] sm:$0xff]
        %v3489 = vld [vmem:[%s526 + $0x4f8] sm:$0xff]
        %v3490 = vld [vmem:[%s526 + $0x500] sm:$0xff]
        %v3491 = vld [vmem:[%s526 + $0x508] sm:$0xff]
        %v3492 = vld [vmem:[%s526 + $0x510] sm:$0xff]
        %v3493 = vld [vmem:[%s526 + $0x518] sm:$0xff]
        %v3494 = vld [vmem:[%s526 + $0x520] sm:$0xff]
        %v3495 = vld [vmem:[%s526 + $0x528] sm:$0xff]
        %v3496 = vld [vmem:[%s526 + $0x530] sm:$0xff]
        %v3497 = vld [vmem:[%s526 + $0x538] sm:$0xff]
        %v3498 = vld [vmem:[%s526 + $0x540] sm:$0xff]
        %v3499 = vld [vmem:[%s526 + $0x548] sm:$0xff]
        %v3500 = vld [vmem:[%s526 + $0x550] sm:$0xff]
        %v3501 = vld [vmem:[%s526 + $0x558] sm:$0xff]
        %v3502 = vld [vmem:[%s526 + $0x560] sm:$0xff]
        %v3503 = vld [vmem:[%s526 + $0x568] sm:$0xff]
        %v3504 = vld [vmem:[%s526 + $0x570] sm:$0xff]
        %v3505 = vld [vmem:[%s526 + $0x578] sm:$0xff]
        %v3506 = vld [vmem:[%s526 + $0x580] sm:$0xff]
        %v3507 = vld [vmem:[%s526 + $0x588] sm:$0xff]
        %v3508 = vld [vmem:[%s526 + $0x590] sm:$0xff]
        %v3509 = vld [vmem:[%s526 + $0x598] sm:$0xff]
        %v3510 = vld [vmem:[%s526 + $0x5a0] sm:$0xff]
        %v3511 = vld [vmem:[%s526 + $0x5a8] sm:$0xff]
        %v3512 = vld [vmem:[%s526 + $0x5b0] sm:$0xff]
        %v3513 = vld [vmem:[%s526 + $0x5b8] sm:$0xff]
        %v3514 = vld [vmem:[%s526 + $0x5c0] sm:$0xff]
        %v3515 = vld [vmem:[%s526 + $0x5c8] sm:$0xff]
        %v3516 = vld [vmem:[%s526 + $0x5d0] sm:$0xff]
        %v3517 = vld [vmem:[%s526 + $0x5d8] sm:$0xff]
        %v3518 = vld [vmem:[%s526 + $0x5e0] sm:$0xff]
        %v3519 = vld [vmem:[%s526 + $0x5e8] sm:$0xff]
        %v3520 = vld [vmem:[%s526 + $0x5f0] sm:$0xff]
        %v3521 = vld [vmem:[%s526 + $0x5f8] sm:$0xff]
        %v3522 = vld [vmem:[%s526 + $0x600] sm:$0xff]
        %v3523 = vld [vmem:[%s526 + $0x608] sm:$0xff]
        %v3524 = vld [vmem:[%s526 + $0x610] sm:$0xff]
        %v3525 = vld [vmem:[%s526 + $0x618] sm:$0xff]
        %v3526 = vld [vmem:[%s526 + $0x620] sm:$0xff]
        %v3527 = vld [vmem:[%s526 + $0x628] sm:$0xff]
        %v3528 = vld [vmem:[%s526 + $0x630] sm:$0xff]
        %v3529 = vld [vmem:[%s526 + $0x638] sm:$0xff]
        %v3530 = vld [vmem:[%s526 + $0x640] sm:$0xff]
        %v3531 = vld [vmem:[%s526 + $0x648] sm:$0xff]
        %v3532 = vld [vmem:[%s526 + $0x650] sm:$0xff]
        %v3533 = vld [vmem:[%s526 + $0x658] sm:$0xff]
        %v3534 = vld [vmem:[%s526 + $0x660] sm:$0xff]
        %v3535 = vld [vmem:[%s526 + $0x668] sm:$0xff]
        %v3536 = vld [vmem:[%s526 + $0x670] sm:$0xff]
        %v3537 = vld [vmem:[%s526 + $0x678] sm:$0xff]
        %v3538 = vld [vmem:[%s526 + $0x680] sm:$0xff]
        %v3539 = vld [vmem:[%s526 + $0x688] sm:$0xff]
        %v3540 = vld [vmem:[%s526 + $0x690] sm:$0xff]
        %v3541 = vld [vmem:[%s526 + $0x698] sm:$0xff]
        %v3542 = vld [vmem:[%s526 + $0x6a0] sm:$0xff]
        %v3543 = vld [vmem:[%s526 + $0x6a8] sm:$0xff]
        %v3544 = vld [vmem:[%s526 + $0x6b0] sm:$0xff]
        %v3545 = vld [vmem:[%s526 + $0x6b8] sm:$0xff]
        %v3546 = vld [vmem:[%s526 + $0x6c0] sm:$0xff]
        %v3547 = vld [vmem:[%s526 + $0x6c8] sm:$0xff]
        %v3548 = vld [vmem:[%s526 + $0x6d0] sm:$0xff]
        %v3549 = vld [vmem:[%s526 + $0x6d8] sm:$0xff]
        %v3550 = vld [vmem:[%s526 + $0x6e0] sm:$0xff]
        %v3551 = vld [vmem:[%s526 + $0x6e8] sm:$0xff]
        %v3552 = vld [vmem:[%s526 + $0x6f0] sm:$0xff]
        %v3553 = vld [vmem:[%s526 + $0x6f8] sm:$0xff]
        %v3554 = vld [vmem:[%s526 + $0x700] sm:$0xff]
        %v3555 = vld [vmem:[%s526 + $0x708] sm:$0xff]
        %v3556 = vld [vmem:[%s526 + $0x710] sm:$0xff]
        %v3557 = vld [vmem:[%s526 + $0x718] sm:$0xff]
        %v3558 = vld [vmem:[%s526 + $0x720] sm:$0xff]
        %v3559 = vld [vmem:[%s526 + $0x728] sm:$0xff]
        %v3560 = vld [vmem:[%s526 + $0x730] sm:$0xff]
        %v3561 = vld [vmem:[%s526 + $0x738] sm:$0xff]
        %v3562 = vld [vmem:[%s526 + $0x740] sm:$0xff]
        %v3563 = vld [vmem:[%s526 + $0x748] sm:$0xff]
        %v3564 = vld [vmem:[%s526 + $0x750] sm:$0xff]
        %v3565 = vld [vmem:[%s526 + $0x758] sm:$0xff]
        %v3566 = vld [vmem:[%s526 + $0x760] sm:$0xff]
        %v3567 = vld [vmem:[%s526 + $0x768] sm:$0xff]
        %v3568 = vld [vmem:[%s526 + $0x770] sm:$0xff]
        %v3569 = vld [vmem:[%s526 + $0x778] sm:$0xff]
        %v3570 = vld [vmem:[%s526 + $0x780] sm:$0xff]
        %v3571 = vld [vmem:[%s526 + $0x788] sm:$0xff]
        %v3572 = vld [vmem:[%s526 + $0x790] sm:$0xff]
        %v3573 = vld [vmem:[%s526 + $0x798] sm:$0xff]
        %v3574 = vld [vmem:[%s526 + $0x7a0] sm:$0xff]
        %v3575 = vld [vmem:[%s526 + $0x7a8] sm:$0xff]
        %v3576 = vld [vmem:[%s526 + $0x7b0] sm:$0xff]
        %v3577 = vld [vmem:[%s526 + $0x7b8] sm:$0xff]
        %v3578 = vld [vmem:[%s526 + $0x7c0] sm:$0xff]
        %v3579 = vld [vmem:[%s526 + $0x7c8] sm:$0xff]
        %v3580 = vld [vmem:[%s526 + $0x7d0] sm:$0xff]
        %v3581 = vld [vmem:[%s526 + $0x7d8] sm:$0xff]
        %v3582 = vld [vmem:[%s526 + $0x7e0] sm:$0xff]
        %v3583 = vld [vmem:[%s526 + $0x7e8] sm:$0xff]
        %v3584 = vld [vmem:[%s526 + $0x7f0] sm:$0xff]
        %v3585 = vld [vmem:[%s526 + $0x7f8] sm:$0xff]
        %v3586 = vld [vmem:[%s526 + $0x800] sm:$0xff]
        %v3587 = vld [vmem:[%s526 + $0x808] sm:$0xff]
        %v3588 = vld [vmem:[%s526 + $0x810] sm:$0xff]
        %v3589 = vld [vmem:[%s526 + $0x818] sm:$0xff]
        %v3590 = vld [vmem:[%s526 + $0x820] sm:$0xff]
        %v3591 = vld [vmem:[%s526 + $0x828] sm:$0xff]
        %v3592 = vld [vmem:[%s526 + $0x830] sm:$0xff]
        %v3593 = vld [vmem:[%s526 + $0x838] sm:$0xff]
        %v3594 = vld [vmem:[%s526 + $0x840] sm:$0xff]
        %v3595 = vld [vmem:[%s526 + $0x848] sm:$0xff]
        %v3596 = vld [vmem:[%s526 + $0x850] sm:$0xff]
        %v3597 = vld [vmem:[%s526 + $0x858] sm:$0xff]
        %v3598 = vld [vmem:[%s526 + $0x860] sm:$0xff]
        %v3599 = vld [vmem:[%s526 + $0x868] sm:$0xff]
        %v3600 = vld [vmem:[%s526 + $0x870] sm:$0xff]
        %v3601 = vld [vmem:[%s526 + $0x878] sm:$0xff]
        %v3602 = vld [vmem:[%s526 + $0x880] sm:$0xff]
        %v3603 = vld [vmem:[%s526 + $0x888] sm:$0xff]
        %v3604 = vld [vmem:[%s526 + $0x890] sm:$0xff]
        %v3605 = vld [vmem:[%s526 + $0x898] sm:$0xff]
        %v3606 = vld [vmem:[%s526 + $0x8a0] sm:$0xff]
        %v3607 = vld [vmem:[%s526 + $0x8a8] sm:$0xff]
        %v3608 = vld [vmem:[%s526 + $0x8b0] sm:$0xff]
        %v3609 = vld [vmem:[%s526 + $0x8b8] sm:$0xff]
        %v3610 = vld [vmem:[%s526 + $0x8c0] sm:$0xff]
        %v3611 = vld [vmem:[%s526 + $0x8c8] sm:$0xff]
        %v3612 = vld [vmem:[%s526 + $0x8d0] sm:$0xff]
        %v3613 = vld [vmem:[%s526 + $0x8d8] sm:$0xff]
        %v3614 = vld [vmem:[%s526 + $0x8e0] sm:$0xff]
        %v3615 = vld [vmem:[%s526 + $0x8e8] sm:$0xff]
        %v3616 = vld [vmem:[%s526 + $0x8f0] sm:$0xff]
        %v3617 = vld [vmem:[%s526 + $0x8f8] sm:$0xff]
        %v3618 = vld [vmem:[%s526 + $0x900] sm:$0xff]
        %v3619 = vld [vmem:[%s526 + $0x908] sm:$0xff]
        %v3620 = vld [vmem:[%s526 + $0x910] sm:$0xff]
        %v3621 = vld [vmem:[%s526 + $0x918] sm:$0xff]
        %v3622 = vld [vmem:[%s526 + $0x920] sm:$0xff]
        %v3623 = vld [vmem:[%s526 + $0x928] sm:$0xff]
        %v3624 = vld [vmem:[%s526 + $0x930] sm:$0xff]
        %v3625 = vld [vmem:[%s526 + $0x938] sm:$0xff]
        %v3626 = vld [vmem:[%s526 + $0x940] sm:$0xff]
        %v3627 = vld [vmem:[%s526 + $0x948] sm:$0xff]
        %v3628 = vld [vmem:[%s526 + $0x950] sm:$0xff]
        %v3629 = vld [vmem:[%s526 + $0x958] sm:$0xff]
        %v3630 = vld [vmem:[%s526 + $0x960] sm:$0xff]
        %v3631 = vld [vmem:[%s526 + $0x968] sm:$0xff]
        %v3632 = vld [vmem:[%s526 + $0x970] sm:$0xff]
        %v3633 = vld [vmem:[%s526 + $0x978] sm:$0xff]
        %v3634 = vld [vmem:[%s526 + $0x980] sm:$0xff]
        %v3635 = vld [vmem:[%s526 + $0x988] sm:$0xff]
        %v3636 = vld [vmem:[%s526 + $0x990] sm:$0xff]
        %v3637 = vld [vmem:[%s526 + $0x998] sm:$0xff]
        %v3638 = vld [vmem:[%s526 + $0x9a0] sm:$0xff]
        %v3639 = vld [vmem:[%s526 + $0x9a8] sm:$0xff]
        %v3640 = vld [vmem:[%s526 + $0x9b0] sm:$0xff]
        %v3641 = vld [vmem:[%s526 + $0x9b8] sm:$0xff]
        %v3642 = vld [vmem:[%s526 + $0x9c0] sm:$0xff]
        %v3643 = vld [vmem:[%s526 + $0x9c8] sm:$0xff]
        %v3644 = vld [vmem:[%s526 + $0x9d0] sm:$0xff]
        %v3645 = vld [vmem:[%s526 + $0x9d8] sm:$0xff]
        %v3646 = vld [vmem:[%s526 + $0x9e0] sm:$0xff]
        %v3647 = vld [vmem:[%s526 + $0x9e8] sm:$0xff]
        %v3648 = vld [vmem:[%s526 + $0x9f0] sm:$0xff]
        %v3649 = vld [vmem:[%s526 + $0x9f8] sm:$0xff]
        %v3650 = vld [vmem:[%s526 + $0xa00] sm:$0xff]
        %v3651 = vld [vmem:[%s526 + $0xa08] sm:$0xff]
        %v3652 = vld [vmem:[%s526 + $0xa10] sm:$0xff]
        %v3653 = vld [vmem:[%s526 + $0xa18] sm:$0xff]
        %v3654 = vld [vmem:[%s526 + $0xa20] sm:$0xff]
        %v3655 = vld [vmem:[%s526 + $0xa28] sm:$0xff]
        %v3656 = vld [vmem:[%s526 + $0xa30] sm:$0xff]
        %v3657 = vld [vmem:[%s526 + $0xa38] sm:$0xff]
        %v3658 = vld [vmem:[%s526 + $0xa40] sm:$0xff]
        %v3659 = vld [vmem:[%s526 + $0xa48] sm:$0xff]
        %v3660 = vld [vmem:[%s526 + $0xa50] sm:$0xff]
        %v3661 = vld [vmem:[%s526 + $0xa58] sm:$0xff]
        %v3662 = vld [vmem:[%s526 + $0xa60] sm:$0xff]
        %v3663 = vld [vmem:[%s526 + $0xa68] sm:$0xff]
        %v3664 = vld [vmem:[%s526 + $0xa70] sm:$0xff]
        %v3665 = vld [vmem:[%s526 + $0xa78] sm:$0xff]
        %v3666 = vld [vmem:[%s526 + $0xa80] sm:$0xff]
        %v3667 = vld [vmem:[%s526 + $0xa88] sm:$0xff]
        %v3668 = vld [vmem:[%s526 + $0xa90] sm:$0xff]
        %v3669 = vld [vmem:[%s526 + $0xa98] sm:$0xff]
        %v3670 = vld [vmem:[%s526 + $0xaa0] sm:$0xff]
        %v3671 = vld [vmem:[%s526 + $0xaa8] sm:$0xff]
        %v3672 = vld [vmem:[%s526 + $0xab0] sm:$0xff]
        %v3673 = vld [vmem:[%s526 + $0xab8] sm:$0xff]
        %v3674 = vld [vmem:[%s526 + $0xac0] sm:$0xff]
        %v3675 = vld [vmem:[%s526 + $0xac8] sm:$0xff]
        %v3676 = vld [vmem:[%s526 + $0xad0] sm:$0xff]
        %v3677 = vld [vmem:[%s526 + $0xad8] sm:$0xff]
        %v3678 = vld [vmem:[%s526 + $0xae0] sm:$0xff]
        %v3679 = vld [vmem:[%s526 + $0xae8] sm:$0xff]
        %v3680 = vld [vmem:[%s526 + $0xaf0] sm:$0xff]
        %v3681 = vld [vmem:[%s526 + $0xaf8] sm:$0xff]
        %v3682 = vld [vmem:[%s526 + $0xb00] sm:$0xff]
        %v3683 = vld [vmem:[%s526 + $0xb08] sm:$0xff]
        %v3684 = vld [vmem:[%s526 + $0xb10] sm:$0xff]
        %v3685 = vld [vmem:[%s526 + $0xb18] sm:$0xff]
        %v3686 = vld [vmem:[%s526 + $0xb20] sm:$0xff]
        %v3687 = vld [vmem:[%s526 + $0xb28] sm:$0xff]
        %v3688 = vld [vmem:[%s526 + $0xb30] sm:$0xff]
        %v3689 = vld [vmem:[%s526 + $0xb38] sm:$0xff]
        %v3690 = vld [vmem:[%s526 + $0xb40] sm:$0xff]
        %v3691 = vld [vmem:[%s526 + $0xb48] sm:$0xff]
        %v3692 = vld [vmem:[%s526 + $0xb50] sm:$0xff]
        %v3693 = vld [vmem:[%s526 + $0xb58] sm:$0xff]
        %v3694 = vld [vmem:[%s526 + $0xb60] sm:$0xff]
        %v3695 = vld [vmem:[%s526 + $0xb68] sm:$0xff]
        %v3696 = vld [vmem:[%s526 + $0xb70] sm:$0xff]
        %v3697 = vld [vmem:[%s526 + $0xb78] sm:$0xff]
        %v3698 = vld [vmem:[%s526 + $0xb80] sm:$0xff]
        %v3699 = vld [vmem:[%s526 + $0xb88] sm:$0xff]
        %v3700 = vld [vmem:[%s526 + $0xb90] sm:$0xff]
        %v3701 = vld [vmem:[%s526 + $0xb98] sm:$0xff]
        %v3702 = vld [vmem:[%s526 + $0xba0] sm:$0xff]
        %v3703 = vld [vmem:[%s526 + $0xba8] sm:$0xff]
        %v3704 = vld [vmem:[%s526 + $0xbb0] sm:$0xff]
        %v3705 = vld [vmem:[%s526 + $0xbb8] sm:$0xff]
        %v3706 = vld [vmem:[%s526 + $0xbc0] sm:$0xff]
        %v3707 = vld [vmem:[%s526 + $0xbc8] sm:$0xff]
        %v3708 = vld [vmem:[%s526 + $0xbd0] sm:$0xff]
        %v3709 = vld [vmem:[%s526 + $0xbd8] sm:$0xff]
        %v3710 = vld [vmem:[%s526 + $0xbe0] sm:$0xff]
        %v3711 = vld [vmem:[%s526 + $0xbe8] sm:$0xff]
        %v3712 = vld [vmem:[%s526 + $0xbf0] sm:$0xff]
        %v3713 = vld [vmem:[%s526 + $0xbf8] sm:$0xff]
        %v3714 = vld [vmem:[%s526 + $0xc00] sm:$0xff]
        %v3715 = vld [vmem:[%s526 + $0xc08] sm:$0xff]
        %v3716 = vld [vmem:[%s526 + $0xc10] sm:$0xff]
        %v3717 = vld [vmem:[%s526 + $0xc18] sm:$0xff]
        %v3718 = vld [vmem:[%s526 + $0xc20] sm:$0xff]
        %v3719 = vld [vmem:[%s526 + $0xc28] sm:$0xff]
        %v3720 = vld [vmem:[%s526 + $0xc30] sm:$0xff]
        %v3721 = vld [vmem:[%s526 + $0xc38] sm:$0xff]
        %v3722 = vld [vmem:[%s526 + $0xc40] sm:$0xff]
        %v3723 = vld [vmem:[%s526 + $0xc48] sm:$0xff]
        %v3724 = vld [vmem:[%s526 + $0xc50] sm:$0xff]
        %v3725 = vld [vmem:[%s526 + $0xc58] sm:$0xff]
        %v3726 = vld [vmem:[%s526 + $0xc60] sm:$0xff]
        %v3727 = vld [vmem:[%s526 + $0xc68] sm:$0xff]
        %v3728 = vld [vmem:[%s526 + $0xc70] sm:$0xff]
        %v3729 = vld [vmem:[%s526 + $0xc78] sm:$0xff]
        %v3730 = vld [vmem:[%s526 + $0xc80] sm:$0xff]
        %v3731 = vld [vmem:[%s526 + $0xc88] sm:$0xff]
        %v3732 = vld [vmem:[%s526 + $0xc90] sm:$0xff]
        %v3733 = vld [vmem:[%s526 + $0xc98] sm:$0xff]
        %v3734 = vld [vmem:[%s526 + $0xca0] sm:$0xff]
        %v3735 = vld [vmem:[%s526 + $0xca8] sm:$0xff]
        %v3736 = vld [vmem:[%s526 + $0xcb0] sm:$0xff]
        %v3737 = vld [vmem:[%s526 + $0xcb8] sm:$0xff]
        %v3738 = vld [vmem:[%s526 + $0xcc0] sm:$0xff]
        %v3739 = vld [vmem:[%s526 + $0xcc8] sm:$0xff]
        %v3740 = vld [vmem:[%s526 + $0xcd0] sm:$0xff]
        %v3741 = vld [vmem:[%s526 + $0xcd8] sm:$0xff]
        %v3742 = vld [vmem:[%s526 + $0xce0] sm:$0xff]
        %v3743 = vld [vmem:[%s526 + $0xce8] sm:$0xff]
        %v3744 = vld [vmem:[%s526 + $0xcf0] sm:$0xff]
        %v3745 = vld [vmem:[%s526 + $0xcf8] sm:$0xff]
        %v3746 = vld [vmem:[%s526 + $0xd00] sm:$0xff]
        %v3747 = vld [vmem:[%s526 + $0xd08] sm:$0xff]
        %v3748 = vld [vmem:[%s526 + $0xd10] sm:$0xff]
        %v3749 = vld [vmem:[%s526 + $0xd18] sm:$0xff]
        %v3750 = vld [vmem:[%s526 + $0xd20] sm:$0xff]
        %v3751 = vld [vmem:[%s526 + $0xd28] sm:$0xff]
        %v3752 = vld [vmem:[%s526 + $0xd30] sm:$0xff]
        %v3753 = vld [vmem:[%s526 + $0xd38] sm:$0xff]
        %v3754 = vld [vmem:[%s526 + $0xd40] sm:$0xff]
        %v3755 = vld [vmem:[%s526 + $0xd48] sm:$0xff]
        %v3756 = vld [vmem:[%s526 + $0xd50] sm:$0xff]
        %v3757 = vld [vmem:[%s526 + $0xd58] sm:$0xff]
        %v3758 = vld [vmem:[%s526 + $0xd60] sm:$0xff]
        %v3759 = vld [vmem:[%s526 + $0xd68] sm:$0xff]
        %v3760 = vld [vmem:[%s526 + $0xd70] sm:$0xff]
        %v3761 = vld [vmem:[%s526 + $0xd78] sm:$0xff]
        %v3762 = vld [vmem:[%s526 + $0xd80] sm:$0xff]
        %v3763 = vld [vmem:[%s526 + $0xd88] sm:$0xff]
        %v3764 = vld [vmem:[%s526 + $0xd90] sm:$0xff]
        %v3765 = vld [vmem:[%s526 + $0xd98] sm:$0xff]
        %v3766 = vld [vmem:[%s526 + $0xda0] sm:$0xff]
        %v3767 = vld [vmem:[%s526 + $0xda8] sm:$0xff]
        %v3768 = vld [vmem:[%s526 + $0xdb0] sm:$0xff]
        %v3769 = vld [vmem:[%s526 + $0xdb8] sm:$0xff]
        %v3770 = vld [vmem:[%s526 + $0xdc0] sm:$0xff]
        %v3771 = vld [vmem:[%s526 + $0xdc8] sm:$0xff]
        %v3772 = vld [vmem:[%s526 + $0xdd0] sm:$0xff]
        %v3773 = vld [vmem:[%s526 + $0xdd8] sm:$0xff]
        %v3774 = vld [vmem:[%s526 + $0xde0] sm:$0xff]
        %v3775 = vld [vmem:[%s526 + $0xde8] sm:$0xff]
        %v3776 = vld [vmem:[%s526 + $0xdf0] sm:$0xff]
        %v3777 = vld [vmem:[%s526 + $0xdf8] sm:$0xff]
        %v3778 = vld [vmem:[%s526 + $0xe00] sm:$0xff]
        %v3779 = vld [vmem:[%s526 + $0xe08] sm:$0xff]
        %v3780 = vld [vmem:[%s526 + $0xe10] sm:$0xff]
        %v3781 = vld [vmem:[%s526 + $0xe18] sm:$0xff]
        %v3782 = vld [vmem:[%s526 + $0xe20] sm:$0xff]
        %v3783 = vld [vmem:[%s526 + $0xe28] sm:$0xff]
        %v3784 = vld [vmem:[%s526 + $0xe30] sm:$0xff]
        %v3785 = vld [vmem:[%s526 + $0xe38] sm:$0xff]
        %v3786 = vld [vmem:[%s526 + $0xe40] sm:$0xff]
        %v3787 = vld [vmem:[%s526 + $0xe48] sm:$0xff]
        %v3788 = vld [vmem:[%s526 + $0xe50] sm:$0xff]
        %v3789 = vld [vmem:[%s526 + $0xe58] sm:$0xff]
        %v3790 = vld [vmem:[%s526 + $0xe60] sm:$0xff]
        %v3791 = vld [vmem:[%s526 + $0xe68] sm:$0xff]
        %v3792 = vld [vmem:[%s526 + $0xe70] sm:$0xff]
        %v3793 = vld [vmem:[%s526 + $0xe78] sm:$0xff]
        %v3794 = vld [vmem:[%s526 + $0xe80] sm:$0xff]
        %v3795 = vld [vmem:[%s526 + $0xe88] sm:$0xff]
        %v3796 = vld [vmem:[%s526 + $0xe90] sm:$0xff]
        %v3797 = vld [vmem:[%s526 + $0xe98] sm:$0xff]
        %v3798 = vld [vmem:[%s526 + $0xea0] sm:$0xff]
        %v3799 = vld [vmem:[%s526 + $0xea8] sm:$0xff]
        %v3800 = vld [vmem:[%s526 + $0xeb0] sm:$0xff]
        %v3801 = vld [vmem:[%s526 + $0xeb8] sm:$0xff]
        %v3802 = vld [vmem:[%s526 + $0xec0] sm:$0xff]
        %v3803 = vld [vmem:[%s526 + $0xec8] sm:$0xff]
        %v3804 = vld [vmem:[%s526 + $0xed0] sm:$0xff]
        %v3805 = vld [vmem:[%s526 + $0xed8] sm:$0xff]
        %v3806 = vld [vmem:[%s526 + $0xee0] sm:$0xff]
        %v3807 = vld [vmem:[%s526 + $0xee8] sm:$0xff]
        %v3808 = vld [vmem:[%s526 + $0xef0] sm:$0xff]
        %v3809 = vld [vmem:[%s526 + $0xef8] sm:$0xff]
        %v3810 = vld [vmem:[%s526 + $0xf00] sm:$0xff]
        %v3811 = vld [vmem:[%s526 + $0xf08] sm:$0xff]
        %v3812 = vld [vmem:[%s526 + $0xf10] sm:$0xff]
        %v3813 = vld [vmem:[%s526 + $0xf18] sm:$0xff]
        %v3814 = vld [vmem:[%s526 + $0xf20] sm:$0xff]
        %v3815 = vld [vmem:[%s526 + $0xf28] sm:$0xff]
        %v3816 = vld [vmem:[%s526 + $0xf30] sm:$0xff]
        %v3817 = vld [vmem:[%s526 + $0xf38] sm:$0xff]
        %v3818 = vld [vmem:[%s526 + $0xf40] sm:$0xff]
        %v3819 = vld [vmem:[%s526 + $0xf48] sm:$0xff]
        %v3820 = vld [vmem:[%s526 + $0xf50] sm:$0xff]
        %v3821 = vld [vmem:[%s526 + $0xf58] sm:$0xff]
        %v3822 = vld [vmem:[%s526 + $0xf60] sm:$0xff]
        %v3823 = vld [vmem:[%s526 + $0xf68] sm:$0xff]
        %v3824 = vld [vmem:[%s526 + $0xf70] sm:$0xff]
        %v3825 = vld [vmem:[%s526 + $0xf78] sm:$0xff]
        %v3826 = vld [vmem:[%s526 + $0xf80] sm:$0xff]
        %v3827 = vld [vmem:[%s526 + $0xf88] sm:$0xff]
        %v3828 = vld [vmem:[%s526 + $0xf90] sm:$0xff]
        %v3829 = vld [vmem:[%s526 + $0xf98] sm:$0xff]
        %v3830 = vld [vmem:[%s526 + $0xfa0] sm:$0xff]
        %v3831 = vld [vmem:[%s526 + $0xfa8] sm:$0xff]
        %v3832 = vld [vmem:[%s526 + $0xfb0] sm:$0xff]
        %v3833 = vld [vmem:[%s526 + $0xfb8] sm:$0xff]
        %v3834 = vld [vmem:[%s526 + $0xfc0] sm:$0xff]
        %v3835 = vld [vmem:[%s526 + $0xfc8] sm:$0xff]
        %v3836 = vld [vmem:[%s526 + $0xfd0] sm:$0xff]
        %v3837 = vld [vmem:[%s526 + $0xfd8] sm:$0xff]
        %v3838 = vld [vmem:[%s526 + $0xfe0] sm:$0xff]
        %v3839 = vld [vmem:[%s526 + $0xfe8] sm:$0xff]
        %v3840 = vld [vmem:[%s526 + $0xff0] sm:$0xff]
        %v3841 = vld [vmem:[%s526 + $0xff8] sm:$0xff]
        %v3842 = vld [vmem:[%s526 + $0x1000] sm:$0xff]
        %v3843 = vld [vmem:[%s526 + $0x1008] sm:$0xff]
        %v3844 = vld [vmem:[%s526 + $0x1010] sm:$0xff]
        %v3845 = vld [vmem:[%s526 + $0x1018] sm:$0xff]
        %v3846 = vld [vmem:[%s526 + $0x1020] sm:$0xff]
        %v3847 = vld [vmem:[%s526 + $0x1028] sm:$0xff]
        %v3848 = vld [vmem:[%s526 + $0x1030] sm:$0xff]
        %v3849 = vld [vmem:[%s526 + $0x1038] sm:$0xff]
        %v3850 = vld [vmem:[%s526 + $0x1040] sm:$0xff]
        %v3851 = vld [vmem:[%s526 + $0x1048] sm:$0xff]
        %v3852 = vld [vmem:[%s526 + $0x1050] sm:$0xff]
        %v3853 = vld [vmem:[%s526 + $0x1058] sm:$0xff]
        %v3854 = vld [vmem:[%s526 + $0x1060] sm:$0xff]
        %v3855 = vld [vmem:[%s526 + $0x1068] sm:$0xff]
        %v3856 = vld [vmem:[%s526 + $0x1070] sm:$0xff]
        %v3857 = vld [vmem:[%s526 + $0x1078] sm:$0xff]
        %v3858 = vld [vmem:[%s526 + $0x1080] sm:$0xff]
        %v3859 = vld [vmem:[%s526 + $0x1088] sm:$0xff]
        %v3860 = vld [vmem:[%s526 + $0x1090] sm:$0xff]
        %v3861 = vld [vmem:[%s526 + $0x1098] sm:$0xff]
        %v3862 = vld [vmem:[%s526 + $0x10a0] sm:$0xff]
        %v3863 = vld [vmem:[%s526 + $0x10a8] sm:$0xff]
        %v3864 = vld [vmem:[%s526 + $0x10b0] sm:$0xff]
        %v3865 = vld [vmem:[%s526 + $0x10b8] sm:$0xff]
        %v3866 = vld [vmem:[%s526 + $0x10c0] sm:$0xff]
        %v3867 = vld [vmem:[%s526 + $0x10c8] sm:$0xff]
        %v3868 = vld [vmem:[%s526 + $0x10d0] sm:$0xff]
        %v3869 = vld [vmem:[%s526 + $0x10d8] sm:$0xff]
        %v3870 = vld [vmem:[%s526 + $0x10e0] sm:$0xff]
        %v3871 = vld [vmem:[%s526 + $0x10e8] sm:$0xff]
        %v3872 = vld [vmem:[%s526 + $0x10f0] sm:$0xff]
        %v3873 = vld [vmem:[%s526 + $0x10f8] sm:$0xff]
        %v3874 = vld [vmem:[%s526 + $0x1100] sm:$0xff]
        %v3875 = vld [vmem:[%s526 + $0x1108] sm:$0xff]
        %v3876 = vld [vmem:[%s526 + $0x1110] sm:$0xff]
        %v3877 = vld [vmem:[%s526 + $0x1118] sm:$0xff]
        %v3878 = vld [vmem:[%s526 + $0x1120] sm:$0xff]
        %v3879 = vld [vmem:[%s526 + $0x1128] sm:$0xff]
        %v3880 = vld [vmem:[%s526 + $0x1130] sm:$0xff]
        %v3881 = vld [vmem:[%s526 + $0x1138] sm:$0xff]
        %v3882 = vld [vmem:[%s526 + $0x1140] sm:$0xff]
        %v3883 = vld [vmem:[%s526 + $0x1148] sm:$0xff]
        %v3884 = vld [vmem:[%s526 + $0x1150] sm:$0xff]
        %v3885 = vld [vmem:[%s526 + $0x1158] sm:$0xff]
        %v3886 = vld [vmem:[%s526 + $0x1160] sm:$0xff]
        %v3887 = vld [vmem:[%s526 + $0x1168] sm:$0xff]
        %v3888 = vld [vmem:[%s526 + $0x1170] sm:$0xff]
        %v3889 = vld [vmem:[%s526 + $0x1178] sm:$0xff]
        %v3890 = vld [vmem:[%s526 + $0x1180] sm:$0xff]
        %v3891 = vld [vmem:[%s526 + $0x1188] sm:$0xff]
        %v3892 = vld [vmem:[%s526 + $0x1190] sm:$0xff]
        %v3893 = vld [vmem:[%s526 + $0x1198] sm:$0xff]
        %v3894 = vld [vmem:[%s526 + $0x11a0] sm:$0xff]
        %v3895 = vld [vmem:[%s526 + $0x11a8] sm:$0xff]
        %v3896 = vld [vmem:[%s526 + $0x11b0] sm:$0xff]
        %v3897 = vld [vmem:[%s526 + $0x11b8] sm:$0xff]
        %v3898 = vld [vmem:[%s526 + $0x11c0] sm:$0xff]
        %v3899 = vld [vmem:[%s526 + $0x11c8] sm:$0xff]
        %v3900 = vld [vmem:[%s526 + $0x11d0] sm:$0xff]
        %v3901 = vld [vmem:[%s526 + $0x11d8] sm:$0xff]
        %v3902 = vld [vmem:[%s526 + $0x11e0] sm:$0xff]
        %v3903 = vld [vmem:[%s526 + $0x11e8] sm:$0xff]
        %v3904 = vld [vmem:[%s526 + $0x11f0] sm:$0xff]
        %v3905 = vld [vmem:[%s526 + $0x11f8] sm:$0xff]
        %v3906 = vld [vmem:[%s526 + $0x1200] sm:$0xff]
        %v3907 = vld [vmem:[%s526 + $0x1208] sm:$0xff]
        %v3908 = vld [vmem:[%s526 + $0x1210] sm:$0xff]
        %v3909 = vld [vmem:[%s526 + $0x1218] sm:$0xff]
        %v3910 = vld [vmem:[%s526 + $0x1220] sm:$0xff]
        %v3911 = vld [vmem:[%s526 + $0x1228] sm:$0xff]
        %v3912 = vld [vmem:[%s526 + $0x1230] sm:$0xff]
        %v3913 = vld [vmem:[%s526 + $0x1238] sm:$0xff]
        %v3914 = vld [vmem:[%s526 + $0x1240] sm:$0xff]
        %v3915 = vld [vmem:[%s526 + $0x1248] sm:$0xff]
        %v3916 = vld [vmem:[%s526 + $0x1250] sm:$0xff]
        %v3917 = vld [vmem:[%s526 + $0x1258] sm:$0xff]
        %v3918 = vld [vmem:[%s526 + $0x1260] sm:$0xff]
        %v3919 = vld [vmem:[%s526 + $0x1268] sm:$0xff]
        %v3920 = vld [vmem:[%s526 + $0x1270] sm:$0xff]
        %v3921 = vld [vmem:[%s526 + $0x1278] sm:$0xff]
        %v3922 = vld [vmem:[%s526 + $0x1280] sm:$0xff]
        %v3923 = vld [vmem:[%s526 + $0x1288] sm:$0xff]
        %v3924 = vld [vmem:[%s526 + $0x1290] sm:$0xff]
        %v3925 = vld [vmem:[%s526 + $0x1298] sm:$0xff]
        %v3926 = vld [vmem:[%s526 + $0x12a0] sm:$0xff]
        %v3927 = vld [vmem:[%s526 + $0x12a8] sm:$0xff]
        %v3928 = vld [vmem:[%s526 + $0x12b0] sm:$0xff]
        %v3929 = vld [vmem:[%s526 + $0x12b8] sm:$0xff]
        %v3930 = vld [vmem:[%s526 + $0x12c0] sm:$0xff]
        %v3931 = vld [vmem:[%s526 + $0x12c8] sm:$0xff]
        %v3932 = vld [vmem:[%s526 + $0x12d0] sm:$0xff]
        %v3933 = vld [vmem:[%s526 + $0x12d8] sm:$0xff]
        %v3934 = vld [vmem:[%s526 + $0x12e0] sm:$0xff]
        %v3935 = vld [vmem:[%s526 + $0x12e8] sm:$0xff]
        %v3936 = vld [vmem:[%s526 + $0x12f0] sm:$0xff]
        %v3937 = vld [vmem:[%s526 + $0x12f8] sm:$0xff]
        %v3938 = vld [vmem:[%s526 + $0x1300] sm:$0xff]
        %v3939 = vld [vmem:[%s526 + $0x1308] sm:$0xff]
        %v3940 = vld [vmem:[%s526 + $0x1310] sm:$0xff]
        %v3941 = vld [vmem:[%s526 + $0x1318] sm:$0xff]
        %v3942 = vld [vmem:[%s526 + $0x1320] sm:$0xff]
        %v3943 = vld [vmem:[%s526 + $0x1328] sm:$0xff]
        %v3944 = vld [vmem:[%s526 + $0x1330] sm:$0xff]
        %v3945 = vld [vmem:[%s526 + $0x1338] sm:$0xff]
        %v3946 = vld [vmem:[%s526 + $0x1340] sm:$0xff]
        %v3947 = vld [vmem:[%s526 + $0x1348] sm:$0xff]
        %v3948 = vld [vmem:[%s526 + $0x1350] sm:$0xff]
        %v3949 = vld [vmem:[%s526 + $0x1358] sm:$0xff]
        %v3950 = vld [vmem:[%s526 + $0x1360] sm:$0xff]
        %v3951 = vld [vmem:[%s526 + $0x1368] sm:$0xff]
        %v3952 = vld [vmem:[%s526 + $0x1370] sm:$0xff]
        %v3953 = vld [vmem:[%s526 + $0x1378] sm:$0xff]
        %v3954 = vld [vmem:[%s526 + $0x1380] sm:$0xff]
        %v3955 = vld [vmem:[%s526 + $0x1388] sm:$0xff]
        %v3956 = vld [vmem:[%s526 + $0x1390] sm:$0xff]
        %v3957 = vld [vmem:[%s526 + $0x1398] sm:$0xff]
        %v3958 = vld [vmem:[%s526 + $0x13a0] sm:$0xff]
        %v3959 = vld [vmem:[%s526 + $0x13a8] sm:$0xff]
        %v3960 = vld [vmem:[%s526 + $0x13b0] sm:$0xff]
        %v3961 = vld [vmem:[%s526 + $0x13b8] sm:$0xff]
        %v3962 = vld [vmem:[%s526 + $0x13c0] sm:$0xff]
        %v3963 = vld [vmem:[%s526 + $0x13c8] sm:$0xff]
        %v3964 = vld [vmem:[%s526 + $0x13d0] sm:$0xff]
        %v3965 = vld [vmem:[%s526 + $0x13d8] sm:$0xff]
        %v3966 = vld [vmem:[%s526 + $0x13e0] sm:$0xff]
        %v3967 = vld [vmem:[%s526 + $0x13e8] sm:$0xff]
        %v3968 = vld [vmem:[%s526 + $0x13f0] sm:$0xff]
        %v3969 = vld [vmem:[%s526 + $0x13f8] sm:$0xff]
        %v3970 = vld [vmem:[%s526 + $0x1400] sm:$0xff]
        %v3971 = vld [vmem:[%s526 + $0x1408] sm:$0xff]
        %v3972 = vld [vmem:[%s526 + $0x1410] sm:$0xff]
        %v3973 = vld [vmem:[%s526 + $0x1418] sm:$0xff]
        %v3974 = vld [vmem:[%s526 + $0x1420] sm:$0xff]
        %v3975 = vld [vmem:[%s526 + $0x1428] sm:$0xff]
        %v3976 = vld [vmem:[%s526 + $0x1430] sm:$0xff]
        %v3977 = vld [vmem:[%s526 + $0x1438] sm:$0xff]
        %v3978 = vld [vmem:[%s526 + $0x1440] sm:$0xff]
        %v3979 = vld [vmem:[%s526 + $0x1448] sm:$0xff]
        %v3980 = vld [vmem:[%s526 + $0x1450] sm:$0xff]
        %v3981 = vld [vmem:[%s526 + $0x1458] sm:$0xff]
        %v3982 = vld [vmem:[%s526 + $0x1460] sm:$0xff]
        %v3983 = vld [vmem:[%s526 + $0x1468] sm:$0xff]
        %v3984 = vld [vmem:[%s526 + $0x1470] sm:$0xff]
        %v3985 = vld [vmem:[%s526 + $0x1478] sm:$0xff]
        %v3986 = vld [vmem:[%s526 + $0x1480] sm:$0xff]
        %v3987 = vld [vmem:[%s526 + $0x1488] sm:$0xff]
        %v3988 = vld [vmem:[%s526 + $0x1490] sm:$0xff]
        %v3989 = vld [vmem:[%s526 + $0x1498] sm:$0xff]
        %v3990 = vld [vmem:[%s526 + $0x14a0] sm:$0xff]
        %v3991 = vld [vmem:[%s526 + $0x14a8] sm:$0xff]
        %v3992 = vld [vmem:[%s526 + $0x14b0] sm:$0xff]
        %v3993 = vld [vmem:[%s526 + $0x14b8] sm:$0xff]
        %v3994 = vld [vmem:[%s526 + $0x14c0] sm:$0xff]
        %v3995 = vld [vmem:[%s526 + $0x14c8] sm:$0xff]
        %v3996 = vld [vmem:[%s526 + $0x14d0] sm:$0xff]
        %v3997 = vld [vmem:[%s526 + $0x14d8] sm:$0xff]
        %v3998 = vld [vmem:[%s526 + $0x14e0] sm:$0xff]
        %v3999 = vld [vmem:[%s526 + $0x14e8] sm:$0xff]
        %v4000 = vld [vmem:[%s526 + $0x14f0] sm:$0xff]
        %v4001 = vld [vmem:[%s526 + $0x14f8] sm:$0xff]
        %v4002 = vld [vmem:[%s526 + $0x1500] sm:$0xff]
        %v4003 = vld [vmem:[%s526 + $0x1508] sm:$0xff]
        %v4004 = vld [vmem:[%s526 + $0x1510] sm:$0xff]
        %v4005 = vld [vmem:[%s526 + $0x1518] sm:$0xff]
        %v4006 = vld [vmem:[%s526 + $0x1520] sm:$0xff]
        %v4007 = vld [vmem:[%s526 + $0x1528] sm:$0xff]
        %v4008 = vld [vmem:[%s526 + $0x1530] sm:$0xff]
        %v4009 = vld [vmem:[%s526 + $0x1538] sm:$0xff]
        %v4010 = vld [vmem:[%s526 + $0x1540] sm:$0xff]
        %v4011 = vld [vmem:[%s526 + $0x1548] sm:$0xff]
        %v4012 = vld [vmem:[%s526 + $0x1550] sm:$0xff]
        %v4013 = vld [vmem:[%s526 + $0x1558] sm:$0xff]
        %v4014 = vld [vmem:[%s526 + $0x1560] sm:$0xff]
        %v4015 = vld [vmem:[%s526 + $0x1568] sm:$0xff]
        %v4016 = vld [vmem:[%s526 + $0x1570] sm:$0xff]
        %v4017 = vld [vmem:[%s526 + $0x1578] sm:$0xff]
        %v4018 = vld [vmem:[%s526 + $0x1580] sm:$0xff]
        %v4019 = vld [vmem:[%s526 + $0x1588] sm:$0xff]
        %v4020 = vld [vmem:[%s526 + $0x1590] sm:$0xff]
        %v4021 = vld [vmem:[%s526 + $0x1598] sm:$0xff]
        %v4022 = vld [vmem:[%s526 + $0x15a0] sm:$0xff]
        %v4023 = vld [vmem:[%s526 + $0x15a8] sm:$0xff]
        %v4024 = vld [vmem:[%s526 + $0x15b0] sm:$0xff]
        %v4025 = vld [vmem:[%s526 + $0x15b8] sm:$0xff]
        %v4026 = vld [vmem:[%s526 + $0x15c0] sm:$0xff]
        %v4027 = vld [vmem:[%s526 + $0x15c8] sm:$0xff]
        %v4028 = vld [vmem:[%s526 + $0x15d0] sm:$0xff]
        %v4029 = vld [vmem:[%s526 + $0x15d8] sm:$0xff]
        %v4030 = vld [vmem:[%s526 + $0x15e0] sm:$0xff]
        %v4031 = vld [vmem:[%s526 + $0x15e8] sm:$0xff]
        %v4032 = vld [vmem:[%s526 + $0x15f0] sm:$0xff]
        %v4033 = vld [vmem:[%s526 + $0x15f8] sm:$0xff]
        %v4034 = vld [vmem:[%s526 + $0x1600] sm:$0xff]
        %v4035 = vld [vmem:[%s526 + $0x1608] sm:$0xff]
        %v4036 = vld [vmem:[%s526 + $0x1610] sm:$0xff]
        %v4037 = vld [vmem:[%s526 + $0x1618] sm:$0xff]
        %v4038 = vld [vmem:[%s526 + $0x1620] sm:$0xff]
        %v4039 = vld [vmem:[%s526 + $0x1628] sm:$0xff]
        %v4040 = vld [vmem:[%s526 + $0x1630] sm:$0xff]
        %v4041 = vld [vmem:[%s526 + $0x1638] sm:$0xff]
        %v4042 = vld [vmem:[%s526 + $0x1640] sm:$0xff]
        %v4043 = vld [vmem:[%s526 + $0x1648] sm:$0xff]
        %v4044 = vld [vmem:[%s526 + $0x1650] sm:$0xff]
        %v4045 = vld [vmem:[%s526 + $0x1658] sm:$0xff]
        %v4046 = vld [vmem:[%s526 + $0x1660] sm:$0xff]
        %v4047 = vld [vmem:[%s526 + $0x1668] sm:$0xff]
        %v4048 = vld [vmem:[%s526 + $0x1670] sm:$0xff]
        %v4049 = vld [vmem:[%s526 + $0x1678] sm:$0xff]
        %v4050 = vld [vmem:[%s526 + $0x1680] sm:$0xff]
        %v4051 = vld [vmem:[%s526 + $0x1688] sm:$0xff]
        %v4052 = vld [vmem:[%s526 + $0x1690] sm:$0xff]
        %v4053 = vld [vmem:[%s526 + $0x1698] sm:$0xff]
        %v4054 = vld [vmem:[%s526 + $0x16a0] sm:$0xff]
        %v4055 = vld [vmem:[%s526 + $0x16a8] sm:$0xff]
        %v4056 = vld [vmem:[%s526 + $0x16b0] sm:$0xff]
        %v4057 = vld [vmem:[%s526 + $0x16b8] sm:$0xff]
        %v4058 = vld [vmem:[%s526 + $0x16c0] sm:$0xff]
        %v4059 = vld [vmem:[%s526 + $0x16c8] sm:$0xff]
        %v4060 = vld [vmem:[%s526 + $0x16d0] sm:$0xff]
        %v4061 = vld [vmem:[%s526 + $0x16d8] sm:$0xff]
        %v4062 = vld [vmem:[%s526 + $0x16e0] sm:$0xff]
        %v4063 = vld [vmem:[%s526 + $0x16e8] sm:$0xff]
        %v4064 = vld [vmem:[%s526 + $0x16f0] sm:$0xff]
        %v4065 = vld [vmem:[%s526 + $0x16f8] sm:$0xff]
        %v4066 = vld [vmem:[%s526 + $0x1700] sm:$0xff]
        %v4067 = vld [vmem:[%s526 + $0x1708] sm:$0xff]
        %v4068 = vld [vmem:[%s526 + $0x1710] sm:$0xff]
        %v4069 = vld [vmem:[%s526 + $0x1718] sm:$0xff]
        %v4070 = vld [vmem:[%s526 + $0x1720] sm:$0xff]
        %v4071 = vld [vmem:[%s526 + $0x1728] sm:$0xff]
        %v4072 = vld [vmem:[%s526 + $0x1730] sm:$0xff]
        %v4073 = vld [vmem:[%s526 + $0x1738] sm:$0xff]
        %v4074 = vld [vmem:[%s526 + $0x1740] sm:$0xff]
        %v4075 = vld [vmem:[%s526 + $0x1748] sm:$0xff]
        %v4076 = vld [vmem:[%s526 + $0x1750] sm:$0xff]
        %v4077 = vld [vmem:[%s526 + $0x1758] sm:$0xff]
        %v4078 = vld [vmem:[%s526 + $0x1760] sm:$0xff]
        %v4079 = vld [vmem:[%s526 + $0x1768] sm:$0xff]
        %v4080 = vld [vmem:[%s526 + $0x1770] sm:$0xff]
        %v4081 = vld [vmem:[%s526 + $0x1778] sm:$0xff]
        %v4082 = vld [vmem:[%s526 + $0x1780] sm:$0xff]
        %v4083 = vld [vmem:[%s526 + $0x1788] sm:$0xff]
        %v4084 = vld [vmem:[%s526 + $0x1790] sm:$0xff]
        %v4085 = vld [vmem:[%s526 + $0x1798] sm:$0xff]
        %v4086 = vld [vmem:[%s526 + $0x17a0] sm:$0xff]
        %v4087 = vld [vmem:[%s526 + $0x17a8] sm:$0xff]
        %v4088 = vld [vmem:[%s526 + $0x17b0] sm:$0xff]
        %v4089 = vld [vmem:[%s526 + $0x17b8] sm:$0xff]
        %v4090 = vld [vmem:[%s526 + $0x17c0] sm:$0xff]
        %v4091 = vld [vmem:[%s526 + $0x17c8] sm:$0xff]
        %v4092 = vld [vmem:[%s526 + $0x17d0] sm:$0xff]
        %v4093 = vld [vmem:[%s526 + $0x17d8] sm:$0xff]
        %v4094 = vld [vmem:[%s526 + $0x17e0] sm:$0xff]
        %v4095 = vld [vmem:[%s526 + $0x17e8] sm:$0xff]
        %v4096 = vld [vmem:[%s526 + $0x17f0] sm:$0xff]
        %v4097 = vld [vmem:[%s526 + $0x17f8] sm:$0xff]
        %v4098 = vld [vmem:[%s649] sm:$0xff]
        %v4099 = vld [vmem:[%s649 + $0x8] sm:$0xff]
        %v4102 = vlaneseq
        %v4103 = vshrl.u32 %v4102, 7
        %v4104 = vsub.s32 0, %v4103
        %v4105 = vrot.slane %v4098, %v4104
        %v4106 = vlaneseq
        %v4107 = vshrl.u32 %v4106, 7
        %v4108 = vsub.s32 1, %v4107
        %v4109 = vrot.slane %v4098, %v4108
        %v4110 = vlaneseq
        %v4111 = vshrl.u32 %v4110, 7
        %v4112 = vsub.s32 2, %v4111
        %v4113 = vrot.slane %v4098, %v4112
        %v4114 = vlaneseq
        %v4115 = vshrl.u32 %v4114, 7
        %v4116 = vsub.s32 3, %v4115
        %v4117 = vrot.slane %v4098, %v4116
        %v4118 = vlaneseq
        %v4119 = vshrl.u32 %v4118, 7
        %v4120 = vsub.s32 4, %v4119
        %v4121 = vrot.slane %v4098, %v4120
        %v4122 = vlaneseq
        %v4123 = vshrl.u32 %v4122, 7
        %v4124 = vsub.s32 5, %v4123
        %v4125 = vrot.slane %v4098, %v4124
        %v4126 = vlaneseq
        %v4127 = vshrl.u32 %v4126, 7
        %v4128 = vsub.s32 6, %v4127
        %v4129 = vrot.slane %v4098, %v4128
        %v4130 = vlaneseq
        %v4131 = vshrl.u32 %v4130, 7
        %v4132 = vsub.s32 7, %v4131
        %v4133 = vrot.slane %v4098, %v4132
        %v4134 = vlaneseq
        %v4135 = vshrl.u32 %v4134, 7
        %v4136 = vsub.s32 0, %v4135
        %v4137 = vrot.slane %v4099, %v4136
        %v4138 = vlaneseq
        %v4139 = vshrl.u32 %v4138, 7
        %v4140 = vsub.s32 1, %v4139
        %v4141 = vrot.slane %v4099, %v4140
        %v4142 = vlaneseq
        %v4143 = vshrl.u32 %v4142, 7
        %v4144 = vsub.s32 2, %v4143
        %v4145 = vrot.slane %v4099, %v4144
        %v4146 = vlaneseq
        %v4147 = vshrl.u32 %v4146, 7
        %v4148 = vsub.s32 3, %v4147
        %v4149 = vrot.slane %v4099, %v4148
        %v4150 = vlaneseq
        %v4151 = vshrl.u32 %v4150, 7
        %v4152 = vsub.s32 4, %v4151
        %v4153 = vrot.slane %v4099, %v4152
        %v4154 = vlaneseq
        %v4155 = vshrl.u32 %v4154, 7
        %v4156 = vsub.s32 5, %v4155
        %v4157 = vrot.slane %v4099, %v4156
        %v4158 = vlaneseq
        %v4159 = vshrl.u32 %v4158, 7
        %v4160 = vsub.s32 6, %v4159
        %v4161 = vrot.slane %v4099, %v4160
        %v4162 = vlaneseq
        %v4163 = vshrl.u32 %v4162, 7
        %v4164 = vsub.s32 7, %v4163
        %v4165 = vrot.slane %v4099, %v4164
        %4182 = vmatprep.subr.mxu0 %v3331
        %4183 = vmatpush1.msra.mxu0 %v3330
        %4184 = vmatprep.subr.mxu0 %v3347
        %4185 = vmatpush1.msra.mxu0 %v3346
        %4186 = vmatprep.subr.mxu0 %v3363
        %4187 = vmatpush1.msra.mxu0 %v3362
        %4188 = vmatprep.subr.mxu0 %v3379
        %4189 = vmatpush1.msra.mxu0 %v3378
        %4190 = vmatprep.subr.mxu0 %v3395
        %4191 = vmatpush1.msra.mxu0 %v3394
        %4192 = vmatprep.subr.mxu0 %v3411
        %4193 = vmatpush1.msra.mxu0 %v3410
        %4194 = vmatprep.subr.mxu0 %v3427
        %4195 = vmatpush1.msra.mxu0 %v3426
        %4196 = vmatprep.subr.mxu0 %v3443
        %4197 = vmatpush1.msra.mxu0 %v3442
        %4198 = vmatprep.subr.mxu0 %v3459
        %4199 = vmatpush1.msra.mxu0 %v3458
        %4200 = vmatprep.subr.mxu0 %v3475
        %4201 = vmatpush1.msra.mxu0 %v3474
        %4202 = vmatprep.subr.mxu0 %v3491
        %4203 = vmatpush1.msra.mxu0 %v3490
        %4204 = vmatprep.subr.mxu0 %v3507
        %4205 = vmatpush1.msra.mxu0 %v3506
        %4206 = vmatprep.subr.mxu0 %v3523
        %4207 = vmatpush1.msra.mxu0 %v3522
        %4208 = vmatprep.subr.mxu0 %v3539
        %4209 = vmatpush1.msra.mxu0 %v3538
        %4210 = vmatprep.subr.mxu0 %v3555
        %4211 = vmatpush1.msra.mxu0 %v3554
        %4212 = vmatprep.subr.mxu0 %v3571
        %4213 = vmatpush1.msra.mxu0 %v3570
        %4214 = vmatprep.subr.mxu0 %v3587
        %4215 = vmatpush1.msra.mxu0 %v3586
        %4216 = vmatprep.subr.mxu0 %v3603
        %4217 = vmatpush1.msra.mxu0 %v3602
        %4218 = vmatprep.subr.mxu0 %v3619
        %4219 = vmatpush1.msra.mxu0 %v3618
        %4220 = vmatprep.subr.mxu0 %v3635
        %4221 = vmatpush1.msra.mxu0 %v3634
        %4222 = vmatprep.subr.mxu0 %v3651
        %4223 = vmatpush1.msra.mxu0 %v3650
        %4224 = vmatprep.subr.mxu0 %v3667
        %4225 = vmatpush1.msra.mxu0 %v3666
        %4226 = vmatprep.subr.mxu0 %v3683
        %4227 = vmatpush1.msra.mxu0 %v3682
        %4228 = vmatprep.subr.mxu0 %v3699
        %4229 = vmatpush1.msra.mxu0 %v3698
        %4230 = vmatprep.subr.mxu0 %v3715
        %4231 = vmatpush1.msra.mxu0 %v3714
        %4232 = vmatprep.subr.mxu0 %v3731
        %4233 = vmatpush1.msra.mxu0 %v3730
        %4234 = vmatprep.subr.mxu0 %v3747
        %4235 = vmatpush1.msra.mxu0 %v3746
        %4236 = vmatprep.subr.mxu0 %v3763
        %4237 = vmatpush1.msra.mxu0 %v3762
        %4238 = vmatprep.subr.mxu0 %v3779
        %4239 = vmatpush1.msra.mxu0 %v3778
        %4240 = vmatprep.subr.mxu0 %v3795
        %4241 = vmatpush1.msra.mxu0 %v3794
        %4242 = vmatprep.subr.mxu0 %v3811
        %4243 = vmatpush1.msra.mxu0 %v3810
        %4244 = vmatprep.subr.mxu0 %v3827
        %4245 = vmatpush1.msra.mxu0 %v3826
        %4246 = vmatprep.mubr.f32.mxu0 %v3325
        %4247 = vmatmul.mubr.f32.gmra.mrb[0].mxu0 %v3324
        %v4248 = vpop.f32.mrb[0].mxu0
        %v4249 = vadd.f32 %v4105, %v4248
        %v4250 = vpop.f32.mrb[0].mxu0
        %v4251 = vadd.f32 %v4109, %v4250
        %4252 = vmatprep.mubr.f32.mxu0 %v3328
        %4253 = vmatmul.mubr.f32.gmra.mrb[0].mxu0 %v3327
        %v4254 = vpop.f32.mrb[0].mxu0
        %v4255 = vadd.f32 %v4105, %v4254
        %v4256 = vpop.f32.mrb[0].mxu0
        %v4257 = vadd.f32 %v4109, %v4256
        %4258 = vdwg.mxu0
        %4259 = vmatprep.subr.mxu0 %v3843
        %4260 = vmatpush1.msra.mxu0 %v3842
        %4261 = vmatprep.subr.mxu0 %v3859
        %4262 = vmatpush1.msra.mxu0 %v3858
        %4263 = vmatprep.subr.mxu0 %v3875
        %4264 = vmatpush1.msra.mxu0 %v3874
        %4265 = vmatprep.subr.mxu0 %v3891
        %4266 = vmatpush1.msra.mxu0 %v3890
        %4267 = vmatprep.subr.mxu0 %v3907
        %4268 = vmatpush1.msra.mxu0 %v3906
        %4269 = vmatprep.subr.mxu0 %v3923
        %4270 = vmatpush1.msra.mxu0 %v3922
        %4271 = vmatprep.subr.mxu0 %v3939
        %4272 = vmatpush1.msra.mxu0 %v3938
        %4273 = vmatprep.subr.mxu0 %v3955
        %4274 = vmatpush1.msra.mxu0 %v3954
        %4275 = vmatprep.subr.mxu0 %v3971
        %4276 = vmatpush1.msra.mxu0 %v3970
        %4277 = vmatprep.subr.mxu0 %v3987
        %4278 = vmatpush1.msra.mxu0 %v3986
        %4279 = vmatprep.subr.mxu0 %v4003
        %4280 = vmatpush1.msra.mxu0 %v4002
        %4281 = vmatprep.subr.mxu0 %v4019
        %4282 = vmatpush1.msra.mxu0 %v4018
        %4283 = vmatprep.subr.mxu0 %v4035
        %4284 = vmatpush1.msra.mxu0 %v4034
        %4285 = vmatprep.subr.mxu0 %v4051
        %4286 = vmatpush1.msra.mxu0 %v4050
        %4287 = vmatprep.subr.mxu0 %v4067
        %4288 = vmatpush1.msra.mxu0 %v4066
        %4289 = vmatprep.subr.mxu0 %v4083
        %4290 = vmatpush1.msra.mxu0 %v4082
        %4291 = vmatprep.subr.mxu0 0.0
        %4292 = vmatpush1.msra.mxu0 0.0
        %4293 = vmatprep.subr.mxu0 0.0
        %4294 = vmatpush1.msra.mxu0 0.0
        %4295 = vmatprep.subr.mxu0 0.0
        %4296 = vmatpush1.msra.mxu0 0.0
        %4297 = vmatprep.subr.mxu0 0.0
        %4298 = vmatpush1.msra.mxu0 0.0
        %4299 = vmatprep.subr.mxu0 0.0
        %4300 = vmatpush1.msra.mxu0 0.0
        %4301 = vmatprep.subr.mxu0 0.0
        %4302 = vmatpush1.msra.mxu0 0.0
        %4303 = vmatprep.subr.mxu0 0.0
        %4304 = vmatpush1.msra.mxu0 0.0
        %4305 = vmatprep.subr.mxu0 0.0
        %4306 = vmatpush1.msra.mxu0 0.0
        %4307 = vmatprep.subr.mxu0 0.0
        %4308 = vmatpush1.msra.mxu0 0.0
        %4309 = vmatprep.subr.mxu0 0.0
        %4310 = vmatpush1.msra.mxu0 0.0
        %4311 = vmatprep.subr.mxu0 0.0
        %4312 = vmatpush1.msra.mxu0 0.0
        %4313 = vmatprep.subr.mxu0 0.0
        %4314 = vmatpush1.msra.mxu0 0.0
        %4315 = vmatprep.subr.mxu0 0.0
        %4316 = vmatpush1.msra.mxu0 0.0
        %4317 = vmatprep.subr.mxu0 0.0
        %4318 = vmatpush1.msra.mxu0 0.0
        %4319 = vmatprep.subr.mxu0 0.0
        %4320 = vmatpush1.msra.mxu0 0.0
        %4321 = vmatprep.subr.mxu0 0.0
        %4322 = vmatpush1.msra.mxu0 0.0
        %4323 = vmatprep.mubr.f32.mxu0 0.0
        %4324 = vmatmul.mubr.f32.gmra.mrb[0].mxu0 %v3326
        %v4325 = vpop.f32.mrb[0].mxu0
        %v4326 = vadd.f32 %v4249, %v4325
        %v4327 = vpop.f32.mrb[0].mxu0
        %v4328 = vadd.f32 %v4251, %v4327
        %4329 = vmatprep.mubr.f32.mxu0 0.0
        %4330 = vmatmul.mubr.f32.gmra.mrb[0].mxu0 %v3329
        %v4331 = vpop.f32.mrb[0].mxu0
        %v4332 = vadd.f32 %v4255, %v4331
        %v4333 = vpop.f32.mrb[0].mxu0
        %v4334 = vadd.f32 %v4257, %v4333
        %4335 = vdwg.mxu0
        %4336 = vmatprep.subr.mxu0 %v3333
        %4337 = vmatpush1.msra.mxu0 %v3332
        %4338 = vmatprep.subr.mxu0 %v3349
        %4339 = vmatpush1.msra.mxu0 %v3348
        %4340 = vmatprep.subr.mxu0 %v3365
        %4341 = vmatpush1.msra.mxu0 %v3364
        %4342 = vmatprep.subr.mxu0 %v3381
        %4343 = vmatpush1.msra.mxu0 %v3380
        %4344 = vmatprep.subr.mxu0 %v3397
        %4345 = vmatpush1.msra.mxu0 %v3396
        %4346 = vmatprep.subr.mxu0 %v3413
        %4347 = vmatpush1.msra.mxu0 %v3412
        %4348 = vmatprep.subr.mxu0 %v3429
        %4349 = vmatpush1.msra.mxu0 %v3428
        %4350 = vmatprep.subr.mxu0 %v3445
        %4351 = vmatpush1.msra.mxu0 %v3444
        %4352 = vmatprep.subr.mxu0 %v3461
        %4353 = vmatpush1.msra.mxu0 %v3460
        %4354 = vmatprep.subr.mxu0 %v3477
        %4355 = vmatpush1.msra.mxu0 %v3476
        %4356 = vmatprep.subr.mxu0 %v3493
        %4357 = vmatpush1.msra.mxu0 %v3492
        %4358 = vmatprep.subr.mxu0 %v3509
        %4359 = vmatpush1.msra.mxu0 %v3508
        %4360 = vmatprep.subr.mxu0 %v3525
        %4361 = vmatpush1.msra.mxu0 %v3524
        %4362 = vmatprep.subr.mxu0 %v3541
        %4363 = vmatpush1.msra.mxu0 %v3540
        %4364 = vmatprep.subr.mxu0 %v3557
        %4365 = vmatpush1.msra.mxu0 %v3556
        %4366 = vmatprep.subr.mxu0 %v3573
        %4367 = vmatpush1.msra.mxu0 %v3572
        %4368 = vmatprep.subr.mxu0 %v3589
        %4369 = vmatpush1.msra.mxu0 %v3588
        %4370 = vmatprep.subr.mxu0 %v3605
        %4371 = vmatpush1.msra.mxu0 %v3604
        %4372 = vmatprep.subr.mxu0 %v3621
        %4373 = vmatpush1.msra.mxu0 %v3620
        %4374 = vmatprep.subr.mxu0 %v3637
        %4375 = vmatpush1.msra.mxu0 %v3636
        %4376 = vmatprep.subr.mxu0 %v3653
        %4377 = vmatpush1.msra.mxu0 %v3652
        %4378 = vmatprep.subr.mxu0 %v3669
        %4379 = vmatpush1.msra.mxu0 %v3668
        %4380 = vmatprep.subr.mxu0 %v3685
        %4381 = vmatpush1.msra.mxu0 %v3684
        %4382 = vmatprep.subr.mxu0 %v3701
        %4383 = vmatpush1.msra.mxu0 %v3700
        %4384 = vmatprep.subr.mxu0 %v3717
        %4385 = vmatpush1.msra.mxu0 %v3716
        %4386 = vmatprep.subr.mxu0 %v3733
        %4387 = vmatpush1.msra.mxu0 %v3732
        %4388 = vmatprep.subr.mxu0 %v3749
        %4389 = vmatpush1.msra.mxu0 %v3748
        %4390 = vmatprep.subr.mxu0 %v3765
        %4391 = vmatpush1.msra.mxu0 %v3764
        %4392 = vmatprep.subr.mxu0 %v3781
        %4393 = vmatpush1.msra.mxu0 %v3780
        %4394 = vmatprep.subr.mxu0 %v3797
        %4395 = vmatpush1.msra.mxu0 %v3796
        %4396 = vmatprep.subr.mxu0 %v3813
        %4397 = vmatpush1.msra.mxu0 %v3812
        %4398 = vmatprep.subr.mxu0 %v3829
        %4399 = vmatpush1.msra.mxu0 %v3828
        %4400 = vmatprep.mubr.f32.mxu0 %v3325
        %4401 = vmatmul.mubr.f32.gmra.mrb[0].mxu0 %v3324
        %v4402 = vpop.f32.mrb[0].mxu0
        %v4403 = vadd.f32 %v4113, %v4402
        %v4404 = vpop.f32.mrb[0].mxu0
        %v4405 = vadd.f32 %v4117, %v4404
        %4406 = vmatprep.mubr.f32.mxu0 %v3328
        %4407 = vmatmul.mubr.f32.gmra.mrb[0].mxu0 %v3327
        %v4408 = vpop.f32.mrb[0].mxu0
        %v4409 = vadd.f32 %v4113, %v4408
        %v4410 = vpop.f32.mrb[0].mxu0
        %v4411 = vadd.f32 %v4117, %v4410
        %4412 = vdwg.mxu0
        %4413 = vmatprep.subr.mxu0 %v3845
        %4414 = vmatpush1.msra.mxu0 %v3844
        %4415 = vmatprep.subr.mxu0 %v3861
        %4416 = vmatpush1.msra.mxu0 %v3860
        %4417 = vmatprep.subr.mxu0 %v3877
        %4418 = vmatpush1.msra.mxu0 %v3876
        %4419 = vmatprep.subr.mxu0 %v3893
        %4420 = vmatpush1.msra.mxu0 %v3892
        %4421 = vmatprep.subr.mxu0 %v3909
        %4422 = vmatpush1.msra.mxu0 %v3908
        %4423 = vmatprep.subr.mxu0 %v3925
        %4424 = vmatpush1.msra.mxu0 %v3924
        %4425 = vmatprep.subr.mxu0 %v3941
        %4426 = vmatpush1.msra.mxu0 %v3940
        %4427 = vmatprep.subr.mxu0 %v3957
        %4428 = vmatpush1.msra.mxu0 %v3956
        %4429 = vmatprep.subr.mxu0 %v3973
        %4430 = vmatpush1.msra.mxu0 %v3972
        %4431 = vmatprep.subr.mxu0 %v3989
        %4432 = vmatpush1.msra.mxu0 %v3988
        %4433 = vmatprep.subr.mxu0 %v4005
        %4434 = vmatpush1.msra.mxu0 %v4004
        %4435 = vmatprep.subr.mxu0 %v4021
        %4436 = vmatpush1.msra.mxu0 %v4020
        %4437 = vmatprep.subr.mxu0 %v4037
        %4438 = vmatpush1.msra.mxu0 %v4036
        %4439 = vmatprep.subr.mxu0 %v4053
        %4440 = vmatpush1.msra.mxu0 %v4052
        %4441 = vmatprep.subr.mxu0 %v4069
        %4442 = vmatpush1.msra.mxu0 %v4068
        %4443 = vmatprep.subr.mxu0 %v4085
        %4444 = vmatpush1.msra.mxu0 %v4084
        %4445 = vmatprep.subr.mxu0 0.0
        %4446 = vmatpush1.msra.mxu0 0.0
        %4447 = vmatprep.subr.mxu0 0.0
        %4448 = vmatpush1.msra.mxu0 0.0
        %4449 = vmatprep.subr.mxu0 0.0
        %4450 = vmatpush1.msra.mxu0 0.0
        %4451 = vmatprep.subr.mxu0 0.0
        %4452 = vmatpush1.msra.mxu0 0.0
        %4453 = vmatprep.subr.mxu0 0.0
        %4454 = vmatpush1.msra.mxu0 0.0
        %4455 = vmatprep.subr.mxu0 0.0
        %4456 = vmatpush1.msra.mxu0 0.0
        %4457 = vmatprep.subr.mxu0 0.0
        %4458 = vmatpush1.msra.mxu0 0.0
        %4459 = vmatprep.subr.mxu0 0.0
        %4460 = vmatpush1.msra.mxu0 0.0
        %4461 = vmatprep.subr.mxu0 0.0
        %4462 = vmatpush1.msra.mxu0 0.0
        %4463 = vmatprep.subr.mxu0 0.0
        %4464 = vmatpush1.msra.mxu0 0.0
        %4465 = vmatprep.subr.mxu0 0.0
        %4466 = vmatpush1.msra.mxu0 0.0
        %4467 = vmatprep.subr.mxu0 0.0
        %4468 = vmatpush1.msra.mxu0 0.0
        %4469 = vmatprep.subr.mxu0 0.0
        %4470 = vmatpush1.msra.mxu0 0.0
        %4471 = vmatprep.subr.mxu0 0.0
        %4472 = vmatpush1.msra.mxu0 0.0
        %4473 = vmatprep.subr.mxu0 0.0
        %4474 = vmatpush1.msra.mxu0 0.0
        %4475 = vmatprep.subr.mxu0 0.0
        %4476 = vmatpush1.msra.mxu0 0.0
        %4477 = vmatprep.mubr.f32.mxu0 0.0
        %4478 = vmatmul.mubr.f32.gmra.mrb[0].mxu0 %v3326
        %v4479 = vpop.f32.mrb[0].mxu0
        %v4480 = vadd.f32 %v4403, %v4479
        %v4481 = vpop.f32.mrb[0].mxu0
        %v4482 = vadd.f32 %v4405, %v4481
        %4483 = vmatprep.mubr.f32.mxu0 0.0
        %4484 = vmatmul.mubr.f32.gmra.mrb[0].mxu0 %v3329
        %v4485 = vpop.f32.mrb[0].mxu0
        %v4486 = vadd.f32 %v4409, %v4485
        %v4487 = vpop.f32.mrb[0].mxu0
        %v4488 = vadd.f32 %v4411, %v4487
        %4489 = vdwg.mxu0
        %4490 = vmatprep.subr.mxu0 %v3335
        %4491 = vmatpush1.msra.mxu0 %v3334
        %4492 = vmatprep.subr.mxu0 %v3351
        %4493 = vmatpush1.msra.mxu0 %v3350
        %4494 = vmatprep.subr.mxu0 %v3367
        %4495 = vmatpush1.msra.mxu0 %v3366
        %4496 = vmatprep.subr.mxu0 %v3383
        %4497 = vmatpush1.msra.mxu0 %v3382
        %4498 = vmatprep.subr.mxu0 %v3399
        %4499 = vmatpush1.msra.mxu0 %v3398
        %4500 = vmatprep.subr.mxu0 %v3415
        %4501 = vmatpush1.msra.mxu0 %v3414
        %4502 = vmatprep.subr.mxu0 %v3431
        %4503 = vmatpush1.msra.mxu0 %v3430
        %4504 = vmatprep.subr.mxu0 %v3447
        %4505 = vmatpush1.msra.mxu0 %v3446
        %4506 = vmatprep.subr.mxu0 %v3463
        %4507 = vmatpush1.msra.mxu0 %v3462
        %4508 = vmatprep.subr.mxu0 %v3479
        %4509 = vmatpush1.msra.mxu0 %v3478
        %4510 = vmatprep.subr.mxu0 %v3495
        %4511 = vmatpush1.msra.mxu0 %v3494
        %4512 = vmatprep.subr.mxu0 %v3511
        %4513 = vmatpush1.msra.mxu0 %v3510
        %4514 = vmatprep.subr.mxu0 %v3527
        %4515 = vmatpush1.msra.mxu0 %v3526
        %4516 = vmatprep.subr.mxu0 %v3543
        %4517 = vmatpush1.msra.mxu0 %v3542
        %4518 = vmatprep.subr.mxu0 %v3559
        %4519 = vmatpush1.msra.mxu0 %v3558
        %4520 = vmatprep.subr.mxu0 %v3575
        %4521 = vmatpush1.msra.mxu0 %v3574
        %4522 = vmatprep.subr.mxu0 %v3591
        %4523 = vmatpush1.msra.mxu0 %v3590
        %4524 = vmatprep.subr.mxu0 %v3607
        %4525 = vmatpush1.msra.mxu0 %v3606
        %4526 = vmatprep.subr.mxu0 %v3623
        %4527 = vmatpush1.msra.mxu0 %v3622
        %4528 = vmatprep.subr.mxu0 %v3639
        %4529 = vmatpush1.msra.mxu0 %v3638
        %4530 = vmatprep.subr.mxu0 %v3655
        %4531 = vmatpush1.msra.mxu0 %v3654
        %4532 = vmatprep.subr.mxu0 %v3671
        %4533 = vmatpush1.msra.mxu0 %v3670
        %4534 = vmatprep.subr.mxu0 %v3687
        %4535 = vmatpush1.msra.mxu0 %v3686
        %4536 = vmatprep.subr.mxu0 %v3703
        %4537 = vmatpush1.msra.mxu0 %v3702
        %4538 = vmatprep.subr.mxu0 %v3719
        %4539 = vmatpush1.msra.mxu0 %v3718
        %4540 = vmatprep.subr.mxu0 %v3735
        %4541 = vmatpush1.msra.mxu0 %v3734
        %4542 = vmatprep.subr.mxu0 %v3751
        %4543 = vmatpush1.msra.mxu0 %v3750
        %4544 = vmatprep.subr.mxu0 %v3767
        %4545 = vmatpush1.msra.mxu0 %v3766
        %4546 = vmatprep.subr.mxu0 %v3783
        %4547 = vmatpush1.msra.mxu0 %v3782
        %4548 = vmatprep.subr.mxu0 %v3799
        %4549 = vmatpush1.msra.mxu0 %v3798
        %4550 = vmatprep.subr.mxu0 %v3815
        %4551 = vmatpush1.msra.mxu0 %v3814
        %4552 = vmatprep.subr.mxu0 %v3831
        %4553 = vmatpush1.msra.mxu0 %v3830
        %4554 = vmatprep.mubr.f32.mxu0 %v3325
        %4555 = vmatmul.mubr.f32.gmra.mrb[0].mxu0 %v3324
        %v4556 = vpop.f32.mrb[0].mxu0
        %v4557 = vadd.f32 %v4121, %v4556
        %v4558 = vpop.f32.mrb[0].mxu0
        %v4559 = vadd.f32 %v4125, %v4558
        %4560 = vmatprep.mubr.f32.mxu0 %v3328
        %4561 = vmatmul.mubr.f32.gmra.mrb[0].mxu0 %v3327
        %v4562 = vpop.f32.mrb[0].mxu0
        %v4563 = vadd.f32 %v4121, %v4562
        %v4564 = vpop.f32.mrb[0].mxu0
        %v4565 = vadd.f32 %v4125, %v4564
        %4566 = vdwg.mxu0
        %4567 = vmatprep.subr.mxu0 %v3847
        %4568 = vmatpush1.msra.mxu0 %v3846
        %4569 = vmatprep.subr.mxu0 %v3863
        %4570 = vmatpush1.msra.mxu0 %v3862
        %4571 = vmatprep.subr.mxu0 %v3879
        %4572 = vmatpush1.msra.mxu0 %v3878
        %4573 = vmatprep.subr.mxu0 %v3895
        %4574 = vmatpush1.msra.mxu0 %v3894
        %4575 = vmatprep.subr.mxu0 %v3911
        %4576 = vmatpush1.msra.mxu0 %v3910
        %4577 = vmatprep.subr.mxu0 %v3927
        %4578 = vmatpush1.msra.mxu0 %v3926
        %4579 = vmatprep.subr.mxu0 %v3943
        %4580 = vmatpush1.msra.mxu0 %v3942
        %4581 = vmatprep.subr.mxu0 %v3959
        %4582 = vmatpush1.msra.mxu0 %v3958
        %4583 = vmatprep.subr.mxu0 %v3975
        %4584 = vmatpush1.msra.mxu0 %v3974
        %4585 = vmatprep.subr.mxu0 %v3991
        %4586 = vmatpush1.msra.mxu0 %v3990
        %4587 = vmatprep.subr.mxu0 %v4007
        %4588 = vmatpush1.msra.mxu0 %v4006
        %4589 = vmatprep.subr.mxu0 %v4023
        %4590 = vmatpush1.msra.mxu0 %v4022
        %4591 = vmatprep.subr.mxu0 %v4039
        %4592 = vmatpush1.msra.mxu0 %v4038
        %4593 = vmatprep.subr.mxu0 %v4055
        %4594 = vmatpush1.msra.mxu0 %v4054
        %4595 = vmatprep.subr.mxu0 %v4071
        %4596 = vmatpush1.msra.mxu0 %v4070
        %4597 = vmatprep.subr.mxu0 %v4087
        %4598 = vmatpush1.msra.mxu0 %v4086
        %4599 = vmatprep.subr.mxu0 0.0
        %4600 = vmatpush1.msra.mxu0 0.0
        %4601 = vmatprep.subr.mxu0 0.0
        %4602 = vmatpush1.msra.mxu0 0.0
        %4603 = vmatprep.subr.mxu0 0.0
        %4604 = vmatpush1.msra.mxu0 0.0
        %4605 = vmatprep.subr.mxu0 0.0
        %4606 = vmatpush1.msra.mxu0 0.0
        %4607 = vmatprep.subr.mxu0 0.0
        %4608 = vmatpush1.msra.mxu0 0.0
        %4609 = vmatprep.subr.mxu0 0.0
        %4610 = vmatpush1.msra.mxu0 0.0
        %4611 = vmatprep.subr.mxu0 0.0
        %4612 = vmatpush1.msra.mxu0 0.0
        %4613 = vmatprep.subr.mxu0 0.0
        %4614 = vmatpush1.msra.mxu0 0.0
        %4615 = vmatprep.subr.mxu0 0.0
        %4616 = vmatpush1.msra.mxu0 0.0
        %4617 = vmatprep.subr.mxu0 0.0
        %4618 = vmatpush1.msra.mxu0 0.0
        %4619 = vmatprep.subr.mxu0 0.0
        %4620 = vmatpush1.msra.mxu0 0.0
        %4621 = vmatprep.subr.mxu0 0.0
        %4622 = vmatpush1.msra.mxu0 0.0
        %4623 = vmatprep.subr.mxu0 0.0
        %4624 = vmatpush1.msra.mxu0 0.0
        %4625 = vmatprep.subr.mxu0 0.0
        %4626 = vmatpush1.msra.mxu0 0.0
        %4627 = vmatprep.subr.mxu0 0.0
        %4628 = vmatpush1.msra.mxu0 0.0
        %4629 = vmatprep.subr.mxu0 0.0
        %4630 = vmatpush1.msra.mxu0 0.0
        %4631 = vmatprep.mubr.f32.mxu0 0.0
        %4632 = vmatmul.mubr.f32.gmra.mrb[0].mxu0 %v3326
        %v4633 = vpop.f32.mrb[0].mxu0
        %v4634 = vadd.f32 %v4557, %v4633
        %v4635 = vpop.f32.mrb[0].mxu0
        %v4636 = vadd.f32 %v4559, %v4635
        %4637 = vmatprep.mubr.f32.mxu0 0.0
        %4638 = vmatmul.mubr.f32.gmra.mrb[0].mxu0 %v3329
        %v4639 = vpop.f32.mrb[0].mxu0
        %v4640 = vadd.f32 %v4563, %v4639
        %v4641 = vpop.f32.mrb[0].mxu0
        %v4642 = vadd.f32 %v4565, %v4641
        %4643 = vdwg.mxu0
        %4644 = vmatprep.subr.mxu0 %v3337
        %4645 = vmatpush1.msra.mxu0 %v3336
        %4646 = vmatprep.subr.mxu0 %v3353
        %4647 = vmatpush1.msra.mxu0 %v3352
        %4648 = vmatprep.subr.mxu0 %v3369
        %4649 = vmatpush1.msra.mxu0 %v3368
        %4650 = vmatprep.subr.mxu0 %v3385
        %4651 = vmatpush1.msra.mxu0 %v3384
        %4652 = vmatprep.subr.mxu0 %v3401
        %4653 = vmatpush1.msra.mxu0 %v3400
        %4654 = vmatprep.subr.mxu0 %v3417
        %4655 = vmatpush1.msra.mxu0 %v3416
        %4656 = vmatprep.subr.mxu0 %v3433
        %4657 = vmatpush1.msra.mxu0 %v3432
        %4658 = vmatprep.subr.mxu0 %v3449
        %4659 = vmatpush1.msra.mxu0 %v3448
        %4660 = vmatprep.subr.mxu0 %v3465
        %4661 = vmatpush1.msra.mxu0 %v3464
        %4662 = vmatprep.subr.mxu0 %v3481
        %4663 = vmatpush1.msra.mxu0 %v3480
        %4664 = vmatprep.subr.mxu0 %v3497
        %4665 = vmatpush1.msra.mxu0 %v3496
        %4666 = vmatprep.subr.mxu0 %v3513
        %4667 = vmatpush1.msra.mxu0 %v3512
        %4668 = vmatprep.subr.mxu0 %v3529
        %4669 = vmatpush1.msra.mxu0 %v3528
        %4670 = vmatprep.subr.mxu0 %v3545
        %4671 = vmatpush1.msra.mxu0 %v3544
        %4672 = vmatprep.subr.mxu0 %v3561
        %4673 = vmatpush1.msra.mxu0 %v3560
        %4674 = vmatprep.subr.mxu0 %v3577
        %4675 = vmatpush1.msra.mxu0 %v3576
        %4676 = vmatprep.subr.mxu0 %v3593
        %4677 = vmatpush1.msra.mxu0 %v3592
        %4678 = vmatprep.subr.mxu0 %v3609
        %4679 = vmatpush1.msra.mxu0 %v3608
        %4680 = vmatprep.subr.mxu0 %v3625
        %4681 = vmatpush1.msra.mxu0 %v3624
        %4682 = vmatprep.subr.mxu0 %v3641
        %4683 = vmatpush1.msra.mxu0 %v3640
        %4684 = vmatprep.subr.mxu0 %v3657
        %4685 = vmatpush1.msra.mxu0 %v3656
        %4686 = vmatprep.subr.mxu0 %v3673
        %4687 = vmatpush1.msra.mxu0 %v3672
        %4688 = vmatprep.subr.mxu0 %v3689
        %4689 = vmatpush1.msra.mxu0 %v3688
        %4690 = vmatprep.subr.mxu0 %v3705
        %4691 = vmatpush1.msra.mxu0 %v3704
        %4692 = vmatprep.subr.mxu0 %v3721
        %4693 = vmatpush1.msra.mxu0 %v3720
        %4694 = vmatprep.subr.mxu0 %v3737
        %4695 = vmatpush1.msra.mxu0 %v3736
        %4696 = vmatprep.subr.mxu0 %v3753
        %4697 = vmatpush1.msra.mxu0 %v3752
        %4698 = vmatprep.subr.mxu0 %v3769
        %4699 = vmatpush1.msra.mxu0 %v3768
        %4700 = vmatprep.subr.mxu0 %v3785
        %4701 = vmatpush1.msra.mxu0 %v3784
        %4702 = vmatprep.subr.mxu0 %v3801
        %4703 = vmatpush1.msra.mxu0 %v3800
        %4704 = vmatprep.subr.mxu0 %v3817
        %4705 = vmatpush1.msra.mxu0 %v3816
        %4706 = vmatprep.subr.mxu0 %v3833
        %4707 = vmatpush1.msra.mxu0 %v3832
        %4708 = vmatprep.mubr.f32.mxu0 %v3325
        %4709 = vmatmul.mubr.f32.gmra.mrb[0].mxu0 %v3324
        %v4710 = vpop.f32.mrb[0].mxu0
        %v4711 = vadd.f32 %v4129, %v4710
        %v4712 = vpop.f32.mrb[0].mxu0
        %v4713 = vadd.f32 %v4133, %v4712
        %4714 = vmatprep.mubr.f32.mxu0 %v3328
        %4715 = vmatmul.mubr.f32.gmra.mrb[0].mxu0 %v3327
        %v4716 = vpop.f32.mrb[0].mxu0
        %v4717 = vadd.f32 %v4129, %v4716
        %v4718 = vpop.f32.mrb[0].mxu0
        %v4719 = vadd.f32 %v4133, %v4718
        %4720 = vdwg.mxu0
        %4721 = vmatprep.subr.mxu0 %v3849
        %4722 = vmatpush1.msra.mxu0 %v3848
        %4723 = vmatprep.subr.mxu0 %v3865
        %4724 = vmatpush1.msra.mxu0 %v3864
        %4725 = vmatprep.subr.mxu0 %v3881
        %4726 = vmatpush1.msra.mxu0 %v3880
        %4727 = vmatprep.subr.mxu0 %v3897
        %4728 = vmatpush1.msra.mxu0 %v3896
        %4729 = vmatprep.subr.mxu0 %v3913
        %4730 = vmatpush1.msra.mxu0 %v3912
        %4731 = vmatprep.subr.mxu0 %v3929
        %4732 = vmatpush1.msra.mxu0 %v3928
        %4733 = vmatprep.subr.mxu0 %v3945
        %4734 = vmatpush1.msra.mxu0 %v3944
        %4735 = vmatprep.subr.mxu0 %v3961
        %4736 = vmatpush1.msra.mxu0 %v3960
        %4737 = vmatprep.subr.mxu0 %v3977
        %4738 = vmatpush1.msra.mxu0 %v3976
        %4739 = vmatprep.subr.mxu0 %v3993
        %4740 = vmatpush1.msra.mxu0 %v3992
        %4741 = vmatprep.subr.mxu0 %v4009
        %4742 = vmatpush1.msra.mxu0 %v4008
        %4743 = vmatprep.subr.mxu0 %v4025
        %4744 = vmatpush1.msra.mxu0 %v4024
        %4745 = vmatprep.subr.mxu0 %v4041
        %4746 = vmatpush1.msra.mxu0 %v4040
        %4747 = vmatprep.subr.mxu0 %v4057
        %4748 = vmatpush1.msra.mxu0 %v4056
        %4749 = vmatprep.subr.mxu0 %v4073
        %4750 = vmatpush1.msra.mxu0 %v4072
        %4751 = vmatprep.subr.mxu0 %v4089
        %4752 = vmatpush1.msra.mxu0 %v4088
        %4753 = vmatprep.subr.mxu0 0.0
        %4754 = vmatpush1.msra.mxu0 0.0
        %4755 = vmatprep.subr.mxu0 0.0
        %4756 = vmatpush1.msra.mxu0 0.0
        %4757 = vmatprep.subr.mxu0 0.0
        %4758 = vmatpush1.msra.mxu0 0.0
        %4759 = vmatprep.subr.mxu0 0.0
        %4760 = vmatpush1.msra.mxu0 0.0
        %4761 = vmatprep.subr.mxu0 0.0
        %4762 = vmatpush1.msra.mxu0 0.0
        %4763 = vmatprep.subr.mxu0 0.0
        %4764 = vmatpush1.msra.mxu0 0.0
        %4765 = vmatprep.subr.mxu0 0.0
        %4766 = vmatpush1.msra.mxu0 0.0
        %4767 = vmatprep.subr.mxu0 0.0
        %4768 = vmatpush1.msra.mxu0 0.0
        %4769 = vmatprep.subr.mxu0 0.0
        %4770 = vmatpush1.msra.mxu0 0.0
        %4771 = vmatprep.subr.mxu0 0.0
        %4772 = vmatpush1.msra.mxu0 0.0
        %4773 = vmatprep.subr.mxu0 0.0
        %4774 = vmatpush1.msra.mxu0 0.0
        %4775 = vmatprep.subr.mxu0 0.0
        %4776 = vmatpush1.msra.mxu0 0.0
        %4777 = vmatprep.subr.mxu0 0.0
        %4778 = vmatpush1.msra.mxu0 0.0
        %4779 = vmatprep.subr.mxu0 0.0
        %4780 = vmatpush1.msra.mxu0 0.0
        %4781 = vmatprep.subr.mxu0 0.0
        %4782 = vmatpush1.msra.mxu0 0.0
        %4783 = vmatprep.subr.mxu0 0.0
        %4784 = vmatpush1.msra.mxu0 0.0
        %4785 = vmatprep.mubr.f32.mxu0 0.0
        %4786 = vmatmul.mubr.f32.gmra.mrb[0].mxu0 %v3326
        %v4787 = vpop.f32.mrb[0].mxu0
        %v4788 = vadd.f32 %v4711, %v4787
        %v4789 = vpop.f32.mrb[0].mxu0
        %v4790 = vadd.f32 %v4713, %v4789
        %4791 = vmatprep.mubr.f32.mxu0 0.0
        %4792 = vmatmul.mubr.f32.gmra.mrb[0].mxu0 %v3329
        %v4793 = vpop.f32.mrb[0].mxu0
        %v4794 = vadd.f32 %v4717, %v4793
        %v4795 = vpop.f32.mrb[0].mxu0
        %v4796 = vadd.f32 %v4719, %v4795
        %4797 = vdwg.mxu0
        %4798 = vmatprep.subr.mxu0 %v3339
        %4799 = vmatpush1.msra.mxu0 %v3338
        %4800 = vmatprep.subr.mxu0 %v3355
        %4801 = vmatpush1.msra.mxu0 %v3354
        %4802 = vmatprep.subr.mxu0 %v3371
        %4803 = vmatpush1.msra.mxu0 %v3370
        %4804 = vmatprep.subr.mxu0 %v3387
        %4805 = vmatpush1.msra.mxu0 %v3386
        %4806 = vmatprep.subr.mxu0 %v3403
        %4807 = vmatpush1.msra.mxu0 %v3402
        %4808 = vmatprep.subr.mxu0 %v3419
        %4809 = vmatpush1.msra.mxu0 %v3418
        %4810 = vmatprep.subr.mxu0 %v3435
        %4811 = vmatpush1.msra.mxu0 %v3434
        %4812 = vmatprep.subr.mxu0 %v3451
        %4813 = vmatpush1.msra.mxu0 %v3450
        %4814 = vmatprep.subr.mxu0 %v3467
        %4815 = vmatpush1.msra.mxu0 %v3466
        %4816 = vmatprep.subr.mxu0 %v3483
        %4817 = vmatpush1.msra.mxu0 %v3482
        %4818 = vmatprep.subr.mxu0 %v3499
        %4819 = vmatpush1.msra.mxu0 %v3498
        %4820 = vmatprep.subr.mxu0 %v3515
        %4821 = vmatpush1.msra.mxu0 %v3514
        %4822 = vmatprep.subr.mxu0 %v3531
        %4823 = vmatpush1.msra.mxu0 %v3530
        %4824 = vmatprep.subr.mxu0 %v3547
        %4825 = vmatpush1.msra.mxu0 %v3546
        %4826 = vmatprep.subr.mxu0 %v3563
        %4827 = vmatpush1.msra.mxu0 %v3562
        %4828 = vmatprep.subr.mxu0 %v3579
        %4829 = vmatpush1.msra.mxu0 %v3578
        %4830 = vmatprep.subr.mxu0 %v3595
        %4831 = vmatpush1.msra.mxu0 %v3594
        %4832 = vmatprep.subr.mxu0 %v3611
        %4833 = vmatpush1.msra.mxu0 %v3610
        %4834 = vmatprep.subr.mxu0 %v3627
        %4835 = vmatpush1.msra.mxu0 %v3626
        %4836 = vmatprep.subr.mxu0 %v3643
        %4837 = vmatpush1.msra.mxu0 %v3642
        %4838 = vmatprep.subr.mxu0 %v3659
        %4839 = vmatpush1.msra.mxu0 %v3658
        %4840 = vmatprep.subr.mxu0 %v3675
        %4841 = vmatpush1.msra.mxu0 %v3674
        %4842 = vmatprep.subr.mxu0 %v3691
        %4843 = vmatpush1.msra.mxu0 %v3690
        %4844 = vmatprep.subr.mxu0 %v3707
        %4845 = vmatpush1.msra.mxu0 %v3706
        %4846 = vmatprep.subr.mxu0 %v3723
        %4847 = vmatpush1.msra.mxu0 %v3722
        %4848 = vmatprep.subr.mxu0 %v3739
        %4849 = vmatpush1.msra.mxu0 %v3738
        %4850 = vmatprep.subr.mxu0 %v3755
        %4851 = vmatpush1.msra.mxu0 %v3754
        %4852 = vmatprep.subr.mxu0 %v3771
        %4853 = vmatpush1.msra.mxu0 %v3770
        %4854 = vmatprep.subr.mxu0 %v3787
        %4855 = vmatpush1.msra.mxu0 %v3786
        %4856 = vmatprep.subr.mxu0 %v3803
        %4857 = vmatpush1.msra.mxu0 %v3802
        %4858 = vmatprep.subr.mxu0 %v3819
        %4859 = vmatpush1.msra.mxu0 %v3818
        %4860 = vmatprep.subr.mxu0 %v3835
        %4861 = vmatpush1.msra.mxu0 %v3834
        %4862 = vmatprep.mubr.f32.mxu0 %v3325
        %4863 = vmatmul.mubr.f32.gmra.mrb[0].mxu0 %v3324
        %v4864 = vpop.f32.mrb[0].mxu0
        %v4865 = vadd.f32 %v4137, %v4864
        %v4866 = vpop.f32.mrb[0].mxu0
        %v4867 = vadd.f32 %v4141, %v4866
        %4868 = vmatprep.mubr.f32.mxu0 %v3328
        %4869 = vmatmul.mubr.f32.gmra.mrb[0].mxu0 %v3327
        %v4870 = vpop.f32.mrb[0].mxu0
        %v4871 = vadd.f32 %v4137, %v4870
        %v4872 = vpop.f32.mrb[0].mxu0
        %v4873 = vadd.f32 %v4141, %v4872
        %4874 = vdwg.mxu0
        %4875 = vmatprep.subr.mxu0 %v3851
        %4876 = vmatpush1.msra.mxu0 %v3850
        %4877 = vmatprep.subr.mxu0 %v3867
        %4878 = vmatpush1.msra.mxu0 %v3866
        %4879 = vmatprep.subr.mxu0 %v3883
        %4880 = vmatpush1.msra.mxu0 %v3882
        %4881 = vmatprep.subr.mxu0 %v3899
        %4882 = vmatpush1.msra.mxu0 %v3898
        %4883 = vmatprep.subr.mxu0 %v3915
        %4884 = vmatpush1.msra.mxu0 %v3914
        %4885 = vmatprep.subr.mxu0 %v3931
        %4886 = vmatpush1.msra.mxu0 %v3930
        %4887 = vmatprep.subr.mxu0 %v3947
        %4888 = vmatpush1.msra.mxu0 %v3946
        %4889 = vmatprep.subr.mxu0 %v3963
        %4890 = vmatpush1.msra.mxu0 %v3962
        %4891 = vmatprep.subr.mxu0 %v3979
        %4892 = vmatpush1.msra.mxu0 %v3978
        %4893 = vmatprep.subr.mxu0 %v3995
        %4894 = vmatpush1.msra.mxu0 %v3994
        %4895 = vmatprep.subr.mxu0 %v4011
        %4896 = vmatpush1.msra.mxu0 %v4010
        %4897 = vmatprep.subr.mxu0 %v4027
        %4898 = vmatpush1.msra.mxu0 %v4026
        %4899 = vmatprep.subr.mxu0 %v4043
        %4900 = vmatpush1.msra.mxu0 %v4042
        %4901 = vmatprep.subr.mxu0 %v4059
        %4902 = vmatpush1.msra.mxu0 %v4058
        %4903 = vmatprep.subr.mxu0 %v4075
        %4904 = vmatpush1.msra.mxu0 %v4074
        %4905 = vmatprep.subr.mxu0 %v4091
        %4906 = vmatpush1.msra.mxu0 %v4090
        %4907 = vmatprep.subr.mxu0 0.0
        %4908 = vmatpush1.msra.mxu0 0.0
        %4909 = vmatprep.subr.mxu0 0.0
        %4910 = vmatpush1.msra.mxu0 0.0
        %4911 = vmatprep.subr.mxu0 0.0
        %4912 = vmatpush1.msra.mxu0 0.0
        %4913 = vmatprep.subr.mxu0 0.0
        %4914 = vmatpush1.msra.mxu0 0.0
        %4915 = vmatprep.subr.mxu0 0.0
        %4916 = vmatpush1.msra.mxu0 0.0
        %4917 = vmatprep.subr.mxu0 0.0
        %4918 = vmatpush1.msra.mxu0 0.0
        %4919 = vmatprep.subr.mxu0 0.0
        %4920 = vmatpush1.msra.mxu0 0.0
        %4921 = vmatprep.subr.mxu0 0.0
        %4922 = vmatpush1.msra.mxu0 0.0
        %4923 = vmatprep.subr.mxu0 0.0
        %4924 = vmatpush1.msra.mxu0 0.0
        %4925 = vmatprep.subr.mxu0 0.0
        %4926 = vmatpush1.msra.mxu0 0.0
        %4927 = vmatprep.subr.mxu0 0.0
        %4928 = vmatpush1.msra.mxu0 0.0
        %4929 = vmatprep.subr.mxu0 0.0
        %4930 = vmatpush1.msra.mxu0 0.0
        %4931 = vmatprep.subr.mxu0 0.0
        %4932 = vmatpush1.msra.mxu0 0.0
        %4933 = vmatprep.subr.mxu0 0.0
        %4934 = vmatpush1.msra.mxu0 0.0
        %4935 = vmatprep.subr.mxu0 0.0
        %4936 = vmatpush1.msra.mxu0 0.0
        %4937 = vmatprep.subr.mxu0 0.0
        %4938 = vmatpush1.msra.mxu0 0.0
        %4939 = vmatprep.mubr.f32.mxu0 0.0
        %4940 = vmatmul.mubr.f32.gmra.mrb[0].mxu0 %v3326
        %v4941 = vpop.f32.mrb[0].mxu0
        %v4942 = vadd.f32 %v4865, %v4941
        %v4943 = vpop.f32.mrb[0].mxu0
        %v4944 = vadd.f32 %v4867, %v4943
        %4945 = vmatprep.mubr.f32.mxu0 0.0
        %4946 = vmatmul.mubr.f32.gmra.mrb[0].mxu0 %v3329
        %v4947 = vpop.f32.mrb[0].mxu0
        %v4948 = vadd.f32 %v4871, %v4947
        %v4949 = vpop.f32.mrb[0].mxu0
        %v4950 = vadd.f32 %v4873, %v4949
        %4951 = vdwg.mxu0
        %4952 = vmatprep.subr.mxu0 %v3341
        %4953 = vmatpush1.msra.mxu0 %v3340
        %4954 = vmatprep.subr.mxu0 %v3357
        %4955 = vmatpush1.msra.mxu0 %v3356
        %4956 = vmatprep.subr.mxu0 %v3373
        %4957 = vmatpush1.msra.mxu0 %v3372
        %4958 = vmatprep.subr.mxu0 %v3389
        %4959 = vmatpush1.msra.mxu0 %v3388
        %4960 = vmatprep.subr.mxu0 %v3405
        %4961 = vmatpush1.msra.mxu0 %v3404
        %4962 = vmatprep.subr.mxu0 %v3421
        %4963 = vmatpush1.msra.mxu0 %v3420
        %4964 = vmatprep.subr.mxu0 %v3437
        %4965 = vmatpush1.msra.mxu0 %v3436
        %4966 = vmatprep.subr.mxu0 %v3453
        %4967 = vmatpush1.msra.mxu0 %v3452
        %4968 = vmatprep.subr.mxu0 %v3469
        %4969 = vmatpush1.msra.mxu0 %v3468
        %4970 = vmatprep.subr.mxu0 %v3485
        %4971 = vmatpush1.msra.mxu0 %v3484
        %4972 = vmatprep.subr.mxu0 %v3501
        %4973 = vmatpush1.msra.mxu0 %v3500
        %4974 = vmatprep.subr.mxu0 %v3517
        %4975 = vmatpush1.msra.mxu0 %v3516
        %4976 = vmatprep.subr.mxu0 %v3533
        %4977 = vmatpush1.msra.mxu0 %v3532
        %4978 = vmatprep.subr.mxu0 %v3549
        %4979 = vmatpush1.msra.mxu0 %v3548
        %4980 = vmatprep.subr.mxu0 %v3565
        %4981 = vmatpush1.msra.mxu0 %v3564
        %4982 = vmatprep.subr.mxu0 %v3581
        %4983 = vmatpush1.msra.mxu0 %v3580
        %4984 = vmatprep.subr.mxu0 %v3597
        %4985 = vmatpush1.msra.mxu0 %v3596
        %4986 = vmatprep.subr.mxu0 %v3613
        %4987 = vmatpush1.msra.mxu0 %v3612
        %4988 = vmatprep.subr.mxu0 %v3629
        %4989 = vmatpush1.msra.mxu0 %v3628
        %4990 = vmatprep.subr.mxu0 %v3645
        %4991 = vmatpush1.msra.mxu0 %v3644
        %4992 = vmatprep.subr.mxu0 %v3661
        %4993 = vmatpush1.msra.mxu0 %v3660
        %4994 = vmatprep.subr.mxu0 %v3677
        %4995 = vmatpush1.msra.mxu0 %v3676
        %4996 = vmatprep.subr.mxu0 %v3693
        %4997 = vmatpush1.msra.mxu0 %v3692
        %4998 = vmatprep.subr.mxu0 %v3709
        %4999 = vmatpush1.msra.mxu0 %v3708
        %5000 = vmatprep.subr.mxu0 %v3725
        %5001 = vmatpush1.msra.mxu0 %v3724
        %5002 = vmatprep.subr.mxu0 %v3741
        %5003 = vmatpush1.msra.mxu0 %v3740
        %5004 = vmatprep.subr.mxu0 %v3757
        %5005 = vmatpush1.msra.mxu0 %v3756
        %5006 = vmatprep.subr.mxu0 %v3773
        %5007 = vmatpush1.msra.mxu0 %v3772
        %5008 = vmatprep.subr.mxu0 %v3789
        %5009 = vmatpush1.msra.mxu0 %v3788
        %5010 = vmatprep.subr.mxu0 %v3805
        %5011 = vmatpush1.msra.mxu0 %v3804
        %5012 = vmatprep.subr.mxu0 %v3821
        %5013 = vmatpush1.msra.mxu0 %v3820
        %5014 = vmatprep.subr.mxu0 %v3837
        %5015 = vmatpush1.msra.mxu0 %v3836
        %5016 = vmatprep.mubr.f32.mxu0 %v3325
        %5017 = vmatmul.mubr.f32.gmra.mrb[0].mxu0 %v3324
        %v5018 = vpop.f32.mrb[0].mxu0
        %v5019 = vadd.f32 %v4145, %v5018
        %v5020 = vpop.f32.mrb[0].mxu0
        %v5021 = vadd.f32 %v4149, %v5020
        %5022 = vmatprep.mubr.f32.mxu0 %v3328
        %5023 = vmatmul.mubr.f32.gmra.mrb[0].mxu0 %v3327
        %v5024 = vpop.f32.mrb[0].mxu0
        %v5025 = vadd.f32 %v4145, %v5024
        %v5026 = vpop.f32.mrb[0].mxu0
        %v5027 = vadd.f32 %v4149, %v5026
        %5028 = vdwg.mxu0
        %5029 = vmatprep.subr.mxu0 %v3853
        %5030 = vmatpush1.msra.mxu0 %v3852
        %5031 = vmatprep.subr.mxu0 %v3869
        %5032 = vmatpush1.msra.mxu0 %v3868
        %5033 = vmatprep.subr.mxu0 %v3885
        %5034 = vmatpush1.msra.mxu0 %v3884
        %5035 = vmatprep.subr.mxu0 %v3901
        %5036 = vmatpush1.msra.mxu0 %v3900
        %5037 = vmatprep.subr.mxu0 %v3917
        %5038 = vmatpush1.msra.mxu0 %v3916
        %5039 = vmatprep.subr.mxu0 %v3933
        %5040 = vmatpush1.msra.mxu0 %v3932
        %5041 = vmatprep.subr.mxu0 %v3949
        %5042 = vmatpush1.msra.mxu0 %v3948
        %5043 = vmatprep.subr.mxu0 %v3965
        %5044 = vmatpush1.msra.mxu0 %v3964
        %5045 = vmatprep.subr.mxu0 %v3981
        %5046 = vmatpush1.msra.mxu0 %v3980
        %5047 = vmatprep.subr.mxu0 %v3997
        %5048 = vmatpush1.msra.mxu0 %v3996
        %5049 = vmatprep.subr.mxu0 %v4013
        %5050 = vmatpush1.msra.mxu0 %v4012
        %5051 = vmatprep.subr.mxu0 %v4029
        %5052 = vmatpush1.msra.mxu0 %v4028
        %5053 = vmatprep.subr.mxu0 %v4045
        %5054 = vmatpush1.msra.mxu0 %v4044
        %5055 = vmatprep.subr.mxu0 %v4061
        %5056 = vmatpush1.msra.mxu0 %v4060
        %5057 = vmatprep.subr.mxu0 %v4077
        %5058 = vmatpush1.msra.mxu0 %v4076
        %5059 = vmatprep.subr.mxu0 %v4093
        %5060 = vmatpush1.msra.mxu0 %v4092
        %5061 = vmatprep.subr.mxu0 0.0
        %5062 = vmatpush1.msra.mxu0 0.0
        %5063 = vmatprep.subr.mxu0 0.0
        %5064 = vmatpush1.msra.mxu0 0.0
        %5065 = vmatprep.subr.mxu0 0.0
        %5066 = vmatpush1.msra.mxu0 0.0
        %5067 = vmatprep.subr.mxu0 0.0
        %5068 = vmatpush1.msra.mxu0 0.0
        %5069 = vmatprep.subr.mxu0 0.0
        %5070 = vmatpush1.msra.mxu0 0.0
        %5071 = vmatprep.subr.mxu0 0.0
        %5072 = vmatpush1.msra.mxu0 0.0
        %5073 = vmatprep.subr.mxu0 0.0
        %5074 = vmatpush1.msra.mxu0 0.0
        %5075 = vmatprep.subr.mxu0 0.0
        %5076 = vmatpush1.msra.mxu0 0.0
        %5077 = vmatprep.subr.mxu0 0.0
        %5078 = vmatpush1.msra.mxu0 0.0
        %5079 = vmatprep.subr.mxu0 0.0
        %5080 = vmatpush1.msra.mxu0 0.0
        %5081 = vmatprep.subr.mxu0 0.0
        %5082 = vmatpush1.msra.mxu0 0.0
        %5083 = vmatprep.subr.mxu0 0.0
        %5084 = vmatpush1.msra.mxu0 0.0
        %5085 = vmatprep.subr.mxu0 0.0
        %5086 = vmatpush1.msra.mxu0 0.0
        %5087 = vmatprep.subr.mxu0 0.0
        %5088 = vmatpush1.msra.mxu0 0.0
        %5089 = vmatprep.subr.mxu0 0.0
        %5090 = vmatpush1.msra.mxu0 0.0
        %5091 = vmatprep.subr.mxu0 0.0
        %5092 = vmatpush1.msra.mxu0 0.0
        %5093 = vmatprep.mubr.f32.mxu0 0.0
        %5094 = vmatmul.mubr.f32.gmra.mrb[0].mxu0 %v3326
        %v5095 = vpop.f32.mrb[0].mxu0
        %v5096 = vadd.f32 %v5019, %v5095
        %v5097 = vpop.f32.mrb[0].mxu0
        %v5098 = vadd.f32 %v5021, %v5097
        %5099 = vmatprep.mubr.f32.mxu0 0.0
        %5100 = vmatmul.mubr.f32.gmra.mrb[0].mxu0 %v3329
        %v5101 = vpop.f32.mrb[0].mxu0
        %v5102 = vadd.f32 %v5025, %v5101
        %v5103 = vpop.f32.mrb[0].mxu0
        %v5104 = vadd.f32 %v5027, %v5103
        %5105 = vdwg.mxu0
        %5106 = vmatprep.subr.mxu0 %v3343
        %5107 = vmatpush1.msra.mxu0 %v3342
        %5108 = vmatprep.subr.mxu0 %v3359
        %5109 = vmatpush1.msra.mxu0 %v3358
        %5110 = vmatprep.subr.mxu0 %v3375
        %5111 = vmatpush1.msra.mxu0 %v3374
        %5112 = vmatprep.subr.mxu0 %v3391
        %5113 = vmatpush1.msra.mxu0 %v3390
        %5114 = vmatprep.subr.mxu0 %v3407
        %5115 = vmatpush1.msra.mxu0 %v3406
        %5116 = vmatprep.subr.mxu0 %v3423
        %5117 = vmatpush1.msra.mxu0 %v3422
        %5118 = vmatprep.subr.mxu0 %v3439
        %5119 = vmatpush1.msra.mxu0 %v3438
        %5120 = vmatprep.subr.mxu0 %v3455
        %5121 = vmatpush1.msra.mxu0 %v3454
        %5122 = vmatprep.subr.mxu0 %v3471
        %5123 = vmatpush1.msra.mxu0 %v3470
        %5124 = vmatprep.subr.mxu0 %v3487
        %5125 = vmatpush1.msra.mxu0 %v3486
        %5126 = vmatprep.subr.mxu0 %v3503
        %5127 = vmatpush1.msra.mxu0 %v3502
        %5128 = vmatprep.subr.mxu0 %v3519
        %5129 = vmatpush1.msra.mxu0 %v3518
        %5130 = vmatprep.subr.mxu0 %v3535
        %5131 = vmatpush1.msra.mxu0 %v3534
        %5132 = vmatprep.subr.mxu0 %v3551
        %5133 = vmatpush1.msra.mxu0 %v3550
        %5134 = vmatprep.subr.mxu0 %v3567
        %5135 = vmatpush1.msra.mxu0 %v3566
        %5136 = vmatprep.subr.mxu0 %v3583
        %5137 = vmatpush1.msra.mxu0 %v3582
        %5138 = vmatprep.subr.mxu0 %v3599
        %5139 = vmatpush1.msra.mxu0 %v3598
        %5140 = vmatprep.subr.mxu0 %v3615
        %5141 = vmatpush1.msra.mxu0 %v3614
        %5142 = vmatprep.subr.mxu0 %v3631
        %5143 = vmatpush1.msra.mxu0 %v3630
        %5144 = vmatprep.subr.mxu0 %v3647
        %5145 = vmatpush1.msra.mxu0 %v3646
        %5146 = vmatprep.subr.mxu0 %v3663
        %5147 = vmatpush1.msra.mxu0 %v3662
        %5148 = vmatprep.subr.mxu0 %v3679
        %5149 = vmatpush1.msra.mxu0 %v3678
        %5150 = vmatprep.subr.mxu0 %v3695
        %5151 = vmatpush1.msra.mxu0 %v3694
        %5152 = vmatprep.subr.mxu0 %v3711
        %5153 = vmatpush1.msra.mxu0 %v3710
        %5154 = vmatprep.subr.mxu0 %v3727
        %5155 = vmatpush1.msra.mxu0 %v3726
        %5156 = vmatprep.subr.mxu0 %v3743
        %5157 = vmatpush1.msra.mxu0 %v3742
        %5158 = vmatprep.subr.mxu0 %v3759
        %5159 = vmatpush1.msra.mxu0 %v3758
        %5160 = vmatprep.subr.mxu0 %v3775
        %5161 = vmatpush1.msra.mxu0 %v3774
        %5162 = vmatprep.subr.mxu0 %v3791
        %5163 = vmatpush1.msra.mxu0 %v3790
        %5164 = vmatprep.subr.mxu0 %v3807
        %5165 = vmatpush1.msra.mxu0 %v3806
        %5166 = vmatprep.subr.mxu0 %v3823
        %5167 = vmatpush1.msra.mxu0 %v3822
        %5168 = vmatprep.subr.mxu0 %v3839
        %5169 = vmatpush1.msra.mxu0 %v3838
        %5170 = vmatprep.mubr.f32.mxu0 %v3325
        %5171 = vmatmul.mubr.f32.gmra.mrb[0].mxu0 %v3324
        %v5172 = vpop.f32.mrb[0].mxu0
        %v5173 = vadd.f32 %v4153, %v5172
        %v5174 = vpop.f32.mrb[0].mxu0
        %v5175 = vadd.f32 %v4157, %v5174
        %5176 = vmatprep.mubr.f32.mxu0 %v3328
        %5177 = vmatmul.mubr.f32.gmra.mrb[0].mxu0 %v3327
        %v5178 = vpop.f32.mrb[0].mxu0
        %v5179 = vadd.f32 %v4153, %v5178
        %v5180 = vpop.f32.mrb[0].mxu0
        %v5181 = vadd.f32 %v4157, %v5180
        %5182 = vdwg.mxu0
        %5183 = vmatprep.subr.mxu0 %v3855
        %5184 = vmatpush1.msra.mxu0 %v3854
        %5185 = vmatprep.subr.mxu0 %v3871
        %5186 = vmatpush1.msra.mxu0 %v3870
        %5187 = vmatprep.subr.mxu0 %v3887
        %5188 = vmatpush1.msra.mxu0 %v3886
        %5189 = vmatprep.subr.mxu0 %v3903
        %5190 = vmatpush1.msra.mxu0 %v3902
        %5191 = vmatprep.subr.mxu0 %v3919
        %5192 = vmatpush1.msra.mxu0 %v3918
        %5193 = vmatprep.subr.mxu0 %v3935
        %5194 = vmatpush1.msra.mxu0 %v3934
        %5195 = vmatprep.subr.mxu0 %v3951
        %5196 = vmatpush1.msra.mxu0 %v3950
        %5197 = vmatprep.subr.mxu0 %v3967
        %5198 = vmatpush1.msra.mxu0 %v3966
        %5199 = vmatprep.subr.mxu0 %v3983
        %5200 = vmatpush1.msra.mxu0 %v3982
        %5201 = vmatprep.subr.mxu0 %v3999
        %5202 = vmatpush1.msra.mxu0 %v3998
        %5203 = vmatprep.subr.mxu0 %v4015
        %5204 = vmatpush1.msra.mxu0 %v4014
        %5205 = vmatprep.subr.mxu0 %v4031
        %5206 = vmatpush1.msra.mxu0 %v4030
        %5207 = vmatprep.subr.mxu0 %v4047
        %5208 = vmatpush1.msra.mxu0 %v4046
        %5209 = vmatprep.subr.mxu0 %v4063
        %5210 = vmatpush1.msra.mxu0 %v4062
        %5211 = vmatprep.subr.mxu0 %v4079
        %5212 = vmatpush1.msra.mxu0 %v4078
        %5213 = vmatprep.subr.mxu0 %v4095
        %5214 = vmatpush1.msra.mxu0 %v4094
        %5215 = vmatprep.subr.mxu0 0.0
        %5216 = vmatpush1.msra.mxu0 0.0
        %5217 = vmatprep.subr.mxu0 0.0
        %5218 = vmatpush1.msra.mxu0 0.0
        %5219 = vmatprep.subr.mxu0 0.0
        %5220 = vmatpush1.msra.mxu0 0.0
        %5221 = vmatprep.subr.mxu0 0.0
        %5222 = vmatpush1.msra.mxu0 0.0
        %5223 = vmatprep.subr.mxu0 0.0
        %5224 = vmatpush1.msra.mxu0 0.0
        %5225 = vmatprep.subr.mxu0 0.0
        %5226 = vmatpush1.msra.mxu0 0.0
        %5227 = vmatprep.subr.mxu0 0.0
        %5228 = vmatpush1.msra.mxu0 0.0
        %5229 = vmatprep.subr.mxu0 0.0
        %5230 = vmatpush1.msra.mxu0 0.0
        %5231 = vmatprep.subr.mxu0 0.0
        %5232 = vmatpush1.msra.mxu0 0.0
        %5233 = vmatprep.subr.mxu0 0.0
        %5234 = vmatpush1.msra.mxu0 0.0
        %5235 = vmatprep.subr.mxu0 0.0
        %5236 = vmatpush1.msra.mxu0 0.0
        %5237 = vmatprep.subr.mxu0 0.0
        %5238 = vmatpush1.msra.mxu0 0.0
        %5239 = vmatprep.subr.mxu0 0.0
        %5240 = vmatpush1.msra.mxu0 0.0
        %5241 = vmatprep.subr.mxu0 0.0
        %5242 = vmatpush1.msra.mxu0 0.0
        %5243 = vmatprep.subr.mxu0 0.0
        %5244 = vmatpush1.msra.mxu0 0.0
        %5245 = vmatprep.subr.mxu0 0.0
        %5246 = vmatpush1.msra.mxu0 0.0
        %5247 = vmatprep.mubr.f32.mxu0 0.0
        %5248 = vmatmul.mubr.f32.gmra.mrb[0].mxu0 %v3326
        %v5249 = vpop.f32.mrb[0].mxu0
        %v5250 = vadd.f32 %v5173, %v5249
        %v5251 = vpop.f32.mrb[0].mxu0
        %v5252 = vadd.f32 %v5175, %v5251
        %5253 = vmatprep.mubr.f32.mxu0 0.0
        %5254 = vmatmul.mubr.f32.gmra.mrb[0].mxu0 %v3329
        %v5255 = vpop.f32.mrb[0].mxu0
        %v5256 = vadd.f32 %v5179, %v5255
        %v5257 = vpop.f32.mrb[0].mxu0
        %v5258 = vadd.f32 %v5181, %v5257
        %5259 = vdwg.mxu0
        %5260 = vmatprep.subr.mxu0 %v3345
        %5261 = vmatpush1.msra.mxu0 %v3344
        %5262 = vmatprep.subr.mxu0 %v3361
        %5263 = vmatpush1.msra.mxu0 %v3360
        %5264 = vmatprep.subr.mxu0 %v3377
        %5265 = vmatpush1.msra.mxu0 %v3376
        %5266 = vmatprep.subr.mxu0 %v3393
        %5267 = vmatpush1.msra.mxu0 %v3392
        %5268 = vmatprep.subr.mxu0 %v3409
        %5269 = vmatpush1.msra.mxu0 %v3408
        %5270 = vmatprep.subr.mxu0 %v3425
        %5271 = vmatpush1.msra.mxu0 %v3424
        %5272 = vmatprep.subr.mxu0 %v3441
        %5273 = vmatpush1.msra.mxu0 %v3440
        %5274 = vmatprep.subr.mxu0 %v3457
        %5275 = vmatpush1.msra.mxu0 %v3456
        %5276 = vmatprep.subr.mxu0 %v3473
        %5277 = vmatpush1.msra.mxu0 %v3472
        %5278 = vmatprep.subr.mxu0 %v3489
        %5279 = vmatpush1.msra.mxu0 %v3488
        %5280 = vmatprep.subr.mxu0 %v3505
        %5281 = vmatpush1.msra.mxu0 %v3504
        %5282 = vmatprep.subr.mxu0 %v3521
        %5283 = vmatpush1.msra.mxu0 %v3520
        %5284 = vmatprep.subr.mxu0 %v3537
        %5285 = vmatpush1.msra.mxu0 %v3536
        %5286 = vmatprep.subr.mxu0 %v3553
        %5287 = vmatpush1.msra.mxu0 %v3552
        %5288 = vmatprep.subr.mxu0 %v3569
        %5289 = vmatpush1.msra.mxu0 %v3568
        %5290 = vmatprep.subr.mxu0 %v3585
        %5291 = vmatpush1.msra.mxu0 %v3584
        %5292 = vmatprep.subr.mxu0 %v3601
        %5293 = vmatpush1.msra.mxu0 %v3600
        %5294 = vmatprep.subr.mxu0 %v3617
        %5295 = vmatpush1.msra.mxu0 %v3616
        %5296 = vmatprep.subr.mxu0 %v3633
        %5297 = vmatpush1.msra.mxu0 %v3632
        %5298 = vmatprep.subr.mxu0 %v3649
        %5299 = vmatpush1.msra.mxu0 %v3648
        %5300 = vmatprep.subr.mxu0 %v3665
        %5301 = vmatpush1.msra.mxu0 %v3664
        %5302 = vmatprep.subr.mxu0 %v3681
        %5303 = vmatpush1.msra.mxu0 %v3680
        %5304 = vmatprep.subr.mxu0 %v3697
        %5305 = vmatpush1.msra.mxu0 %v3696
        %5306 = vmatprep.subr.mxu0 %v3713
        %5307 = vmatpush1.msra.mxu0 %v3712
        %5308 = vmatprep.subr.mxu0 %v3729
        %5309 = vmatpush1.msra.mxu0 %v3728
        %5310 = vmatprep.subr.mxu0 %v3745
        %5311 = vmatpush1.msra.mxu0 %v3744
        %5312 = vmatprep.subr.mxu0 %v3761
        %5313 = vmatpush1.msra.mxu0 %v3760
        %5314 = vmatprep.subr.mxu0 %v3777
        %5315 = vmatpush1.msra.mxu0 %v3776
        %5316 = vmatprep.subr.mxu0 %v3793
        %5317 = vmatpush1.msra.mxu0 %v3792
        %5318 = vmatprep.subr.mxu0 %v3809
        %5319 = vmatpush1.msra.mxu0 %v3808
        %5320 = vmatprep.subr.mxu0 %v3825
        %5321 = vmatpush1.msra.mxu0 %v3824
        %5322 = vmatprep.subr.mxu0 %v3841
        %5323 = vmatpush1.msra.mxu0 %v3840
        %5324 = vmatprep.mubr.f32.mxu0 %v3325
        %5325 = vmatmul.mubr.f32.gmra.mrb[0].mxu0 %v3324
        %v5326 = vpop.f32.mrb[0].mxu0
        %v5327 = vadd.f32 %v4161, %v5326
        %v5328 = vpop.f32.mrb[0].mxu0
        %v5329 = vadd.f32 %v4165, %v5328
        %5330 = vmatprep.mubr.f32.mxu0 %v3328
        %5331 = vmatmul.mubr.f32.gmra.mrb[0].mxu0 %v3327
        %v5332 = vpop.f32.mrb[0].mxu0
        %v5333 = vadd.f32 %v4161, %v5332
        %v5334 = vpop.f32.mrb[0].mxu0
        %v5335 = vadd.f32 %v4165, %v5334
        %5336 = vdwg.mxu0
        %5337 = vmatprep.subr.mxu0 %v3857
        %5338 = vmatpush1.msra.mxu0 %v3856
        %5339 = vmatprep.subr.mxu0 %v3873
        %5340 = vmatpush1.msra.mxu0 %v3872
        %5341 = vmatprep.subr.mxu0 %v3889
        %5342 = vmatpush1.msra.mxu0 %v3888
        %5343 = vmatprep.subr.mxu0 %v3905
        %5344 = vmatpush1.msra.mxu0 %v3904
        %5345 = vmatprep.subr.mxu0 %v3921
        %5346 = vmatpush1.msra.mxu0 %v3920
        %5347 = vmatprep.subr.mxu0 %v3937
        %5348 = vmatpush1.msra.mxu0 %v3936
        %5349 = vmatprep.subr.mxu0 %v3953
        %5350 = vmatpush1.msra.mxu0 %v3952
        %5351 = vmatprep.subr.mxu0 %v3969
        %5352 = vmatpush1.msra.mxu0 %v3968
        %5353 = vmatprep.subr.mxu0 %v3985
        %5354 = vmatpush1.msra.mxu0 %v3984
        %5355 = vmatprep.subr.mxu0 %v4001
        %5356 = vmatpush1.msra.mxu0 %v4000
        %5357 = vmatprep.subr.mxu0 %v4017
        %5358 = vmatpush1.msra.mxu0 %v4016
        %5359 = vmatprep.subr.mxu0 %v4033
        %5360 = vmatpush1.msra.mxu0 %v4032
        %5361 = vmatprep.subr.mxu0 %v4049
        %5362 = vmatpush1.msra.mxu0 %v4048
        %5363 = vmatprep.subr.mxu0 %v4065
        %5364 = vmatpush1.msra.mxu0 %v4064
        %5365 = vmatprep.subr.mxu0 %v4081
        %5366 = vmatpush1.msra.mxu0 %v4080
        %5367 = vmatprep.subr.mxu0 %v4097
        %5368 = vmatpush1.msra.mxu0 %v4096
        %5369 = vmatprep.subr.mxu0 0.0
        %5370 = vmatpush1.msra.mxu0 0.0
        %5371 = vmatprep.subr.mxu0 0.0
        %5372 = vmatpush1.msra.mxu0 0.0
        %5373 = vmatprep.subr.mxu0 0.0
        %5374 = vmatpush1.msra.mxu0 0.0
        %5375 = vmatprep.subr.mxu0 0.0
        %5376 = vmatpush1.msra.mxu0 0.0
        %5377 = vmatprep.subr.mxu0 0.0
        %5378 = vmatpush1.msra.mxu0 0.0
        %5379 = vmatprep.subr.mxu0 0.0
        %5380 = vmatpush1.msra.mxu0 0.0
        %5381 = vmatprep.subr.mxu0 0.0
        %5382 = vmatpush1.msra.mxu0 0.0
        %5383 = vmatprep.subr.mxu0 0.0
        %5384 = vmatpush1.msra.mxu0 0.0
        %5385 = vmatprep.subr.mxu0 0.0
        %5386 = vmatpush1.msra.mxu0 0.0
        %5387 = vmatprep.subr.mxu0 0.0
        %5388 = vmatpush1.msra.mxu0 0.0
        %5389 = vmatprep.subr.mxu0 0.0
        %5390 = vmatpush1.msra.mxu0 0.0
        %5391 = vmatprep.subr.mxu0 0.0
        %5392 = vmatpush1.msra.mxu0 0.0
        %5393 = vmatprep.subr.mxu0 0.0
        %5394 = vmatpush1.msra.mxu0 0.0
        %5395 = vmatprep.subr.mxu0 0.0
        %5396 = vmatpush1.msra.mxu0 0.0
        %5397 = vmatprep.subr.mxu0 0.0
        %5398 = vmatpush1.msra.mxu0 0.0
        %5399 = vmatprep.subr.mxu0 0.0
        %5400 = vmatpush1.msra.mxu0 0.0
        %5401 = vmatprep.mubr.f32.mxu0 0.0
        %5402 = vmatmul.mubr.f32.gmra.mrb[0].mxu0 %v3326
        %v5403 = vpop.f32.mrb[0].mxu0
        %v5404 = vadd.f32 %v5327, %v5403
        %v5405 = vpop.f32.mrb[0].mxu0
        %v5406 = vadd.f32 %v5329, %v5405
        %5407 = vmatprep.mubr.f32.mxu0 0.0
        %5408 = vmatmul.mubr.f32.gmra.mrb[0].mxu0 %v3329
        %v5409 = vpop.f32.mrb[0].mxu0
        %v5410 = vadd.f32 %v5333, %v5409
        %v5411 = vpop.f32.mrb[0].mxu0
        %v5412 = vadd.f32 %v5335, %v5411
        %5413 = vdwg.mxu0
        %v5414 = vmax.f32 %v4326, 0.0
        %v5415 = vmax.f32 %v4328, 0.0
        %v5416 = vmax.f32 %v4480, 0.0
        %v5417 = vmax.f32 %v4482, 0.0
        %v5418 = vmax.f32 %v4634, 0.0
        %v5419 = vmax.f32 %v4636, 0.0
        %v5420 = vmax.f32 %v4788, 0.0
        %v5421 = vmax.f32 %v4790, 0.0
        %v5422 = vmax.f32 %v4942, 0.0
        %v5423 = vmax.f32 %v4944, 0.0
        %v5424 = vmax.f32 %v5096, 0.0
        %v5425 = vmax.f32 %v5098, 0.0
        %v5426 = vmax.f32 %v5250, 0.0
        %v5427 = vmax.f32 %v5252, 0.0
        %v5428 = vmax.f32 %v5404, 0.0
        %v5429 = vmax.f32 %v5406, 0.0
        %v5430 = vmax.f32 %v4332, 0.0
        %v5431 = vmax.f32 %v4334, 0.0
        %v5432 = vmax.f32 %v4486, 0.0
        %v5433 = vmax.f32 %v4488, 0.0
        %v5434 = vmax.f32 %v4640, 0.0
        %v5435 = vmax.f32 %v4642, 0.0
        %v5436 = vmax.f32 %v4794, 0.0
        %v5437 = vmax.f32 %v4796, 0.0
        %v5438 = vmax.f32 %v4948, 0.0
        %v5439 = vmax.f32 %v4950, 0.0
        %v5440 = vmax.f32 %v5102, 0.0
        %v5441 = vmax.f32 %v5104, 0.0
        %v5442 = vmax.f32 %v5256, 0.0
        %v5443 = vmax.f32 %v5258, 0.0
        %v5444 = vmax.f32 %v5410, 0.0
        %v5445 = vmax.f32 %v5412, 0.0
        %v5446 = vld [vmem:[%s535] sm:$0xff]
        %v5447 = vld [vmem:[%s535 + $0x8] sm:$0xff]
        %v5448 = vld [vmem:[%s535 + $0x10] sm:$0xff]
        %v5449 = vld [vmem:[%s535 + $0x18] sm:$0xff]
        %v5450 = vld [vmem:[%s535 + $0x20] sm:$0xff]
        %v5451 = vld [vmem:[%s535 + $0x28] sm:$0xff]
        %v5452 = vld [vmem:[%s535 + $0x30] sm:$0xff]
        %v5453 = vld [vmem:[%s535 + $0x38] sm:$0xff]
        %v5454 = vld [vmem:[%s535 + $0x40] sm:$0xff]
        %v5455 = vld [vmem:[%s535 + $0x48] sm:$0xff]
        %v5456 = vld [vmem:[%s535 + $0x50] sm:$0xff]
        %v5457 = vld [vmem:[%s535 + $0x58] sm:$0xff]
        %v5458 = vld [vmem:[%s535 + $0x60] sm:$0xff]
        %v5459 = vld [vmem:[%s535 + $0x68] sm:$0xff]
        %v5460 = vld [vmem:[%s535 + $0x70] sm:$0xff]
        %v5461 = vld [vmem:[%s535 + $0x78] sm:$0xff]
        %v5462 = vld [vmem:[%s535 + $0x80] sm:$0xff]
        %v5463 = vld [vmem:[%s535 + $0x88] sm:$0xff]
        %v5464 = vld [vmem:[%s535 + $0x90] sm:$0xff]
        %v5465 = vld [vmem:[%s535 + $0x98] sm:$0xff]
        %v5466 = vld [vmem:[%s535 + $0xa0] sm:$0xff]
        %v5467 = vld [vmem:[%s535 + $0xa8] sm:$0xff]
        %v5468 = vld [vmem:[%s535 + $0xb0] sm:$0xff]
        %v5469 = vld [vmem:[%s535 + $0xb8] sm:$0xff]
        %v5470 = vld [vmem:[%s535 + $0xc0] sm:$0xff]
        %v5471 = vld [vmem:[%s535 + $0xc8] sm:$0xff]
        %v5472 = vld [vmem:[%s535 + $0xd0] sm:$0xff]
        %v5473 = vld [vmem:[%s535 + $0xd8] sm:$0xff]
        %v5474 = vld [vmem:[%s535 + $0xe0] sm:$0xff]
        %v5475 = vld [vmem:[%s535 + $0xe8] sm:$0xff]
        %v5476 = vld [vmem:[%s535 + $0xf0] sm:$0xff]
        %v5477 = vld [vmem:[%s535 + $0xf8] sm:$0xff]
        %v5478 = vld [vmem:[%s535 + $0x100] sm:$0xff]
        %v5479 = vld [vmem:[%s535 + $0x108] sm:$0xff]
        %v5480 = vld [vmem:[%s535 + $0x110] sm:$0xff]
        %v5481 = vld [vmem:[%s535 + $0x118] sm:$0xff]
        %v5482 = vld [vmem:[%s535 + $0x120] sm:$0xff]
        %v5483 = vld [vmem:[%s535 + $0x128] sm:$0xff]
        %v5484 = vld [vmem:[%s535 + $0x130] sm:$0xff]
        %v5485 = vld [vmem:[%s535 + $0x138] sm:$0xff]
        %v5486 = vld [vmem:[%s535 + $0x140] sm:$0xff]
        %v5487 = vld [vmem:[%s535 + $0x148] sm:$0xff]
        %v5488 = vld [vmem:[%s535 + $0x150] sm:$0xff]
        %v5489 = vld [vmem:[%s535 + $0x158] sm:$0xff]
        %v5490 = vld [vmem:[%s535 + $0x160] sm:$0xff]
        %v5491 = vld [vmem:[%s535 + $0x168] sm:$0xff]
        %v5492 = vld [vmem:[%s535 + $0x170] sm:$0xff]
        %v5493 = vld [vmem:[%s535 + $0x178] sm:$0xff]
        %v5494 = vld [vmem:[%s535 + $0x180] sm:$0xff]
        %v5495 = vld [vmem:[%s535 + $0x188] sm:$0xff]
        %v5496 = vld [vmem:[%s535 + $0x190] sm:$0xff]
        %v5497 = vld [vmem:[%s535 + $0x198] sm:$0xff]
        %v5498 = vld [vmem:[%s535 + $0x1a0] sm:$0xff]
        %v5499 = vld [vmem:[%s535 + $0x1a8] sm:$0xff]
        %v5500 = vld [vmem:[%s535 + $0x1b0] sm:$0xff]
        %v5501 = vld [vmem:[%s535 + $0x1b8] sm:$0xff]
        %v5502 = vld [vmem:[%s535 + $0x1c0] sm:$0xff]
        %v5503 = vld [vmem:[%s535 + $0x1c8] sm:$0xff]
        %v5504 = vld [vmem:[%s535 + $0x1d0] sm:$0xff]
        %v5505 = vld [vmem:[%s535 + $0x1d8] sm:$0xff]
        %v5506 = vld [vmem:[%s535 + $0x1e0] sm:$0xff]
        %v5507 = vld [vmem:[%s535 + $0x1e8] sm:$0xff]
        %v5508 = vld [vmem:[%s535 + $0x1f0] sm:$0xff]
        %v5509 = vld [vmem:[%s535 + $0x1f8] sm:$0xff]
        %v5510 = vld [vmem:[%s535 + $0x200] sm:$0xff]
        %v5511 = vld [vmem:[%s535 + $0x208] sm:$0xff]
        %v5512 = vld [vmem:[%s535 + $0x210] sm:$0xff]
        %v5513 = vld [vmem:[%s535 + $0x218] sm:$0xff]
        %v5514 = vld [vmem:[%s535 + $0x220] sm:$0xff]
        %v5515 = vld [vmem:[%s535 + $0x228] sm:$0xff]
        %v5516 = vld [vmem:[%s535 + $0x230] sm:$0xff]
        %v5517 = vld [vmem:[%s535 + $0x238] sm:$0xff]
        %v5518 = vld [vmem:[%s535 + $0x240] sm:$0xff]
        %v5519 = vld [vmem:[%s535 + $0x248] sm:$0xff]
        %v5520 = vld [vmem:[%s535 + $0x250] sm:$0xff]
        %v5521 = vld [vmem:[%s535 + $0x258] sm:$0xff]
        %v5522 = vld [vmem:[%s535 + $0x260] sm:$0xff]
        %v5523 = vld [vmem:[%s535 + $0x268] sm:$0xff]
        %v5524 = vld [vmem:[%s535 + $0x270] sm:$0xff]
        %v5525 = vld [vmem:[%s535 + $0x278] sm:$0xff]
        %v5526 = vld [vmem:[%s535 + $0x280] sm:$0xff]
        %v5527 = vld [vmem:[%s535 + $0x288] sm:$0xff]
        %v5528 = vld [vmem:[%s535 + $0x290] sm:$0xff]
        %v5529 = vld [vmem:[%s535 + $0x298] sm:$0xff]
        %v5530 = vld [vmem:[%s535 + $0x2a0] sm:$0xff]
        %v5531 = vld [vmem:[%s535 + $0x2a8] sm:$0xff]
        %v5532 = vld [vmem:[%s535 + $0x2b0] sm:$0xff]
        %v5533 = vld [vmem:[%s535 + $0x2b8] sm:$0xff]
        %v5534 = vld [vmem:[%s535 + $0x2c0] sm:$0xff]
        %v5535 = vld [vmem:[%s535 + $0x2c8] sm:$0xff]
        %v5536 = vld [vmem:[%s535 + $0x2d0] sm:$0xff]
        %v5537 = vld [vmem:[%s535 + $0x2d8] sm:$0xff]
        %v5538 = vld [vmem:[%s535 + $0x2e0] sm:$0xff]
        %v5539 = vld [vmem:[%s535 + $0x2e8] sm:$0xff]
        %v5540 = vld [vmem:[%s535 + $0x2f0] sm:$0xff]
        %v5541 = vld [vmem:[%s535 + $0x2f8] sm:$0xff]
        %v5542 = vld [vmem:[%s535 + $0x300] sm:$0xff]
        %v5543 = vld [vmem:[%s535 + $0x308] sm:$0xff]
        %v5544 = vld [vmem:[%s535 + $0x310] sm:$0xff]
        %v5545 = vld [vmem:[%s535 + $0x318] sm:$0xff]
        %v5546 = vld [vmem:[%s535 + $0x320] sm:$0xff]
        %v5547 = vld [vmem:[%s535 + $0x328] sm:$0xff]
        %v5548 = vld [vmem:[%s535 + $0x330] sm:$0xff]
        %v5549 = vld [vmem:[%s535 + $0x338] sm:$0xff]
        %v5550 = vld [vmem:[%s535 + $0x340] sm:$0xff]
        %v5551 = vld [vmem:[%s535 + $0x348] sm:$0xff]
        %v5552 = vld [vmem:[%s535 + $0x350] sm:$0xff]
        %v5553 = vld [vmem:[%s535 + $0x358] sm:$0xff]
        %v5554 = vld [vmem:[%s535 + $0x360] sm:$0xff]
        %v5555 = vld [vmem:[%s535 + $0x368] sm:$0xff]
        %v5556 = vld [vmem:[%s535 + $0x370] sm:$0xff]
        %v5557 = vld [vmem:[%s535 + $0x378] sm:$0xff]
        %v5558 = vld [vmem:[%s535 + $0x380] sm:$0xff]
        %v5559 = vld [vmem:[%s535 + $0x388] sm:$0xff]
        %v5560 = vld [vmem:[%s535 + $0x390] sm:$0xff]
        %v5561 = vld [vmem:[%s535 + $0x398] sm:$0xff]
        %v5562 = vld [vmem:[%s535 + $0x3a0] sm:$0xff]
        %v5563 = vld [vmem:[%s535 + $0x3a8] sm:$0xff]
        %v5564 = vld [vmem:[%s535 + $0x3b0] sm:$0xff]
        %v5565 = vld [vmem:[%s535 + $0x3b8] sm:$0xff]
        %v5566 = vld [vmem:[%s535 + $0x3c0] sm:$0xff]
        %v5567 = vld [vmem:[%s535 + $0x3c8] sm:$0xff]
        %v5568 = vld [vmem:[%s535 + $0x3d0] sm:$0xff]
        %v5569 = vld [vmem:[%s535 + $0x3d8] sm:$0xff]
        %v5570 = vld [vmem:[%s535 + $0x3e0] sm:$0xff]
        %v5571 = vld [vmem:[%s535 + $0x3e8] sm:$0xff]
        %v5572 = vld [vmem:[%s535 + $0x3f0] sm:$0xff]
        %v5573 = vld [vmem:[%s535 + $0x3f8] sm:$0xff]
        %v5574 = vld [vmem:[%s535 + $0x400] sm:$0xff]
        %v5575 = vld [vmem:[%s535 + $0x408] sm:$0xff]
        %v5576 = vld [vmem:[%s535 + $0x410] sm:$0xff]
        %v5577 = vld [vmem:[%s535 + $0x418] sm:$0xff]
        %v5578 = vld [vmem:[%s535 + $0x420] sm:$0xff]
        %v5579 = vld [vmem:[%s535 + $0x428] sm:$0xff]
        %v5580 = vld [vmem:[%s535 + $0x430] sm:$0xff]
        %v5581 = vld [vmem:[%s535 + $0x438] sm:$0xff]
        %v5582 = vld [vmem:[%s535 + $0x440] sm:$0xff]
        %v5583 = vld [vmem:[%s535 + $0x448] sm:$0xff]
        %v5584 = vld [vmem:[%s535 + $0x450] sm:$0xff]
        %v5585 = vld [vmem:[%s535 + $0x458] sm:$0xff]
        %v5586 = vld [vmem:[%s535 + $0x460] sm:$0xff]
        %v5587 = vld [vmem:[%s535 + $0x468] sm:$0xff]
        %v5588 = vld [vmem:[%s535 + $0x470] sm:$0xff]
        %v5589 = vld [vmem:[%s535 + $0x478] sm:$0xff]
        %v5590 = vld [vmem:[%s535 + $0x480] sm:$0xff]
        %v5591 = vld [vmem:[%s535 + $0x488] sm:$0xff]
        %v5592 = vld [vmem:[%s535 + $0x490] sm:$0xff]
        %v5593 = vld [vmem:[%s535 + $0x498] sm:$0xff]
        %v5594 = vld [vmem:[%s535 + $0x4a0] sm:$0xff]
        %v5595 = vld [vmem:[%s535 + $0x4a8] sm:$0xff]
        %v5596 = vld [vmem:[%s535 + $0x4b0] sm:$0xff]
        %v5597 = vld [vmem:[%s535 + $0x4b8] sm:$0xff]
        %v5598 = vld [vmem:[%s535 + $0x4c0] sm:$0xff]
        %v5599 = vld [vmem:[%s535 + $0x4c8] sm:$0xff]
        %v5600 = vld [vmem:[%s535 + $0x4d0] sm:$0xff]
        %v5601 = vld [vmem:[%s535 + $0x4d8] sm:$0xff]
        %v5602 = vld [vmem:[%s535 + $0x4e0] sm:$0xff]
        %v5603 = vld [vmem:[%s535 + $0x4e8] sm:$0xff]
        %v5604 = vld [vmem:[%s535 + $0x4f0] sm:$0xff]
        %v5605 = vld [vmem:[%s535 + $0x4f8] sm:$0xff]
        %v5606 = vld [vmem:[%s535 + $0x500] sm:$0xff]
        %v5607 = vld [vmem:[%s535 + $0x508] sm:$0xff]
        %v5608 = vld [vmem:[%s535 + $0x510] sm:$0xff]
        %v5609 = vld [vmem:[%s535 + $0x518] sm:$0xff]
        %v5610 = vld [vmem:[%s535 + $0x520] sm:$0xff]
        %v5611 = vld [vmem:[%s535 + $0x528] sm:$0xff]
        %v5612 = vld [vmem:[%s535 + $0x530] sm:$0xff]
        %v5613 = vld [vmem:[%s535 + $0x538] sm:$0xff]
        %v5614 = vld [vmem:[%s535 + $0x540] sm:$0xff]
        %v5615 = vld [vmem:[%s535 + $0x548] sm:$0xff]
        %v5616 = vld [vmem:[%s535 + $0x550] sm:$0xff]
        %v5617 = vld [vmem:[%s535 + $0x558] sm:$0xff]
        %v5618 = vld [vmem:[%s535 + $0x560] sm:$0xff]
        %v5619 = vld [vmem:[%s535 + $0x568] sm:$0xff]
        %v5620 = vld [vmem:[%s535 + $0x570] sm:$0xff]
        %v5621 = vld [vmem:[%s535 + $0x578] sm:$0xff]
        %v5622 = vld [vmem:[%s535 + $0x580] sm:$0xff]
        %v5623 = vld [vmem:[%s535 + $0x588] sm:$0xff]
        %v5624 = vld [vmem:[%s535 + $0x590] sm:$0xff]
        %v5625 = vld [vmem:[%s535 + $0x598] sm:$0xff]
        %v5626 = vld [vmem:[%s535 + $0x5a0] sm:$0xff]
        %v5627 = vld [vmem:[%s535 + $0x5a8] sm:$0xff]
        %v5628 = vld [vmem:[%s535 + $0x5b0] sm:$0xff]
        %v5629 = vld [vmem:[%s535 + $0x5b8] sm:$0xff]
        %v5630 = vld [vmem:[%s535 + $0x5c0] sm:$0xff]
        %v5631 = vld [vmem:[%s535 + $0x5c8] sm:$0xff]
        %v5632 = vld [vmem:[%s535 + $0x5d0] sm:$0xff]
        %v5633 = vld [vmem:[%s535 + $0x5d8] sm:$0xff]
        %v5634 = vld [vmem:[%s535 + $0x5e0] sm:$0xff]
        %v5635 = vld [vmem:[%s535 + $0x5e8] sm:$0xff]
        %v5636 = vld [vmem:[%s535 + $0x5f0] sm:$0xff]
        %v5637 = vld [vmem:[%s535 + $0x5f8] sm:$0xff]
        %v5638 = vld [vmem:[%s535 + $0x600] sm:$0xff]
        %v5639 = vld [vmem:[%s535 + $0x608] sm:$0xff]
        %v5640 = vld [vmem:[%s535 + $0x610] sm:$0xff]
        %v5641 = vld [vmem:[%s535 + $0x618] sm:$0xff]
        %v5642 = vld [vmem:[%s535 + $0x620] sm:$0xff]
        %v5643 = vld [vmem:[%s535 + $0x628] sm:$0xff]
        %v5644 = vld [vmem:[%s535 + $0x630] sm:$0xff]
        %v5645 = vld [vmem:[%s535 + $0x638] sm:$0xff]
        %v5646 = vld [vmem:[%s535 + $0x640] sm:$0xff]
        %v5647 = vld [vmem:[%s535 + $0x648] sm:$0xff]
        %v5648 = vld [vmem:[%s535 + $0x650] sm:$0xff]
        %v5649 = vld [vmem:[%s535 + $0x658] sm:$0xff]
        %v5650 = vld [vmem:[%s535 + $0x660] sm:$0xff]
        %v5651 = vld [vmem:[%s535 + $0x668] sm:$0xff]
        %v5652 = vld [vmem:[%s535 + $0x670] sm:$0xff]
        %v5653 = vld [vmem:[%s535 + $0x678] sm:$0xff]
        %v5654 = vld [vmem:[%s535 + $0x680] sm:$0xff]
        %v5655 = vld [vmem:[%s535 + $0x688] sm:$0xff]
        %v5656 = vld [vmem:[%s535 + $0x690] sm:$0xff]
        %v5657 = vld [vmem:[%s535 + $0x698] sm:$0xff]
        %v5658 = vld [vmem:[%s535 + $0x6a0] sm:$0xff]
        %v5659 = vld [vmem:[%s535 + $0x6a8] sm:$0xff]
        %v5660 = vld [vmem:[%s535 + $0x6b0] sm:$0xff]
        %v5661 = vld [vmem:[%s535 + $0x6b8] sm:$0xff]
        %v5662 = vld [vmem:[%s535 + $0x6c0] sm:$0xff]
        %v5663 = vld [vmem:[%s535 + $0x6c8] sm:$0xff]
        %v5664 = vld [vmem:[%s535 + $0x6d0] sm:$0xff]
        %v5665 = vld [vmem:[%s535 + $0x6d8] sm:$0xff]
        %v5666 = vld [vmem:[%s535 + $0x6e0] sm:$0xff]
        %v5667 = vld [vmem:[%s535 + $0x6e8] sm:$0xff]
        %v5668 = vld [vmem:[%s535 + $0x6f0] sm:$0xff]
        %v5669 = vld [vmem:[%s535 + $0x6f8] sm:$0xff]
        %v5670 = vld [vmem:[%s535 + $0x700] sm:$0xff]
        %v5671 = vld [vmem:[%s535 + $0x708] sm:$0xff]
        %v5672 = vld [vmem:[%s535 + $0x710] sm:$0xff]
        %v5673 = vld [vmem:[%s535 + $0x718] sm:$0xff]
        %v5674 = vld [vmem:[%s535 + $0x720] sm:$0xff]
        %v5675 = vld [vmem:[%s535 + $0x728] sm:$0xff]
        %v5676 = vld [vmem:[%s535 + $0x730] sm:$0xff]
        %v5677 = vld [vmem:[%s535 + $0x738] sm:$0xff]
        %v5678 = vld [vmem:[%s535 + $0x740] sm:$0xff]
        %v5679 = vld [vmem:[%s535 + $0x748] sm:$0xff]
        %v5680 = vld [vmem:[%s535 + $0x750] sm:$0xff]
        %v5681 = vld [vmem:[%s535 + $0x758] sm:$0xff]
        %v5682 = vld [vmem:[%s535 + $0x760] sm:$0xff]
        %v5683 = vld [vmem:[%s535 + $0x768] sm:$0xff]
        %v5684 = vld [vmem:[%s535 + $0x770] sm:$0xff]
        %v5685 = vld [vmem:[%s535 + $0x778] sm:$0xff]
        %v5686 = vld [vmem:[%s535 + $0x780] sm:$0xff]
        %v5687 = vld [vmem:[%s535 + $0x788] sm:$0xff]
        %v5688 = vld [vmem:[%s535 + $0x790] sm:$0xff]
        %v5689 = vld [vmem:[%s535 + $0x798] sm:$0xff]
        %v5690 = vld [vmem:[%s535 + $0x7a0] sm:$0xff]
        %v5691 = vld [vmem:[%s535 + $0x7a8] sm:$0xff]
        %v5692 = vld [vmem:[%s535 + $0x7b0] sm:$0xff]
        %v5693 = vld [vmem:[%s535 + $0x7b8] sm:$0xff]
        %v5694 = vld [vmem:[%s535 + $0x7c0] sm:$0xff]
        %v5695 = vld [vmem:[%s535 + $0x7c8] sm:$0xff]
        %v5696 = vld [vmem:[%s535 + $0x7d0] sm:$0xff]
        %v5697 = vld [vmem:[%s535 + $0x7d8] sm:$0xff]
        %v5698 = vld [vmem:[%s535 + $0x7e0] sm:$0xff]
        %v5699 = vld [vmem:[%s535 + $0x7e8] sm:$0xff]
        %v5700 = vld [vmem:[%s535 + $0x7f0] sm:$0xff]
        %v5701 = vld [vmem:[%s535 + $0x7f8] sm:$0xff]
        %v5702 = vld [vmem:[%s535 + $0x800] sm:$0xff]
        %v5703 = vld [vmem:[%s535 + $0x808] sm:$0xff]
        %v5704 = vld [vmem:[%s535 + $0x810] sm:$0xff]
        %v5705 = vld [vmem:[%s535 + $0x818] sm:$0xff]
        %v5706 = vld [vmem:[%s535 + $0x820] sm:$0xff]
        %v5707 = vld [vmem:[%s535 + $0x828] sm:$0xff]
        %v5708 = vld [vmem:[%s535 + $0x830] sm:$0xff]
        %v5709 = vld [vmem:[%s535 + $0x838] sm:$0xff]
        %v5710 = vld [vmem:[%s535 + $0x840] sm:$0xff]
        %v5711 = vld [vmem:[%s535 + $0x848] sm:$0xff]
        %v5712 = vld [vmem:[%s535 + $0x850] sm:$0xff]
        %v5713 = vld [vmem:[%s535 + $0x858] sm:$0xff]
        %v5714 = vld [vmem:[%s535 + $0x860] sm:$0xff]
        %v5715 = vld [vmem:[%s535 + $0x868] sm:$0xff]
        %v5716 = vld [vmem:[%s535 + $0x870] sm:$0xff]
        %v5717 = vld [vmem:[%s535 + $0x878] sm:$0xff]
        %v5718 = vld [vmem:[%s535 + $0x880] sm:$0xff]
        %v5719 = vld [vmem:[%s535 + $0x888] sm:$0xff]
        %v5720 = vld [vmem:[%s535 + $0x890] sm:$0xff]
        %v5721 = vld [vmem:[%s535 + $0x898] sm:$0xff]
        %v5722 = vld [vmem:[%s535 + $0x8a0] sm:$0xff]
        %v5723 = vld [vmem:[%s535 + $0x8a8] sm:$0xff]
        %v5724 = vld [vmem:[%s535 + $0x8b0] sm:$0xff]
        %v5725 = vld [vmem:[%s535 + $0x8b8] sm:$0xff]
        %v5726 = vld [vmem:[%s535 + $0x8c0] sm:$0xff]
        %v5727 = vld [vmem:[%s535 + $0x8c8] sm:$0xff]
        %v5728 = vld [vmem:[%s535 + $0x8d0] sm:$0xff]
        %v5729 = vld [vmem:[%s535 + $0x8d8] sm:$0xff]
        %v5730 = vld [vmem:[%s535 + $0x8e0] sm:$0xff]
        %v5731 = vld [vmem:[%s535 + $0x8e8] sm:$0xff]
        %v5732 = vld [vmem:[%s535 + $0x8f0] sm:$0xff]
        %v5733 = vld [vmem:[%s535 + $0x8f8] sm:$0xff]
        %v5734 = vld [vmem:[%s535 + $0x900] sm:$0xff]
        %v5735 = vld [vmem:[%s535 + $0x908] sm:$0xff]
        %v5736 = vld [vmem:[%s535 + $0x910] sm:$0xff]
        %v5737 = vld [vmem:[%s535 + $0x918] sm:$0xff]
        %v5738 = vld [vmem:[%s535 + $0x920] sm:$0xff]
        %v5739 = vld [vmem:[%s535 + $0x928] sm:$0xff]
        %v5740 = vld [vmem:[%s535 + $0x930] sm:$0xff]
        %v5741 = vld [vmem:[%s535 + $0x938] sm:$0xff]
        %v5742 = vld [vmem:[%s535 + $0x940] sm:$0xff]
        %v5743 = vld [vmem:[%s535 + $0x948] sm:$0xff]
        %v5744 = vld [vmem:[%s535 + $0x950] sm:$0xff]
        %v5745 = vld [vmem:[%s535 + $0x958] sm:$0xff]
        %v5746 = vld [vmem:[%s535 + $0x960] sm:$0xff]
        %v5747 = vld [vmem:[%s535 + $0x968] sm:$0xff]
        %v5748 = vld [vmem:[%s535 + $0x970] sm:$0xff]
        %v5749 = vld [vmem:[%s535 + $0x978] sm:$0xff]
        %v5750 = vld [vmem:[%s535 + $0x980] sm:$0xff]
        %v5751 = vld [vmem:[%s535 + $0x988] sm:$0xff]
        %v5752 = vld [vmem:[%s535 + $0x990] sm:$0xff]
        %v5753 = vld [vmem:[%s535 + $0x998] sm:$0xff]
        %v5754 = vld [vmem:[%s535 + $0x9a0] sm:$0xff]
        %v5755 = vld [vmem:[%s535 + $0x9a8] sm:$0xff]
        %v5756 = vld [vmem:[%s535 + $0x9b0] sm:$0xff]
        %v5757 = vld [vmem:[%s535 + $0x9b8] sm:$0xff]
        %v5758 = vld [vmem:[%s535 + $0x9c0] sm:$0xff]
        %v5759 = vld [vmem:[%s535 + $0x9c8] sm:$0xff]
        %v5760 = vld [vmem:[%s535 + $0x9d0] sm:$0xff]
        %v5761 = vld [vmem:[%s535 + $0x9d8] sm:$0xff]
        %v5762 = vld [vmem:[%s535 + $0x9e0] sm:$0xff]
        %v5763 = vld [vmem:[%s535 + $0x9e8] sm:$0xff]
        %v5764 = vld [vmem:[%s535 + $0x9f0] sm:$0xff]
        %v5765 = vld [vmem:[%s535 + $0x9f8] sm:$0xff]
        %v5766 = vld [vmem:[%s535 + $0xa00] sm:$0xff]
        %v5767 = vld [vmem:[%s535 + $0xa08] sm:$0xff]
        %v5768 = vld [vmem:[%s535 + $0xa10] sm:$0xff]
        %v5769 = vld [vmem:[%s535 + $0xa18] sm:$0xff]
        %v5770 = vld [vmem:[%s535 + $0xa20] sm:$0xff]
        %v5771 = vld [vmem:[%s535 + $0xa28] sm:$0xff]
        %v5772 = vld [vmem:[%s535 + $0xa30] sm:$0xff]
        %v5773 = vld [vmem:[%s535 + $0xa38] sm:$0xff]
        %v5774 = vld [vmem:[%s535 + $0xa40] sm:$0xff]
        %v5775 = vld [vmem:[%s535 + $0xa48] sm:$0xff]
        %v5776 = vld [vmem:[%s535 + $0xa50] sm:$0xff]
        %v5777 = vld [vmem:[%s535 + $0xa58] sm:$0xff]
        %v5778 = vld [vmem:[%s535 + $0xa60] sm:$0xff]
        %v5779 = vld [vmem:[%s535 + $0xa68] sm:$0xff]
        %v5780 = vld [vmem:[%s535 + $0xa70] sm:$0xff]
        %v5781 = vld [vmem:[%s535 + $0xa78] sm:$0xff]
        %v5782 = vld [vmem:[%s535 + $0xa80] sm:$0xff]
        %v5783 = vld [vmem:[%s535 + $0xa88] sm:$0xff]
        %v5784 = vld [vmem:[%s535 + $0xa90] sm:$0xff]
        %v5785 = vld [vmem:[%s535 + $0xa98] sm:$0xff]
        %v5786 = vld [vmem:[%s535 + $0xaa0] sm:$0xff]
        %v5787 = vld [vmem:[%s535 + $0xaa8] sm:$0xff]
        %v5788 = vld [vmem:[%s535 + $0xab0] sm:$0xff]
        %v5789 = vld [vmem:[%s535 + $0xab8] sm:$0xff]
        %v5790 = vld [vmem:[%s535 + $0xac0] sm:$0xff]
        %v5791 = vld [vmem:[%s535 + $0xac8] sm:$0xff]
        %v5792 = vld [vmem:[%s535 + $0xad0] sm:$0xff]
        %v5793 = vld [vmem:[%s535 + $0xad8] sm:$0xff]
        %v5794 = vld [vmem:[%s535 + $0xae0] sm:$0xff]
        %v5795 = vld [vmem:[%s535 + $0xae8] sm:$0xff]
        %v5796 = vld [vmem:[%s535 + $0xaf0] sm:$0xff]
        %v5797 = vld [vmem:[%s535 + $0xaf8] sm:$0xff]
        %v5798 = vld [vmem:[%s535 + $0xb00] sm:$0xff]
        %v5799 = vld [vmem:[%s535 + $0xb08] sm:$0xff]
        %v5800 = vld [vmem:[%s535 + $0xb10] sm:$0xff]
        %v5801 = vld [vmem:[%s535 + $0xb18] sm:$0xff]
        %v5802 = vld [vmem:[%s535 + $0xb20] sm:$0xff]
        %v5803 = vld [vmem:[%s535 + $0xb28] sm:$0xff]
        %v5804 = vld [vmem:[%s535 + $0xb30] sm:$0xff]
        %v5805 = vld [vmem:[%s535 + $0xb38] sm:$0xff]
        %v5806 = vld [vmem:[%s535 + $0xb40] sm:$0xff]
        %v5807 = vld [vmem:[%s535 + $0xb48] sm:$0xff]
        %v5808 = vld [vmem:[%s535 + $0xb50] sm:$0xff]
        %v5809 = vld [vmem:[%s535 + $0xb58] sm:$0xff]
        %v5810 = vld [vmem:[%s535 + $0xb60] sm:$0xff]
        %v5811 = vld [vmem:[%s535 + $0xb68] sm:$0xff]
        %v5812 = vld [vmem:[%s535 + $0xb70] sm:$0xff]
        %v5813 = vld [vmem:[%s535 + $0xb78] sm:$0xff]
        %v5814 = vld [vmem:[%s535 + $0xb80] sm:$0xff]
        %v5815 = vld [vmem:[%s535 + $0xb88] sm:$0xff]
        %v5816 = vld [vmem:[%s535 + $0xb90] sm:$0xff]
        %v5817 = vld [vmem:[%s535 + $0xb98] sm:$0xff]
        %v5818 = vld [vmem:[%s535 + $0xba0] sm:$0xff]
        %v5819 = vld [vmem:[%s535 + $0xba8] sm:$0xff]
        %v5820 = vld [vmem:[%s535 + $0xbb0] sm:$0xff]
        %v5821 = vld [vmem:[%s535 + $0xbb8] sm:$0xff]
        %v5822 = vld [vmem:[%s535 + $0xbc0] sm:$0xff]
        %v5823 = vld [vmem:[%s535 + $0xbc8] sm:$0xff]
        %v5824 = vld [vmem:[%s535 + $0xbd0] sm:$0xff]
        %v5825 = vld [vmem:[%s535 + $0xbd8] sm:$0xff]
        %v5826 = vld [vmem:[%s535 + $0xbe0] sm:$0xff]
        %v5827 = vld [vmem:[%s535 + $0xbe8] sm:$0xff]
        %v5828 = vld [vmem:[%s535 + $0xbf0] sm:$0xff]
        %v5829 = vld [vmem:[%s535 + $0xbf8] sm:$0xff]
        %v5830 = vld [vmem:[%s535 + $0xc00] sm:$0xff]
        %v5831 = vld [vmem:[%s535 + $0xc08] sm:$0xff]
        %v5832 = vld [vmem:[%s535 + $0xc10] sm:$0xff]
        %v5833 = vld [vmem:[%s535 + $0xc18] sm:$0xff]
        %v5834 = vld [vmem:[%s535 + $0xc20] sm:$0xff]
        %v5835 = vld [vmem:[%s535 + $0xc28] sm:$0xff]
        %v5836 = vld [vmem:[%s535 + $0xc30] sm:$0xff]
        %v5837 = vld [vmem:[%s535 + $0xc38] sm:$0xff]
        %v5838 = vld [vmem:[%s535 + $0xc40] sm:$0xff]
        %v5839 = vld [vmem:[%s535 + $0xc48] sm:$0xff]
        %v5840 = vld [vmem:[%s535 + $0xc50] sm:$0xff]
        %v5841 = vld [vmem:[%s535 + $0xc58] sm:$0xff]
        %v5842 = vld [vmem:[%s535 + $0xc60] sm:$0xff]
        %v5843 = vld [vmem:[%s535 + $0xc68] sm:$0xff]
        %v5844 = vld [vmem:[%s535 + $0xc70] sm:$0xff]
        %v5845 = vld [vmem:[%s535 + $0xc78] sm:$0xff]
        %v5846 = vld [vmem:[%s535 + $0xc80] sm:$0xff]
        %v5847 = vld [vmem:[%s535 + $0xc88] sm:$0xff]
        %v5848 = vld [vmem:[%s535 + $0xc90] sm:$0xff]
        %v5849 = vld [vmem:[%s535 + $0xc98] sm:$0xff]
        %v5850 = vld [vmem:[%s535 + $0xca0] sm:$0xff]
        %v5851 = vld [vmem:[%s535 + $0xca8] sm:$0xff]
        %v5852 = vld [vmem:[%s535 + $0xcb0] sm:$0xff]
        %v5853 = vld [vmem:[%s535 + $0xcb8] sm:$0xff]
        %v5854 = vld [vmem:[%s535 + $0xcc0] sm:$0xff]
        %v5855 = vld [vmem:[%s535 + $0xcc8] sm:$0xff]
        %v5856 = vld [vmem:[%s535 + $0xcd0] sm:$0xff]
        %v5857 = vld [vmem:[%s535 + $0xcd8] sm:$0xff]
        %v5858 = vld [vmem:[%s535 + $0xce0] sm:$0xff]
        %v5859 = vld [vmem:[%s535 + $0xce8] sm:$0xff]
        %v5860 = vld [vmem:[%s535 + $0xcf0] sm:$0xff]
        %v5861 = vld [vmem:[%s535 + $0xcf8] sm:$0xff]
        %v5862 = vld [vmem:[%s535 + $0xd00] sm:$0xff]
        %v5863 = vld [vmem:[%s535 + $0xd08] sm:$0xff]
        %v5864 = vld [vmem:[%s535 + $0xd10] sm:$0xff]
        %v5865 = vld [vmem:[%s535 + $0xd18] sm:$0xff]
        %v5866 = vld [vmem:[%s535 + $0xd20] sm:$0xff]
        %v5867 = vld [vmem:[%s535 + $0xd28] sm:$0xff]
        %v5868 = vld [vmem:[%s535 + $0xd30] sm:$0xff]
        %v5869 = vld [vmem:[%s535 + $0xd38] sm:$0xff]
        %v5870 = vld [vmem:[%s535 + $0xd40] sm:$0xff]
        %v5871 = vld [vmem:[%s535 + $0xd48] sm:$0xff]
        %v5872 = vld [vmem:[%s535 + $0xd50] sm:$0xff]
        %v5873 = vld [vmem:[%s535 + $0xd58] sm:$0xff]
        %v5874 = vld [vmem:[%s535 + $0xd60] sm:$0xff]
        %v5875 = vld [vmem:[%s535 + $0xd68] sm:$0xff]
        %v5876 = vld [vmem:[%s535 + $0xd70] sm:$0xff]
        %v5877 = vld [vmem:[%s535 + $0xd78] sm:$0xff]
        %v5878 = vld [vmem:[%s535 + $0xd80] sm:$0xff]
        %v5879 = vld [vmem:[%s535 + $0xd88] sm:$0xff]
        %v5880 = vld [vmem:[%s535 + $0xd90] sm:$0xff]
        %v5881 = vld [vmem:[%s535 + $0xd98] sm:$0xff]
        %v5882 = vld [vmem:[%s535 + $0xda0] sm:$0xff]
        %v5883 = vld [vmem:[%s535 + $0xda8] sm:$0xff]
        %v5884 = vld [vmem:[%s535 + $0xdb0] sm:$0xff]
        %v5885 = vld [vmem:[%s535 + $0xdb8] sm:$0xff]
        %v5886 = vld [vmem:[%s535 + $0xdc0] sm:$0xff]
        %v5887 = vld [vmem:[%s535 + $0xdc8] sm:$0xff]
        %v5888 = vld [vmem:[%s535 + $0xdd0] sm:$0xff]
        %v5889 = vld [vmem:[%s535 + $0xdd8] sm:$0xff]
        %v5890 = vld [vmem:[%s535 + $0xde0] sm:$0xff]
        %v5891 = vld [vmem:[%s535 + $0xde8] sm:$0xff]
        %v5892 = vld [vmem:[%s535 + $0xdf0] sm:$0xff]
        %v5893 = vld [vmem:[%s535 + $0xdf8] sm:$0xff]
        %v5894 = vld [vmem:[%s535 + $0xe00] sm:$0xff]
        %v5895 = vld [vmem:[%s535 + $0xe08] sm:$0xff]
        %v5896 = vld [vmem:[%s535 + $0xe10] sm:$0xff]
        %v5897 = vld [vmem:[%s535 + $0xe18] sm:$0xff]
        %v5898 = vld [vmem:[%s535 + $0xe20] sm:$0xff]
        %v5899 = vld [vmem:[%s535 + $0xe28] sm:$0xff]
        %v5900 = vld [vmem:[%s535 + $0xe30] sm:$0xff]
        %v5901 = vld [vmem:[%s535 + $0xe38] sm:$0xff]
        %v5902 = vld [vmem:[%s535 + $0xe40] sm:$0xff]
        %v5903 = vld [vmem:[%s535 + $0xe48] sm:$0xff]
        %v5904 = vld [vmem:[%s535 + $0xe50] sm:$0xff]
        %v5905 = vld [vmem:[%s535 + $0xe58] sm:$0xff]
        %v5906 = vld [vmem:[%s535 + $0xe60] sm:$0xff]
        %v5907 = vld [vmem:[%s535 + $0xe68] sm:$0xff]
        %v5908 = vld [vmem:[%s535 + $0xe70] sm:$0xff]
        %v5909 = vld [vmem:[%s535 + $0xe78] sm:$0xff]
        %v5910 = vld [vmem:[%s535 + $0xe80] sm:$0xff]
        %v5911 = vld [vmem:[%s535 + $0xe88] sm:$0xff]
        %v5912 = vld [vmem:[%s535 + $0xe90] sm:$0xff]
        %v5913 = vld [vmem:[%s535 + $0xe98] sm:$0xff]
        %v5914 = vld [vmem:[%s535 + $0xea0] sm:$0xff]
        %v5915 = vld [vmem:[%s535 + $0xea8] sm:$0xff]
        %v5916 = vld [vmem:[%s535 + $0xeb0] sm:$0xff]
        %v5917 = vld [vmem:[%s535 + $0xeb8] sm:$0xff]
        %v5918 = vld [vmem:[%s535 + $0xec0] sm:$0xff]
        %v5919 = vld [vmem:[%s535 + $0xec8] sm:$0xff]
        %v5920 = vld [vmem:[%s535 + $0xed0] sm:$0xff]
        %v5921 = vld [vmem:[%s535 + $0xed8] sm:$0xff]
        %v5922 = vld [vmem:[%s535 + $0xee0] sm:$0xff]
        %v5923 = vld [vmem:[%s535 + $0xee8] sm:$0xff]
        %v5924 = vld [vmem:[%s535 + $0xef0] sm:$0xff]
        %v5925 = vld [vmem:[%s535 + $0xef8] sm:$0xff]
        %v5926 = vld [vmem:[%s535 + $0xf00] sm:$0xff]
        %v5927 = vld [vmem:[%s535 + $0xf08] sm:$0xff]
        %v5928 = vld [vmem:[%s535 + $0xf10] sm:$0xff]
        %v5929 = vld [vmem:[%s535 + $0xf18] sm:$0xff]
        %v5930 = vld [vmem:[%s535 + $0xf20] sm:$0xff]
        %v5931 = vld [vmem:[%s535 + $0xf28] sm:$0xff]
        %v5932 = vld [vmem:[%s535 + $0xf30] sm:$0xff]
        %v5933 = vld [vmem:[%s535 + $0xf38] sm:$0xff]
        %v5934 = vld [vmem:[%s535 + $0xf40] sm:$0xff]
        %v5935 = vld [vmem:[%s535 + $0xf48] sm:$0xff]
        %v5936 = vld [vmem:[%s535 + $0xf50] sm:$0xff]
        %v5937 = vld [vmem:[%s535 + $0xf58] sm:$0xff]
        %v5938 = vld [vmem:[%s535 + $0xf60] sm:$0xff]
        %v5939 = vld [vmem:[%s535 + $0xf68] sm:$0xff]
        %v5940 = vld [vmem:[%s535 + $0xf70] sm:$0xff]
        %v5941 = vld [vmem:[%s535 + $0xf78] sm:$0xff]
        %v5942 = vld [vmem:[%s535 + $0xf80] sm:$0xff]
        %v5943 = vld [vmem:[%s535 + $0xf88] sm:$0xff]
        %v5944 = vld [vmem:[%s535 + $0xf90] sm:$0xff]
        %v5945 = vld [vmem:[%s535 + $0xf98] sm:$0xff]
        %v5946 = vld [vmem:[%s535 + $0xfa0] sm:$0xff]
        %v5947 = vld [vmem:[%s535 + $0xfa8] sm:$0xff]
        %v5948 = vld [vmem:[%s535 + $0xfb0] sm:$0xff]
        %v5949 = vld [vmem:[%s535 + $0xfb8] sm:$0xff]
        %v5950 = vld [vmem:[%s535 + $0xfc0] sm:$0xff]
        %v5951 = vld [vmem:[%s535 + $0xfc8] sm:$0xff]
        %v5952 = vld [vmem:[%s535 + $0xfd0] sm:$0xff]
        %v5953 = vld [vmem:[%s535 + $0xfd8] sm:$0xff]
        %v5954 = vld [vmem:[%s535 + $0xfe0] sm:$0xff]
        %v5955 = vld [vmem:[%s535 + $0xfe8] sm:$0xff]
        %v5956 = vld [vmem:[%s535 + $0xff0] sm:$0xff]
        %v5957 = vld [vmem:[%s535 + $0xff8] sm:$0xff]
        %v5958 = vld [vmem:[%s535 + $0x1000] sm:$0xff]
        %v5959 = vld [vmem:[%s535 + $0x1008] sm:$0xff]
        %v5960 = vld [vmem:[%s535 + $0x1010] sm:$0xff]
        %v5961 = vld [vmem:[%s535 + $0x1018] sm:$0xff]
        %v5962 = vld [vmem:[%s535 + $0x1020] sm:$0xff]
        %v5963 = vld [vmem:[%s535 + $0x1028] sm:$0xff]
        %v5964 = vld [vmem:[%s535 + $0x1030] sm:$0xff]
        %v5965 = vld [vmem:[%s535 + $0x1038] sm:$0xff]
        %v5966 = vld [vmem:[%s535 + $0x1040] sm:$0xff]
        %v5967 = vld [vmem:[%s535 + $0x1048] sm:$0xff]
        %v5968 = vld [vmem:[%s535 + $0x1050] sm:$0xff]
        %v5969 = vld [vmem:[%s535 + $0x1058] sm:$0xff]
        %v5970 = vld [vmem:[%s535 + $0x1060] sm:$0xff]
        %v5971 = vld [vmem:[%s535 + $0x1068] sm:$0xff]
        %v5972 = vld [vmem:[%s535 + $0x1070] sm:$0xff]
        %v5973 = vld [vmem:[%s535 + $0x1078] sm:$0xff]
        %v5974 = vld [vmem:[%s535 + $0x1080] sm:$0xff]
        %v5975 = vld [vmem:[%s535 + $0x1088] sm:$0xff]
        %v5976 = vld [vmem:[%s535 + $0x1090] sm:$0xff]
        %v5977 = vld [vmem:[%s535 + $0x1098] sm:$0xff]
        %v5978 = vld [vmem:[%s535 + $0x10a0] sm:$0xff]
        %v5979 = vld [vmem:[%s535 + $0x10a8] sm:$0xff]
        %v5980 = vld [vmem:[%s535 + $0x10b0] sm:$0xff]
        %v5981 = vld [vmem:[%s535 + $0x10b8] sm:$0xff]
        %v5982 = vld [vmem:[%s535 + $0x10c0] sm:$0xff]
        %v5983 = vld [vmem:[%s535 + $0x10c8] sm:$0xff]
        %v5984 = vld [vmem:[%s535 + $0x10d0] sm:$0xff]
        %v5985 = vld [vmem:[%s535 + $0x10d8] sm:$0xff]
        %v5986 = vld [vmem:[%s535 + $0x10e0] sm:$0xff]
        %v5987 = vld [vmem:[%s535 + $0x10e8] sm:$0xff]
        %v5988 = vld [vmem:[%s535 + $0x10f0] sm:$0xff]
        %v5989 = vld [vmem:[%s535 + $0x10f8] sm:$0xff]
        %v5990 = vld [vmem:[%s535 + $0x1100] sm:$0xff]
        %v5991 = vld [vmem:[%s535 + $0x1108] sm:$0xff]
        %v5992 = vld [vmem:[%s535 + $0x1110] sm:$0xff]
        %v5993 = vld [vmem:[%s535 + $0x1118] sm:$0xff]
        %v5994 = vld [vmem:[%s535 + $0x1120] sm:$0xff]
        %v5995 = vld [vmem:[%s535 + $0x1128] sm:$0xff]
        %v5996 = vld [vmem:[%s535 + $0x1130] sm:$0xff]
        %v5997 = vld [vmem:[%s535 + $0x1138] sm:$0xff]
        %v5998 = vld [vmem:[%s535 + $0x1140] sm:$0xff]
        %v5999 = vld [vmem:[%s535 + $0x1148] sm:$0xff]
        %v6000 = vld [vmem:[%s535 + $0x1150] sm:$0xff]
        %v6001 = vld [vmem:[%s535 + $0x1158] sm:$0xff]
        %v6002 = vld [vmem:[%s535 + $0x1160] sm:$0xff]
        %v6003 = vld [vmem:[%s535 + $0x1168] sm:$0xff]
        %v6004 = vld [vmem:[%s535 + $0x1170] sm:$0xff]
        %v6005 = vld [vmem:[%s535 + $0x1178] sm:$0xff]
        %v6006 = vld [vmem:[%s535 + $0x1180] sm:$0xff]
        %v6007 = vld [vmem:[%s535 + $0x1188] sm:$0xff]
        %v6008 = vld [vmem:[%s535 + $0x1190] sm:$0xff]
        %v6009 = vld [vmem:[%s535 + $0x1198] sm:$0xff]
        %v6010 = vld [vmem:[%s535 + $0x11a0] sm:$0xff]
        %v6011 = vld [vmem:[%s535 + $0x11a8] sm:$0xff]
        %v6012 = vld [vmem:[%s535 + $0x11b0] sm:$0xff]
        %v6013 = vld [vmem:[%s535 + $0x11b8] sm:$0xff]
        %v6014 = vld [vmem:[%s535 + $0x11c0] sm:$0xff]
        %v6015 = vld [vmem:[%s535 + $0x11c8] sm:$0xff]
        %v6016 = vld [vmem:[%s535 + $0x11d0] sm:$0xff]
        %v6017 = vld [vmem:[%s535 + $0x11d8] sm:$0xff]
        %v6018 = vld [vmem:[%s535 + $0x11e0] sm:$0xff]
        %v6019 = vld [vmem:[%s535 + $0x11e8] sm:$0xff]
        %v6020 = vld [vmem:[%s535 + $0x11f0] sm:$0xff]
        %v6021 = vld [vmem:[%s535 + $0x11f8] sm:$0xff]
        %v6022 = vld [vmem:[%s535 + $0x1200] sm:$0xff]
        %v6023 = vld [vmem:[%s535 + $0x1208] sm:$0xff]
        %v6024 = vld [vmem:[%s535 + $0x1210] sm:$0xff]
        %v6025 = vld [vmem:[%s535 + $0x1218] sm:$0xff]
        %v6026 = vld [vmem:[%s535 + $0x1220] sm:$0xff]
        %v6027 = vld [vmem:[%s535 + $0x1228] sm:$0xff]
        %v6028 = vld [vmem:[%s535 + $0x1230] sm:$0xff]
        %v6029 = vld [vmem:[%s535 + $0x1238] sm:$0xff]
        %v6030 = vld [vmem:[%s535 + $0x1240] sm:$0xff]
        %v6031 = vld [vmem:[%s535 + $0x1248] sm:$0xff]
        %v6032 = vld [vmem:[%s535 + $0x1250] sm:$0xff]
        %v6033 = vld [vmem:[%s535 + $0x1258] sm:$0xff]
        %v6034 = vld [vmem:[%s535 + $0x1260] sm:$0xff]
        %v6035 = vld [vmem:[%s535 + $0x1268] sm:$0xff]
        %v6036 = vld [vmem:[%s535 + $0x1270] sm:$0xff]
        %v6037 = vld [vmem:[%s535 + $0x1278] sm:$0xff]
        %v6038 = vld [vmem:[%s535 + $0x1280] sm:$0xff]
        %v6039 = vld [vmem:[%s535 + $0x1288] sm:$0xff]
        %v6040 = vld [vmem:[%s535 + $0x1290] sm:$0xff]
        %v6041 = vld [vmem:[%s535 + $0x1298] sm:$0xff]
        %v6042 = vld [vmem:[%s535 + $0x12a0] sm:$0xff]
        %v6043 = vld [vmem:[%s535 + $0x12a8] sm:$0xff]
        %v6044 = vld [vmem:[%s535 + $0x12b0] sm:$0xff]
        %v6045 = vld [vmem:[%s535 + $0x12b8] sm:$0xff]
        %v6046 = vld [vmem:[%s535 + $0x12c0] sm:$0xff]
        %v6047 = vld [vmem:[%s535 + $0x12c8] sm:$0xff]
        %v6048 = vld [vmem:[%s535 + $0x12d0] sm:$0xff]
        %v6049 = vld [vmem:[%s535 + $0x12d8] sm:$0xff]
        %v6050 = vld [vmem:[%s535 + $0x12e0] sm:$0xff]
        %v6051 = vld [vmem:[%s535 + $0x12e8] sm:$0xff]
        %v6052 = vld [vmem:[%s535 + $0x12f0] sm:$0xff]
        %v6053 = vld [vmem:[%s535 + $0x12f8] sm:$0xff]
        %v6054 = vld [vmem:[%s535 + $0x1300] sm:$0xff]
        %v6055 = vld [vmem:[%s535 + $0x1308] sm:$0xff]
        %v6056 = vld [vmem:[%s535 + $0x1310] sm:$0xff]
        %v6057 = vld [vmem:[%s535 + $0x1318] sm:$0xff]
        %v6058 = vld [vmem:[%s535 + $0x1320] sm:$0xff]
        %v6059 = vld [vmem:[%s535 + $0x1328] sm:$0xff]
        %v6060 = vld [vmem:[%s535 + $0x1330] sm:$0xff]
        %v6061 = vld [vmem:[%s535 + $0x1338] sm:$0xff]
        %v6062 = vld [vmem:[%s535 + $0x1340] sm:$0xff]
        %v6063 = vld [vmem:[%s535 + $0x1348] sm:$0xff]
        %v6064 = vld [vmem:[%s535 + $0x1350] sm:$0xff]
        %v6065 = vld [vmem:[%s535 + $0x1358] sm:$0xff]
        %v6066 = vld [vmem:[%s535 + $0x1360] sm:$0xff]
        %v6067 = vld [vmem:[%s535 + $0x1368] sm:$0xff]
        %v6068 = vld [vmem:[%s535 + $0x1370] sm:$0xff]
        %v6069 = vld [vmem:[%s535 + $0x1378] sm:$0xff]
        %v6070 = vld [vmem:[%s535 + $0x1380] sm:$0xff]
        %v6071 = vld [vmem:[%s535 + $0x1388] sm:$0xff]
        %v6072 = vld [vmem:[%s535 + $0x1390] sm:$0xff]
        %v6073 = vld [vmem:[%s535 + $0x1398] sm:$0xff]
        %v6074 = vld [vmem:[%s535 + $0x13a0] sm:$0xff]
        %v6075 = vld [vmem:[%s535 + $0x13a8] sm:$0xff]
        %v6076 = vld [vmem:[%s535 + $0x13b0] sm:$0xff]
        %v6077 = vld [vmem:[%s535 + $0x13b8] sm:$0xff]
        %v6078 = vld [vmem:[%s535 + $0x13c0] sm:$0xff]
        %v6079 = vld [vmem:[%s535 + $0x13c8] sm:$0xff]
        %v6080 = vld [vmem:[%s535 + $0x13d0] sm:$0xff]
        %v6081 = vld [vmem:[%s535 + $0x13d8] sm:$0xff]
        %v6082 = vld [vmem:[%s535 + $0x13e0] sm:$0xff]
        %v6083 = vld [vmem:[%s535 + $0x13e8] sm:$0xff]
        %v6084 = vld [vmem:[%s535 + $0x13f0] sm:$0xff]
        %v6085 = vld [vmem:[%s535 + $0x13f8] sm:$0xff]
        %v6086 = vld [vmem:[%s535 + $0x1400] sm:$0xff]
        %v6087 = vld [vmem:[%s535 + $0x1408] sm:$0xff]
        %v6088 = vld [vmem:[%s535 + $0x1410] sm:$0xff]
        %v6089 = vld [vmem:[%s535 + $0x1418] sm:$0xff]
        %v6090 = vld [vmem:[%s535 + $0x1420] sm:$0xff]
        %v6091 = vld [vmem:[%s535 + $0x1428] sm:$0xff]
        %v6092 = vld [vmem:[%s535 + $0x1430] sm:$0xff]
        %v6093 = vld [vmem:[%s535 + $0x1438] sm:$0xff]
        %v6094 = vld [vmem:[%s535 + $0x1440] sm:$0xff]
        %v6095 = vld [vmem:[%s535 + $0x1448] sm:$0xff]
        %v6096 = vld [vmem:[%s535 + $0x1450] sm:$0xff]
        %v6097 = vld [vmem:[%s535 + $0x1458] sm:$0xff]
        %v6098 = vld [vmem:[%s535 + $0x1460] sm:$0xff]
        %v6099 = vld [vmem:[%s535 + $0x1468] sm:$0xff]
        %v6100 = vld [vmem:[%s535 + $0x1470] sm:$0xff]
        %v6101 = vld [vmem:[%s535 + $0x1478] sm:$0xff]
        %v6102 = vld [vmem:[%s535 + $0x1480] sm:$0xff]
        %v6103 = vld [vmem:[%s535 + $0x1488] sm:$0xff]
        %v6104 = vld [vmem:[%s535 + $0x1490] sm:$0xff]
        %v6105 = vld [vmem:[%s535 + $0x1498] sm:$0xff]
        %v6106 = vld [vmem:[%s535 + $0x14a0] sm:$0xff]
        %v6107 = vld [vmem:[%s535 + $0x14a8] sm:$0xff]
        %v6108 = vld [vmem:[%s535 + $0x14b0] sm:$0xff]
        %v6109 = vld [vmem:[%s535 + $0x14b8] sm:$0xff]
        %v6110 = vld [vmem:[%s535 + $0x14c0] sm:$0xff]
        %v6111 = vld [vmem:[%s535 + $0x14c8] sm:$0xff]
        %v6112 = vld [vmem:[%s535 + $0x14d0] sm:$0xff]
        %v6113 = vld [vmem:[%s535 + $0x14d8] sm:$0xff]
        %v6114 = vld [vmem:[%s535 + $0x14e0] sm:$0xff]
        %v6115 = vld [vmem:[%s535 + $0x14e8] sm:$0xff]
        %v6116 = vld [vmem:[%s535 + $0x14f0] sm:$0xff]
        %v6117 = vld [vmem:[%s535 + $0x14f8] sm:$0xff]
        %v6118 = vld [vmem:[%s535 + $0x1500] sm:$0xff]
        %v6119 = vld [vmem:[%s535 + $0x1508] sm:$0xff]
        %v6120 = vld [vmem:[%s535 + $0x1510] sm:$0xff]
        %v6121 = vld [vmem:[%s535 + $0x1518] sm:$0xff]
        %v6122 = vld [vmem:[%s535 + $0x1520] sm:$0xff]
        %v6123 = vld [vmem:[%s535 + $0x1528] sm:$0xff]
        %v6124 = vld [vmem:[%s535 + $0x1530] sm:$0xff]
        %v6125 = vld [vmem:[%s535 + $0x1538] sm:$0xff]
        %v6126 = vld [vmem:[%s535 + $0x1540] sm:$0xff]
        %v6127 = vld [vmem:[%s535 + $0x1548] sm:$0xff]
        %v6128 = vld [vmem:[%s535 + $0x1550] sm:$0xff]
        %v6129 = vld [vmem:[%s535 + $0x1558] sm:$0xff]
        %v6130 = vld [vmem:[%s535 + $0x1560] sm:$0xff]
        %v6131 = vld [vmem:[%s535 + $0x1568] sm:$0xff]
        %v6132 = vld [vmem:[%s535 + $0x1570] sm:$0xff]
        %v6133 = vld [vmem:[%s535 + $0x1578] sm:$0xff]
        %v6134 = vld [vmem:[%s535 + $0x1580] sm:$0xff]
        %v6135 = vld [vmem:[%s535 + $0x1588] sm:$0xff]
        %v6136 = vld [vmem:[%s535 + $0x1590] sm:$0xff]
        %v6137 = vld [vmem:[%s535 + $0x1598] sm:$0xff]
        %v6138 = vld [vmem:[%s535 + $0x15a0] sm:$0xff]
        %v6139 = vld [vmem:[%s535 + $0x15a8] sm:$0xff]
        %v6140 = vld [vmem:[%s535 + $0x15b0] sm:$0xff]
        %v6141 = vld [vmem:[%s535 + $0x15b8] sm:$0xff]
        %v6142 = vld [vmem:[%s535 + $0x15c0] sm:$0xff]
        %v6143 = vld [vmem:[%s535 + $0x15c8] sm:$0xff]
        %v6144 = vld [vmem:[%s535 + $0x15d0] sm:$0xff]
        %v6145 = vld [vmem:[%s535 + $0x15d8] sm:$0xff]
        %v6146 = vld [vmem:[%s535 + $0x15e0] sm:$0xff]
        %v6147 = vld [vmem:[%s535 + $0x15e8] sm:$0xff]
        %v6148 = vld [vmem:[%s535 + $0x15f0] sm:$0xff]
        %v6149 = vld [vmem:[%s535 + $0x15f8] sm:$0xff]
        %v6150 = vld [vmem:[%s535 + $0x1600] sm:$0xff]
        %v6151 = vld [vmem:[%s535 + $0x1608] sm:$0xff]
        %v6152 = vld [vmem:[%s535 + $0x1610] sm:$0xff]
        %v6153 = vld [vmem:[%s535 + $0x1618] sm:$0xff]
        %v6154 = vld [vmem:[%s535 + $0x1620] sm:$0xff]
        %v6155 = vld [vmem:[%s535 + $0x1628] sm:$0xff]
        %v6156 = vld [vmem:[%s535 + $0x1630] sm:$0xff]
        %v6157 = vld [vmem:[%s535 + $0x1638] sm:$0xff]
        %v6158 = vld [vmem:[%s535 + $0x1640] sm:$0xff]
        %v6159 = vld [vmem:[%s535 + $0x1648] sm:$0xff]
        %v6160 = vld [vmem:[%s535 + $0x1650] sm:$0xff]
        %v6161 = vld [vmem:[%s535 + $0x1658] sm:$0xff]
        %v6162 = vld [vmem:[%s535 + $0x1660] sm:$0xff]
        %v6163 = vld [vmem:[%s535 + $0x1668] sm:$0xff]
        %v6164 = vld [vmem:[%s535 + $0x1670] sm:$0xff]
        %v6165 = vld [vmem:[%s535 + $0x1678] sm:$0xff]
        %v6166 = vld [vmem:[%s535 + $0x1680] sm:$0xff]
        %v6167 = vld [vmem:[%s535 + $0x1688] sm:$0xff]
        %v6168 = vld [vmem:[%s535 + $0x1690] sm:$0xff]
        %v6169 = vld [vmem:[%s535 + $0x1698] sm:$0xff]
        %v6170 = vld [vmem:[%s535 + $0x16a0] sm:$0xff]
        %v6171 = vld [vmem:[%s535 + $0x16a8] sm:$0xff]
        %v6172 = vld [vmem:[%s535 + $0x16b0] sm:$0xff]
        %v6173 = vld [vmem:[%s535 + $0x16b8] sm:$0xff]
        %v6174 = vld [vmem:[%s535 + $0x16c0] sm:$0xff]
        %v6175 = vld [vmem:[%s535 + $0x16c8] sm:$0xff]
        %v6176 = vld [vmem:[%s535 + $0x16d0] sm:$0xff]
        %v6177 = vld [vmem:[%s535 + $0x16d8] sm:$0xff]
        %v6178 = vld [vmem:[%s535 + $0x16e0] sm:$0xff]
        %v6179 = vld [vmem:[%s535 + $0x16e8] sm:$0xff]
        %v6180 = vld [vmem:[%s535 + $0x16f0] sm:$0xff]
        %v6181 = vld [vmem:[%s535 + $0x16f8] sm:$0xff]
        %v6182 = vld [vmem:[%s535 + $0x1700] sm:$0xff]
        %v6183 = vld [vmem:[%s535 + $0x1708] sm:$0xff]
        %v6184 = vld [vmem:[%s535 + $0x1710] sm:$0xff]
        %v6185 = vld [vmem:[%s535 + $0x1718] sm:$0xff]
        %v6186 = vld [vmem:[%s535 + $0x1720] sm:$0xff]
        %v6187 = vld [vmem:[%s535 + $0x1728] sm:$0xff]
        %v6188 = vld [vmem:[%s535 + $0x1730] sm:$0xff]
        %v6189 = vld [vmem:[%s535 + $0x1738] sm:$0xff]
        %v6190 = vld [vmem:[%s535 + $0x1740] sm:$0xff]
        %v6191 = vld [vmem:[%s535 + $0x1748] sm:$0xff]
        %v6192 = vld [vmem:[%s535 + $0x1750] sm:$0xff]
        %v6193 = vld [vmem:[%s535 + $0x1758] sm:$0xff]
        %v6194 = vld [vmem:[%s535 + $0x1760] sm:$0xff]
        %v6195 = vld [vmem:[%s535 + $0x1768] sm:$0xff]
        %v6196 = vld [vmem:[%s535 + $0x1770] sm:$0xff]
        %v6197 = vld [vmem:[%s535 + $0x1778] sm:$0xff]
        %v6198 = vld [vmem:[%s535 + $0x1780] sm:$0xff]
        %v6199 = vld [vmem:[%s535 + $0x1788] sm:$0xff]
        %v6200 = vld [vmem:[%s535 + $0x1790] sm:$0xff]
        %v6201 = vld [vmem:[%s535 + $0x1798] sm:$0xff]
        %v6202 = vld [vmem:[%s535 + $0x17a0] sm:$0xff]
        %v6203 = vld [vmem:[%s535 + $0x17a8] sm:$0xff]
        %v6204 = vld [vmem:[%s535 + $0x17b0] sm:$0xff]
        %v6205 = vld [vmem:[%s535 + $0x17b8] sm:$0xff]
        %v6206 = vld [vmem:[%s535 + $0x17c0] sm:$0xff]
        %v6207 = vld [vmem:[%s535 + $0x17c8] sm:$0xff]
        %v6208 = vld [vmem:[%s535 + $0x17d0] sm:$0xff]
        %v6209 = vld [vmem:[%s535 + $0x17d8] sm:$0xff]
        %v6210 = vld [vmem:[%s535 + $0x17e0] sm:$0xff]
        %v6211 = vld [vmem:[%s535 + $0x17e8] sm:$0xff]
        %v6212 = vld [vmem:[%s535 + $0x17f0] sm:$0xff]
        %v6213 = vld [vmem:[%s535 + $0x17f8] sm:$0xff]
        %v6214 = vld [vmem:[%s653] sm:$0x7]
        %v6216 = vlaneseq
        %v6217 = vshrl.u32 %v6216, 7
        %v6218 = vsub.s32 0, %v6217
        %v6219 = vrot.slane %v6214, %v6218
        %v6220 = vlaneseq
        %v6221 = vshrl.u32 %v6220, 7
        %v6222 = vsub.s32 1, %v6221
        %v6223 = vrot.slane %v6214, %v6222
        %v6224 = vlaneseq
        %v6225 = vshrl.u32 %v6224, 7
        %v6226 = vsub.s32 2, %v6225
        %v6227 = vrot.slane %v6214, %v6226
        %6231 = vmatprep.subr.mxu0 %v5447
        %6232 = vmatpush1.msra.mxu0 %v5446
        %6233 = vmatprep.subr.mxu0 %v5450
        %6234 = vmatpush1.msra.mxu0 %v5449
        %6235 = vmatprep.subr.mxu0 %v5453
        %6236 = vmatpush1.msra.mxu0 %v5452
        %6237 = vmatprep.subr.mxu0 %v5456
        %6238 = vmatpush1.msra.mxu0 %v5455
        %6239 = vmatprep.subr.mxu0 %v5459
        %6240 = vmatpush1.msra.mxu0 %v5458
        %6241 = vmatprep.subr.mxu0 %v5462
        %6242 = vmatpush1.msra.mxu0 %v5461
        %6243 = vmatprep.subr.mxu0 %v5465
        %6244 = vmatpush1.msra.mxu0 %v5464
        %6245 = vmatprep.subr.mxu0 %v5468
        %6246 = vmatpush1.msra.mxu0 %v5467
        %6247 = vmatprep.subr.mxu0 %v5471
        %6248 = vmatpush1.msra.mxu0 %v5470
        %6249 = vmatprep.subr.mxu0 %v5474
        %6250 = vmatpush1.msra.mxu0 %v5473
        %6251 = vmatprep.subr.mxu0 %v5477
        %6252 = vmatpush1.msra.mxu0 %v5476
        %6253 = vmatprep.subr.mxu0 %v5480
        %6254 = vmatpush1.msra.mxu0 %v5479
        %6255 = vmatprep.subr.mxu0 %v5483
        %6256 = vmatpush1.msra.mxu0 %v5482
        %6257 = vmatprep.subr.mxu0 %v5486
        %6258 = vmatpush1.msra.mxu0 %v5485
        %6259 = vmatprep.subr.mxu0 %v5489
        %6260 = vmatpush1.msra.mxu0 %v5488
        %6261 = vmatprep.subr.mxu0 %v5492
        %6262 = vmatpush1.msra.mxu0 %v5491
        %6263 = vmatprep.subr.mxu0 %v5495
        %6264 = vmatpush1.msra.mxu0 %v5494
        %6265 = vmatprep.subr.mxu0 %v5498
        %6266 = vmatpush1.msra.mxu0 %v5497
        %6267 = vmatprep.subr.mxu0 %v5501
        %6268 = vmatpush1.msra.mxu0 %v5500
        %6269 = vmatprep.subr.mxu0 %v5504
        %6270 = vmatpush1.msra.mxu0 %v5503
        %6271 = vmatprep.subr.mxu0 %v5507
        %6272 = vmatpush1.msra.mxu0 %v5506
        %6273 = vmatprep.subr.mxu0 %v5510
        %6274 = vmatpush1.msra.mxu0 %v5509
        %6275 = vmatprep.subr.mxu0 %v5513
        %6276 = vmatpush1.msra.mxu0 %v5512
        %6277 = vmatprep.subr.mxu0 %v5516
        %6278 = vmatpush1.msra.mxu0 %v5515
        %6279 = vmatprep.subr.mxu0 %v5519
        %6280 = vmatpush1.msra.mxu0 %v5518
        %6281 = vmatprep.subr.mxu0 %v5522
        %6282 = vmatpush1.msra.mxu0 %v5521
        %6283 = vmatprep.subr.mxu0 %v5525
        %6284 = vmatpush1.msra.mxu0 %v5524
        %6285 = vmatprep.subr.mxu0 %v5528
        %6286 = vmatpush1.msra.mxu0 %v5527
        %6287 = vmatprep.subr.mxu0 %v5531
        %6288 = vmatpush1.msra.mxu0 %v5530
        %6289 = vmatprep.subr.mxu0 %v5534
        %6290 = vmatpush1.msra.mxu0 %v5533
        %6291 = vmatprep.subr.mxu0 %v5537
        %6292 = vmatpush1.msra.mxu0 %v5536
        %6293 = vmatprep.subr.mxu0 %v5540
        %6294 = vmatpush1.msra.mxu0 %v5539
        %6295 = vmatprep.mubr.f32.mxu0 %v5415
        %6296 = vmatmul.mubr.f32.gmra.mrb[0].mxu0 %v5414
        %v6297 = vpop.f32.mrb[0].mxu0
        %v6298 = vadd.f32 %v6219, %v6297
        %v6299 = vpop.f32.mrb[0].mxu0
        %v6300 = vadd.f32 %v6223, %v6299
        %6301 = vmatprep.mubr.f32.mxu0 %v5431
        %6302 = vmatmul.mubr.f32.gmra.mrb[0].mxu0 %v5430
        %v6303 = vpop.f32.mrb[0].mxu0
        %v6304 = vadd.f32 %v6219, %v6303
        %v6305 = vpop.f32.mrb[0].mxu0
        %v6306 = vadd.f32 %v6223, %v6305
        %6307 = vdwg.mxu0
        %6308 = vmatprep.subr.mxu0 %v5543
        %6309 = vmatpush1.msra.mxu0 %v5542
        %6310 = vmatprep.subr.mxu0 %v5546
        %6311 = vmatpush1.msra.mxu0 %v5545
        %6312 = vmatprep.subr.mxu0 %v5549
        %6313 = vmatpush1.msra.mxu0 %v5548
        %6314 = vmatprep.subr.mxu0 %v5552
        %6315 = vmatpush1.msra.mxu0 %v5551
        %6316 = vmatprep.subr.mxu0 %v5555
        %6317 = vmatpush1.msra.mxu0 %v5554
        %6318 = vmatprep.subr.mxu0 %v5558
        %6319 = vmatpush1.msra.mxu0 %v5557
        %6320 = vmatprep.subr.mxu0 %v5561
        %6321 = vmatpush1.msra.mxu0 %v5560
        %6322 = vmatprep.subr.mxu0 %v5564
        %6323 = vmatpush1.msra.mxu0 %v5563
        %6324 = vmatprep.subr.mxu0 %v5567
        %6325 = vmatpush1.msra.mxu0 %v5566
        %6326 = vmatprep.subr.mxu0 %v5570
        %6327 = vmatpush1.msra.mxu0 %v5569
        %6328 = vmatprep.subr.mxu0 %v5573
        %6329 = vmatpush1.msra.mxu0 %v5572
        %6330 = vmatprep.subr.mxu0 %v5576
        %6331 = vmatpush1.msra.mxu0 %v5575
        %6332 = vmatprep.subr.mxu0 %v5579
        %6333 = vmatpush1.msra.mxu0 %v5578
        %6334 = vmatprep.subr.mxu0 %v5582
        %6335 = vmatpush1.msra.mxu0 %v5581
        %6336 = vmatprep.subr.mxu0 %v5585
        %6337 = vmatpush1.msra.mxu0 %v5584
        %6338 = vmatprep.subr.mxu0 %v5588
        %6339 = vmatpush1.msra.mxu0 %v5587
        %6340 = vmatprep.subr.mxu0 %v5591
        %6341 = vmatpush1.msra.mxu0 %v5590
        %6342 = vmatprep.subr.mxu0 %v5594
        %6343 = vmatpush1.msra.mxu0 %v5593
        %6344 = vmatprep.subr.mxu0 %v5597
        %6345 = vmatpush1.msra.mxu0 %v5596
        %6346 = vmatprep.subr.mxu0 %v5600
        %6347 = vmatpush1.msra.mxu0 %v5599
        %6348 = vmatprep.subr.mxu0 %v5603
        %6349 = vmatpush1.msra.mxu0 %v5602
        %6350 = vmatprep.subr.mxu0 %v5606
        %6351 = vmatpush1.msra.mxu0 %v5605
        %6352 = vmatprep.subr.mxu0 %v5609
        %6353 = vmatpush1.msra.mxu0 %v5608
        %6354 = vmatprep.subr.mxu0 %v5612
        %6355 = vmatpush1.msra.mxu0 %v5611
        %6356 = vmatprep.subr.mxu0 %v5615
        %6357 = vmatpush1.msra.mxu0 %v5614
        %6358 = vmatprep.subr.mxu0 %v5618
        %6359 = vmatpush1.msra.mxu0 %v5617
        %6360 = vmatprep.subr.mxu0 %v5621
        %6361 = vmatpush1.msra.mxu0 %v5620
        %6362 = vmatprep.subr.mxu0 %v5624
        %6363 = vmatpush1.msra.mxu0 %v5623
        %6364 = vmatprep.subr.mxu0 %v5627
        %6365 = vmatpush1.msra.mxu0 %v5626
        %6366 = vmatprep.subr.mxu0 %v5630
        %6367 = vmatpush1.msra.mxu0 %v5629
        %6368 = vmatprep.subr.mxu0 %v5633
        %6369 = vmatpush1.msra.mxu0 %v5632
        %6370 = vmatprep.subr.mxu0 %v5636
        %6371 = vmatpush1.msra.mxu0 %v5635
        %6372 = vmatprep.mubr.f32.mxu0 %v5417
        %6373 = vmatmul.mubr.f32.gmra.mrb[0].mxu0 %v5416
        %v6374 = vpop.f32.mrb[0].mxu0
        %v6375 = vadd.f32 %v6298, %v6374
        %v6376 = vpop.f32.mrb[0].mxu0
        %v6377 = vadd.f32 %v6300, %v6376
        %6378 = vmatprep.mubr.f32.mxu0 %v5433
        %6379 = vmatmul.mubr.f32.gmra.mrb[0].mxu0 %v5432
        %v6380 = vpop.f32.mrb[0].mxu0
        %v6381 = vadd.f32 %v6304, %v6380
        %v6382 = vpop.f32.mrb[0].mxu0
        %v6383 = vadd.f32 %v6306, %v6382
        %6384 = vdwg.mxu0
        %6385 = vmatprep.subr.mxu0 %v5639
        %6386 = vmatpush1.msra.mxu0 %v5638
        %6387 = vmatprep.subr.mxu0 %v5642
        %6388 = vmatpush1.msra.mxu0 %v5641
        %6389 = vmatprep.subr.mxu0 %v5645
        %6390 = vmatpush1.msra.mxu0 %v5644
        %6391 = vmatprep.subr.mxu0 %v5648
        %6392 = vmatpush1.msra.mxu0 %v5647
        %6393 = vmatprep.subr.mxu0 %v5651
        %6394 = vmatpush1.msra.mxu0 %v5650
        %6395 = vmatprep.subr.mxu0 %v5654
        %6396 = vmatpush1.msra.mxu0 %v5653
        %6397 = vmatprep.subr.mxu0 %v5657
        %6398 = vmatpush1.msra.mxu0 %v5656
        %6399 = vmatprep.subr.mxu0 %v5660
        %6400 = vmatpush1.msra.mxu0 %v5659
        %6401 = vmatprep.subr.mxu0 %v5663
        %6402 = vmatpush1.msra.mxu0 %v5662
        %6403 = vmatprep.subr.mxu0 %v5666
        %6404 = vmatpush1.msra.mxu0 %v5665
        %6405 = vmatprep.subr.mxu0 %v5669
        %6406 = vmatpush1.msra.mxu0 %v5668
        %6407 = vmatprep.subr.mxu0 %v5672
        %6408 = vmatpush1.msra.mxu0 %v5671
        %6409 = vmatprep.subr.mxu0 %v5675
        %6410 = vmatpush1.msra.mxu0 %v5674
        %6411 = vmatprep.subr.mxu0 %v5678
        %6412 = vmatpush1.msra.mxu0 %v5677
        %6413 = vmatprep.subr.mxu0 %v5681
        %6414 = vmatpush1.msra.mxu0 %v5680
        %6415 = vmatprep.subr.mxu0 %v5684
        %6416 = vmatpush1.msra.mxu0 %v5683
        %6417 = vmatprep.subr.mxu0 %v5687
        %6418 = vmatpush1.msra.mxu0 %v5686
        %6419 = vmatprep.subr.mxu0 %v5690
        %6420 = vmatpush1.msra.mxu0 %v5689
        %6421 = vmatprep.subr.mxu0 %v5693
        %6422 = vmatpush1.msra.mxu0 %v5692
        %6423 = vmatprep.subr.mxu0 %v5696
        %6424 = vmatpush1.msra.mxu0 %v5695
        %6425 = vmatprep.subr.mxu0 %v5699
        %6426 = vmatpush1.msra.mxu0 %v5698
        %6427 = vmatprep.subr.mxu0 %v5702
        %6428 = vmatpush1.msra.mxu0 %v5701
        %6429 = vmatprep.subr.mxu0 %v5705
        %6430 = vmatpush1.msra.mxu0 %v5704
        %6431 = vmatprep.subr.mxu0 %v5708
        %6432 = vmatpush1.msra.mxu0 %v5707
        %6433 = vmatprep.subr.mxu0 %v5711
        %6434 = vmatpush1.msra.mxu0 %v5710
        %6435 = vmatprep.subr.mxu0 %v5714
        %6436 = vmatpush1.msra.mxu0 %v5713
        %6437 = vmatprep.subr.mxu0 %v5717
        %6438 = vmatpush1.msra.mxu0 %v5716
        %6439 = vmatprep.subr.mxu0 %v5720
        %6440 = vmatpush1.msra.mxu0 %v5719
        %6441 = vmatprep.subr.mxu0 %v5723
        %6442 = vmatpush1.msra.mxu0 %v5722
        %6443 = vmatprep.subr.mxu0 %v5726
        %6444 = vmatpush1.msra.mxu0 %v5725
        %6445 = vmatprep.subr.mxu0 %v5729
        %6446 = vmatpush1.msra.mxu0 %v5728
        %6447 = vmatprep.subr.mxu0 %v5732
        %6448 = vmatpush1.msra.mxu0 %v5731
        %6449 = vmatprep.mubr.f32.mxu0 %v5419
        %6450 = vmatmul.mubr.f32.gmra.mrb[0].mxu0 %v5418
        %v6451 = vpop.f32.mrb[0].mxu0
        %v6452 = vadd.f32 %v6375, %v6451
        %v6453 = vpop.f32.mrb[0].mxu0
        %v6454 = vadd.f32 %v6377, %v6453
        %6455 = vmatprep.mubr.f32.mxu0 %v5435
        %6456 = vmatmul.mubr.f32.gmra.mrb[0].mxu0 %v5434
        %v6457 = vpop.f32.mrb[0].mxu0
        %v6458 = vadd.f32 %v6381, %v6457
        %v6459 = vpop.f32.mrb[0].mxu0
        %v6460 = vadd.f32 %v6383, %v6459
        %6461 = vdwg.mxu0
        %6462 = vmatprep.subr.mxu0 %v5735
        %6463 = vmatpush1.msra.mxu0 %v5734
        %6464 = vmatprep.subr.mxu0 %v5738
        %6465 = vmatpush1.msra.mxu0 %v5737
        %6466 = vmatprep.subr.mxu0 %v5741
        %6467 = vmatpush1.msra.mxu0 %v5740
        %6468 = vmatprep.subr.mxu0 %v5744
        %6469 = vmatpush1.msra.mxu0 %v5743
        %6470 = vmatprep.subr.mxu0 %v5747
        %6471 = vmatpush1.msra.mxu0 %v5746
        %6472 = vmatprep.subr.mxu0 %v5750
        %6473 = vmatpush1.msra.mxu0 %v5749
        %6474 = vmatprep.subr.mxu0 %v5753
        %6475 = vmatpush1.msra.mxu0 %v5752
        %6476 = vmatprep.subr.mxu0 %v5756
        %6477 = vmatpush1.msra.mxu0 %v5755
        %6478 = vmatprep.subr.mxu0 %v5759
        %6479 = vmatpush1.msra.mxu0 %v5758
        %6480 = vmatprep.subr.mxu0 %v5762
        %6481 = vmatpush1.msra.mxu0 %v5761
        %6482 = vmatprep.subr.mxu0 %v5765
        %6483 = vmatpush1.msra.mxu0 %v5764
        %6484 = vmatprep.subr.mxu0 %v5768
        %6485 = vmatpush1.msra.mxu0 %v5767
        %6486 = vmatprep.subr.mxu0 %v5771
        %6487 = vmatpush1.msra.mxu0 %v5770
        %6488 = vmatprep.subr.mxu0 %v5774
        %6489 = vmatpush1.msra.mxu0 %v5773
        %6490 = vmatprep.subr.mxu0 %v5777
        %6491 = vmatpush1.msra.mxu0 %v5776
        %6492 = vmatprep.subr.mxu0 %v5780
        %6493 = vmatpush1.msra.mxu0 %v5779
        %6494 = vmatprep.subr.mxu0 %v5783
        %6495 = vmatpush1.msra.mxu0 %v5782
        %6496 = vmatprep.subr.mxu0 %v5786
        %6497 = vmatpush1.msra.mxu0 %v5785
        %6498 = vmatprep.subr.mxu0 %v5789
        %6499 = vmatpush1.msra.mxu0 %v5788
        %6500 = vmatprep.subr.mxu0 %v5792
        %6501 = vmatpush1.msra.mxu0 %v5791
        %6502 = vmatprep.subr.mxu0 %v5795
        %6503 = vmatpush1.msra.mxu0 %v5794
        %6504 = vmatprep.subr.mxu0 %v5798
        %6505 = vmatpush1.msra.mxu0 %v5797
        %6506 = vmatprep.subr.mxu0 %v5801
        %6507 = vmatpush1.msra.mxu0 %v5800
        %6508 = vmatprep.subr.mxu0 %v5804
        %6509 = vmatpush1.msra.mxu0 %v5803
        %6510 = vmatprep.subr.mxu0 %v5807
        %6511 = vmatpush1.msra.mxu0 %v5806
        %6512 = vmatprep.subr.mxu0 %v5810
        %6513 = vmatpush1.msra.mxu0 %v5809
        %6514 = vmatprep.subr.mxu0 %v5813
        %6515 = vmatpush1.msra.mxu0 %v5812
        %6516 = vmatprep.subr.mxu0 %v5816
        %6517 = vmatpush1.msra.mxu0 %v5815
        %6518 = vmatprep.subr.mxu0 %v5819
        %6519 = vmatpush1.msra.mxu0 %v5818
        %6520 = vmatprep.subr.mxu0 %v5822
        %6521 = vmatpush1.msra.mxu0 %v5821
        %6522 = vmatprep.subr.mxu0 %v5825
        %6523 = vmatpush1.msra.mxu0 %v5824
        %6524 = vmatprep.subr.mxu0 %v5828
        %6525 = vmatpush1.msra.mxu0 %v5827
        %6526 = vmatprep.mubr.f32.mxu0 %v5421
        %6527 = vmatmul.mubr.f32.gmra.mrb[0].mxu0 %v5420
        %v6528 = vpop.f32.mrb[0].mxu0
        %v6529 = vadd.f32 %v6452, %v6528
        %v6530 = vpop.f32.mrb[0].mxu0
        %v6531 = vadd.f32 %v6454, %v6530
        %6532 = vmatprep.mubr.f32.mxu0 %v5437
        %6533 = vmatmul.mubr.f32.gmra.mrb[0].mxu0 %v5436
        %v6534 = vpop.f32.mrb[0].mxu0
        %v6535 = vadd.f32 %v6458, %v6534
        %v6536 = vpop.f32.mrb[0].mxu0
        %v6537 = vadd.f32 %v6460, %v6536
        %6538 = vdwg.mxu0
        %6539 = vmatprep.subr.mxu0 %v5831
        %6540 = vmatpush1.msra.mxu0 %v5830
        %6541 = vmatprep.subr.mxu0 %v5834
        %6542 = vmatpush1.msra.mxu0 %v5833
        %6543 = vmatprep.subr.mxu0 %v5837
        %6544 = vmatpush1.msra.mxu0 %v5836
        %6545 = vmatprep.subr.mxu0 %v5840
        %6546 = vmatpush1.msra.mxu0 %v5839
        %6547 = vmatprep.subr.mxu0 %v5843
        %6548 = vmatpush1.msra.mxu0 %v5842
        %6549 = vmatprep.subr.mxu0 %v5846
        %6550 = vmatpush1.msra.mxu0 %v5845
        %6551 = vmatprep.subr.mxu0 %v5849
        %6552 = vmatpush1.msra.mxu0 %v5848
        %6553 = vmatprep.subr.mxu0 %v5852
        %6554 = vmatpush1.msra.mxu0 %v5851
        %6555 = vmatprep.subr.mxu0 %v5855
        %6556 = vmatpush1.msra.mxu0 %v5854
        %6557 = vmatprep.subr.mxu0 %v5858
        %6558 = vmatpush1.msra.mxu0 %v5857
        %6559 = vmatprep.subr.mxu0 %v5861
        %6560 = vmatpush1.msra.mxu0 %v5860
        %6561 = vmatprep.subr.mxu0 %v5864
        %6562 = vmatpush1.msra.mxu0 %v5863
        %6563 = vmatprep.subr.mxu0 %v5867
        %6564 = vmatpush1.msra.mxu0 %v5866
        %6565 = vmatprep.subr.mxu0 %v5870
        %6566 = vmatpush1.msra.mxu0 %v5869
        %6567 = vmatprep.subr.mxu0 %v5873
        %6568 = vmatpush1.msra.mxu0 %v5872
        %6569 = vmatprep.subr.mxu0 %v5876
        %6570 = vmatpush1.msra.mxu0 %v5875
        %6571 = vmatprep.subr.mxu0 %v5879
        %6572 = vmatpush1.msra.mxu0 %v5878
        %6573 = vmatprep.subr.mxu0 %v5882
        %6574 = vmatpush1.msra.mxu0 %v5881
        %6575 = vmatprep.subr.mxu0 %v5885
        %6576 = vmatpush1.msra.mxu0 %v5884
        %6577 = vmatprep.subr.mxu0 %v5888
        %6578 = vmatpush1.msra.mxu0 %v5887
        %6579 = vmatprep.subr.mxu0 %v5891
        %6580 = vmatpush1.msra.mxu0 %v5890
        %6581 = vmatprep.subr.mxu0 %v5894
        %6582 = vmatpush1.msra.mxu0 %v5893
        %6583 = vmatprep.subr.mxu0 %v5897
        %6584 = vmatpush1.msra.mxu0 %v5896
        %6585 = vmatprep.subr.mxu0 %v5900
        %6586 = vmatpush1.msra.mxu0 %v5899
        %6587 = vmatprep.subr.mxu0 %v5903
        %6588 = vmatpush1.msra.mxu0 %v5902
        %6589 = vmatprep.subr.mxu0 %v5906
        %6590 = vmatpush1.msra.mxu0 %v5905
        %6591 = vmatprep.subr.mxu0 %v5909
        %6592 = vmatpush1.msra.mxu0 %v5908
        %6593 = vmatprep.subr.mxu0 %v5912
        %6594 = vmatpush1.msra.mxu0 %v5911
        %6595 = vmatprep.subr.mxu0 %v5915
        %6596 = vmatpush1.msra.mxu0 %v5914
        %6597 = vmatprep.subr.mxu0 %v5918
        %6598 = vmatpush1.msra.mxu0 %v5917
        %6599 = vmatprep.subr.mxu0 %v5921
        %6600 = vmatpush1.msra.mxu0 %v5920
        %6601 = vmatprep.subr.mxu0 %v5924
        %6602 = vmatpush1.msra.mxu0 %v5923
        %6603 = vmatprep.mubr.f32.mxu0 %v5423
        %6604 = vmatmul.mubr.f32.gmra.mrb[0].mxu0 %v5422
        %v6605 = vpop.f32.mrb[0].mxu0
        %v6606 = vadd.f32 %v6529, %v6605
        %v6607 = vpop.f32.mrb[0].mxu0
        %v6608 = vadd.f32 %v6531, %v6607
        %6609 = vmatprep.mubr.f32.mxu0 %v5439
        %6610 = vmatmul.mubr.f32.gmra.mrb[0].mxu0 %v5438
        %v6611 = vpop.f32.mrb[0].mxu0
        %v6612 = vadd.f32 %v6535, %v6611
        %v6613 = vpop.f32.mrb[0].mxu0
        %v6614 = vadd.f32 %v6537, %v6613
        %6615 = vdwg.mxu0
        %6616 = vmatprep.subr.mxu0 %v5927
        %6617 = vmatpush1.msra.mxu0 %v5926
        %6618 = vmatprep.subr.mxu0 %v5930
        %6619 = vmatpush1.msra.mxu0 %v5929
        %6620 = vmatprep.subr.mxu0 %v5933
        %6621 = vmatpush1.msra.mxu0 %v5932
        %6622 = vmatprep.subr.mxu0 %v5936
        %6623 = vmatpush1.msra.mxu0 %v5935
        %6624 = vmatprep.subr.mxu0 %v5939
        %6625 = vmatpush1.msra.mxu0 %v5938
        %6626 = vmatprep.subr.mxu0 %v5942
        %6627 = vmatpush1.msra.mxu0 %v5941
        %6628 = vmatprep.subr.mxu0 %v5945
        %6629 = vmatpush1.msra.mxu0 %v5944
        %6630 = vmatprep.subr.mxu0 %v5948
        %6631 = vmatpush1.msra.mxu0 %v5947
        %6632 = vmatprep.subr.mxu0 %v5951
        %6633 = vmatpush1.msra.mxu0 %v5950
        %6634 = vmatprep.subr.mxu0 %v5954
        %6635 = vmatpush1.msra.mxu0 %v5953
        %6636 = vmatprep.subr.mxu0 %v5957
        %6637 = vmatpush1.msra.mxu0 %v5956
        %6638 = vmatprep.subr.mxu0 %v5960
        %6639 = vmatpush1.msra.mxu0 %v5959
        %6640 = vmatprep.subr.mxu0 %v5963
        %6641 = vmatpush1.msra.mxu0 %v5962
        %6642 = vmatprep.subr.mxu0 %v5966
        %6643 = vmatpush1.msra.mxu0 %v5965
        %6644 = vmatprep.subr.mxu0 %v5969
        %6645 = vmatpush1.msra.mxu0 %v5968
        %6646 = vmatprep.subr.mxu0 %v5972
        %6647 = vmatpush1.msra.mxu0 %v5971
        %6648 = vmatprep.subr.mxu0 %v5975
        %6649 = vmatpush1.msra.mxu0 %v5974
        %6650 = vmatprep.subr.mxu0 %v5978
        %6651 = vmatpush1.msra.mxu0 %v5977
        %6652 = vmatprep.subr.mxu0 %v5981
        %6653 = vmatpush1.msra.mxu0 %v5980
        %6654 = vmatprep.subr.mxu0 %v5984
        %6655 = vmatpush1.msra.mxu0 %v5983
        %6656 = vmatprep.subr.mxu0 %v5987
        %6657 = vmatpush1.msra.mxu0 %v5986
        %6658 = vmatprep.subr.mxu0 %v5990
        %6659 = vmatpush1.msra.mxu0 %v5989
        %6660 = vmatprep.subr.mxu0 %v5993
        %6661 = vmatpush1.msra.mxu0 %v5992
        %6662 = vmatprep.subr.mxu0 %v5996
        %6663 = vmatpush1.msra.mxu0 %v5995
        %6664 = vmatprep.subr.mxu0 %v5999
        %6665 = vmatpush1.msra.mxu0 %v5998
        %6666 = vmatprep.subr.mxu0 %v6002
        %6667 = vmatpush1.msra.mxu0 %v6001
        %6668 = vmatprep.subr.mxu0 %v6005
        %6669 = vmatpush1.msra.mxu0 %v6004
        %6670 = vmatprep.subr.mxu0 %v6008
        %6671 = vmatpush1.msra.mxu0 %v6007
        %6672 = vmatprep.subr.mxu0 %v6011
        %6673 = vmatpush1.msra.mxu0 %v6010
        %6674 = vmatprep.subr.mxu0 %v6014
        %6675 = vmatpush1.msra.mxu0 %v6013
        %6676 = vmatprep.subr.mxu0 %v6017
        %6677 = vmatpush1.msra.mxu0 %v6016
        %6678 = vmatprep.subr.mxu0 %v6020
        %6679 = vmatpush1.msra.mxu0 %v6019
        %6680 = vmatprep.mubr.f32.mxu0 %v5425
        %6681 = vmatmul.mubr.f32.gmra.mrb[0].mxu0 %v5424
        %v6682 = vpop.f32.mrb[0].mxu0
        %v6683 = vadd.f32 %v6606, %v6682
        %v6684 = vpop.f32.mrb[0].mxu0
        %v6685 = vadd.f32 %v6608, %v6684
        %6686 = vmatprep.mubr.f32.mxu0 %v5441
        %6687 = vmatmul.mubr.f32.gmra.mrb[0].mxu0 %v5440
        %v6688 = vpop.f32.mrb[0].mxu0
        %v6689 = vadd.f32 %v6612, %v6688
        %v6690 = vpop.f32.mrb[0].mxu0
        %v6691 = vadd.f32 %v6614, %v6690
        %6692 = vdwg.mxu0
        %6693 = vmatprep.subr.mxu0 %v6023
        %6694 = vmatpush1.msra.mxu0 %v6022
        %6695 = vmatprep.subr.mxu0 %v6026
        %6696 = vmatpush1.msra.mxu0 %v6025
        %6697 = vmatprep.subr.mxu0 %v6029
        %6698 = vmatpush1.msra.mxu0 %v6028
        %6699 = vmatprep.subr.mxu0 %v6032
        %6700 = vmatpush1.msra.mxu0 %v6031
        %6701 = vmatprep.subr.mxu0 %v6035
        %6702 = vmatpush1.msra.mxu0 %v6034
        %6703 = vmatprep.subr.mxu0 %v6038
        %6704 = vmatpush1.msra.mxu0 %v6037
        %6705 = vmatprep.subr.mxu0 %v6041
        %6706 = vmatpush1.msra.mxu0 %v6040
        %6707 = vmatprep.subr.mxu0 %v6044
        %6708 = vmatpush1.msra.mxu0 %v6043
        %6709 = vmatprep.subr.mxu0 %v6047
        %6710 = vmatpush1.msra.mxu0 %v6046
        %6711 = vmatprep.subr.mxu0 %v6050
        %6712 = vmatpush1.msra.mxu0 %v6049
        %6713 = vmatprep.subr.mxu0 %v6053
        %6714 = vmatpush1.msra.mxu0 %v6052
        %6715 = vmatprep.subr.mxu0 %v6056
        %6716 = vmatpush1.msra.mxu0 %v6055
        %6717 = vmatprep.subr.mxu0 %v6059
        %6718 = vmatpush1.msra.mxu0 %v6058
        %6719 = vmatprep.subr.mxu0 %v6062
        %6720 = vmatpush1.msra.mxu0 %v6061
        %6721 = vmatprep.subr.mxu0 %v6065
        %6722 = vmatpush1.msra.mxu0 %v6064
        %6723 = vmatprep.subr.mxu0 %v6068
        %6724 = vmatpush1.msra.mxu0 %v6067
        %6725 = vmatprep.subr.mxu0 %v6071
        %6726 = vmatpush1.msra.mxu0 %v6070
        %6727 = vmatprep.subr.mxu0 %v6074
        %6728 = vmatpush1.msra.mxu0 %v6073
        %6729 = vmatprep.subr.mxu0 %v6077
        %6730 = vmatpush1.msra.mxu0 %v6076
        %6731 = vmatprep.subr.mxu0 %v6080
        %6732 = vmatpush1.msra.mxu0 %v6079
        %6733 = vmatprep.subr.mxu0 %v6083
        %6734 = vmatpush1.msra.mxu0 %v6082
        %6735 = vmatprep.subr.mxu0 %v6086
        %6736 = vmatpush1.msra.mxu0 %v6085
        %6737 = vmatprep.subr.mxu0 %v6089
        %6738 = vmatpush1.msra.mxu0 %v6088
        %6739 = vmatprep.subr.mxu0 %v6092
        %6740 = vmatpush1.msra.mxu0 %v6091
        %6741 = vmatprep.subr.mxu0 %v6095
        %6742 = vmatpush1.msra.mxu0 %v6094
        %6743 = vmatprep.subr.mxu0 %v6098
        %6744 = vmatpush1.msra.mxu0 %v6097
        %6745 = vmatprep.subr.mxu0 %v6101
        %6746 = vmatpush1.msra.mxu0 %v6100
        %6747 = vmatprep.subr.mxu0 %v6104
        %6748 = vmatpush1.msra.mxu0 %v6103
        %6749 = vmatprep.subr.mxu0 %v6107
        %6750 = vmatpush1.msra.mxu0 %v6106
        %6751 = vmatprep.subr.mxu0 %v6110
        %6752 = vmatpush1.msra.mxu0 %v6109
        %6753 = vmatprep.subr.mxu0 %v6113
        %6754 = vmatpush1.msra.mxu0 %v6112
        %6755 = vmatprep.subr.mxu0 %v6116
        %6756 = vmatpush1.msra.mxu0 %v6115
        %6757 = vmatprep.mubr.f32.mxu0 %v5427
        %6758 = vmatmul.mubr.f32.gmra.mrb[0].mxu0 %v5426
        %v6759 = vpop.f32.mrb[0].mxu0
        %v6760 = vadd.f32 %v6683, %v6759
        %v6761 = vpop.f32.mrb[0].mxu0
        %v6762 = vadd.f32 %v6685, %v6761
        %6763 = vmatprep.mubr.f32.mxu0 %v5443
        %6764 = vmatmul.mubr.f32.gmra.mrb[0].mxu0 %v5442
        %v6765 = vpop.f32.mrb[0].mxu0
        %v6766 = vadd.f32 %v6689, %v6765
        %v6767 = vpop.f32.mrb[0].mxu0
        %v6768 = vadd.f32 %v6691, %v6767
        %6769 = vdwg.mxu0
        %6770 = vmatprep.subr.mxu0 %v6119
        %6771 = vmatpush1.msra.mxu0 %v6118
        %6772 = vmatprep.subr.mxu0 %v6122
        %6773 = vmatpush1.msra.mxu0 %v6121
        %6774 = vmatprep.subr.mxu0 %v6125
        %6775 = vmatpush1.msra.mxu0 %v6124
        %6776 = vmatprep.subr.mxu0 %v6128
        %6777 = vmatpush1.msra.mxu0 %v6127
        %6778 = vmatprep.subr.mxu0 %v6131
        %6779 = vmatpush1.msra.mxu0 %v6130
        %6780 = vmatprep.subr.mxu0 %v6134
        %6781 = vmatpush1.msra.mxu0 %v6133
        %6782 = vmatprep.subr.mxu0 %v6137
        %6783 = vmatpush1.msra.mxu0 %v6136
        %6784 = vmatprep.subr.mxu0 %v6140
        %6785 = vmatpush1.msra.mxu0 %v6139
        %6786 = vmatprep.subr.mxu0 %v6143
        %6787 = vmatpush1.msra.mxu0 %v6142
        %6788 = vmatprep.subr.mxu0 %v6146
        %6789 = vmatpush1.msra.mxu0 %v6145
        %6790 = vmatprep.subr.mxu0 %v6149
        %6791 = vmatpush1.msra.mxu0 %v6148
        %6792 = vmatprep.subr.mxu0 %v6152
        %6793 = vmatpush1.msra.mxu0 %v6151
        %6794 = vmatprep.subr.mxu0 %v6155
        %6795 = vmatpush1.msra.mxu0 %v6154
        %6796 = vmatprep.subr.mxu0 %v6158
        %6797 = vmatpush1.msra.mxu0 %v6157
        %6798 = vmatprep.subr.mxu0 %v6161
        %6799 = vmatpush1.msra.mxu0 %v6160
        %6800 = vmatprep.subr.mxu0 %v6164
        %6801 = vmatpush1.msra.mxu0 %v6163
        %6802 = vmatprep.subr.mxu0 %v6167
        %6803 = vmatpush1.msra.mxu0 %v6166
        %6804 = vmatprep.subr.mxu0 %v6170
        %6805 = vmatpush1.msra.mxu0 %v6169
        %6806 = vmatprep.subr.mxu0 %v6173
        %6807 = vmatpush1.msra.mxu0 %v6172
        %6808 = vmatprep.subr.mxu0 %v6176
        %6809 = vmatpush1.msra.mxu0 %v6175
        %6810 = vmatprep.subr.mxu0 %v6179
        %6811 = vmatpush1.msra.mxu0 %v6178
        %6812 = vmatprep.subr.mxu0 %v6182
        %6813 = vmatpush1.msra.mxu0 %v6181
        %6814 = vmatprep.subr.mxu0 %v6185
        %6815 = vmatpush1.msra.mxu0 %v6184
        %6816 = vmatprep.subr.mxu0 %v6188
        %6817 = vmatpush1.msra.mxu0 %v6187
        %6818 = vmatprep.subr.mxu0 %v6191
        %6819 = vmatpush1.msra.mxu0 %v6190
        %6820 = vmatprep.subr.mxu0 %v6194
        %6821 = vmatpush1.msra.mxu0 %v6193
        %6822 = vmatprep.subr.mxu0 %v6197
        %6823 = vmatpush1.msra.mxu0 %v6196
        %6824 = vmatprep.subr.mxu0 %v6200
        %6825 = vmatpush1.msra.mxu0 %v6199
        %6826 = vmatprep.subr.mxu0 %v6203
        %6827 = vmatpush1.msra.mxu0 %v6202
        %6828 = vmatprep.subr.mxu0 %v6206
        %6829 = vmatpush1.msra.mxu0 %v6205
        %6830 = vmatprep.subr.mxu0 %v6209
        %6831 = vmatpush1.msra.mxu0 %v6208
        %6832 = vmatprep.subr.mxu0 %v6212
        %6833 = vmatpush1.msra.mxu0 %v6211
        %6834 = vmatprep.mubr.f32.mxu0 %v5429
        %6835 = vmatmul.mubr.f32.gmra.mrb[0].mxu0 %v5428
        %v6836 = vpop.f32.mrb[0].mxu0
        %v6837 = vadd.f32 %v6760, %v6836
        %v6838 = vpop.f32.mrb[0].mxu0
        %v6839 = vadd.f32 %v6762, %v6838
        %6840 = vmatprep.mubr.f32.mxu0 %v5445
        %6841 = vmatmul.mubr.f32.gmra.mrb[0].mxu0 %v5444
        %v6842 = vpop.f32.mrb[0].mxu0
        %v6843 = vadd.f32 %v6766, %v6842
        %v6844 = vpop.f32.mrb[0].mxu0
        %v6845 = vadd.f32 %v6768, %v6844
        %6846 = vdwg.mxu0
        %6847 = vmatprep.subr.mxu0 0.0
        %6848 = vmatpush1.msra.mxu0 %v5448
        %6849 = vmatprep.subr.mxu0 0.0
        %6850 = vmatpush1.msra.mxu0 %v5451
        %6851 = vmatprep.subr.mxu0 0.0
        %6852 = vmatpush1.msra.mxu0 %v5454
        %6853 = vmatprep.subr.mxu0 0.0
        %6854 = vmatpush1.msra.mxu0 %v5457
        %6855 = vmatprep.subr.mxu0 0.0
        %6856 = vmatpush1.msra.mxu0 %v5460
        %6857 = vmatprep.subr.mxu0 0.0
        %6858 = vmatpush1.msra.mxu0 %v5463
        %6859 = vmatprep.subr.mxu0 0.0
        %6860 = vmatpush1.msra.mxu0 %v5466
        %6861 = vmatprep.subr.mxu0 0.0
        %6862 = vmatpush1.msra.mxu0 %v5469
        %6863 = vmatprep.subr.mxu0 0.0
        %6864 = vmatpush1.msra.mxu0 %v5472
        %6865 = vmatprep.subr.mxu0 0.0
        %6866 = vmatpush1.msra.mxu0 %v5475
        %6867 = vmatprep.subr.mxu0 0.0
        %6868 = vmatpush1.msra.mxu0 %v5478
        %6869 = vmatprep.subr.mxu0 0.0
        %6870 = vmatpush1.msra.mxu0 %v5481
        %6871 = vmatprep.subr.mxu0 0.0
        %6872 = vmatpush1.msra.mxu0 %v5484
        %6873 = vmatprep.subr.mxu0 0.0
        %6874 = vmatpush1.msra.mxu0 %v5487
        %6875 = vmatprep.subr.mxu0 0.0
        %6876 = vmatpush1.msra.mxu0 %v5490
        %6877 = vmatprep.subr.mxu0 0.0
        %6878 = vmatpush1.msra.mxu0 %v5493
        %6879 = vmatprep.subr.mxu0 0.0
        %6880 = vmatpush1.msra.mxu0 %v5496
        %6881 = vmatprep.subr.mxu0 0.0
        %6882 = vmatpush1.msra.mxu0 %v5499
        %6883 = vmatprep.subr.mxu0 0.0
        %6884 = vmatpush1.msra.mxu0 %v5502
        %6885 = vmatprep.subr.mxu0 0.0
        %6886 = vmatpush1.msra.mxu0 %v5505
        %6887 = vmatprep.subr.mxu0 0.0
        %6888 = vmatpush1.msra.mxu0 %v5508
        %6889 = vmatprep.subr.mxu0 0.0
        %6890 = vmatpush1.msra.mxu0 %v5511
        %6891 = vmatprep.subr.mxu0 0.0
        %6892 = vmatpush1.msra.mxu0 %v5514
        %6893 = vmatprep.subr.mxu0 0.0
        %6894 = vmatpush1.msra.mxu0 %v5517
        %6895 = vmatprep.subr.mxu0 0.0
        %6896 = vmatpush1.msra.mxu0 %v5520
        %6897 = vmatprep.subr.mxu0 0.0
        %6898 = vmatpush1.msra.mxu0 %v5523
        %6899 = vmatprep.subr.mxu0 0.0
        %6900 = vmatpush1.msra.mxu0 %v5526
        %6901 = vmatprep.subr.mxu0 0.0
        %6902 = vmatpush1.msra.mxu0 %v5529
        %6903 = vmatprep.subr.mxu0 0.0
        %6904 = vmatpush1.msra.mxu0 %v5532
        %6905 = vmatprep.subr.mxu0 0.0
        %6906 = vmatpush1.msra.mxu0 %v5535
        %6907 = vmatprep.subr.mxu0 0.0
        %6908 = vmatpush1.msra.mxu0 %v5538
        %6909 = vmatprep.subr.mxu0 0.0
        %6910 = vmatpush1.msra.mxu0 %v5541
        %6911 = vmatprep.mubr.f32.mxu0 %v5415
        %6912 = vmatmul.mubr.f32.gmra.mrb[0].mxu0 %v5414
        %v6913 = vpop.f32.mrb[0].mxu0
        %v6914 = vadd.f32 %v6227, %v6913
        %v6915 = vpop.f32.mrb[0].mxu0
        %6916 = vmatprep.mubr.f32.mxu0 %v5431
        %6917 = vmatmul.mubr.f32.gmra.mrb[0].mxu0 %v5430
        %v6918 = vpop.f32.mrb[0].mxu0
        %v6919 = vadd.f32 %v6227, %v6918
        %v6920 = vpop.f32.mrb[0].mxu0
        %6921 = vdwg.mxu0
        %6922 = vmatprep.subr.mxu0 0.0
        %6923 = vmatpush1.msra.mxu0 %v5544
        %6924 = vmatprep.subr.mxu0 0.0
        %6925 = vmatpush1.msra.mxu0 %v5547
        %6926 = vmatprep.subr.mxu0 0.0
        %6927 = vmatpush1.msra.mxu0 %v5550
        %6928 = vmatprep.subr.mxu0 0.0
        %6929 = vmatpush1.msra.mxu0 %v5553
        %6930 = vmatprep.subr.mxu0 0.0
        %6931 = vmatpush1.msra.mxu0 %v5556
        %6932 = vmatprep.subr.mxu0 0.0
        %6933 = vmatpush1.msra.mxu0 %v5559
        %6934 = vmatprep.subr.mxu0 0.0
        %6935 = vmatpush1.msra.mxu0 %v5562
        %6936 = vmatprep.subr.mxu0 0.0
        %6937 = vmatpush1.msra.mxu0 %v5565
        %6938 = vmatprep.subr.mxu0 0.0
        %6939 = vmatpush1.msra.mxu0 %v5568
        %6940 = vmatprep.subr.mxu0 0.0
        %6941 = vmatpush1.msra.mxu0 %v5571
        %6942 = vmatprep.subr.mxu0 0.0
        %6943 = vmatpush1.msra.mxu0 %v5574
        %6944 = vmatprep.subr.mxu0 0.0
        %6945 = vmatpush1.msra.mxu0 %v5577
        %6946 = vmatprep.subr.mxu0 0.0
        %6947 = vmatpush1.msra.mxu0 %v5580
        %6948 = vmatprep.subr.mxu0 0.0
        %6949 = vmatpush1.msra.mxu0 %v5583
        %6950 = vmatprep.subr.mxu0 0.0
        %6951 = vmatpush1.msra.mxu0 %v5586
        %6952 = vmatprep.subr.mxu0 0.0
        %6953 = vmatpush1.msra.mxu0 %v5589
        %6954 = vmatprep.subr.mxu0 0.0
        %6955 = vmatpush1.msra.mxu0 %v5592
        %6956 = vmatprep.subr.mxu0 0.0
        %6957 = vmatpush1.msra.mxu0 %v5595
        %6958 = vmatprep.subr.mxu0 0.0
        %6959 = vmatpush1.msra.mxu0 %v5598
        %6960 = vmatprep.subr.mxu0 0.0
        %6961 = vmatpush1.msra.mxu0 %v5601
        %6962 = vmatprep.subr.mxu0 0.0
        %6963 = vmatpush1.msra.mxu0 %v5604
        %6964 = vmatprep.subr.mxu0 0.0
        %6965 = vmatpush1.msra.mxu0 %v5607
        %6966 = vmatprep.subr.mxu0 0.0
        %6967 = vmatpush1.msra.mxu0 %v5610
        %6968 = vmatprep.subr.mxu0 0.0
        %6969 = vmatpush1.msra.mxu0 %v5613
        %6970 = vmatprep.subr.mxu0 0.0
        %6971 = vmatpush1.msra.mxu0 %v5616
        %6972 = vmatprep.subr.mxu0 0.0
        %6973 = vmatpush1.msra.mxu0 %v5619
        %6974 = vmatprep.subr.mxu0 0.0
        %6975 = vmatpush1.msra.mxu0 %v5622
        %6976 = vmatprep.subr.mxu0 0.0
        %6977 = vmatpush1.msra.mxu0 %v5625
        %6978 = vmatprep.subr.mxu0 0.0
        %6979 = vmatpush1.msra.mxu0 %v5628
        %6980 = vmatprep.subr.mxu0 0.0
        %6981 = vmatpush1.msra.mxu0 %v5631
        %6982 = vmatprep.subr.mxu0 0.0
        %6983 = vmatpush1.msra.mxu0 %v5634
        %6984 = vmatprep.subr.mxu0 0.0
        %6985 = vmatpush1.msra.mxu0 %v5637
        %6986 = vmatprep.mubr.f32.mxu0 %v5417
        %6987 = vmatmul.mubr.f32.gmra.mrb[0].mxu0 %v5416
        %v6988 = vpop.f32.mrb[0].mxu0
        %v6989 = vadd.f32 %v6914, %v6988
        %v6990 = vpop.f32.mrb[0].mxu0
        %6991 = vmatprep.mubr.f32.mxu0 %v5433
        %6992 = vmatmul.mubr.f32.gmra.mrb[0].mxu0 %v5432
        %v6993 = vpop.f32.mrb[0].mxu0
        %v6994 = vadd.f32 %v6919, %v6993
        %v6995 = vpop.f32.mrb[0].mxu0
        %6996 = vdwg.mxu0
        %6997 = vmatprep.subr.mxu0 0.0
        %6998 = vmatpush1.msra.mxu0 %v5640
        %6999 = vmatprep.subr.mxu0 0.0
        %7000 = vmatpush1.msra.mxu0 %v5643
        %7001 = vmatprep.subr.mxu0 0.0
        %7002 = vmatpush1.msra.mxu0 %v5646
        %7003 = vmatprep.subr.mxu0 0.0
        %7004 = vmatpush1.msra.mxu0 %v5649
        %7005 = vmatprep.subr.mxu0 0.0
        %7006 = vmatpush1.msra.mxu0 %v5652
        %7007 = vmatprep.subr.mxu0 0.0
        %7008 = vmatpush1.msra.mxu0 %v5655
        %7009 = vmatprep.subr.mxu0 0.0
        %7010 = vmatpush1.msra.mxu0 %v5658
        %7011 = vmatprep.subr.mxu0 0.0
        %7012 = vmatpush1.msra.mxu0 %v5661
        %7013 = vmatprep.subr.mxu0 0.0
        %7014 = vmatpush1.msra.mxu0 %v5664
        %7015 = vmatprep.subr.mxu0 0.0
        %7016 = vmatpush1.msra.mxu0 %v5667
        %7017 = vmatprep.subr.mxu0 0.0
        %7018 = vmatpush1.msra.mxu0 %v5670
        %7019 = vmatprep.subr.mxu0 0.0
        %7020 = vmatpush1.msra.mxu0 %v5673
        %7021 = vmatprep.subr.mxu0 0.0
        %7022 = vmatpush1.msra.mxu0 %v5676
        %7023 = vmatprep.subr.mxu0 0.0
        %7024 = vmatpush1.msra.mxu0 %v5679
        %7025 = vmatprep.subr.mxu0 0.0
        %7026 = vmatpush1.msra.mxu0 %v5682
        %7027 = vmatprep.subr.mxu0 0.0
        %7028 = vmatpush1.msra.mxu0 %v5685
        %7029 = vmatprep.subr.mxu0 0.0
        %7030 = vmatpush1.msra.mxu0 %v5688
        %7031 = vmatprep.subr.mxu0 0.0
        %7032 = vmatpush1.msra.mxu0 %v5691
        %7033 = vmatprep.subr.mxu0 0.0
        %7034 = vmatpush1.msra.mxu0 %v5694
        %7035 = vmatprep.subr.mxu0 0.0
        %7036 = vmatpush1.msra.mxu0 %v5697
        %7037 = vmatprep.subr.mxu0 0.0
        %7038 = vmatpush1.msra.mxu0 %v5700
        %7039 = vmatprep.subr.mxu0 0.0
        %7040 = vmatpush1.msra.mxu0 %v5703
        %7041 = vmatprep.subr.mxu0 0.0
        %7042 = vmatpush1.msra.mxu0 %v5706
        %7043 = vmatprep.subr.mxu0 0.0
        %7044 = vmatpush1.msra.mxu0 %v5709
        %7045 = vmatprep.subr.mxu0 0.0
        %7046 = vmatpush1.msra.mxu0 %v5712
        %7047 = vmatprep.subr.mxu0 0.0
        %7048 = vmatpush1.msra.mxu0 %v5715
        %7049 = vmatprep.subr.mxu0 0.0
        %7050 = vmatpush1.msra.mxu0 %v5718
        %7051 = vmatprep.subr.mxu0 0.0
        %7052 = vmatpush1.msra.mxu0 %v5721
        %7053 = vmatprep.subr.mxu0 0.0
        %7054 = vmatpush1.msra.mxu0 %v5724
        %7055 = vmatprep.subr.mxu0 0.0
        %7056 = vmatpush1.msra.mxu0 %v5727
        %7057 = vmatprep.subr.mxu0 0.0
        %7058 = vmatpush1.msra.mxu0 %v5730
        %7059 = vmatprep.subr.mxu0 0.0
        %7060 = vmatpush1.msra.mxu0 %v5733
        %7061 = vmatprep.mubr.f32.mxu0 %v5419
        %7062 = vmatmul.mubr.f32.gmra.mrb[0].mxu0 %v5418
        %v7063 = vpop.f32.mrb[0].mxu0
        %v7064 = vadd.f32 %v6989, %v7063
        %v7065 = vpop.f32.mrb[0].mxu0
        %7066 = vmatprep.mubr.f32.mxu0 %v5435
        %7067 = vmatmul.mubr.f32.gmra.mrb[0].mxu0 %v5434
        %v7068 = vpop.f32.mrb[0].mxu0
        %v7069 = vadd.f32 %v6994, %v7068
        %v7070 = vpop.f32.mrb[0].mxu0
        %7071 = vdwg.mxu0
        %7072 = vmatprep.subr.mxu0 0.0
        %7073 = vmatpush1.msra.mxu0 %v5736
        %7074 = vmatprep.subr.mxu0 0.0
        %7075 = vmatpush1.msra.mxu0 %v5739
        %7076 = vmatprep.subr.mxu0 0.0
        %7077 = vmatpush1.msra.mxu0 %v5742
        %7078 = vmatprep.subr.mxu0 0.0
        %7079 = vmatpush1.msra.mxu0 %v5745
        %7080 = vmatprep.subr.mxu0 0.0
        %7081 = vmatpush1.msra.mxu0 %v5748
        %7082 = vmatprep.subr.mxu0 0.0
        %7083 = vmatpush1.msra.mxu0 %v5751
        %7084 = vmatprep.subr.mxu0 0.0
        %7085 = vmatpush1.msra.mxu0 %v5754
        %7086 = vmatprep.subr.mxu0 0.0
        %7087 = vmatpush1.msra.mxu0 %v5757
        %7088 = vmatprep.subr.mxu0 0.0
        %7089 = vmatpush1.msra.mxu0 %v5760
        %7090 = vmatprep.subr.mxu0 0.0
        %7091 = vmatpush1.msra.mxu0 %v5763
        %7092 = vmatprep.subr.mxu0 0.0
        %7093 = vmatpush1.msra.mxu0 %v5766
        %7094 = vmatprep.subr.mxu0 0.0
        %7095 = vmatpush1.msra.mxu0 %v5769
        %7096 = vmatprep.subr.mxu0 0.0
        %7097 = vmatpush1.msra.mxu0 %v5772
        %7098 = vmatprep.subr.mxu0 0.0
        %7099 = vmatpush1.msra.mxu0 %v5775
        %7100 = vmatprep.subr.mxu0 0.0
        %7101 = vmatpush1.msra.mxu0 %v5778
        %7102 = vmatprep.subr.mxu0 0.0
        %7103 = vmatpush1.msra.mxu0 %v5781
        %7104 = vmatprep.subr.mxu0 0.0
        %7105 = vmatpush1.msra.mxu0 %v5784
        %7106 = vmatprep.subr.mxu0 0.0
        %7107 = vmatpush1.msra.mxu0 %v5787
        %7108 = vmatprep.subr.mxu0 0.0
        %7109 = vmatpush1.msra.mxu0 %v5790
        %7110 = vmatprep.subr.mxu0 0.0
        %7111 = vmatpush1.msra.mxu0 %v5793
        %7112 = vmatprep.subr.mxu0 0.0
        %7113 = vmatpush1.msra.mxu0 %v5796
        %7114 = vmatprep.subr.mxu0 0.0
        %7115 = vmatpush1.msra.mxu0 %v5799
        %7116 = vmatprep.subr.mxu0 0.0
        %7117 = vmatpush1.msra.mxu0 %v5802
        %7118 = vmatprep.subr.mxu0 0.0
        %7119 = vmatpush1.msra.mxu0 %v5805
        %7120 = vmatprep.subr.mxu0 0.0
        %7121 = vmatpush1.msra.mxu0 %v5808
        %7122 = vmatprep.subr.mxu0 0.0
        %7123 = vmatpush1.msra.mxu0 %v5811
        %7124 = vmatprep.subr.mxu0 0.0
        %7125 = vmatpush1.msra.mxu0 %v5814
        %7126 = vmatprep.subr.mxu0 0.0
        %7127 = vmatpush1.msra.mxu0 %v5817
        %7128 = vmatprep.subr.mxu0 0.0
        %7129 = vmatpush1.msra.mxu0 %v5820
        %7130 = vmatprep.subr.mxu0 0.0
        %7131 = vmatpush1.msra.mxu0 %v5823
        %7132 = vmatprep.subr.mxu0 0.0
        %7133 = vmatpush1.msra.mxu0 %v5826
        %7134 = vmatprep.subr.mxu0 0.0
        %7135 = vmatpush1.msra.mxu0 %v5829
        %7136 = vmatprep.mubr.f32.mxu0 %v5421
        %7137 = vmatmul.mubr.f32.gmra.mrb[0].mxu0 %v5420
        %v7138 = vpop.f32.mrb[0].mxu0
        %v7139 = vadd.f32 %v7064, %v7138
        %v7140 = vpop.f32.mrb[0].mxu0
        %7141 = vmatprep.mubr.f32.mxu0 %v5437
        %7142 = vmatmul.mubr.f32.gmra.mrb[0].mxu0 %v5436
        %v7143 = vpop.f32.mrb[0].mxu0
        %v7144 = vadd.f32 %v7069, %v7143
        %v7145 = vpop.f32.mrb[0].mxu0
        %7146 = vdwg.mxu0
        %7147 = vmatprep.subr.mxu0 0.0
        %7148 = vmatpush1.msra.mxu0 %v5832
        %7149 = vmatprep.subr.mxu0 0.0
        %7150 = vmatpush1.msra.mxu0 %v5835
        %7151 = vmatprep.subr.mxu0 0.0
        %7152 = vmatpush1.msra.mxu0 %v5838
        %7153 = vmatprep.subr.mxu0 0.0
        %7154 = vmatpush1.msra.mxu0 %v5841
        %7155 = vmatprep.subr.mxu0 0.0
        %7156 = vmatpush1.msra.mxu0 %v5844
        %7157 = vmatprep.subr.mxu0 0.0
        %7158 = vmatpush1.msra.mxu0 %v5847
        %7159 = vmatprep.subr.mxu0 0.0
        %7160 = vmatpush1.msra.mxu0 %v5850
        %7161 = vmatprep.subr.mxu0 0.0
        %7162 = vmatpush1.msra.mxu0 %v5853
        %7163 = vmatprep.subr.mxu0 0.0
        %7164 = vmatpush1.msra.mxu0 %v5856
        %7165 = vmatprep.subr.mxu0 0.0
        %7166 = vmatpush1.msra.mxu0 %v5859
        %7167 = vmatprep.subr.mxu0 0.0
        %7168 = vmatpush1.msra.mxu0 %v5862
        %7169 = vmatprep.subr.mxu0 0.0
        %7170 = vmatpush1.msra.mxu0 %v5865
        %7171 = vmatprep.subr.mxu0 0.0
        %7172 = vmatpush1.msra.mxu0 %v5868
        %7173 = vmatprep.subr.mxu0 0.0
        %7174 = vmatpush1.msra.mxu0 %v5871
        %7175 = vmatprep.subr.mxu0 0.0
        %7176 = vmatpush1.msra.mxu0 %v5874
        %7177 = vmatprep.subr.mxu0 0.0
        %7178 = vmatpush1.msra.mxu0 %v5877
        %7179 = vmatprep.subr.mxu0 0.0
        %7180 = vmatpush1.msra.mxu0 %v5880
        %7181 = vmatprep.subr.mxu0 0.0
        %7182 = vmatpush1.msra.mxu0 %v5883
        %7183 = vmatprep.subr.mxu0 0.0
        %7184 = vmatpush1.msra.mxu0 %v5886
        %7185 = vmatprep.subr.mxu0 0.0
        %7186 = vmatpush1.msra.mxu0 %v5889
        %7187 = vmatprep.subr.mxu0 0.0
        %7188 = vmatpush1.msra.mxu0 %v5892
        %7189 = vmatprep.subr.mxu0 0.0
        %7190 = vmatpush1.msra.mxu0 %v5895
        %7191 = vmatprep.subr.mxu0 0.0
        %7192 = vmatpush1.msra.mxu0 %v5898
        %7193 = vmatprep.subr.mxu0 0.0
        %7194 = vmatpush1.msra.mxu0 %v5901
        %7195 = vmatprep.subr.mxu0 0.0
        %7196 = vmatpush1.msra.mxu0 %v5904
        %7197 = vmatprep.subr.mxu0 0.0
        %7198 = vmatpush1.msra.mxu0 %v5907
        %7199 = vmatprep.subr.mxu0 0.0
        %7200 = vmatpush1.msra.mxu0 %v5910
        %7201 = vmatprep.subr.mxu0 0.0
        %7202 = vmatpush1.msra.mxu0 %v5913
        %7203 = vmatprep.subr.mxu0 0.0
        %7204 = vmatpush1.msra.mxu0 %v5916
        %7205 = vmatprep.subr.mxu0 0.0
        %7206 = vmatpush1.msra.mxu0 %v5919
        %7207 = vmatprep.subr.mxu0 0.0
        %7208 = vmatpush1.msra.mxu0 %v5922
        %7209 = vmatprep.subr.mxu0 0.0
        %7210 = vmatpush1.msra.mxu0 %v5925
        %7211 = vmatprep.mubr.f32.mxu0 %v5423
        %7212 = vmatmul.mubr.f32.gmra.mrb[0].mxu0 %v5422
        %v7213 = vpop.f32.mrb[0].mxu0
        %v7214 = vadd.f32 %v7139, %v7213
        %v7215 = vpop.f32.mrb[0].mxu0
        %7216 = vmatprep.mubr.f32.mxu0 %v5439
        %7217 = vmatmul.mubr.f32.gmra.mrb[0].mxu0 %v5438
        %v7218 = vpop.f32.mrb[0].mxu0
        %v7219 = vadd.f32 %v7144, %v7218
        %v7220 = vpop.f32.mrb[0].mxu0
        %7221 = vdwg.mxu0
        %7222 = vmatprep.subr.mxu0 0.0
        %7223 = vmatpush1.msra.mxu0 %v5928
        %7224 = vmatprep.subr.mxu0 0.0
        %7225 = vmatpush1.msra.mxu0 %v5931
        %7226 = vmatprep.subr.mxu0 0.0
        %7227 = vmatpush1.msra.mxu0 %v5934
        %7228 = vmatprep.subr.mxu0 0.0
        %7229 = vmatpush1.msra.mxu0 %v5937
        %7230 = vmatprep.subr.mxu0 0.0
        %7231 = vmatpush1.msra.mxu0 %v5940
        %7232 = vmatprep.subr.mxu0 0.0
        %7233 = vmatpush1.msra.mxu0 %v5943
        %7234 = vmatprep.subr.mxu0 0.0
        %7235 = vmatpush1.msra.mxu0 %v5946
        %7236 = vmatprep.subr.mxu0 0.0
        %7237 = vmatpush1.msra.mxu0 %v5949
        %7238 = vmatprep.subr.mxu0 0.0
        %7239 = vmatpush1.msra.mxu0 %v5952
        %7240 = vmatprep.subr.mxu0 0.0
        %7241 = vmatpush1.msra.mxu0 %v5955
        %7242 = vmatprep.subr.mxu0 0.0
        %7243 = vmatpush1.msra.mxu0 %v5958
        %7244 = vmatprep.subr.mxu0 0.0
        %7245 = vmatpush1.msra.mxu0 %v5961
        %7246 = vmatprep.subr.mxu0 0.0
        %7247 = vmatpush1.msra.mxu0 %v5964
        %7248 = vmatprep.subr.mxu0 0.0
        %7249 = vmatpush1.msra.mxu0 %v5967
        %7250 = vmatprep.subr.mxu0 0.0
        %7251 = vmatpush1.msra.mxu0 %v5970
        %7252 = vmatprep.subr.mxu0 0.0
        %7253 = vmatpush1.msra.mxu0 %v5973
        %7254 = vmatprep.subr.mxu0 0.0
        %7255 = vmatpush1.msra.mxu0 %v5976
        %7256 = vmatprep.subr.mxu0 0.0
        %7257 = vmatpush1.msra.mxu0 %v5979
        %7258 = vmatprep.subr.mxu0 0.0
        %7259 = vmatpush1.msra.mxu0 %v5982
        %7260 = vmatprep.subr.mxu0 0.0
        %7261 = vmatpush1.msra.mxu0 %v5985
        %7262 = vmatprep.subr.mxu0 0.0
        %7263 = vmatpush1.msra.mxu0 %v5988
        %7264 = vmatprep.subr.mxu0 0.0
        %7265 = vmatpush1.msra.mxu0 %v5991
        %7266 = vmatprep.subr.mxu0 0.0
        %7267 = vmatpush1.msra.mxu0 %v5994
        %7268 = vmatprep.subr.mxu0 0.0
        %7269 = vmatpush1.msra.mxu0 %v5997
        %7270 = vmatprep.subr.mxu0 0.0
        %7271 = vmatpush1.msra.mxu0 %v6000
        %7272 = vmatprep.subr.mxu0 0.0
        %7273 = vmatpush1.msra.mxu0 %v6003
        %7274 = vmatprep.subr.mxu0 0.0
        %7275 = vmatpush1.msra.mxu0 %v6006
        %7276 = vmatprep.subr.mxu0 0.0
        %7277 = vmatpush1.msra.mxu0 %v6009
        %7278 = vmatprep.subr.mxu0 0.0
        %7279 = vmatpush1.msra.mxu0 %v6012
        %7280 = vmatprep.subr.mxu0 0.0
        %7281 = vmatpush1.msra.mxu0 %v6015
        %7282 = vmatprep.subr.mxu0 0.0
        %7283 = vmatpush1.msra.mxu0 %v6018
        %7284 = vmatprep.subr.mxu0 0.0
        %7285 = vmatpush1.msra.mxu0 %v6021
        %7286 = vmatprep.mubr.f32.mxu0 %v5425
        %7287 = vmatmul.mubr.f32.gmra.mrb[0].mxu0 %v5424
        %v7288 = vpop.f32.mrb[0].mxu0
        %v7289 = vadd.f32 %v7214, %v7288
        %v7290 = vpop.f32.mrb[0].mxu0
        %7291 = vmatprep.mubr.f32.mxu0 %v5441
        %7292 = vmatmul.mubr.f32.gmra.mrb[0].mxu0 %v5440
        %v7293 = vpop.f32.mrb[0].mxu0
        %v7294 = vadd.f32 %v7219, %v7293
        %v7295 = vpop.f32.mrb[0].mxu0
        %7296 = vdwg.mxu0
        %7297 = vmatprep.subr.mxu0 0.0
        %7298 = vmatpush1.msra.mxu0 %v6024
        %7299 = vmatprep.subr.mxu0 0.0
        %7300 = vmatpush1.msra.mxu0 %v6027
        %7301 = vmatprep.subr.mxu0 0.0
        %7302 = vmatpush1.msra.mxu0 %v6030
        %7303 = vmatprep.subr.mxu0 0.0
        %7304 = vmatpush1.msra.mxu0 %v6033
        %7305 = vmatprep.subr.mxu0 0.0
        %7306 = vmatpush1.msra.mxu0 %v6036
        %7307 = vmatprep.subr.mxu0 0.0
        %7308 = vmatpush1.msra.mxu0 %v6039
        %7309 = vmatprep.subr.mxu0 0.0
        %7310 = vmatpush1.msra.mxu0 %v6042
        %7311 = vmatprep.subr.mxu0 0.0
        %7312 = vmatpush1.msra.mxu0 %v6045
        %7313 = vmatprep.subr.mxu0 0.0
        %7314 = vmatpush1.msra.mxu0 %v6048
        %7315 = vmatprep.subr.mxu0 0.0
        %7316 = vmatpush1.msra.mxu0 %v6051
        %7317 = vmatprep.subr.mxu0 0.0
        %7318 = vmatpush1.msra.mxu0 %v6054
        %7319 = vmatprep.subr.mxu0 0.0
        %7320 = vmatpush1.msra.mxu0 %v6057
        %7321 = vmatprep.subr.mxu0 0.0
        %7322 = vmatpush1.msra.mxu0 %v6060
        %7323 = vmatprep.subr.mxu0 0.0
        %7324 = vmatpush1.msra.mxu0 %v6063
        %7325 = vmatprep.subr.mxu0 0.0
        %7326 = vmatpush1.msra.mxu0 %v6066
        %7327 = vmatprep.subr.mxu0 0.0
        %7328 = vmatpush1.msra.mxu0 %v6069
        %7329 = vmatprep.subr.mxu0 0.0
        %7330 = vmatpush1.msra.mxu0 %v6072
        %7331 = vmatprep.subr.mxu0 0.0
        %7332 = vmatpush1.msra.mxu0 %v6075
        %7333 = vmatprep.subr.mxu0 0.0
        %7334 = vmatpush1.msra.mxu0 %v6078
        %7335 = vmatprep.subr.mxu0 0.0
        %7336 = vmatpush1.msra.mxu0 %v6081
        %7337 = vmatprep.subr.mxu0 0.0
        %7338 = vmatpush1.msra.mxu0 %v6084
        %7339 = vmatprep.subr.mxu0 0.0
        %7340 = vmatpush1.msra.mxu0 %v6087
        %7341 = vmatprep.subr.mxu0 0.0
        %7342 = vmatpush1.msra.mxu0 %v6090
        %7343 = vmatprep.subr.mxu0 0.0
        %7344 = vmatpush1.msra.mxu0 %v6093
        %7345 = vmatprep.subr.mxu0 0.0
        %7346 = vmatpush1.msra.mxu0 %v6096
        %7347 = vmatprep.subr.mxu0 0.0
        %7348 = vmatpush1.msra.mxu0 %v6099
        %7349 = vmatprep.subr.mxu0 0.0
        %7350 = vmatpush1.msra.mxu0 %v6102
        %7351 = vmatprep.subr.mxu0 0.0
        %7352 = vmatpush1.msra.mxu0 %v6105
        %7353 = vmatprep.subr.mxu0 0.0
        %7354 = vmatpush1.msra.mxu0 %v6108
        %7355 = vmatprep.subr.mxu0 0.0
        %7356 = vmatpush1.msra.mxu0 %v6111
        %7357 = vmatprep.subr.mxu0 0.0
        %7358 = vmatpush1.msra.mxu0 %v6114
        %7359 = vmatprep.subr.mxu0 0.0
        %7360 = vmatpush1.msra.mxu0 %v6117
        %7361 = vmatprep.mubr.f32.mxu0 %v5427
        %7362 = vmatmul.mubr.f32.gmra.mrb[0].mxu0 %v5426
        %v7363 = vpop.f32.mrb[0].mxu0
        %v7364 = vadd.f32 %v7289, %v7363
        %v7365 = vpop.f32.mrb[0].mxu0
        %7366 = vmatprep.mubr.f32.mxu0 %v5443
        %7367 = vmatmul.mubr.f32.gmra.mrb[0].mxu0 %v5442
        %v7368 = vpop.f32.mrb[0].mxu0
        %v7369 = vadd.f32 %v7294, %v7368
        %v7370 = vpop.f32.mrb[0].mxu0
        %7371 = vdwg.mxu0
        %7372 = vmatprep.subr.mxu0 0.0
        %7373 = vmatpush1.msra.mxu0 %v6120
        %7374 = vmatprep.subr.mxu0 0.0
        %7375 = vmatpush1.msra.mxu0 %v6123
        %7376 = vmatprep.subr.mxu0 0.0
        %7377 = vmatpush1.msra.mxu0 %v6126
        %7378 = vmatprep.subr.mxu0 0.0
        %7379 = vmatpush1.msra.mxu0 %v6129
        %7380 = vmatprep.subr.mxu0 0.0
        %7381 = vmatpush1.msra.mxu0 %v6132
        %7382 = vmatprep.subr.mxu0 0.0
        %7383 = vmatpush1.msra.mxu0 %v6135
        %7384 = vmatprep.subr.mxu0 0.0
        %7385 = vmatpush1.msra.mxu0 %v6138
        %7386 = vmatprep.subr.mxu0 0.0
        %7387 = vmatpush1.msra.mxu0 %v6141
        %7388 = vmatprep.subr.mxu0 0.0
        %7389 = vmatpush1.msra.mxu0 %v6144
        %7390 = vmatprep.subr.mxu0 0.0
        %7391 = vmatpush1.msra.mxu0 %v6147
        %7392 = vmatprep.subr.mxu0 0.0
        %7393 = vmatpush1.msra.mxu0 %v6150
        %7394 = vmatprep.subr.mxu0 0.0
        %7395 = vmatpush1.msra.mxu0 %v6153
        %7396 = vmatprep.subr.mxu0 0.0
        %7397 = vmatpush1.msra.mxu0 %v6156
        %7398 = vmatprep.subr.mxu0 0.0
        %7399 = vmatpush1.msra.mxu0 %v6159
        %7400 = vmatprep.subr.mxu0 0.0
        %7401 = vmatpush1.msra.mxu0 %v6162
        %7402 = vmatprep.subr.mxu0 0.0
        %7403 = vmatpush1.msra.mxu0 %v6165
        %7404 = vmatprep.subr.mxu0 0.0
        %7405 = vmatpush1.msra.mxu0 %v6168
        %7406 = vmatprep.subr.mxu0 0.0
        %7407 = vmatpush1.msra.mxu0 %v6171
        %7408 = vmatprep.subr.mxu0 0.0
        %7409 = vmatpush1.msra.mxu0 %v6174
        %7410 = vmatprep.subr.mxu0 0.0
        %7411 = vmatpush1.msra.mxu0 %v6177
        %7412 = vmatprep.subr.mxu0 0.0
        %7413 = vmatpush1.msra.mxu0 %v6180
        %7414 = vmatprep.subr.mxu0 0.0
        %7415 = vmatpush1.msra.mxu0 %v6183
        %7416 = vmatprep.subr.mxu0 0.0
        %7417 = vmatpush1.msra.mxu0 %v6186
        %7418 = vmatprep.subr.mxu0 0.0
        %7419 = vmatpush1.msra.mxu0 %v6189
        %7420 = vmatprep.subr.mxu0 0.0
        %7421 = vmatpush1.msra.mxu0 %v6192
        %7422 = vmatprep.subr.mxu0 0.0
        %7423 = vmatpush1.msra.mxu0 %v6195
        %7424 = vmatprep.subr.mxu0 0.0
        %7425 = vmatpush1.msra.mxu0 %v6198
        %7426 = vmatprep.subr.mxu0 0.0
        %7427 = vmatpush1.msra.mxu0 %v6201
        %7428 = vmatprep.subr.mxu0 0.0
        %7429 = vmatpush1.msra.mxu0 %v6204
        %7430 = vmatprep.subr.mxu0 0.0
        %7431 = vmatpush1.msra.mxu0 %v6207
        %7432 = vmatprep.subr.mxu0 0.0
        %7433 = vmatpush1.msra.mxu0 %v6210
        %7434 = vmatprep.subr.mxu0 0.0
        %7435 = vmatpush1.msra.mxu0 %v6213
        %7436 = vmatprep.mubr.f32.mxu0 %v5429
        %7437 = vmatmul.mubr.f32.gmra.mrb[0].mxu0 %v5428
        %v7438 = vpop.f32.mrb[0].mxu0
        %v7439 = vadd.f32 %v7364, %v7438
        %v7440 = vpop.f32.mrb[0].mxu0
        %7441 = vmatprep.mubr.f32.mxu0 %v5445
        %7442 = vmatmul.mubr.f32.gmra.mrb[0].mxu0 %v5444
        %v7443 = vpop.f32.mrb[0].mxu0
        %v7444 = vadd.f32 %v7369, %v7443
        %v7445 = vpop.f32.mrb[0].mxu0
        %7446 = vdwg.mxu0
        %v7447 = vadd.f32 %v3324, %v6837
        %v7448 = vadd.f32 %v3325, %v6839
        %v7449 = vadd.f32 %v3326, %v7439
        %v7450 = vadd.f32 %v3327, %v6843
        %v7451 = vadd.f32 %v3328, %v6845
        %v7452 = vadd.f32 %v3329, %v7444
        %v7453 = vld [vmem:[%s657] sm:$0x7]
        %v7454 = vld [vmem:[%s661] sm:$0x7]
        %v7455 = vadd.f32 %v7447, %v7448
        %v7456 = vadd.f32 %v7455, %v7449
        %7457 = vadd.xlane.f32.xlu0 %v7456
        %v7458 = vpop.xlane.xlu0 %7457
        %v7459 = vadd.f32 %v7450, %v7451
        %v7460 = vadd.f32 %v7459, %v7452
        %7461 = vadd.xlane.f32.xlu0 %v7460
        %v7462 = vpop.xlane.xlu0 %7461
        %v7463 = vmul.f32 %v7458, 0.0033333334
        %v7464 = vmul.f32 %v7462, 0.0033333334
        %v7465 = vmul.f32 %v7447, %v7447
        %v7466 = vmul.f32 %v7448, %v7448
        %v7467 = vmul.f32 %v7449, %v7449
        %v7468 = vmul.f32 %v7450, %v7450
        %v7469 = vmul.f32 %v7451, %v7451
        %v7470 = vmul.f32 %v7452, %v7452
        %v7471 = vadd.f32 %v7465, %v7466
        %v7472 = vadd.f32 %v7471, %v7467
        %7473 = vadd.xlane.f32.xlu0 %v7472
        %v7474 = vpop.xlane.xlu0 %7473
        %v7475 = vadd.f32 %v7468, %v7469
        %v7476 = vadd.f32 %v7475, %v7470
        %7477 = vadd.xlane.f32.xlu0 %v7476
        %v7478 = vpop.xlane.xlu0 %7477
        %v7479 = vmul.f32 %v7474, 0.0033333334
        %v7480 = vmul.f32 %v7478, 0.0033333334
        %v7481 = vmul.f32 %v7463, %v7463
        %v7482 = vmul.f32 %v7464, %v7464
        %v7483 = vsub.f32 %v7479, %v7481
        %v7484 = vsub.f32 %v7480, %v7482
        %v7485 = vadd.f32 %v7483, 1e-05
        %v7486 = vadd.f32 %v7484, 1e-05
        %v7487 = vrsqrt.pop %v7485
        %v7488 = vrsqrt.pop %v7486
        %v7489 = vsub.f32 %v7447, %v7463
        %v7490 = vsub.f32 %v7448, %v7463
        %v7491 = vsub.f32 %v7449, %v7463
        %v7492 = vsub.f32 %v7450, %v7464
        %v7493 = vsub.f32 %v7451, %v7464
        %v7494 = vsub.f32 %v7452, %v7464
        %v7495 = vmul.f32 %v7489, %v7487
        %v7496 = vmul.f32 %v7490, %v7487
        %v7497 = vmul.f32 %v7491, %v7487
        %v7498 = vmul.f32 %v7492, %v7488
        %v7499 = vmul.f32 %v7493, %v7488
        %v7500 = vmul.f32 %v7494, %v7488
        %v7502 = vlaneseq
        %v7503 = vshrl.u32 %v7502, 7
        %v7504 = vsub.s32 0, %v7503
        %v7505 = vrot.slane %v7453, %v7504
        %v7506 = vlaneseq
        %v7507 = vshrl.u32 %v7506, 7
        %v7508 = vsub.s32 1, %v7507
        %v7509 = vrot.slane %v7453, %v7508
        %v7510 = vlaneseq
        %v7511 = vshrl.u32 %v7510, 7
        %v7512 = vsub.s32 2, %v7511
        %v7513 = vrot.slane %v7453, %v7512
        %v7517 = vmul.f32 %v7495, %v7505
        %v7518 = vmul.f32 %v7496, %v7509
        %v7519 = vmul.f32 %v7497, %v7513
        %v7520 = vmul.f32 %v7498, %v7505
        %v7521 = vmul.f32 %v7499, %v7509
        %v7522 = vmul.f32 %v7500, %v7513
        %v7524 = vlaneseq
        %v7525 = vshrl.u32 %v7524, 7
        %v7526 = vsub.s32 0, %v7525
        %v7527 = vrot.slane %v7454, %v7526
        %v7528 = vlaneseq
        %v7529 = vshrl.u32 %v7528, 7
        %v7530 = vsub.s32 1, %v7529
        %v7531 = vrot.slane %v7454, %v7530
        %v7532 = vlaneseq
        %v7533 = vshrl.u32 %v7532, 7
        %v7534 = vsub.s32 2, %v7533
        %v7535 = vrot.slane %v7454, %v7534
        %v7539 = vadd.f32 %v7517, %v7527
        %v7540 = vadd.f32 %v7518, %v7531
        %v7541 = vadd.f32 %v7519, %v7535
        %v7542 = vadd.f32 %v7520, %v7527
        %v7543 = vadd.f32 %v7521, %v7531
        %v7544 = vadd.f32 %v7522, %v7535
        %7545 = vst [vmem:[%s13] sm:$0xff] %v7539
        %7546 = vst [vmem:[%s13 + $0x8] sm:$0xff] %v7540
        %7547 = vst [vmem:[%s13 + $0x10] sm:$0xff] %v7541
        %7548 = vst [vmem:[%s13 + $0x18] sm:$0xff] %v7542
        %7549 = vst [vmem:[%s13 + $0x20] sm:$0xff] %v7543
        %7550 = vst [vmem:[%s13 + $0x28] sm:$0xff] %v7544
        // Predicated region
        $region85: #{encoder_forward.2} parent=71 // pred_check
          %p7551 = pneg %p376
        $region86: #{encoder_forward.2} parent=71 // pred_check_branch
          %7553 = sbr.rel (%p7551) target = $region88
        $region87: #{encoder_forward.2} parent=71 // pred_region
          _
        $region88: #{encoder_forward.2} parent=71 // pred_fallthru
          _
        // Predicated region
        $region89: #{encoder_forward.2} parent=71 // pred_check
          %p7554 = pneg %p376
        $region90: #{encoder_forward.2} parent=71 // pred_check_branch
          %7556 = sbr.rel (%p7554) target = $region92
        $region91: #{encoder_forward.2} parent=71 // pred_region
          _
        $region92: #{encoder_forward.2} parent=71 // pred_fallthru
          _
      $region72: #{encoder_forward.2} parent=5 // pred_fallthru
        _
      %p7557 = scmp.le.s32.totalorder 2, %s25
      // Predicated region
      $region93: #{encoder_forward.2} parent=5 // pred_check
        %p7558 = pneg %p7557
      $region94: #{encoder_forward.2} parent=5 // pred_check_branch
        %7560 = sbr.rel (%p7558) target = $region96
      $region95: #{encoder_forward.2} parent=5 // pred_region
        %s7561 = ssub.s32 %s25, 2
      $region96: #{encoder_forward.2} parent=5 // pred_fallthru
        _
    $region6: #{encoder_forward.2} parent=1 // loop_footer
      %s29 = sadd.s32 1, %s25
    $region7: #{encoder_forward.2} parent=1 // loop_footer_branch
      %24 = sbr.rel target = $region3
    $region8: #{encoder_forward.2} parent=1 // loop_exit
      _
    %7562 = vsyncpa [#allocation3], 1
    %s7563 = scalar_lea.sflag [#allocation3], 1
    %7564 = vsyncpa %s7563, 1
    %7565 = vsyncpa [#allocation5], 1
    %s7566 = scalar_lea.sflag [#allocation5], 1
    %7567 = vsyncpa %s7566, 1

</llo_original>
